<compile_context>
chip_gen: v6e
topology: v6e:2x2x1
jax: 0.10.0
libtpu: 0.0.40
codegen_flags: <defaults>
</compile_context>

<pallas_src>
import numpy as np
import jax
import jax.numpy as jnp
from jax import lax
from jax.experimental import pallas as pl
from jax.experimental.pallas import tpu as pltpu

# ---- FashionMNIST config: chan=1, in_dim=28, multiplier=2, out_dim=10 ----
N_BRANCH = 5
C_IN = 1
IN_DIM = 28
C1 = 16             # 8 * multiplier
C2 = 32             # 16 * multiplier
H1 = IN_DIM - 2     # 26
H2 = IN_DIM - 4     # 24
HP = H2 // 2        # 12
FLAT = C2 * HP * HP # 4608
HID = 128           # 64 * multiplier
OUT_PER = 2         # out_dim // 5
OUT = 10

W1_COLS = H1 * C1   # 416: conv1 lanes, index = x1*16 + co
W2_COLS = H2 * C2   # 768: conv2 lanes, [even-x half | odd-x half]
HALF = HP * C2      # 384: one pooled-x half, index = xp*32 + co


# ---------------------------------------------------------------------------
# Fused per-(branch, batch-tile) kernel:
#   conv1 -> relu -> conv2 -> relu -> maxpool -> fc1 -> relu -> fc2
# Activation layouts inside the kernel:
#   x      : (28, T, 28)            leading = image row, sublane = sample
#   h1     : (26*T, 416)            row = (y1, t), lane = x1*16 + co
#   h2     : (24*T, 768)            row = (y2, t), lane = [even-x | odd-x] blocks
#   pooled : (12, T, 384)           leading = pooled y, lane = xp*32 + co
# ---------------------------------------------------------------------------
def fused_branch_kernel(x_ref, w1_ref, b1_ref, w2_ref, b2_ref,
                        w3_ref, b3_ref, w4_ref, b4_ref, out_ref):
    t = x_ref.shape[1]
    x = x_ref[...]                                            # (28, T, 28)

    # ---- conv1 + bias + relu : 3 banded MXU matmuls (dy taps) ----
    h1 = jnp.dot(x[0:H1].reshape(H1 * t, IN_DIM), w1_ref[0, 0],
                 preferred_element_type=jnp.float32)
    for dy in range(1, 3):
        h1 = h1 + jnp.dot(x[dy:dy + H1].reshape(H1 * t, IN_DIM), w1_ref[0, dy],
                          preferred_element_type=jnp.float32)
    h1 = jnp.maximum(h1 + b1_ref[0], 0.0)                     # (26T, 416)
    h1 = h1.reshape(H1, t, W1_COLS)

    # ---- conv2 + bias + relu : 3 banded MXU matmuls (dy taps) ----
    h2 = jnp.dot(h1[0:H2].reshape(H2 * t, W1_COLS), w2_ref[0, 0],
                 preferred_element_type=jnp.float32)
    for dy in range(1, 3):
        h2 = h2 + jnp.dot(h1[dy:dy + H2].reshape(H2 * t, W1_COLS), w2_ref[0, dy],
                          preferred_element_type=jnp.float32)
    h2 = jnp.maximum(h2 + b2_ref[0], 0.0)                     # (24T, 768)

    # ---- maxpool 2x2: x-pairs = the two 384-lane halves (128-aligned slices),
    #                   y-pairs = adjacent row-slabs ----
    xp = jnp.maximum(h2[:, :HALF], h2[:, HALF:])              # (24T, 384)
    xp = xp.reshape(HP, 2, t, HALF)
    pooled = jnp.maximum(xp[:, 0], xp[:, 1])                  # (12, T, 384)

    # ---- fc1 + bias + relu : 12 K=384 MXU matmuls (one per pooled row) ----
    acc = jnp.dot(pooled[0], w3_ref[0, 0], preferred_element_type=jnp.float32)
    for yp in range(1, HP):
        acc = acc + jnp.dot(pooled[yp], w3_ref[0, yp],
                            preferred_element_type=jnp.float32)
    h3 = jnp.maximum(acc + b3_ref[0], 0.0)                    # (T, 128)

    # ---- fc2 ----
    out_ref[0] = jnp.dot(h3, w4_ref[0],
                         preferred_element_type=jnp.float32) + b4_ref[0]


# ---------------------------------------------------------------------------
# Host-side weight preparation: fold the 3x3 width taps, the HWC reordering
# and the pool-friendly even/odd column permutation into dense matrices.
# ---------------------------------------------------------------------------
def _build_kernel_params(params):
    f32 = jnp.float32

    # conv1 banded: W1b[b, dy, x1+dx, x1*16+co] = w1[b, co, 0, dy, dx]
    x1 = np.arange(H1)
    dxs = np.arange(3)
    co1 = np.arange(C1)
    r1 = np.broadcast_to(x1[:, None, None] + dxs[None, :, None], (H1, 3, C1))
    c1 = np.broadcast_to(x1[:, None, None] * C1 + co1[None, None, :], (H1, 3, C1))
    w1t = jnp.transpose(params["conv1_w"][:, :, 0, :, :], (0, 2, 3, 1))  # (B,dy,dx,co)
    v1 = jnp.broadcast_to(w1t[:, :, None, :, :], (N_BRANCH, 3, H1, 3, C1))
    W1b = jnp.zeros((N_BRANCH, 3, IN_DIM, W1_COLS), f32).at[:, :, r1, c1].set(v1)
    b1w = jnp.tile(params["conv1_b"], (1, H1))[:, None, :]               # (B,1,416)

    # conv2 banded + even/odd-x column split:
    #   W2b[b, dy, (x2+dx)*16+ci, (x2//2)*32+co + 384*(x2%2)] = w2[b, co, ci, dy, dx]
    x2 = np.arange(H2)
    ci = np.arange(C1)
    co2 = np.arange(C2)
    r2 = (x2[:, None, None, None] + dxs[None, :, None, None]) * C1 \
        + ci[None, None, :, None]
    c2 = (x2[:, None, None, None] // 2) * C2 + co2[None, None, None, :] \
        + (x2[:, None, None, None] % 2) * HALF
    r2 = np.broadcast_to(r2, (H2, 3, C1, C2))
    c2 = np.broadcast_to(c2, (H2, 3, C1, C2))
    w2t = jnp.transpose(params["conv2_w"], (0, 3, 4, 2, 1))              # (B,dy,dx,ci,co)
    v2 = jnp.broadcast_to(w2t[:, :, None, :, :, :], (N_BRANCH, 3, H2, 3, C1, C2))
    W2b = jnp.zeros((N_BRANCH, 3, W1_COLS, W2_COLS), f32).at[:, :, r2, c2].set(v2)
    b2w = jnp.tile(params["conv2_b"], (1, H2))[:, None, :]               # (B,1,768)

    # fc1: torch weight (HID, 4608) with CHW flatten (co, yp, xp) ->
    #      per-yp matrices (xp*32+co, HID) matching the pooled lane order.
    w3 = params["fc1_w"].reshape(N_BRANCH, HID, C2, HP, HP)              # (B,h,co,yp,xp)
    W3r = jnp.transpose(w3, (0, 3, 4, 2, 1)).reshape(N_BRANCH, HP, HALF, HID)
    b3 = params["fc1_b"][:, None, :]                                     # (B,1,128)
    W4 = jnp.transpose(params["fc2_w"], (0, 2, 1))                       # (B,128,2)
    b4 = params["fc2_b"][:, None, :]                                     # (B,1,2)
    return W1b, b1w, W2b, b2w, W3r, b3, W4, b4


def semantic_split_net_forward(x_nchw, params):
    n = x_nchw.shape[0]
    tile = 64 if n >= 64 else max(8, -(-n // 8) * 8)   # batch tile, multiple of 8
    n_pad = -(-n // tile) * tile
    num_tiles = n_pad // tile

    # (N,1,28,28) -> (28, N_pad, 28): image row leading, sample in sublanes.
    x = jnp.transpose(x_nchw[:, 0, :, :], (1, 0, 2)).astype(jnp.float32)
    if n_pad != n:
        x = jnp.pad(x, ((0, 0), (0, n_pad - n), (0, 0)))

    W1b, b1w, W2b, b2w, W3r, b3, W4, b4 = _build_kernel_params(params)

    branch_logits = pl.pallas_call(
        fused_branch_kernel,
        out_shape=jax.ShapeDtypeStruct((N_BRANCH, n_pad, OUT_PER), jnp.float32),
        # Branch OUTER so per-branch weights are DMA'd once and stay resident
        # across all batch tiles; batch tiles inner.
        grid=(N_BRANCH, num_tiles),
        in_specs=[
            pl.BlockSpec((IN_DIM, tile, IN_DIM), lambda b, i: (0, i, 0)),
            pl.BlockSpec((1, 3, IN_DIM, W1_COLS), lambda b, i: (b, 0, 0, 0)),
            pl.BlockSpec((1, 1, W1_COLS), lambda b, i: (b, 0, 0)),
            pl.BlockSpec((1, 3, W1_COLS, W2_COLS), lambda b, i: (b, 0, 0, 0)),
            pl.BlockSpec((1, 1, W2_COLS), lambda b, i: (b, 0, 0)),
            pl.BlockSpec((1, HP, HALF, HID), lambda b, i: (b, 0, 0, 0)),
            pl.BlockSpec((1, 1, HID), lambda b, i: (b, 0, 0)),
            pl.BlockSpec((1, HID, OUT_PER), lambda b, i: (b, 0, 0)),
            pl.BlockSpec((1, 1, OUT_PER), lambda b, i: (b, 0, 0)),
        ],
        out_specs=pl.BlockSpec((1, tile, OUT_PER), lambda b, i: (b, i, 0)),
        compiler_params=pltpu.CompilerParams(
            dimension_semantics=("parallel", "parallel"),
            vmem_limit_bytes=48 * 1024 * 1024),   # fits v7x's 64 MiB per TC
    )(x, W1b, b1w, W2b, b2w, W3r, b3, W4, b4)

    # torch.cat([...], dim=1) ordering, then log_softmax.  Left to XLA: a
    # dedicated pallas_call for an (n, 10) tensor is pure launch/DMA overhead.
    logits = jnp.transpose(branch_logits[:, :n, :], (1, 0, 2)).reshape(n, OUT)
    return jax.nn.log_softmax(logits, axis=-1)


# ---------------------------------------------------------------------------
# Deterministic parameter init (PyTorch-style uniform), PyTorch layouts,
# stacked over the 5 branches.
# ---------------------------------------------------------------------------
def init_params(key):
    ks = jax.random.split(key, 8)

    def u(k, shape, fan_in):
        bound = 1.0 / np.sqrt(fan_in)
        return jax.random.uniform(k, shape, jnp.float32, -bound, bound)

    return {
        "conv1_w": u(ks[0], (N_BRANCH, C1, C_IN, 3, 3), C_IN * 9),
        "conv1_b": u(ks[1], (N_BRANCH, C1), C_IN * 9),
        "conv2_w": u(ks[2], (N_BRANCH, C2, C1, 3, 3), C1 * 9),
        "conv2_b": u(ks[3], (N_BRANCH, C2), C1 * 9),
        "fc1_w": u(ks[4], (N_BRANCH, HID, FLAT), FLAT),
        "fc1_b": u(ks[5], (N_BRANCH, HID), FLAT),
        "fc2_w": u(ks[6], (N_BRANCH, OUT_PER, HID), HID),
        "fc2_b": u(ks[7], (N_BRANCH, OUT_PER), HID),
    }


# Pure-JAX reference (PyTorch semantics, NCHW) for validation.
def reference_forward(x_nchw, params):
    n = x_nchw.shape[0]
    outs = []
    for b in range(N_BRANCH):
        h = lax.conv_general_dilated(
            x_nchw, params["conv1_w"][b], (1, 1), "VALID",
            dimension_numbers=("NCHW", "OIHW", "NCHW"),
            precision=lax.Precision.HIGHEST)
        h = jnp.maximum(h + params["conv1_b"][b][None, :, None, None], 0.0)
        h = lax.conv_general_dilated(
            h, params["conv2_w"][b], (1, 1), "VALID",
            dimension_numbers=("NCHW", "OIHW", "NCHW"),
            precision=lax.Precision.HIGHEST)
        h = jnp.maximum(h + params["conv2_b"][b][None, :, None, None], 0.0)
        h = h.reshape(n, C2, HP, 2, HP, 2).max(axis=(3, 5))
        f = h.reshape(n, FLAT)                                  # CHW flatten
        h = jnp.maximum(
            jnp.dot(f, params["fc1_w"][b].T, precision=lax.Precision.HIGHEST)
            + params["fc1_b"][b], 0.0)
        outs.append(
            jnp.dot(h, params["fc2_w"][b].T, precision=lax.Precision.HIGHEST)
            + params["fc2_b"][b])
    return jax.nn.log_softmax(jnp.concatenate(outs, axis=1), axis=1)


if __name__ == "__main__":
    key = jax.random.PRNGKey(0)
    kp, kx = jax.random.split(key)
    params = init_params(kp)
    # batch=2, FashionMNIST-shaped input, NCHW like PyTorch
    x = jax.random.normal(kx, (2, C_IN, IN_DIM, IN_DIM), jnp.float32)

    fwd = jax.jit(semantic_split_net_forward)
    out = jax.block_until_ready(fwd(x, params))

    ref = reference_forward(x, params)
    if not jnp.allclose(out, ref, atol=5e-2, rtol=1e-2):
        raise AssertionError(
            f"mismatch vs reference, max abs diff = {float(jnp.max(jnp.abs(out - ref)))}")
    print("KERNEL_OK")
</pallas_src>

<mosaic_0001>
module attributes {stable_mosaic.version = 11 : i64} {
  func.func @fused_branch_kernel(%arg0: i32, %arg1: i32, %arg2: memref<28x8x28xf32, #tpu.memory_space<vmem>>, %arg3: memref<1x3x28x416xf32, #tpu.memory_space<vmem>>, %arg4: memref<1x1x416xf32, #tpu.memory_space<vmem>>, %arg5: memref<1x3x416x768xf32, #tpu.memory_space<vmem>>, %arg6: memref<1x1x768xf32, #tpu.memory_space<vmem>>, %arg7: memref<1x12x384x128xf32, #tpu.memory_space<vmem>>, %arg8: memref<1x1x128xf32, #tpu.memory_space<vmem>>, %arg9: memref<1x128x2xf32, #tpu.memory_space<vmem>>, %arg10: memref<1x1x2xf32, #tpu.memory_space<vmem>>, %arg11: memref<1x8x2xf32, #tpu.memory_space<vmem>>) attributes {dimension_semantics = [#tpu.dimension_semantics<parallel>, #tpu.dimension_semantics<parallel>], iteration_bounds = array<i64: 5, 1>, scalar_prefetch = 0 : i64, scratch_operands = 0 : i64, tpu.core_type = #tpu.core_type<tc>, window_params = [{transform_indices = @transform_0, window_bounds = array<i64: 28, 8, 28>}, {transform_indices = @transform_1, window_bounds = array<i64: 1, 3, 28, 416>}, {transform_indices = @transform_2, window_bounds = array<i64: 1, 1, 416>}, {transform_indices = @transform_3, window_bounds = array<i64: 1, 3, 416, 768>}, {transform_indices = @transform_4, window_bounds = array<i64: 1, 1, 768>}, {transform_indices = @transform_5, window_bounds = array<i64: 1, 12, 384, 128>}, {transform_indices = @transform_6, window_bounds = array<i64: 1, 1, 128>}, {transform_indices = @transform_7, window_bounds = array<i64: 1, 128, 2>}, {transform_indices = @transform_8, window_bounds = array<i64: 1, 1, 2>}, {transform_indices = @transform_9, window_bounds = array<i64: 1, 8, 2>}]} {
    %c0 = arith.constant 0 : index
    %c0_0 = arith.constant 0 : index
    %c0_1 = arith.constant 0 : index
    %0 = vector.load %arg2[%c0, %c0_0, %c0_1] : memref<28x8x28xf32, #tpu.memory_space<vmem>>, vector<28x8x28xf32>
    %1 = vector.extract_strided_slice %0 {offsets = [0, 0, 0], sizes = [26, 8, 28], strides = [1, 1, 1]} : vector<28x8x28xf32> to vector<26x8x28xf32>
    %2 = vector.shape_cast %1 : vector<26x8x28xf32> to vector<208x28xf32>
    %c0_2 = arith.constant 0 : index
    %c0_3 = arith.constant 0 : index
    %c0_4 = arith.constant 0 : index
    %c0_5 = arith.constant 0 : index
    %3 = vector.load %arg3[%c0_2, %c0_3, %c0_4, %c0_5] : memref<1x3x28x416xf32, #tpu.memory_space<vmem>>, vector<1x1x28x416xf32>
    %4 = vector.shape_cast %3 : vector<1x1x28x416xf32> to vector<28x416xf32>
    %cst = arith.constant dense<0.000000e+00> : vector<208x416xf32>
    %5 = tpu.matmul %2, %4, %cst {dimension_numbers = #tpu.dot_dimension_numbers<[1], [0], [0], [1], [0, 0, 1, 1], [], []>} : vector<208x28xf32>, vector<28x416xf32>, vector<208x416xf32> -> vector<208x416xf32>
    %6 = vector.extract_strided_slice %0 {offsets = [1, 0, 0], sizes = [26, 8, 28], strides = [1, 1, 1]} : vector<28x8x28xf32> to vector<26x8x28xf32>
    %7 = vector.shape_cast %6 : vector<26x8x28xf32> to vector<208x28xf32>
    %c0_6 = arith.constant 0 : index
    %c1 = arith.constant 1 : index
    %c0_7 = arith.constant 0 : index
    %c0_8 = arith.constant 0 : index
    %8 = vector.load %arg3[%c0_6, %c1, %c0_7, %c0_8] : memref<1x3x28x416xf32, #tpu.memory_space<vmem>>, vector<1x1x28x416xf32>
    %9 = vector.shape_cast %8 : vector<1x1x28x416xf32> to vector<28x416xf32>
    %cst_9 = arith.constant dense<0.000000e+00> : vector<208x416xf32>
    %10 = tpu.matmul %7, %9, %cst_9 {dimension_numbers = #tpu.dot_dimension_numbers<[1], [0], [0], [1], [0, 0, 1, 1], [], []>} : vector<208x28xf32>, vector<28x416xf32>, vector<208x416xf32> -> vector<208x416xf32>
    %11 = arith.addf %5, %10 : vector<208x416xf32>
    %12 = vector.extract_strided_slice %0 {offsets = [2, 0, 0], sizes = [26, 8, 28], strides = [1, 1, 1]} : vector<28x8x28xf32> to vector<26x8x28xf32>
    %13 = vector.shape_cast %12 : vector<26x8x28xf32> to vector<208x28xf32>
    %c0_10 = arith.constant 0 : index
    %c2 = arith.constant 2 : index
    %c0_11 = arith.constant 0 : index
    %c0_12 = arith.constant 0 : index
    %14 = vector.load %arg3[%c0_10, %c2, %c0_11, %c0_12] : memref<1x3x28x416xf32, #tpu.memory_space<vmem>>, vector<1x1x28x416xf32>
    %15 = vector.shape_cast %14 : vector<1x1x28x416xf32> to vector<28x416xf32>
    %cst_13 = arith.constant dense<0.000000e+00> : vector<208x416xf32>
    %16 = tpu.matmul %13, %15, %cst_13 {dimension_numbers = #tpu.dot_dimension_numbers<[1], [0], [0], [1], [0, 0, 1, 1], [], []>} : vector<208x28xf32>, vector<28x416xf32>, vector<208x416xf32> -> vector<208x416xf32>
    %17 = arith.addf %11, %16 : vector<208x416xf32>
    %c0_14 = arith.constant 0 : index
    %c0_15 = arith.constant 0 : index
    %c0_16 = arith.constant 0 : index
    %18 = vector.load %arg4[%c0_14, %c0_15, %c0_16] : memref<1x1x416xf32, #tpu.memory_space<vmem>>, vector<1x1x416xf32>
    %19 = vector.shape_cast %18 : vector<1x1x416xf32> to vector<1x416xf32>
    %20 = vector.broadcast %19 : vector<1x416xf32> to vector<208x416xf32>
    %21 = arith.addf %17, %20 : vector<208x416xf32>
    %cst_17 = arith.constant 0.000000e+00 : f32
    %22 = vector.broadcast %cst_17 : f32 to vector<208x416xf32>
    %23 = arith.maximumf %21, %22 : vector<208x416xf32>
    %24 = vector.shape_cast %23 : vector<208x416xf32> to vector<26x8x416xf32>
    %25 = vector.extract_strided_slice %24 {offsets = [0, 0, 0], sizes = [24, 8, 416], strides = [1, 1, 1]} : vector<26x8x416xf32> to vector<24x8x416xf32>
    %26 = vector.shape_cast %25 : vector<24x8x416xf32> to vector<192x416xf32>
    %c0_18 = arith.constant 0 : index
    %c0_19 = arith.constant 0 : index
    %c0_20 = arith.constant 0 : index
    %c0_21 = arith.constant 0 : index
    %27 = vector.load %arg5[%c0_18, %c0_19, %c0_20, %c0_21] : memref<1x3x416x768xf32, #tpu.memory_space<vmem>>, vector<1x1x416x768xf32>
    %28 = vector.shape_cast %27 : vector<1x1x416x768xf32> to vector<416x768xf32>
    %cst_22 = arith.constant dense<0.000000e+00> : vector<192x768xf32>
    %29 = tpu.matmul %26, %28, %cst_22 {dimension_numbers = #tpu.dot_dimension_numbers<[1], [0], [0], [1], [0, 0, 1, 1], [], []>} : vector<192x416xf32>, vector<416x768xf32>, vector<192x768xf32> -> vector<192x768xf32>
    %30 = vector.extract_strided_slice %24 {offsets = [1, 0, 0], sizes = [24, 8, 416], strides = [1, 1, 1]} : vector<26x8x416xf32> to vector<24x8x416xf32>
    %31 = vector.shape_cast %30 : vector<24x8x416xf32> to vector<192x416xf32>
    %c0_23 = arith.constant 0 : index
    %c1_24 = arith.constant 1 : index
    %c0_25 = arith.constant 0 : index
    %c0_26 = arith.constant 0 : index
    %32 = vector.load %arg5[%c0_23, %c1_24, %c0_25, %c0_26] : memref<1x3x416x768xf32, #tpu.memory_space<vmem>>, vector<1x1x416x768xf32>
    %33 = vector.shape_cast %32 : vector<1x1x416x768xf32> to vector<416x768xf32>
    %cst_27 = arith.constant dense<0.000000e+00> : vector<192x768xf32>
    %34 = tpu.matmul %31, %33, %cst_27 {dimension_numbers = #tpu.dot_dimension_numbers<[1], [0], [0], [1], [0, 0, 1, 1], [], []>} : vector<192x416xf32>, vector<416x768xf32>, vector<192x768xf32> -> vector<192x768xf32>
    %35 = arith.addf %29, %34 : vector<192x768xf32>
    %36 = vector.extract_strided_slice %24 {offsets = [2, 0, 0], sizes = [24, 8, 416], strides = [1, 1, 1]} : vector<26x8x416xf32> to vector<24x8x416xf32>
    %37 = vector.shape_cast %36 : vector<24x8x416xf32> to vector<192x416xf32>
    %c0_28 = arith.constant 0 : index
    %c2_29 = arith.constant 2 : index
    %c0_30 = arith.constant 0 : index
    %c0_31 = arith.constant 0 : index
    %38 = vector.load %arg5[%c0_28, %c2_29, %c0_30, %c0_31] : memref<1x3x416x768xf32, #tpu.memory_space<vmem>>, vector<1x1x416x768xf32>
    %39 = vector.shape_cast %38 : vector<1x1x416x768xf32> to vector<416x768xf32>
    %cst_32 = arith.constant dense<0.000000e+00> : vector<192x768xf32>
    %40 = tpu.matmul %37, %39, %cst_32 {dimension_numbers = #tpu.dot_dimension_numbers<[1], [0], [0], [1], [0, 0, 1, 1], [], []>} : vector<192x416xf32>, vector<416x768xf32>, vector<192x768xf32> -> vector<192x768xf32>
    %41 = arith.addf %35, %40 : vector<192x768xf32>
    %c0_33 = arith.constant 0 : index
    %c0_34 = arith.constant 0 : index
    %c0_35 = arith.constant 0 : index
    %42 = vector.load %arg6[%c0_33, %c0_34, %c0_35] : memref<1x1x768xf32, #tpu.memory_space<vmem>>, vector<1x1x768xf32>
    %43 = vector.shape_cast %42 : vector<1x1x768xf32> to vector<1x768xf32>
    %44 = vector.broadcast %43 : vector<1x768xf32> to vector<192x768xf32>
    %45 = arith.addf %41, %44 : vector<192x768xf32>
    %cst_36 = arith.constant 0.000000e+00 : f32
    %46 = vector.broadcast %cst_36 : f32 to vector<192x768xf32>
    %47 = arith.maximumf %45, %46 : vector<192x768xf32>
    %48 = vector.extract_strided_slice %47 {offsets = [0, 0], sizes = [192, 384], strides = [1, 1]} : vector<192x768xf32> to vector<192x384xf32>
    %49 = vector.extract_strided_slice %47 {offsets = [0, 384], sizes = [192, 384], strides = [1, 1]} : vector<192x768xf32> to vector<192x384xf32>
    %50 = arith.maximumf %48, %49 : vector<192x384xf32>
    %51 = vector.shape_cast %50 : vector<192x384xf32> to vector<12x2x8x384xf32>
    %52 = vector.extract_strided_slice %51 {offsets = [0, 0, 0, 0], sizes = [12, 1, 8, 384], strides = [1, 1, 1, 1]} : vector<12x2x8x384xf32> to vector<12x1x8x384xf32>
    %53 = vector.shape_cast %52 : vector<12x1x8x384xf32> to vector<12x8x384xf32>
    %54 = vector.extract_strided_slice %51 {offsets = [0, 1, 0, 0], sizes = [12, 1, 8, 384], strides = [1, 1, 1, 1]} : vector<12x2x8x384xf32> to vector<12x1x8x384xf32>
    %55 = vector.shape_cast %54 : vector<12x1x8x384xf32> to vector<12x8x384xf32>
    %56 = arith.maximumf %53, %55 : vector<12x8x384xf32>
    %57 = vector.extract_strided_slice %56 {offsets = [0, 0, 0], sizes = [1, 8, 384], strides = [1, 1, 1]} : vector<12x8x384xf32> to vector<1x8x384xf32>
    %58 = vector.shape_cast %57 : vector<1x8x384xf32> to vector<8x384xf32>
    %c0_37 = arith.constant 0 : index
    %c0_38 = arith.constant 0 : index
    %c0_39 = arith.constant 0 : index
    %c0_40 = arith.constant 0 : index
    %59 = vector.load %arg7[%c0_37, %c0_38, %c0_39, %c0_40] : memref<1x12x384x128xf32, #tpu.memory_space<vmem>>, vector<1x1x384x128xf32>
    %60 = vector.shape_cast %59 : vector<1x1x384x128xf32> to vector<384x128xf32>
    %cst_41 = arith.constant dense<0.000000e+00> : vector<8x128xf32>
    %61 = tpu.matmul %58, %60, %cst_41 {dimension_numbers = #tpu.dot_dimension_numbers<[1], [0], [0], [1], [0, 0, 1, 1], [], []>} : vector<8x384xf32>, vector<384x128xf32>, vector<8x128xf32> -> vector<8x128xf32>
    %62 = vector.extract_strided_slice %56 {offsets = [1, 0, 0], sizes = [1, 8, 384], strides = [1, 1, 1]} : vector<12x8x384xf32> to vector<1x8x384xf32>
    %63 = vector.shape_cast %62 : vector<1x8x384xf32> to vector<8x384xf32>
    %c0_42 = arith.constant 0 : index
    %c1_43 = arith.constant 1 : index
    %c0_44 = arith.constant 0 : index
    %c0_45 = arith.constant 0 : index
    %64 = vector.load %arg7[%c0_42, %c1_43, %c0_44, %c0_45] : memref<1x12x384x128xf32, #tpu.memory_space<vmem>>, vector<1x1x384x128xf32>
    %65 = vector.shape_cast %64 : vector<1x1x384x128xf32> to vector<384x128xf32>
    %cst_46 = arith.constant dense<0.000000e+00> : vector<8x128xf32>
    %66 = tpu.matmul %63, %65, %cst_46 {dimension_numbers = #tpu.dot_dimension_numbers<[1], [0], [0], [1], [0, 0, 1, 1], [], []>} : vector<8x384xf32>, vector<384x128xf32>, vector<8x128xf32> -> vector<8x128xf32>
    %67 = arith.addf %61, %66 : vector<8x128xf32>
    %68 = vector.extract_strided_slice %56 {offsets = [2, 0, 0], sizes = [1, 8, 384], strides = [1, 1, 1]} : vector<12x8x384xf32> to vector<1x8x384xf32>
    %69 = vector.shape_cast %68 : vector<1x8x384xf32> to vector<8x384xf32>
    %c0_47 = arith.constant 0 : index
    %c2_48 = arith.constant 2 : index
    %c0_49 = arith.constant 0 : index
    %c0_50 = arith.constant 0 : index
    %70 = vector.load %arg7[%c0_47, %c2_48, %c0_49, %c0_50] : memref<1x12x384x128xf32, #tpu.memory_space<vmem>>, vector<1x1x384x128xf32>
    %71 = vector.shape_cast %70 : vector<1x1x384x128xf32> to vector<384x128xf32>
    %cst_51 = arith.constant dense<0.000000e+00> : vector<8x128xf32>
    %72 = tpu.matmul %69, %71, %cst_51 {dimension_numbers = #tpu.dot_dimension_numbers<[1], [0], [0], [1], [0, 0, 1, 1], [], []>} : vector<8x384xf32>, vector<384x128xf32>, vector<8x128xf32> -> vector<8x128xf32>
    %73 = arith.addf %67, %72 : vector<8x128xf32>
    %74 = vector.extract_strided_slice %56 {offsets = [3, 0, 0], sizes = [1, 8, 384], strides = [1, 1, 1]} : vector<12x8x384xf32> to vector<1x8x384xf32>
    %75 = vector.shape_cast %74 : vector<1x8x384xf32> to vector<8x384xf32>
    %c0_52 = arith.constant 0 : index
    %c3 = arith.constant 3 : index
    %c0_53 = arith.constant 0 : index
    %c0_54 = arith.constant 0 : index
    %76 = vector.load %arg7[%c0_52, %c3, %c0_53, %c0_54] : memref<1x12x384x128xf32, #tpu.memory_space<vmem>>, vector<1x1x384x128xf32>
    %77 = vector.shape_cast %76 : vector<1x1x384x128xf32> to vector<384x128xf32>
    %cst_55 = arith.constant dense<0.000000e+00> : vector<8x128xf32>
    %78 = tpu.matmul %75, %77, %cst_55 {dimension_numbers = #tpu.dot_dimension_numbers<[1], [0], [0], [1], [0, 0, 1, 1], [], []>} : vector<8x384xf32>, vector<384x128xf32>, vector<8x128xf32> -> vector<8x128xf32>
    %79 = arith.addf %73, %78 : vector<8x128xf32>
    %80 = vector.extract_strided_slice %56 {offsets = [4, 0, 0], sizes = [1, 8, 384], strides = [1, 1, 1]} : vector<12x8x384xf32> to vector<1x8x384xf32>
    %81 = vector.shape_cast %80 : vector<1x8x384xf32> to vector<8x384xf32>
    %c0_56 = arith.constant 0 : index
    %c4 = arith.constant 4 : index
    %c0_57 = arith.constant 0 : index
    %c0_58 = arith.constant 0 : index
    %82 = vector.load %arg7[%c0_56, %c4, %c0_57, %c0_58] : memref<1x12x384x128xf32, #tpu.memory_space<vmem>>, vector<1x1x384x128xf32>
    %83 = vector.shape_cast %82 : vector<1x1x384x128xf32> to vector<384x128xf32>
    %cst_59 = arith.constant dense<0.000000e+00> : vector<8x128xf32>
    %84 = tpu.matmul %81, %83, %cst_59 {dimension_numbers = #tpu.dot_dimension_numbers<[1], [0], [0], [1], [0, 0, 1, 1], [], []>} : vector<8x384xf32>, vector<384x128xf32>, vector<8x128xf32> -> vector<8x128xf32>
    %85 = arith.addf %79, %84 : vector<8x128xf32>
    %86 = vector.extract_strided_slice %56 {offsets = [5, 0, 0], sizes = [1, 8, 384], strides = [1, 1, 1]} : vector<12x8x384xf32> to vector<1x8x384xf32>
    %87 = vector.shape_cast %86 : vector<1x8x384xf32> to vector<8x384xf32>
    %c0_60 = arith.constant 0 : index
    %c5 = arith.constant 5 : index
    %c0_61 = arith.constant 0 : index
    %c0_62 = arith.constant 0 : index
    %88 = vector.load %arg7[%c0_60, %c5, %c0_61, %c0_62] : memref<1x12x384x128xf32, #tpu.memory_space<vmem>>, vector<1x1x384x128xf32>
    %89 = vector.shape_cast %88 : vector<1x1x384x128xf32> to vector<384x128xf32>
    %cst_63 = arith.constant dense<0.000000e+00> : vector<8x128xf32>
    %90 = tpu.matmul %87, %89, %cst_63 {dimension_numbers = #tpu.dot_dimension_numbers<[1], [0], [0], [1], [0, 0, 1, 1], [], []>} : vector<8x384xf32>, vector<384x128xf32>, vector<8x128xf32> -> vector<8x128xf32>
    %91 = arith.addf %85, %90 : vector<8x128xf32>
    %92 = vector.extract_strided_slice %56 {offsets = [6, 0, 0], sizes = [1, 8, 384], strides = [1, 1, 1]} : vector<12x8x384xf32> to vector<1x8x384xf32>
    %93 = vector.shape_cast %92 : vector<1x8x384xf32> to vector<8x384xf32>
    %c0_64 = arith.constant 0 : index
    %c6 = arith.constant 6 : index
    %c0_65 = arith.constant 0 : index
    %c0_66 = arith.constant 0 : index
    %94 = vector.load %arg7[%c0_64, %c6, %c0_65, %c0_66] : memref<1x12x384x128xf32, #tpu.memory_space<vmem>>, vector<1x1x384x128xf32>
    %95 = vector.shape_cast %94 : vector<1x1x384x128xf32> to vector<384x128xf32>
    %cst_67 = arith.constant dense<0.000000e+00> : vector<8x128xf32>
    %96 = tpu.matmul %93, %95, %cst_67 {dimension_numbers = #tpu.dot_dimension_numbers<[1], [0], [0], [1], [0, 0, 1, 1], [], []>} : vector<8x384xf32>, vector<384x128xf32>, vector<8x128xf32> -> vector<8x128xf32>
    %97 = arith.addf %91, %96 : vector<8x128xf32>
    %98 = vector.extract_strided_slice %56 {offsets = [7, 0, 0], sizes = [1, 8, 384], strides = [1, 1, 1]} : vector<12x8x384xf32> to vector<1x8x384xf32>
    %99 = vector.shape_cast %98 : vector<1x8x384xf32> to vector<8x384xf32>
    %c0_68 = arith.constant 0 : index
    %c7 = arith.constant 7 : index
    %c0_69 = arith.constant 0 : index
    %c0_70 = arith.constant 0 : index
    %100 = vector.load %arg7[%c0_68, %c7, %c0_69, %c0_70] : memref<1x12x384x128xf32, #tpu.memory_space<vmem>>, vector<1x1x384x128xf32>
    %101 = vector.shape_cast %100 : vector<1x1x384x128xf32> to vector<384x128xf32>
    %cst_71 = arith.constant dense<0.000000e+00> : vector<8x128xf32>
    %102 = tpu.matmul %99, %101, %cst_71 {dimension_numbers = #tpu.dot_dimension_numbers<[1], [0], [0], [1], [0, 0, 1, 1], [], []>} : vector<8x384xf32>, vector<384x128xf32>, vector<8x128xf32> -> vector<8x128xf32>
    %103 = arith.addf %97, %102 : vector<8x128xf32>
    %104 = vector.extract_strided_slice %56 {offsets = [8, 0, 0], sizes = [1, 8, 384], strides = [1, 1, 1]} : vector<12x8x384xf32> to vector<1x8x384xf32>
    %105 = vector.shape_cast %104 : vector<1x8x384xf32> to vector<8x384xf32>
    %c0_72 = arith.constant 0 : index
    %c8 = arith.constant 8 : index
    %c0_73 = arith.constant 0 : index
    %c0_74 = arith.constant 0 : index
    %106 = vector.load %arg7[%c0_72, %c8, %c0_73, %c0_74] : memref<1x12x384x128xf32, #tpu.memory_space<vmem>>, vector<1x1x384x128xf32>
    %107 = vector.shape_cast %106 : vector<1x1x384x128xf32> to vector<384x128xf32>
    %cst_75 = arith.constant dense<0.000000e+00> : vector<8x128xf32>
    %108 = tpu.matmul %105, %107, %cst_75 {dimension_numbers = #tpu.dot_dimension_numbers<[1], [0], [0], [1], [0, 0, 1, 1], [], []>} : vector<8x384xf32>, vector<384x128xf32>, vector<8x128xf32> -> vector<8x128xf32>
    %109 = arith.addf %103, %108 : vector<8x128xf32>
    %110 = vector.extract_strided_slice %56 {offsets = [9, 0, 0], sizes = [1, 8, 384], strides = [1, 1, 1]} : vector<12x8x384xf32> to vector<1x8x384xf32>
    %111 = vector.shape_cast %110 : vector<1x8x384xf32> to vector<8x384xf32>
    %c0_76 = arith.constant 0 : index
    %c9 = arith.constant 9 : index
    %c0_77 = arith.constant 0 : index
    %c0_78 = arith.constant 0 : index
    %112 = vector.load %arg7[%c0_76, %c9, %c0_77, %c0_78] : memref<1x12x384x128xf32, #tpu.memory_space<vmem>>, vector<1x1x384x128xf32>
    %113 = vector.shape_cast %112 : vector<1x1x384x128xf32> to vector<384x128xf32>
    %cst_79 = arith.constant dense<0.000000e+00> : vector<8x128xf32>
    %114 = tpu.matmul %111, %113, %cst_79 {dimension_numbers = #tpu.dot_dimension_numbers<[1], [0], [0], [1], [0, 0, 1, 1], [], []>} : vector<8x384xf32>, vector<384x128xf32>, vector<8x128xf32> -> vector<8x128xf32>
    %115 = arith.addf %109, %114 : vector<8x128xf32>
    %116 = vector.extract_strided_slice %56 {offsets = [10, 0, 0], sizes = [1, 8, 384], strides = [1, 1, 1]} : vector<12x8x384xf32> to vector<1x8x384xf32>
    %117 = vector.shape_cast %116 : vector<1x8x384xf32> to vector<8x384xf32>
    %c0_80 = arith.constant 0 : index
    %c10 = arith.constant 10 : index
    %c0_81 = arith.constant 0 : index
    %c0_82 = arith.constant 0 : index
    %118 = vector.load %arg7[%c0_80, %c10, %c0_81, %c0_82] : memref<1x12x384x128xf32, #tpu.memory_space<vmem>>, vector<1x1x384x128xf32>
    %119 = vector.shape_cast %118 : vector<1x1x384x128xf32> to vector<384x128xf32>
    %cst_83 = arith.constant dense<0.000000e+00> : vector<8x128xf32>
    %120 = tpu.matmul %117, %119, %cst_83 {dimension_numbers = #tpu.dot_dimension_numbers<[1], [0], [0], [1], [0, 0, 1, 1], [], []>} : vector<8x384xf32>, vector<384x128xf32>, vector<8x128xf32> -> vector<8x128xf32>
    %121 = arith.addf %115, %120 : vector<8x128xf32>
    %122 = vector.extract_strided_slice %56 {offsets = [11, 0, 0], sizes = [1, 8, 384], strides = [1, 1, 1]} : vector<12x8x384xf32> to vector<1x8x384xf32>
    %123 = vector.shape_cast %122 : vector<1x8x384xf32> to vector<8x384xf32>
    %c0_84 = arith.constant 0 : index
    %c11 = arith.constant 11 : index
    %c0_85 = arith.constant 0 : index
    %c0_86 = arith.constant 0 : index
    %124 = vector.load %arg7[%c0_84, %c11, %c0_85, %c0_86] : memref<1x12x384x128xf32, #tpu.memory_space<vmem>>, vector<1x1x384x128xf32>
    %125 = vector.shape_cast %124 : vector<1x1x384x128xf32> to vector<384x128xf32>
    %cst_87 = arith.constant dense<0.000000e+00> : vector<8x128xf32>
    %126 = tpu.matmul %123, %125, %cst_87 {dimension_numbers = #tpu.dot_dimension_numbers<[1], [0], [0], [1], [0, 0, 1, 1], [], []>} : vector<8x384xf32>, vector<384x128xf32>, vector<8x128xf32> -> vector<8x128xf32>
    %127 = arith.addf %121, %126 : vector<8x128xf32>
    %c0_88 = arith.constant 0 : index
    %c0_89 = arith.constant 0 : index
    %c0_90 = arith.constant 0 : index
    %128 = vector.load %arg8[%c0_88, %c0_89, %c0_90] : memref<1x1x128xf32, #tpu.memory_space<vmem>>, vector<1x1x128xf32>
    %129 = vector.shape_cast %128 : vector<1x1x128xf32> to vector<1x128xf32>
    %130 = vector.broadcast %129 : vector<1x128xf32> to vector<8x128xf32>
    %131 = arith.addf %127, %130 : vector<8x128xf32>
    %cst_91 = arith.constant 0.000000e+00 : f32
    %132 = vector.broadcast %cst_91 : f32 to vector<8x128xf32>
    %133 = arith.maximumf %131, %132 : vector<8x128xf32>
    %c0_92 = arith.constant 0 : index
    %c0_93 = arith.constant 0 : index
    %c0_94 = arith.constant 0 : index
    %134 = vector.load %arg9[%c0_92, %c0_93, %c0_94] : memref<1x128x2xf32, #tpu.memory_space<vmem>>, vector<1x128x2xf32>
    %135 = vector.shape_cast %134 : vector<1x128x2xf32> to vector<128x2xf32>
    %cst_95 = arith.constant dense<0.000000e+00> : vector<8x2xf32>
    %136 = tpu.matmul %133, %135, %cst_95 {dimension_numbers = #tpu.dot_dimension_numbers<[1], [0], [0], [1], [0, 0, 1, 1], [], []>} : vector<8x128xf32>, vector<128x2xf32>, vector<8x2xf32> -> vector<8x2xf32>
    %c0_96 = arith.constant 0 : index
    %c0_97 = arith.constant 0 : index
    %c0_98 = arith.constant 0 : index
    %137 = vector.load %arg10[%c0_96, %c0_97, %c0_98] : memref<1x1x2xf32, #tpu.memory_space<vmem>>, vector<1x1x2xf32>
    %138 = vector.shape_cast %137 : vector<1x1x2xf32> to vector<1x2xf32>
    %139 = vector.broadcast %138 : vector<1x2xf32> to vector<8x2xf32>
    %140 = arith.addf %136, %139 : vector<8x2xf32>
    %c0_99 = arith.constant 0 : index
    %c0_100 = arith.constant 0 : index
    %c0_101 = arith.constant 0 : index
    %141 = vector.load %arg11[%c0_99, %c0_100, %c0_101] : memref<1x8x2xf32, #tpu.memory_space<vmem>>, vector<1x8x2xf32>
    %142 = vector.shape_cast %141 : vector<1x8x2xf32> to vector<8x2xf32>
    %143 = vector.shape_cast %140 : vector<8x2xf32> to vector<1x8x2xf32>
    tpu.vector_store %arg11[%c0_99, %c0_100, %c0_101], %143 {strides = array<i32>} : memref<1x8x2xf32, #tpu.memory_space<vmem>>, vector<1x8x2xf32>,
    return
  }
  func.func @transform_0(%arg0: i32, %arg1: i32) -> (i32, i32, i32) {
    %c0_i32 = arith.constant 0 : i32
    %c0_i32_0 = arith.constant 0 : i32
    %c0_i32_1 = arith.constant 0 : i32
    return %c0_i32, %arg1, %c0_i32_0 : i32, i32, i32
  }
  func.func @transform_1(%arg0: i32, %arg1: i32) -> (i32, i32, i32, i32) {
    %c0_i32 = arith.constant 0 : i32
    %c0_i32_0 = arith.constant 0 : i32
    %c0_i32_1 = arith.constant 0 : i32
    %c0_i32_2 = arith.constant 0 : i32
    return %arg0, %c0_i32, %c0_i32_0, %c0_i32_1 : i32, i32, i32, i32
  }
  func.func @transform_2(%arg0: i32, %arg1: i32) -> (i32, i32, i32) {
    %c0_i32 = arith.constant 0 : i32
    %c0_i32_0 = arith.constant 0 : i32
    %c0_i32_1 = arith.constant 0 : i32
    return %arg0, %c0_i32, %c0_i32_0 : i32, i32, i32
  }
  func.func @transform_3(%arg0: i32, %arg1: i32) -> (i32, i32, i32, i32) {
    %c0_i32 = arith.constant 0 : i32
    %c0_i32_0 = arith.constant 0 : i32
    %c0_i32_1 = arith.constant 0 : i32
    %c0_i32_2 = arith.constant 0 : i32
    return %arg0, %c0_i32, %c0_i32_0, %c0_i32_1 : i32, i32, i32, i32
  }
  func.func @transform_4(%arg0: i32, %arg1: i32) -> (i32, i32, i32) {
    %c0_i32 = arith.constant 0 : i32
    %c0_i32_0 = arith.constant 0 : i32
    %c0_i32_1 = arith.constant 0 : i32
    return %arg0, %c0_i32, %c0_i32_0 : i32, i32, i32
  }
  func.func @transform_5(%arg0: i32, %arg1: i32) -> (i32, i32, i32, i32) {
    %c0_i32 = arith.constant 0 : i32
    %c0_i32_0 = arith.constant 0 : i32
    %c0_i32_1 = arith.constant 0 : i32
    %c0_i32_2 = arith.constant 0 : i32
    return %arg0, %c0_i32, %c0_i32_0, %c0_i32_1 : i32, i32, i32, i32
  }
  func.func @transform_6(%arg0: i32, %arg1: i32) -> (i32, i32, i32) {
    %c0_i32 = arith.constant 0 : i32
    %c0_i32_0 = arith.constant 0 : i32
    %c0_i32_1 = arith.constant 0 : i32
    return %arg0, %c0_i32, %c0_i32_0 : i32, i32, i32
  }
  func.func @transform_7(%arg0: i32, %arg1: i32) -> (i32, i32, i32) {
    %c0_i32 = arith.constant 0 : i32
    %c0_i32_0 = arith.constant 0 : i32
    %c0_i32_1 = arith.constant 0 : i32
    return %arg0, %c0_i32, %c0_i32_0 : i32, i32, i32
  }
  func.func @transform_8(%arg0: i32, %arg1: i32) -> (i32, i32, i32) {
    %c0_i32 = arith.constant 0 : i32
    %c0_i32_0 = arith.constant 0 : i32
    %c0_i32_1 = arith.constant 0 : i32
    return %arg0, %c0_i32, %c0_i32_0 : i32, i32, i32
  }
  func.func @transform_9(%arg0: i32, %arg1: i32) -> (i32, i32, i32) {
    %c0_i32 = arith.constant 0 : i32
    %c0_i32_0 = arith.constant 0 : i32
    return %arg0, %arg1, %c0_i32 : i32, i32, i32
  }
}

</mosaic_0001>

<llo_original>
// kernel: semantic_split_net_forward.1
$region0: #{semantic_split_net_forward.1}
  #allocation0 [shape = 'u32[]', space=smem, size = 0x4, offset = 0x4, fixed_abs, tag = 'smem constant byte address 0x4 - core index']
  #allocation1 [shape = 'u32[144,128]{1,0:T(1,128)}', space=vmem, size = 0x12000, scoped, tag = 'internal scratch']
  %s0 = inlined_call_operand.vmem [shape: f32[28,8,28], index: 0, kind: input, shape index: {}]
  %s1 = inlined_call_operand.vmem [shape: f32[5,3,28,416], index: 1, kind: input, shape index: {}]
  %s2 = inlined_call_operand.vmem [shape: f32[5,1,416], index: 2, kind: input, shape index: {}]
  %s3 = inlined_call_operand.vmem [shape: f32[5,3,416,768], index: 3, kind: input, shape index: {}]
  %s4 = inlined_call_operand.vmem [shape: f32[5,1,768], index: 4, kind: input, shape index: {}]
  %s5 = inlined_call_operand.vmem [shape: f32[5,12,384,128], index: 5, kind: input, shape index: {}]
  %s6 = inlined_call_operand.vmem [shape: f32[5,1,128], index: 6, kind: input, shape index: {}]
  %s7 = inlined_call_operand.vmem [shape: f32[5,128,2], index: 7, kind: input, shape index: {}]
  %s8 = inlined_call_operand.vmem [shape: f32[5,1,2], index: 8, kind: input, shape index: {}]
  %s9 = inlined_call_operand.vmem [shape: f32[5,8,2], index: 9, kind: output, shape index: {}]
  %s10 = sld [smem:[#allocation0]]
  $region69: #{semantic_split_net_forward.1} parent=0
    _
  %s12 = ssub.s32 1, %s10
  %s13 = scalar_select 0, %s12, %s10
  loop: start=0, step=1, limit=7
  $region2: #{semantic_split_net_forward.1} parent=0 // loop_pre_header
    _
  $region3: #{semantic_split_net_forward.1} parent=0 // loop_header
    %s15 = sphi 0, %s19
    %p16 = scmp.ge.s32.totalorder %s15, 7
    %s22 = sphi 0, %s34
    %s23 = sphi 0, %s30
    %s24 = sphi 0, %s22
    %s25 = sphi 0, %s23
    %s26 = sphi 0, %s24
    %s27 = sphi 0, %s25
    %s37 = sphi 0, %s39
    %s40 = sphi 0, %s37
    %s41 = sphi 0, %s40
    %s57 = sphi 0, %s41
    %s63 = sphi 0, %s65
    %s66 = sphi 0, %s63
    %s67 = sphi 0, %s66
    %s83 = sphi 0, %s67
    %s89 = sphi 0, %s91
    %s92 = sphi 0, %s89
    %s93 = sphi 0, %s92
    %s109 = sphi 0, %s93
    %s115 = sphi 0, %s117
    %s118 = sphi 0, %s115
    %s119 = sphi 0, %s118
    %s135 = sphi 0, %s119
    %s141 = sphi 0, %s143
    %s144 = sphi 0, %s141
    %s145 = sphi 0, %s144
    %s161 = sphi 0, %s145
    %s167 = sphi 0, %s169
    %s170 = sphi 0, %s167
    %s171 = sphi 0, %s170
    %s187 = sphi 0, %s171
    %s193 = sphi 0, %s195
    %s196 = sphi 0, %s193
    %s197 = sphi 0, %s196
    %s213 = sphi 0, %s197
    %s219 = sphi 0, %s221
    %s222 = sphi 0, %s219
    %s223 = sphi 0, %s222
    %s239 = sphi 0, %s223
    %s245 = sphi 0, %s247
    %s248 = sphi 0, %s245
    %s249 = sphi 0, %s248
    %s265 = sphi 0, %s249
    %s273 = sphi 0, %s275
    %s276 = sphi 0, %s273
    %s277 = sphi 0, %s276
    %s293 = sphi 0, %s277
  $region4: #{semantic_split_net_forward.1} parent=0 // loop_header_branch
    %18 = sbr.rel (%p16) target = $region8
  $region5: #{semantic_split_net_forward.1} parent=0 // loop_body
    %s20 = ssub.s32 %s15, 1
    %s21 = ssub.s32 %s15, 2
    %s28 = sadd.s32 1, %s23
    %p29 = scmp.ge.s32.totalorder %s28, 1
    %s30 = scalar_select %p29, 0, %s28
    %s31 = sadd.s32 1, %s22
    %s32 = scalar_select %p29, %s31, %s22
    %p33 = scmp.ge.s32.totalorder %s32, 5
    %s34 = scalar_select %p33, 0, %s32
    %s35 = ssub.s32 %s23, %s30
    %p36 = scmp.eq.s32.totalorder %s35, 0
    %s38 = sadd.s32 %s37, 1
    %s39 = scalar_select %p36, %s37, %s38
    %p42 = pneg %p36
    %p43 = scmp.eq.s32.totalorder %s15, 4
    %p44 = por %p42, %p43
    %p45 = scmp.ne.s32.totalorder %s37, %s40
    %p46 = scmp.eq.s32.totalorder %s15, 0
    %p47 = por %p45, %p46
    %p48 = scmp.ne.s32.totalorder %s37, %s40
    %p49 = scmp.eq.s32.totalorder %s20, 4
    %p50 = por %p48, %p49
    %p51 = scmp.ne.s32.totalorder %s40, %s41
    %p52 = scmp.eq.s32.totalorder %s20, 0
    %p53 = por %p51, %p52
    %p54 = scmp.ne.s32.totalorder %s40, %s41
    %p55 = scmp.eq.s32.totalorder %s21, 4
    %p56 = por %p54, %p55
    %p58 = scmp.ne.s32.totalorder %s41, %s57
    %p59 = scmp.eq.s32.totalorder %s21, 0
    %p60 = por %p58, %p59
    %s61 = ssub.s32 %s22, %s34
    %p62 = scmp.eq.s32.totalorder %s61, 0
    %s64 = sadd.s32 %s63, 1
    %s65 = scalar_select %p62, %s63, %s64
    %p68 = pneg %p62
    %p69 = scmp.eq.s32.totalorder %s15, 4
    %p70 = por %p68, %p69
    %p71 = scmp.ne.s32.totalorder %s63, %s66
    %p72 = scmp.eq.s32.totalorder %s15, 0
    %p73 = por %p71, %p72
    %p74 = scmp.ne.s32.totalorder %s63, %s66
    %p75 = scmp.eq.s32.totalorder %s20, 4
    %p76 = por %p74, %p75
    %p77 = scmp.ne.s32.totalorder %s66, %s67
    %p78 = scmp.eq.s32.totalorder %s20, 0
    %p79 = por %p77, %p78
    %p80 = scmp.ne.s32.totalorder %s66, %s67
    %p81 = scmp.eq.s32.totalorder %s21, 4
    %p82 = por %p80, %p81
    %p84 = scmp.ne.s32.totalorder %s67, %s83
    %p85 = scmp.eq.s32.totalorder %s21, 0
    %p86 = por %p84, %p85
    %s87 = ssub.s32 %s22, %s34
    %p88 = scmp.eq.s32.totalorder %s87, 0
    %s90 = sadd.s32 %s89, 1
    %s91 = scalar_select %p88, %s89, %s90
    %p94 = pneg %p88
    %p95 = scmp.eq.s32.totalorder %s15, 4
    %p96 = por %p94, %p95
    %p97 = scmp.ne.s32.totalorder %s89, %s92
    %p98 = scmp.eq.s32.totalorder %s15, 0
    %p99 = por %p97, %p98
    %p100 = scmp.ne.s32.totalorder %s89, %s92
    %p101 = scmp.eq.s32.totalorder %s20, 4
    %p102 = por %p100, %p101
    %p103 = scmp.ne.s32.totalorder %s92, %s93
    %p104 = scmp.eq.s32.totalorder %s20, 0
    %p105 = por %p103, %p104
    %p106 = scmp.ne.s32.totalorder %s92, %s93
    %p107 = scmp.eq.s32.totalorder %s21, 4
    %p108 = por %p106, %p107
    %p110 = scmp.ne.s32.totalorder %s93, %s109
    %p111 = scmp.eq.s32.totalorder %s21, 0
    %p112 = por %p110, %p111
    %s113 = ssub.s32 %s22, %s34
    %p114 = scmp.eq.s32.totalorder %s113, 0
    %s116 = sadd.s32 %s115, 1
    %s117 = scalar_select %p114, %s115, %s116
    %p120 = pneg %p114
    %p121 = scmp.eq.s32.totalorder %s15, 4
    %p122 = por %p120, %p121
    %p123 = scmp.ne.s32.totalorder %s115, %s118
    %p124 = scmp.eq.s32.totalorder %s15, 0
    %p125 = por %p123, %p124
    %p126 = scmp.ne.s32.totalorder %s115, %s118
    %p127 = scmp.eq.s32.totalorder %s20, 4
    %p128 = por %p126, %p127
    %p129 = scmp.ne.s32.totalorder %s118, %s119
    %p130 = scmp.eq.s32.totalorder %s20, 0
    %p131 = por %p129, %p130
    %p132 = scmp.ne.s32.totalorder %s118, %s119
    %p133 = scmp.eq.s32.totalorder %s21, 4
    %p134 = por %p132, %p133
    %p136 = scmp.ne.s32.totalorder %s119, %s135
    %p137 = scmp.eq.s32.totalorder %s21, 0
    %p138 = por %p136, %p137
    %s139 = ssub.s32 %s22, %s34
    %p140 = scmp.eq.s32.totalorder %s139, 0
    %s142 = sadd.s32 %s141, 1
    %s143 = scalar_select %p140, %s141, %s142
    %p146 = pneg %p140
    %p147 = scmp.eq.s32.totalorder %s15, 4
    %p148 = por %p146, %p147
    %p149 = scmp.ne.s32.totalorder %s141, %s144
    %p150 = scmp.eq.s32.totalorder %s15, 0
    %p151 = por %p149, %p150
    %p152 = scmp.ne.s32.totalorder %s141, %s144
    %p153 = scmp.eq.s32.totalorder %s20, 4
    %p154 = por %p152, %p153
    %p155 = scmp.ne.s32.totalorder %s144, %s145
    %p156 = scmp.eq.s32.totalorder %s20, 0
    %p157 = por %p155, %p156
    %p158 = scmp.ne.s32.totalorder %s144, %s145
    %p159 = scmp.eq.s32.totalorder %s21, 4
    %p160 = por %p158, %p159
    %p162 = scmp.ne.s32.totalorder %s145, %s161
    %p163 = scmp.eq.s32.totalorder %s21, 0
    %p164 = por %p162, %p163
    %s165 = ssub.s32 %s22, %s34
    %p166 = scmp.eq.s32.totalorder %s165, 0
    %s168 = sadd.s32 %s167, 1
    %s169 = scalar_select %p166, %s167, %s168
    %p172 = pneg %p166
    %p173 = scmp.eq.s32.totalorder %s15, 4
    %p174 = por %p172, %p173
    %p175 = scmp.ne.s32.totalorder %s167, %s170
    %p176 = scmp.eq.s32.totalorder %s15, 0
    %p177 = por %p175, %p176
    %p178 = scmp.ne.s32.totalorder %s167, %s170
    %p179 = scmp.eq.s32.totalorder %s20, 4
    %p180 = por %p178, %p179
    %p181 = scmp.ne.s32.totalorder %s170, %s171
    %p182 = scmp.eq.s32.totalorder %s20, 0
    %p183 = por %p181, %p182
    %p184 = scmp.ne.s32.totalorder %s170, %s171
    %p185 = scmp.eq.s32.totalorder %s21, 4
    %p186 = por %p184, %p185
    %p188 = scmp.ne.s32.totalorder %s171, %s187
    %p189 = scmp.eq.s32.totalorder %s21, 0
    %p190 = por %p188, %p189
    %s191 = ssub.s32 %s22, %s34
    %p192 = scmp.eq.s32.totalorder %s191, 0
    %s194 = sadd.s32 %s193, 1
    %s195 = scalar_select %p192, %s193, %s194
    %p198 = pneg %p192
    %p199 = scmp.eq.s32.totalorder %s15, 4
    %p200 = por %p198, %p199
    %p201 = scmp.ne.s32.totalorder %s193, %s196
    %p202 = scmp.eq.s32.totalorder %s15, 0
    %p203 = por %p201, %p202
    %p204 = scmp.ne.s32.totalorder %s193, %s196
    %p205 = scmp.eq.s32.totalorder %s20, 4
    %p206 = por %p204, %p205
    %p207 = scmp.ne.s32.totalorder %s196, %s197
    %p208 = scmp.eq.s32.totalorder %s20, 0
    %p209 = por %p207, %p208
    %p210 = scmp.ne.s32.totalorder %s196, %s197
    %p211 = scmp.eq.s32.totalorder %s21, 4
    %p212 = por %p210, %p211
    %p214 = scmp.ne.s32.totalorder %s197, %s213
    %p215 = scmp.eq.s32.totalorder %s21, 0
    %p216 = por %p214, %p215
    %s217 = ssub.s32 %s22, %s34
    %p218 = scmp.eq.s32.totalorder %s217, 0
    %s220 = sadd.s32 %s219, 1
    %s221 = scalar_select %p218, %s219, %s220
    %p224 = pneg %p218
    %p225 = scmp.eq.s32.totalorder %s15, 4
    %p226 = por %p224, %p225
    %p227 = scmp.ne.s32.totalorder %s219, %s222
    %p228 = scmp.eq.s32.totalorder %s15, 0
    %p229 = por %p227, %p228
    %p230 = scmp.ne.s32.totalorder %s219, %s222
    %p231 = scmp.eq.s32.totalorder %s20, 4
    %p232 = por %p230, %p231
    %p233 = scmp.ne.s32.totalorder %s222, %s223
    %p234 = scmp.eq.s32.totalorder %s20, 0
    %p235 = por %p233, %p234
    %p236 = scmp.ne.s32.totalorder %s222, %s223
    %p237 = scmp.eq.s32.totalorder %s21, 4
    %p238 = por %p236, %p237
    %p240 = scmp.ne.s32.totalorder %s223, %s239
    %p241 = scmp.eq.s32.totalorder %s21, 0
    %p242 = por %p240, %p241
    %s243 = ssub.s32 %s22, %s34
    %p244 = scmp.eq.s32.totalorder %s243, 0
    %s246 = sadd.s32 %s245, 1
    %s247 = scalar_select %p244, %s245, %s246
    %p250 = pneg %p244
    %p251 = scmp.eq.s32.totalorder %s15, 4
    %p252 = por %p250, %p251
    %p253 = scmp.ne.s32.totalorder %s245, %s248
    %p254 = scmp.eq.s32.totalorder %s15, 0
    %p255 = por %p253, %p254
    %p256 = scmp.ne.s32.totalorder %s245, %s248
    %p257 = scmp.eq.s32.totalorder %s20, 4
    %p258 = por %p256, %p257
    %p259 = scmp.ne.s32.totalorder %s248, %s249
    %p260 = scmp.eq.s32.totalorder %s20, 0
    %p261 = por %p259, %p260
    %p262 = scmp.ne.s32.totalorder %s248, %s249
    %p263 = scmp.eq.s32.totalorder %s21, 4
    %p264 = por %p262, %p263
    %p266 = scmp.ne.s32.totalorder %s249, %s265
    %p267 = scmp.eq.s32.totalorder %s21, 0
    %p268 = por %p266, %p267
    %s269 = ssub.s32 %s22, %s34
    %s270 = ssub.s32 %s23, %s30
    %s271 = sor.u32 %s269, %s270
    %p272 = scmp.eq.s32.totalorder %s271, 0
    %s274 = sadd.s32 %s273, 1
    %s275 = scalar_select %p272, %s273, %s274
    %p278 = pneg %p272
    %p279 = scmp.eq.s32.totalorder %s15, 4
    %p280 = por %p278, %p279
    %p281 = scmp.ne.s32.totalorder %s273, %s276
    %p282 = scmp.eq.s32.totalorder %s15, 0
    %p283 = por %p281, %p282
    %p284 = scmp.ne.s32.totalorder %s273, %s276
    %p285 = scmp.eq.s32.totalorder %s20, 4
    %p286 = por %p284, %p285
    %p287 = scmp.ne.s32.totalorder %s276, %s277
    %p288 = scmp.eq.s32.totalorder %s20, 0
    %p289 = por %p287, %p288
    %p290 = scmp.ne.s32.totalorder %s276, %s277
    %p291 = scmp.eq.s32.totalorder %s21, 4
    %p292 = por %p290, %p291
    %p294 = scmp.ne.s32.totalorder %s277, %s293
    %p295 = scmp.eq.s32.totalorder %s21, 0
    %p296 = por %p294, %p295
    %p297 = scmp.le.s32.totalorder 1, %s15
    %p298 = scmp.lt.s32.totalorder %s15, 6
    %p299 = pnand %p297, %p298
    %p300 = pneg %p299
    // Predicated region
    $region9: #{semantic_split_net_forward.1} parent=5 // pred_check
      _
    $region10: #{semantic_split_net_forward.1} parent=5 // pred_check_branch
      %302 = sbr.rel (%p299) target = $region12
    $region11: #{semantic_split_net_forward.1} parent=5 // pred_region
      %s303 = ssub.s32 %s15, 1
      // Predicated region
      $region13: #{semantic_split_net_forward.1} parent=11 // pred_check
        %p304 = pneg %p53
      $region14: #{semantic_split_net_forward.1} parent=11 // pred_check_branch
        %306 = sbr.rel (%p304) target = $region16
      $region15: #{semantic_split_net_forward.1} parent=11 // pred_region
        %p307 = scmp.lt.s32.totalorder %s25, 0
        %s308 = scalar_select %p307, %s25, 0
        %s309 = smul.addr %s308, 8
        %s310 = scalar_lea.vmem %s0, %s309
      $region16: #{semantic_split_net_forward.1} parent=11 // pred_fallthru
        _
    $region12: #{semantic_split_net_forward.1} parent=5 // pred_fallthru
      _
    %p311 = scmp.lt.s32.totalorder %s15, 5
    // Predicated region
    $region17: #{semantic_split_net_forward.1} parent=5 // pred_check
      %p312 = pneg %p311
    $region18: #{semantic_split_net_forward.1} parent=5 // pred_check_branch
      %314 = sbr.rel (%p312) target = $region20
    $region19: #{semantic_split_net_forward.1} parent=5 // pred_region
      // Predicated region
      $region21: #{semantic_split_net_forward.1} parent=19 // pred_check
        %p315 = pneg %p73
      $region22: #{semantic_split_net_forward.1} parent=19 // pred_check_branch
        %317 = sbr.rel (%p315) target = $region24
      $region23: #{semantic_split_net_forward.1} parent=19 // pred_region
        %p318 = scmp.lt.s32.totalorder %s22, 4
        %s319 = scalar_select %p318, %s22, 4
        %s320 = smul.addr %s319, 48
        %s321 = smul.addr %s320, 8
        %s322 = scalar_lea.vmem %s1, %s321
      $region24: #{semantic_split_net_forward.1} parent=19 // pred_fallthru
        _
      // Predicated region
      $region25: #{semantic_split_net_forward.1} parent=19 // pred_check
        %p323 = pneg %p99
      $region26: #{semantic_split_net_forward.1} parent=19 // pred_check_branch
        %325 = sbr.rel (%p323) target = $region28
      $region27: #{semantic_split_net_forward.1} parent=19 // pred_region
        %p326 = scmp.lt.s32.totalorder %s22, 4
        %s327 = scalar_select %p326, %s22, 4
        %s328 = smul.addr %s327, 4
        %s329 = scalar_lea.vmem %s2, %s328
      $region28: #{semantic_split_net_forward.1} parent=19 // pred_fallthru
        _
      // Predicated region
      $region29: #{semantic_split_net_forward.1} parent=19 // pred_check
        %p330 = pneg %p125
      $region30: #{semantic_split_net_forward.1} parent=19 // pred_check_branch
        %332 = sbr.rel (%p330) target = $region32
      $region31: #{semantic_split_net_forward.1} parent=19 // pred_region
        %p333 = scmp.lt.s32.totalorder %s22, 4
        %s334 = scalar_select %p333, %s22, 4
        %s335 = smul.addr %s334, 936
        %s336 = smul.addr %s335, 8
        %s337 = scalar_lea.vmem %s3, %s336
      $region32: #{semantic_split_net_forward.1} parent=19 // pred_fallthru
        _
      // Predicated region
      $region33: #{semantic_split_net_forward.1} parent=19 // pred_check
        %p338 = pneg %p151
      $region34: #{semantic_split_net_forward.1} parent=19 // pred_check_branch
        %340 = sbr.rel (%p338) target = $region36
      $region35: #{semantic_split_net_forward.1} parent=19 // pred_region
        %p341 = scmp.lt.s32.totalorder %s22, 4
        %s342 = scalar_select %p341, %s22, 4
        %s343 = smul.addr %s342, 6
        %s344 = scalar_lea.vmem %s4, %s343
      $region36: #{semantic_split_net_forward.1} parent=19 // pred_fallthru
        _
      // Predicated region
      $region37: #{semantic_split_net_forward.1} parent=19 // pred_check
        %p345 = pneg %p177
      $region38: #{semantic_split_net_forward.1} parent=19 // pred_check_branch
        %347 = sbr.rel (%p345) target = $region40
      $region39: #{semantic_split_net_forward.1} parent=19 // pred_region
        %p348 = scmp.lt.s32.totalorder %s22, 4
        %s349 = scalar_select %p348, %s22, 4
        %s350 = smul.addr %s349, 576
        %s351 = smul.addr %s350, 8
        %s352 = scalar_lea.vmem %s5, %s351
      $region40: #{semantic_split_net_forward.1} parent=19 // pred_fallthru
        _
      // Predicated region
      $region41: #{semantic_split_net_forward.1} parent=19 // pred_check
        %p353 = pneg %p203
      $region42: #{semantic_split_net_forward.1} parent=19 // pred_check_branch
        %355 = sbr.rel (%p353) target = $region44
      $region43: #{semantic_split_net_forward.1} parent=19 // pred_region
        %p356 = scmp.lt.s32.totalorder %s22, 4
        %s357 = scalar_select %p356, %s22, 4
        %s358 = scalar_lea.vmem %s6, %s357
      $region44: #{semantic_split_net_forward.1} parent=19 // pred_fallthru
        _
      // Predicated region
      $region45: #{semantic_split_net_forward.1} parent=19 // pred_check
        %p359 = pneg %p229
      $region46: #{semantic_split_net_forward.1} parent=19 // pred_check_branch
        %361 = sbr.rel (%p359) target = $region48
      $region47: #{semantic_split_net_forward.1} parent=19 // pred_region
        %p362 = scmp.lt.s32.totalorder %s22, 4
        %s363 = scalar_select %p362, %s22, 4
        %s364 = smul.addr %s363, 16
        %s365 = smul.addr %s364, 8
        %s366 = scalar_lea.vmem %s7, %s365
      $region48: #{semantic_split_net_forward.1} parent=19 // pred_fallthru
        _
      // Predicated region
      $region49: #{semantic_split_net_forward.1} parent=19 // pred_check
        %p367 = pneg %p255
      $region50: #{semantic_split_net_forward.1} parent=19 // pred_check_branch
        %369 = sbr.rel (%p367) target = $region52
      $region51: #{semantic_split_net_forward.1} parent=19 // pred_region
        %p370 = scmp.lt.s32.totalorder %s22, 4
        %s371 = scalar_select %p370, %s22, 4
        %s372 = scalar_lea.vmem %s8, %s371
      $region52: #{semantic_split_net_forward.1} parent=19 // pred_fallthru
        _
    $region20: #{semantic_split_net_forward.1} parent=5 // pred_fallthru
      _
    %p373 = scmp.le.s32.totalorder 1, %s15
    %p374 = scmp.lt.s32.totalorder %s15, 6
    %p375 = pnand %p373, %p374
    %p376 = pneg %p375
    // Predicated region
    $region53: #{semantic_split_net_forward.1} parent=5 // pred_check
      _
    $region54: #{semantic_split_net_forward.1} parent=5 // pred_check_branch
      %378 = sbr.rel (%p375) target = $region56
    $region55: #{semantic_split_net_forward.1} parent=5 // pred_region
      %s379 = ssub.s32 %s15, 1
      %p380 = scmp.lt.s32.totalorder %s25, 0
      %s381 = scalar_select %p380, %s25, 0
      %s382 = smul.addr %s381, 8
      %s383 = scalar_lea.vmem %s0, %s382
      %p384 = pneg %p53
      %p385 = pneg %p50
      %p386 = scmp.lt.s32.totalorder %s24, 4
      %s387 = scalar_select %p386, %s24, 4
      %s388 = smul.addr %s387, 48
      %s389 = smul.addr %s388, 8
      %s390 = scalar_lea.vmem %s1, %s389
      %p391 = pneg %p79
      %p392 = pneg %p76
      %p393 = scmp.lt.s32.totalorder %s24, 4
      %s394 = scalar_select %p393, %s24, 4
      %s395 = smul.addr %s394, 4
      %s396 = scalar_lea.vmem %s2, %s395
      %p397 = pneg %p105
      %p398 = pneg %p102
      %p399 = scmp.lt.s32.totalorder %s24, 4
      %s400 = scalar_select %p399, %s24, 4
      %s401 = smul.addr %s400, 936
      %s402 = smul.addr %s401, 8
      %s403 = scalar_lea.vmem %s3, %s402
      %p404 = pneg %p131
      %p405 = pneg %p128
      %p406 = scmp.lt.s32.totalorder %s24, 4
      %s407 = scalar_select %p406, %s24, 4
      %s408 = smul.addr %s407, 6
      %s409 = scalar_lea.vmem %s4, %s408
      %p410 = pneg %p157
      %p411 = pneg %p154
      %p412 = scmp.lt.s32.totalorder %s24, 4
      %s413 = scalar_select %p412, %s24, 4
      %s414 = smul.addr %s413, 576
      %s415 = smul.addr %s414, 8
      %s416 = scalar_lea.vmem %s5, %s415
      %p417 = pneg %p183
      %p418 = pneg %p180
      %p419 = scmp.lt.s32.totalorder %s24, 4
      %s420 = scalar_select %p419, %s24, 4
      %s421 = scalar_lea.vmem %s6, %s420
      %p422 = pneg %p209
      %p423 = pneg %p206
      %p424 = scmp.lt.s32.totalorder %s24, 4
      %s425 = scalar_select %p424, %s24, 4
      %s426 = smul.addr %s425, 16
      %s427 = smul.addr %s426, 8
      %s428 = scalar_lea.vmem %s7, %s427
      %p429 = pneg %p235
      %p430 = pneg %p232
      %p431 = scmp.lt.s32.totalorder %s24, 4
      %s432 = scalar_select %p431, %s24, 4
      %s433 = scalar_lea.vmem %s8, %s432
      %p434 = pneg %p261
      %p435 = pneg %p258
      %p436 = pneg %p289
      %p437 = pneg %p286
      %p438 = scmp.lt.s32.totalorder %s24, 4
      %s439 = scalar_select %p438, %s24, 4
      %p440 = scmp.lt.s32.totalorder %s25, 0
      %s441 = scalar_select %p440, %s25, 0
      %s442 = sadd.s32 %s441, %s439
      %s443 = smul.addr %s442, 8
      %s444 = scalar_lea.vmem %s9, %s443
      %p445 = scmp.lt.s32.totalorder %s25, 0
      %s446 = scalar_select %p445, %s25, 0
      %s447 = smul.addr %s446, 8
      %s448 = scalar_lea.vmem %s0, %s447
      %p449 = scmp.lt.s32.totalorder %s24, 4
      %s450 = scalar_select %p449, %s24, 4
      %s451 = smul.addr %s450, 48
      %s452 = smul.addr %s451, 8
      %s453 = scalar_lea.vmem %s1, %s452
      %p454 = scmp.lt.s32.totalorder %s24, 4
      %s455 = scalar_select %p454, %s24, 4
      %s456 = smul.addr %s455, 4
      %s457 = scalar_lea.vmem %s2, %s456
      %p458 = scmp.lt.s32.totalorder %s24, 4
      %s459 = scalar_select %p458, %s24, 4
      %s460 = smul.addr %s459, 936
      %s461 = smul.addr %s460, 8
      %s462 = scalar_lea.vmem %s3, %s461
      %p463 = scmp.lt.s32.totalorder %s24, 4
      %s464 = scalar_select %p463, %s24, 4
      %s465 = smul.addr %s464, 6
      %s466 = scalar_lea.vmem %s4, %s465
      %p467 = scmp.lt.s32.totalorder %s24, 4
      %s468 = scalar_select %p467, %s24, 4
      %s469 = smul.addr %s468, 576
      %s470 = smul.addr %s469, 8
      %s471 = scalar_lea.vmem %s5, %s470
      %p472 = scmp.lt.s32.totalorder %s24, 4
      %s473 = scalar_select %p472, %s24, 4
      %s474 = scalar_lea.vmem %s6, %s473
      %p475 = scmp.lt.s32.totalorder %s24, 4
      %s476 = scalar_select %p475, %s24, 4
      %s477 = smul.addr %s476, 16
      %s478 = smul.addr %s477, 8
      %s479 = scalar_lea.vmem %s7, %s478
      %p480 = scmp.lt.s32.totalorder %s24, 4
      %s481 = scalar_select %p480, %s24, 4
      %s482 = scalar_lea.vmem %s8, %s481
      %p483 = scmp.lt.s32.totalorder %s24, 4
      %s484 = scalar_select %p483, %s24, 4
      %p485 = scmp.lt.s32.totalorder %s25, 0
      %s486 = scalar_select %p485, %s25, 0
      %s487 = sadd.s32 %s486, %s484
      %s488 = smul.addr %s487, 8
      %s489 = scalar_lea.vmem %s9, %s488
      %v490 = vld [vmem:[%s448] sm:$0xff]
      %v491 = vld [vmem:[%s448 + $0x8] sm:$0xff]
      %v492 = vld [vmem:[%s448 + $0x10] sm:$0xff]
      %v493 = vld [vmem:[%s448 + $0x18] sm:$0xff]
      %v494 = vld [vmem:[%s448 + $0x20] sm:$0xff]
      %v495 = vld [vmem:[%s448 + $0x28] sm:$0xff]
      %v496 = vld [vmem:[%s448 + $0x30] sm:$0xff]
      %v497 = vld [vmem:[%s448 + $0x38] sm:$0xff]
      %v498 = vld [vmem:[%s448 + $0x40] sm:$0xff]
      %v499 = vld [vmem:[%s448 + $0x48] sm:$0xff]
      %v500 = vld [vmem:[%s448 + $0x50] sm:$0xff]
      %v501 = vld [vmem:[%s448 + $0x58] sm:$0xff]
      %v502 = vld [vmem:[%s448 + $0x60] sm:$0xff]
      %v503 = vld [vmem:[%s448 + $0x68] sm:$0xff]
      %v504 = vld [vmem:[%s448 + $0x70] sm:$0xff]
      %v505 = vld [vmem:[%s448 + $0x78] sm:$0xff]
      %v506 = vld [vmem:[%s448 + $0x80] sm:$0xff]
      %v507 = vld [vmem:[%s448 + $0x88] sm:$0xff]
      %v508 = vld [vmem:[%s448 + $0x90] sm:$0xff]
      %v509 = vld [vmem:[%s448 + $0x98] sm:$0xff]
      %v510 = vld [vmem:[%s448 + $0xa0] sm:$0xff]
      %v511 = vld [vmem:[%s448 + $0xa8] sm:$0xff]
      %v512 = vld [vmem:[%s448 + $0xb0] sm:$0xff]
      %v513 = vld [vmem:[%s448 + $0xb8] sm:$0xff]
      %v514 = vld [vmem:[%s448 + $0xc0] sm:$0xff]
      %v515 = vld [vmem:[%s448 + $0xc8] sm:$0xff]
      %v516 = vld [vmem:[%s448 + $0xd0] sm:$0xff]
      %v517 = vld [vmem:[%s448 + $0xd8] sm:$0xff]
      %v518 = vld [vmem:[%s453] sm:$0xff]
      %v519 = vld [vmem:[%s453 + $0x8] sm:$0xff]
      %v520 = vld [vmem:[%s453 + $0x10] sm:$0xff]
      %v521 = vld [vmem:[%s453 + $0x18] sm:$0xff]
      %v522 = vld [vmem:[%s453 + $0x20] sm:$0xff]
      %v523 = vld [vmem:[%s453 + $0x28] sm:$0xff]
      %v524 = vld [vmem:[%s453 + $0x30] sm:$0xff]
      %v525 = vld [vmem:[%s453 + $0x38] sm:$0xff]
      %v526 = vld [vmem:[%s453 + $0x40] sm:$0xff]
      %v527 = vld [vmem:[%s453 + $0x48] sm:$0xff]
      %v528 = vld [vmem:[%s453 + $0x50] sm:$0xff]
      %v529 = vld [vmem:[%s453 + $0x58] sm:$0xff]
      %v530 = vld [vmem:[%s453 + $0x60] sm:$0xf]
      %v531 = vld [vmem:[%s453 + $0x68] sm:$0xf]
      %v532 = vld [vmem:[%s453 + $0x70] sm:$0xf]
      %v533 = vld [vmem:[%s453 + $0x78] sm:$0xf]
      %s534 = scalar_lea.vmem %s453, 128
      %v535 = vld [vmem:[%s534] sm:$0xff]
      %v536 = vld [vmem:[%s534 + $0x8] sm:$0xff]
      %v537 = vld [vmem:[%s534 + $0x10] sm:$0xff]
      %v538 = vld [vmem:[%s534 + $0x18] sm:$0xff]
      %v539 = vld [vmem:[%s534 + $0x20] sm:$0xff]
      %v540 = vld [vmem:[%s534 + $0x28] sm:$0xff]
      %v541 = vld [vmem:[%s534 + $0x30] sm:$0xff]
      %v542 = vld [vmem:[%s534 + $0x38] sm:$0xff]
      %v543 = vld [vmem:[%s534 + $0x40] sm:$0xff]
      %v544 = vld [vmem:[%s534 + $0x48] sm:$0xff]
      %v545 = vld [vmem:[%s534 + $0x50] sm:$0xff]
      %v546 = vld [vmem:[%s534 + $0x58] sm:$0xff]
      %v547 = vld [vmem:[%s534 + $0x60] sm:$0xf]
      %v548 = vld [vmem:[%s534 + $0x68] sm:$0xf]
      %v549 = vld [vmem:[%s534 + $0x70] sm:$0xf]
      %v550 = vld [vmem:[%s534 + $0x78] sm:$0xf]
      %vm551 = vcmask 228352
      %v553 = vsel %vm551, %v491, 0
      %v556 = vsel %vm551, %v492, 0
      %v559 = vsel %vm551, %v493, 0
      %v562 = vsel %vm551, %v494, 0
      %v565 = vsel %vm551, %v495, 0
      %v568 = vsel %vm551, %v496, 0
      %v571 = vsel %vm551, %v497, 0
      %v574 = vsel %vm551, %v498, 0
      %v577 = vsel %vm551, %v499, 0
      %v580 = vsel %vm551, %v500, 0
      %v583 = vsel %vm551, %v501, 0
      %v586 = vsel %vm551, %v502, 0
      %v589 = vsel %vm551, %v503, 0
      %v592 = vsel %vm551, %v504, 0
      %v595 = vsel %vm551, %v505, 0
      %v598 = vsel %vm551, %v506, 0
      %v601 = vsel %vm551, %v507, 0
      %v604 = vsel %vm551, %v508, 0
      %v607 = vsel %vm551, %v509, 0
      %v610 = vsel %vm551, %v510, 0
      %v613 = vsel %vm551, %v511, 0
      %v616 = vsel %vm551, %v512, 0
      %v619 = vsel %vm551, %v513, 0
      %v622 = vsel %vm551, %v514, 0
      %v625 = vsel %vm551, %v515, 0
      %v628 = vsel %vm551, %v516, 0
      %vm630 = vcmask 1043456
      %v632 = vsel %vm630, %v547, 0
      %v635 = vsel %vm630, %v548, 0
      %v638 = vsel %vm630, %v549, 0
      %v641 = vsel %vm630, %v550, 0
      %643 = vmatprep.subr.mxu0 0.0
      %644 = vmatpush1.msra.mxu0 0.0
      %645 = vmatprep.subr.mxu0 0.0
      %646 = vmatpush1.msra.mxu0 0.0
      %647 = vmatprep.subr.mxu0 0.0
      %648 = vmatpush1.msra.mxu0 0.0
      %649 = vmatprep.subr.mxu0 0.0
      %650 = vmatpush1.msra.mxu0 0.0
      %651 = vmatprep.subr.mxu0 0.0
      %652 = vmatpush1.msra.mxu0 0.0
      %653 = vmatprep.subr.mxu0 0.0
      %654 = vmatpush1.msra.mxu0 0.0
      %655 = vmatprep.subr.mxu0 0.0
      %656 = vmatpush1.msra.mxu0 0.0
      %657 = vmatprep.subr.mxu0 0.0
      %658 = vmatpush1.msra.mxu0 0.0
      %659 = vmatprep.subr.mxu0 0.0
      %660 = vmatpush1.msra.mxu0 0.0
      %661 = vmatprep.subr.mxu0 0.0
      %662 = vmatpush1.msra.mxu0 0.0
      %663 = vmatprep.subr.mxu0 0.0
      %664 = vmatpush1.msra.mxu0 0.0
      %665 = vmatprep.subr.mxu0 0.0
      %666 = vmatpush1.msra.mxu0 0.0
      %667 = vmatprep.subr.mxu0 %v635
      %668 = vmatpush1.msra.mxu0 %v632
      %669 = vmatprep.subr.mxu0 %v544
      %670 = vmatpush1.msra.mxu0 %v543
      %671 = vmatprep.subr.mxu0 %v540
      %672 = vmatpush1.msra.mxu0 %v539
      %673 = vmatprep.subr.mxu0 %v536
      %674 = vmatpush1.msra.mxu0 %v535
      %675 = vmatprep.subr.mxu0 0.0
      %676 = vmatpush2.msra.mxu0 0.0
      %677 = vmatprep.subr.mxu0 0.0
      %678 = vmatpush2.msra.mxu0 0.0
      %679 = vmatprep.subr.mxu0 0.0
      %680 = vmatpush2.msra.mxu0 0.0
      %681 = vmatprep.subr.mxu0 0.0
      %682 = vmatpush2.msra.mxu0 0.0
      %683 = vmatprep.subr.mxu0 0.0
      %684 = vmatpush2.msra.mxu0 0.0
      %685 = vmatprep.subr.mxu0 0.0
      %686 = vmatpush2.msra.mxu0 0.0
      %687 = vmatprep.subr.mxu0 0.0
      %688 = vmatpush2.msra.mxu0 0.0
      %689 = vmatprep.subr.mxu0 0.0
      %690 = vmatpush2.msra.mxu0 0.0
      %691 = vmatprep.subr.mxu0 0.0
      %692 = vmatpush2.msra.mxu0 0.0
      %693 = vmatprep.subr.mxu0 0.0
      %694 = vmatpush2.msra.mxu0 0.0
      %695 = vmatprep.subr.mxu0 0.0
      %696 = vmatpush2.msra.mxu0 0.0
      %697 = vmatprep.subr.mxu0 0.0
      %698 = vmatpush2.msra.mxu0 0.0
      %699 = vmatprep.subr.mxu0 0.0
      %700 = vmatpush2.msra.mxu0 0.0
      %701 = vmatprep.subr.mxu0 0.0
      %702 = vmatpush2.msra.mxu0 0.0
      %703 = vmatprep.subr.mxu0 0.0
      %704 = vmatpush2.msra.mxu0 0.0
      %705 = vmatprep.subr.mxu0 0.0
      %706 = vmatpush2.msra.mxu0 0.0
      %707 = vmatprep.mubr.f32.mxu0 0.0
      %708 = vmatmul.mubr.f32.gmra.mxu0 %v553
      %v709 = vpop.f32.mrf.mxu0
      %v710 = vadd.f32 0.0, %v709
      %v711 = vpop.f32.mrf.mxu0
      %v712 = vadd.f32 0.0, %v711
      %713 = vmatprep.mubr.f32.mxu0 0.0
      %714 = vmatmul.mubr.f32.gmra.mxu0 %v556
      %v715 = vpop.f32.mrf.mxu0
      %v716 = vadd.f32 0.0, %v715
      %v717 = vpop.f32.mrf.mxu0
      %v718 = vadd.f32 0.0, %v717
      %719 = vmatprep.mubr.f32.mxu0 0.0
      %720 = vmatmul.mubr.f32.gmra.mxu0 %v559
      %v721 = vpop.f32.mrf.mxu0
      %v722 = vadd.f32 0.0, %v721
      %v723 = vpop.f32.mrf.mxu0
      %v724 = vadd.f32 0.0, %v723
      %725 = vmatprep.mubr.f32.mxu0 0.0
      %726 = vmatmul.mubr.f32.gmra.mxu0 %v562
      %v727 = vpop.f32.mrf.mxu0
      %v728 = vadd.f32 0.0, %v727
      %v729 = vpop.f32.mrf.mxu0
      %v730 = vadd.f32 0.0, %v729
      %731 = vmatprep.mubr.f32.mxu0 0.0
      %732 = vmatmul.mubr.f32.gmra.mxu0 %v565
      %v733 = vpop.f32.mrf.mxu0
      %v734 = vadd.f32 0.0, %v733
      %v735 = vpop.f32.mrf.mxu0
      %v736 = vadd.f32 0.0, %v735
      %737 = vmatprep.mubr.f32.mxu0 0.0
      %738 = vmatmul.mubr.f32.gmra.mxu0 %v568
      %v739 = vpop.f32.mrf.mxu0
      %v740 = vadd.f32 0.0, %v739
      %v741 = vpop.f32.mrf.mxu0
      %v742 = vadd.f32 0.0, %v741
      %743 = vmatprep.mubr.f32.mxu0 0.0
      %744 = vmatmul.mubr.f32.gmra.mxu0 %v571
      %v745 = vpop.f32.mrf.mxu0
      %v746 = vadd.f32 0.0, %v745
      %v747 = vpop.f32.mrf.mxu0
      %v748 = vadd.f32 0.0, %v747
      %749 = vmatprep.mubr.f32.mxu0 0.0
      %750 = vmatmul.mubr.f32.gmra.mxu0 %v574
      %v751 = vpop.f32.mrf.mxu0
      %v752 = vadd.f32 0.0, %v751
      %v753 = vpop.f32.mrf.mxu0
      %v754 = vadd.f32 0.0, %v753
      %755 = vmatprep.mubr.f32.mxu0 0.0
      %756 = vmatmul.mubr.f32.gmra.mxu0 %v577
      %v757 = vpop.f32.mrf.mxu0
      %v758 = vadd.f32 0.0, %v757
      %v759 = vpop.f32.mrf.mxu0
      %v760 = vadd.f32 0.0, %v759
      %761 = vmatprep.mubr.f32.mxu0 0.0
      %762 = vmatmul.mubr.f32.gmra.mxu0 %v580
      %v763 = vpop.f32.mrf.mxu0
      %v764 = vadd.f32 0.0, %v763
      %v765 = vpop.f32.mrf.mxu0
      %v766 = vadd.f32 0.0, %v765
      %767 = vmatprep.mubr.f32.mxu0 0.0
      %768 = vmatmul.mubr.f32.gmra.mxu0 %v583
      %v769 = vpop.f32.mrf.mxu0
      %v770 = vadd.f32 0.0, %v769
      %v771 = vpop.f32.mrf.mxu0
      %v772 = vadd.f32 0.0, %v771
      %773 = vmatprep.mubr.f32.mxu0 0.0
      %774 = vmatmul.mubr.f32.gmra.mxu0 %v586
      %v775 = vpop.f32.mrf.mxu0
      %v776 = vadd.f32 0.0, %v775
      %v777 = vpop.f32.mrf.mxu0
      %v778 = vadd.f32 0.0, %v777
      %779 = vmatprep.mubr.f32.mxu0 0.0
      %780 = vmatmul.mubr.f32.gmra.mxu0 %v589
      %v781 = vpop.f32.mrf.mxu0
      %v782 = vadd.f32 0.0, %v781
      %v783 = vpop.f32.mrf.mxu0
      %v784 = vadd.f32 0.0, %v783
      %785 = vmatprep.mubr.f32.mxu0 0.0
      %786 = vmatmul.mubr.f32.gmra.mxu0 %v592
      %v787 = vpop.f32.mrf.mxu0
      %v788 = vadd.f32 0.0, %v787
      %v789 = vpop.f32.mrf.mxu0
      %v790 = vadd.f32 0.0, %v789
      %791 = vmatprep.mubr.f32.mxu0 0.0
      %792 = vmatmul.mubr.f32.gmra.mxu0 %v595
      %v793 = vpop.f32.mrf.mxu0
      %v794 = vadd.f32 0.0, %v793
      %v795 = vpop.f32.mrf.mxu0
      %v796 = vadd.f32 0.0, %v795
      %797 = vmatprep.mubr.f32.mxu0 0.0
      %798 = vmatmul.mubr.f32.gmra.mxu0 %v598
      %v799 = vpop.f32.mrf.mxu0
      %v800 = vadd.f32 0.0, %v799
      %v801 = vpop.f32.mrf.mxu0
      %v802 = vadd.f32 0.0, %v801
      %803 = vmatprep.mubr.f32.mxu0 0.0
      %804 = vmatmul.mubr.f32.gmra.mxu0 %v601
      %v805 = vpop.f32.mrf.mxu0
      %v806 = vadd.f32 0.0, %v805
      %v807 = vpop.f32.mrf.mxu0
      %v808 = vadd.f32 0.0, %v807
      %809 = vmatprep.mubr.f32.mxu0 0.0
      %810 = vmatmul.mubr.f32.gmra.mxu0 %v604
      %v811 = vpop.f32.mrf.mxu0
      %v812 = vadd.f32 0.0, %v811
      %v813 = vpop.f32.mrf.mxu0
      %v814 = vadd.f32 0.0, %v813
      %815 = vmatprep.mubr.f32.mxu0 0.0
      %816 = vmatmul.mubr.f32.gmra.mxu0 %v607
      %v817 = vpop.f32.mrf.mxu0
      %v818 = vadd.f32 0.0, %v817
      %v819 = vpop.f32.mrf.mxu0
      %v820 = vadd.f32 0.0, %v819
      %821 = vmatprep.mubr.f32.mxu0 0.0
      %822 = vmatmul.mubr.f32.gmra.mxu0 %v610
      %v823 = vpop.f32.mrf.mxu0
      %v824 = vadd.f32 0.0, %v823
      %v825 = vpop.f32.mrf.mxu0
      %v826 = vadd.f32 0.0, %v825
      %827 = vmatprep.mubr.f32.mxu0 0.0
      %828 = vmatmul.mubr.f32.gmra.mxu0 %v613
      %v829 = vpop.f32.mrf.mxu0
      %v830 = vadd.f32 0.0, %v829
      %v831 = vpop.f32.mrf.mxu0
      %v832 = vadd.f32 0.0, %v831
      %833 = vmatprep.mubr.f32.mxu0 0.0
      %834 = vmatmul.mubr.f32.gmra.mxu0 %v616
      %v835 = vpop.f32.mrf.mxu0
      %v836 = vadd.f32 0.0, %v835
      %v837 = vpop.f32.mrf.mxu0
      %v838 = vadd.f32 0.0, %v837
      %839 = vmatprep.mubr.f32.mxu0 0.0
      %840 = vmatmul.mubr.f32.gmra.mxu0 %v619
      %v841 = vpop.f32.mrf.mxu0
      %v842 = vadd.f32 0.0, %v841
      %v843 = vpop.f32.mrf.mxu0
      %v844 = vadd.f32 0.0, %v843
      %845 = vmatprep.mubr.f32.mxu0 0.0
      %846 = vmatmul.mubr.f32.gmra.mxu0 %v622
      %v847 = vpop.f32.mrf.mxu0
      %v848 = vadd.f32 0.0, %v847
      %v849 = vpop.f32.mrf.mxu0
      %v850 = vadd.f32 0.0, %v849
      %851 = vmatprep.mubr.f32.mxu0 0.0
      %852 = vmatmul.mubr.f32.gmra.mxu0 %v625
      %v853 = vpop.f32.mrf.mxu0
      %v854 = vadd.f32 0.0, %v853
      %v855 = vpop.f32.mrf.mxu0
      %v856 = vadd.f32 0.0, %v855
      %857 = vmatprep.mubr.f32.mxu0 0.0
      %858 = vmatmul.mubr.f32.gmra.mxu0 %v628
      %v859 = vpop.f32.mrf.mxu0
      %v860 = vadd.f32 0.0, %v859
      %v861 = vpop.f32.mrf.mxu0
      %v862 = vadd.f32 0.0, %v861
      %863 = vdwg.mxu0
      %864 = vmatprep.subr.mxu0 0.0
      %865 = vmatpush1.msra.mxu0 0.0
      %866 = vmatprep.subr.mxu0 0.0
      %867 = vmatpush1.msra.mxu0 0.0
      %868 = vmatprep.subr.mxu0 0.0
      %869 = vmatpush1.msra.mxu0 0.0
      %870 = vmatprep.subr.mxu0 0.0
      %871 = vmatpush1.msra.mxu0 0.0
      %872 = vmatprep.subr.mxu0 0.0
      %873 = vmatpush1.msra.mxu0 0.0
      %874 = vmatprep.subr.mxu0 0.0
      %875 = vmatpush1.msra.mxu0 0.0
      %876 = vmatprep.subr.mxu0 0.0
      %877 = vmatpush1.msra.mxu0 0.0
      %878 = vmatprep.subr.mxu0 0.0
      %879 = vmatpush1.msra.mxu0 0.0
      %880 = vmatprep.subr.mxu0 0.0
      %881 = vmatpush1.msra.mxu0 0.0
      %882 = vmatprep.subr.mxu0 0.0
      %883 = vmatpush1.msra.mxu0 0.0
      %884 = vmatprep.subr.mxu0 0.0
      %885 = vmatpush1.msra.mxu0 0.0
      %886 = vmatprep.subr.mxu0 0.0
      %887 = vmatpush1.msra.mxu0 0.0
      %888 = vmatprep.subr.mxu0 %v641
      %889 = vmatpush1.msra.mxu0 %v638
      %890 = vmatprep.subr.mxu0 %v546
      %891 = vmatpush1.msra.mxu0 %v545
      %892 = vmatprep.subr.mxu0 %v542
      %893 = vmatpush1.msra.mxu0 %v541
      %894 = vmatprep.subr.mxu0 %v538
      %895 = vmatpush1.msra.mxu0 %v537
      %896 = vmatprep.subr.mxu0 0.0
      %897 = vmatpush2.msra.mxu0 0.0
      %898 = vmatprep.subr.mxu0 0.0
      %899 = vmatpush2.msra.mxu0 0.0
      %900 = vmatprep.subr.mxu0 0.0
      %901 = vmatpush2.msra.mxu0 0.0
      %902 = vmatprep.subr.mxu0 0.0
      %903 = vmatpush2.msra.mxu0 0.0
      %904 = vmatprep.subr.mxu0 0.0
      %905 = vmatpush2.msra.mxu0 0.0
      %906 = vmatprep.subr.mxu0 0.0
      %907 = vmatpush2.msra.mxu0 0.0
      %908 = vmatprep.subr.mxu0 0.0
      %909 = vmatpush2.msra.mxu0 0.0
      %910 = vmatprep.subr.mxu0 0.0
      %911 = vmatpush2.msra.mxu0 0.0
      %912 = vmatprep.subr.mxu0 0.0
      %913 = vmatpush2.msra.mxu0 0.0
      %914 = vmatprep.subr.mxu0 0.0
      %915 = vmatpush2.msra.mxu0 0.0
      %916 = vmatprep.subr.mxu0 0.0
      %917 = vmatpush2.msra.mxu0 0.0
      %918 = vmatprep.subr.mxu0 0.0
      %919 = vmatpush2.msra.mxu0 0.0
      %920 = vmatprep.subr.mxu0 0.0
      %921 = vmatpush2.msra.mxu0 0.0
      %922 = vmatprep.subr.mxu0 0.0
      %923 = vmatpush2.msra.mxu0 0.0
      %924 = vmatprep.subr.mxu0 0.0
      %925 = vmatpush2.msra.mxu0 0.0
      %926 = vmatprep.subr.mxu0 0.0
      %927 = vmatpush2.msra.mxu0 0.0
      %928 = vmatprep.mubr.f32.mxu0 0.0
      %929 = vmatmul.mubr.f32.gmra.mxu0 %v553
      %v930 = vpop.f32.mrf.mxu0
      %v931 = vadd.f32 0.0, %v930
      %v932 = vpop.f32.mrf.mxu0
      %v933 = vadd.f32 0.0, %v932
      %934 = vmatprep.mubr.f32.mxu0 0.0
      %935 = vmatmul.mubr.f32.gmra.mxu0 %v556
      %v936 = vpop.f32.mrf.mxu0
      %v937 = vadd.f32 0.0, %v936
      %v938 = vpop.f32.mrf.mxu0
      %v939 = vadd.f32 0.0, %v938
      %940 = vmatprep.mubr.f32.mxu0 0.0
      %941 = vmatmul.mubr.f32.gmra.mxu0 %v559
      %v942 = vpop.f32.mrf.mxu0
      %v943 = vadd.f32 0.0, %v942
      %v944 = vpop.f32.mrf.mxu0
      %v945 = vadd.f32 0.0, %v944
      %946 = vmatprep.mubr.f32.mxu0 0.0
      %947 = vmatmul.mubr.f32.gmra.mxu0 %v562
      %v948 = vpop.f32.mrf.mxu0
      %v949 = vadd.f32 0.0, %v948
      %v950 = vpop.f32.mrf.mxu0
      %v951 = vadd.f32 0.0, %v950
      %952 = vmatprep.mubr.f32.mxu0 0.0
      %953 = vmatmul.mubr.f32.gmra.mxu0 %v565
      %v954 = vpop.f32.mrf.mxu0
      %v955 = vadd.f32 0.0, %v954
      %v956 = vpop.f32.mrf.mxu0
      %v957 = vadd.f32 0.0, %v956
      %958 = vmatprep.mubr.f32.mxu0 0.0
      %959 = vmatmul.mubr.f32.gmra.mxu0 %v568
      %v960 = vpop.f32.mrf.mxu0
      %v961 = vadd.f32 0.0, %v960
      %v962 = vpop.f32.mrf.mxu0
      %v963 = vadd.f32 0.0, %v962
      %964 = vmatprep.mubr.f32.mxu0 0.0
      %965 = vmatmul.mubr.f32.gmra.mxu0 %v571
      %v966 = vpop.f32.mrf.mxu0
      %v967 = vadd.f32 0.0, %v966
      %v968 = vpop.f32.mrf.mxu0
      %v969 = vadd.f32 0.0, %v968
      %970 = vmatprep.mubr.f32.mxu0 0.0
      %971 = vmatmul.mubr.f32.gmra.mxu0 %v574
      %v972 = vpop.f32.mrf.mxu0
      %v973 = vadd.f32 0.0, %v972
      %v974 = vpop.f32.mrf.mxu0
      %v975 = vadd.f32 0.0, %v974
      %976 = vmatprep.mubr.f32.mxu0 0.0
      %977 = vmatmul.mubr.f32.gmra.mxu0 %v577
      %v978 = vpop.f32.mrf.mxu0
      %v979 = vadd.f32 0.0, %v978
      %v980 = vpop.f32.mrf.mxu0
      %v981 = vadd.f32 0.0, %v980
      %982 = vmatprep.mubr.f32.mxu0 0.0
      %983 = vmatmul.mubr.f32.gmra.mxu0 %v580
      %v984 = vpop.f32.mrf.mxu0
      %v985 = vadd.f32 0.0, %v984
      %v986 = vpop.f32.mrf.mxu0
      %v987 = vadd.f32 0.0, %v986
      %988 = vmatprep.mubr.f32.mxu0 0.0
      %989 = vmatmul.mubr.f32.gmra.mxu0 %v583
      %v990 = vpop.f32.mrf.mxu0
      %v991 = vadd.f32 0.0, %v990
      %v992 = vpop.f32.mrf.mxu0
      %v993 = vadd.f32 0.0, %v992
      %994 = vmatprep.mubr.f32.mxu0 0.0
      %995 = vmatmul.mubr.f32.gmra.mxu0 %v586
      %v996 = vpop.f32.mrf.mxu0
      %v997 = vadd.f32 0.0, %v996
      %v998 = vpop.f32.mrf.mxu0
      %v999 = vadd.f32 0.0, %v998
      %1000 = vmatprep.mubr.f32.mxu0 0.0
      %1001 = vmatmul.mubr.f32.gmra.mxu0 %v589
      %v1002 = vpop.f32.mrf.mxu0
      %v1003 = vadd.f32 0.0, %v1002
      %v1004 = vpop.f32.mrf.mxu0
      %v1005 = vadd.f32 0.0, %v1004
      %1006 = vmatprep.mubr.f32.mxu0 0.0
      %1007 = vmatmul.mubr.f32.gmra.mxu0 %v592
      %v1008 = vpop.f32.mrf.mxu0
      %v1009 = vadd.f32 0.0, %v1008
      %v1010 = vpop.f32.mrf.mxu0
      %v1011 = vadd.f32 0.0, %v1010
      %1012 = vmatprep.mubr.f32.mxu0 0.0
      %1013 = vmatmul.mubr.f32.gmra.mxu0 %v595
      %v1014 = vpop.f32.mrf.mxu0
      %v1015 = vadd.f32 0.0, %v1014
      %v1016 = vpop.f32.mrf.mxu0
      %v1017 = vadd.f32 0.0, %v1016
      %1018 = vmatprep.mubr.f32.mxu0 0.0
      %1019 = vmatmul.mubr.f32.gmra.mxu0 %v598
      %v1020 = vpop.f32.mrf.mxu0
      %v1021 = vadd.f32 0.0, %v1020
      %v1022 = vpop.f32.mrf.mxu0
      %v1023 = vadd.f32 0.0, %v1022
      %1024 = vmatprep.mubr.f32.mxu0 0.0
      %1025 = vmatmul.mubr.f32.gmra.mxu0 %v601
      %v1026 = vpop.f32.mrf.mxu0
      %v1027 = vadd.f32 0.0, %v1026
      %v1028 = vpop.f32.mrf.mxu0
      %v1029 = vadd.f32 0.0, %v1028
      %1030 = vmatprep.mubr.f32.mxu0 0.0
      %1031 = vmatmul.mubr.f32.gmra.mxu0 %v604
      %v1032 = vpop.f32.mrf.mxu0
      %v1033 = vadd.f32 0.0, %v1032
      %v1034 = vpop.f32.mrf.mxu0
      %v1035 = vadd.f32 0.0, %v1034
      %1036 = vmatprep.mubr.f32.mxu0 0.0
      %1037 = vmatmul.mubr.f32.gmra.mxu0 %v607
      %v1038 = vpop.f32.mrf.mxu0
      %v1039 = vadd.f32 0.0, %v1038
      %v1040 = vpop.f32.mrf.mxu0
      %v1041 = vadd.f32 0.0, %v1040
      %1042 = vmatprep.mubr.f32.mxu0 0.0
      %1043 = vmatmul.mubr.f32.gmra.mxu0 %v610
      %v1044 = vpop.f32.mrf.mxu0
      %v1045 = vadd.f32 0.0, %v1044
      %v1046 = vpop.f32.mrf.mxu0
      %v1047 = vadd.f32 0.0, %v1046
      %1048 = vmatprep.mubr.f32.mxu0 0.0
      %1049 = vmatmul.mubr.f32.gmra.mxu0 %v613
      %v1050 = vpop.f32.mrf.mxu0
      %v1051 = vadd.f32 0.0, %v1050
      %v1052 = vpop.f32.mrf.mxu0
      %v1053 = vadd.f32 0.0, %v1052
      %1054 = vmatprep.mubr.f32.mxu0 0.0
      %1055 = vmatmul.mubr.f32.gmra.mxu0 %v616
      %v1056 = vpop.f32.mrf.mxu0
      %v1057 = vadd.f32 0.0, %v1056
      %v1058 = vpop.f32.mrf.mxu0
      %v1059 = vadd.f32 0.0, %v1058
      %1060 = vmatprep.mubr.f32.mxu0 0.0
      %1061 = vmatmul.mubr.f32.gmra.mxu0 %v619
      %v1062 = vpop.f32.mrf.mxu0
      %v1063 = vadd.f32 0.0, %v1062
      %v1064 = vpop.f32.mrf.mxu0
      %v1065 = vadd.f32 0.0, %v1064
      %1066 = vmatprep.mubr.f32.mxu0 0.0
      %1067 = vmatmul.mubr.f32.gmra.mxu0 %v622
      %v1068 = vpop.f32.mrf.mxu0
      %v1069 = vadd.f32 0.0, %v1068
      %v1070 = vpop.f32.mrf.mxu0
      %v1071 = vadd.f32 0.0, %v1070
      %1072 = vmatprep.mubr.f32.mxu0 0.0
      %1073 = vmatmul.mubr.f32.gmra.mxu0 %v625
      %v1074 = vpop.f32.mrf.mxu0
      %v1075 = vadd.f32 0.0, %v1074
      %v1076 = vpop.f32.mrf.mxu0
      %v1077 = vadd.f32 0.0, %v1076
      %1078 = vmatprep.mubr.f32.mxu0 0.0
      %1079 = vmatmul.mubr.f32.gmra.mxu0 %v628
      %v1080 = vpop.f32.mrf.mxu0
      %v1081 = vadd.f32 0.0, %v1080
      %v1082 = vpop.f32.mrf.mxu0
      %v1083 = vadd.f32 0.0, %v1082
      %1084 = vdwg.mxu0
      %v1086 = vsel %vm551, %v490, 0
      %v1089 = vsel %vm630, %v530, 0
      %v1092 = vsel %vm630, %v531, 0
      %v1095 = vsel %vm630, %v532, 0
      %v1098 = vsel %vm630, %v533, 0
      %1100 = vmatprep.subr.mxu0 0.0
      %1101 = vmatpush1.msra.mxu0 0.0
      %1102 = vmatprep.subr.mxu0 0.0
      %1103 = vmatpush1.msra.mxu0 0.0
      %1104 = vmatprep.subr.mxu0 0.0
      %1105 = vmatpush1.msra.mxu0 0.0
      %1106 = vmatprep.subr.mxu0 0.0
      %1107 = vmatpush1.msra.mxu0 0.0
      %1108 = vmatprep.subr.mxu0 0.0
      %1109 = vmatpush1.msra.mxu0 0.0
      %1110 = vmatprep.subr.mxu0 0.0
      %1111 = vmatpush1.msra.mxu0 0.0
      %1112 = vmatprep.subr.mxu0 0.0
      %1113 = vmatpush1.msra.mxu0 0.0
      %1114 = vmatprep.subr.mxu0 0.0
      %1115 = vmatpush1.msra.mxu0 0.0
      %1116 = vmatprep.subr.mxu0 0.0
      %1117 = vmatpush1.msra.mxu0 0.0
      %1118 = vmatprep.subr.mxu0 0.0
      %1119 = vmatpush1.msra.mxu0 0.0
      %1120 = vmatprep.subr.mxu0 0.0
      %1121 = vmatpush1.msra.mxu0 0.0
      %1122 = vmatprep.subr.mxu0 0.0
      %1123 = vmatpush1.msra.mxu0 0.0
      %1124 = vmatprep.subr.mxu0 %v1092
      %1125 = vmatpush1.msra.mxu0 %v1089
      %1126 = vmatprep.subr.mxu0 %v527
      %1127 = vmatpush1.msra.mxu0 %v526
      %1128 = vmatprep.subr.mxu0 %v523
      %1129 = vmatpush1.msra.mxu0 %v522
      %1130 = vmatprep.subr.mxu0 %v519
      %1131 = vmatpush1.msra.mxu0 %v518
      %1132 = vmatprep.subr.mxu0 0.0
      %1133 = vmatpush2.msra.mxu0 0.0
      %1134 = vmatprep.subr.mxu0 0.0
      %1135 = vmatpush2.msra.mxu0 0.0
      %1136 = vmatprep.subr.mxu0 0.0
      %1137 = vmatpush2.msra.mxu0 0.0
      %1138 = vmatprep.subr.mxu0 0.0
      %1139 = vmatpush2.msra.mxu0 0.0
      %1140 = vmatprep.subr.mxu0 0.0
      %1141 = vmatpush2.msra.mxu0 0.0
      %1142 = vmatprep.subr.mxu0 0.0
      %1143 = vmatpush2.msra.mxu0 0.0
      %1144 = vmatprep.subr.mxu0 0.0
      %1145 = vmatpush2.msra.mxu0 0.0
      %1146 = vmatprep.subr.mxu0 0.0
      %1147 = vmatpush2.msra.mxu0 0.0
      %1148 = vmatprep.subr.mxu0 0.0
      %1149 = vmatpush2.msra.mxu0 0.0
      %1150 = vmatprep.subr.mxu0 0.0
      %1151 = vmatpush2.msra.mxu0 0.0
      %1152 = vmatprep.subr.mxu0 0.0
      %1153 = vmatpush2.msra.mxu0 0.0
      %1154 = vmatprep.subr.mxu0 0.0
      %1155 = vmatpush2.msra.mxu0 0.0
      %1156 = vmatprep.subr.mxu0 0.0
      %1157 = vmatpush2.msra.mxu0 0.0
      %1158 = vmatprep.subr.mxu0 0.0
      %1159 = vmatpush2.msra.mxu0 0.0
      %1160 = vmatprep.subr.mxu0 0.0
      %1161 = vmatpush2.msra.mxu0 0.0
      %1162 = vmatprep.subr.mxu0 0.0
      %1163 = vmatpush2.msra.mxu0 0.0
      %1164 = vmatprep.mubr.f32.mxu0 0.0
      %1165 = vmatmul.mubr.f32.gmra.mxu0 %v1086
      %v1166 = vpop.f32.mrf.mxu0
      %v1167 = vadd.f32 %v710, %v1166
      %v1168 = vpop.f32.mrf.mxu0
      %v1169 = vadd.f32 %v712, %v1168
      %1170 = vmatprep.mubr.f32.mxu0 0.0
      %1171 = vmatmul.mubr.f32.gmra.mxu0 %v553
      %v1172 = vpop.f32.mrf.mxu0
      %v1173 = vadd.f32 %v716, %v1172
      %v1174 = vpop.f32.mrf.mxu0
      %v1175 = vadd.f32 %v718, %v1174
      %1176 = vmatprep.mubr.f32.mxu0 0.0
      %1177 = vmatmul.mubr.f32.gmra.mxu0 %v556
      %v1178 = vpop.f32.mrf.mxu0
      %v1179 = vadd.f32 %v722, %v1178
      %v1180 = vpop.f32.mrf.mxu0
      %v1181 = vadd.f32 %v724, %v1180
      %1182 = vmatprep.mubr.f32.mxu0 0.0
      %1183 = vmatmul.mubr.f32.gmra.mxu0 %v559
      %v1184 = vpop.f32.mrf.mxu0
      %v1185 = vadd.f32 %v728, %v1184
      %v1186 = vpop.f32.mrf.mxu0
      %v1187 = vadd.f32 %v730, %v1186
      %1188 = vmatprep.mubr.f32.mxu0 0.0
      %1189 = vmatmul.mubr.f32.gmra.mxu0 %v562
      %v1190 = vpop.f32.mrf.mxu0
      %v1191 = vadd.f32 %v734, %v1190
      %v1192 = vpop.f32.mrf.mxu0
      %v1193 = vadd.f32 %v736, %v1192
      %1194 = vmatprep.mubr.f32.mxu0 0.0
      %1195 = vmatmul.mubr.f32.gmra.mxu0 %v565
      %v1196 = vpop.f32.mrf.mxu0
      %v1197 = vadd.f32 %v740, %v1196
      %v1198 = vpop.f32.mrf.mxu0
      %v1199 = vadd.f32 %v742, %v1198
      %1200 = vmatprep.mubr.f32.mxu0 0.0
      %1201 = vmatmul.mubr.f32.gmra.mxu0 %v568
      %v1202 = vpop.f32.mrf.mxu0
      %v1203 = vadd.f32 %v746, %v1202
      %v1204 = vpop.f32.mrf.mxu0
      %v1205 = vadd.f32 %v748, %v1204
      %1206 = vmatprep.mubr.f32.mxu0 0.0
      %1207 = vmatmul.mubr.f32.gmra.mxu0 %v571
      %v1208 = vpop.f32.mrf.mxu0
      %v1209 = vadd.f32 %v752, %v1208
      %v1210 = vpop.f32.mrf.mxu0
      %v1211 = vadd.f32 %v754, %v1210
      %1212 = vmatprep.mubr.f32.mxu0 0.0
      %1213 = vmatmul.mubr.f32.gmra.mxu0 %v574
      %v1214 = vpop.f32.mrf.mxu0
      %v1215 = vadd.f32 %v758, %v1214
      %v1216 = vpop.f32.mrf.mxu0
      %v1217 = vadd.f32 %v760, %v1216
      %1218 = vmatprep.mubr.f32.mxu0 0.0
      %1219 = vmatmul.mubr.f32.gmra.mxu0 %v577
      %v1220 = vpop.f32.mrf.mxu0
      %v1221 = vadd.f32 %v764, %v1220
      %v1222 = vpop.f32.mrf.mxu0
      %v1223 = vadd.f32 %v766, %v1222
      %1224 = vmatprep.mubr.f32.mxu0 0.0
      %1225 = vmatmul.mubr.f32.gmra.mxu0 %v580
      %v1226 = vpop.f32.mrf.mxu0
      %v1227 = vadd.f32 %v770, %v1226
      %v1228 = vpop.f32.mrf.mxu0
      %v1229 = vadd.f32 %v772, %v1228
      %1230 = vmatprep.mubr.f32.mxu0 0.0
      %1231 = vmatmul.mubr.f32.gmra.mxu0 %v583
      %v1232 = vpop.f32.mrf.mxu0
      %v1233 = vadd.f32 %v776, %v1232
      %v1234 = vpop.f32.mrf.mxu0
      %v1235 = vadd.f32 %v778, %v1234
      %1236 = vmatprep.mubr.f32.mxu0 0.0
      %1237 = vmatmul.mubr.f32.gmra.mxu0 %v586
      %v1238 = vpop.f32.mrf.mxu0
      %v1239 = vadd.f32 %v782, %v1238
      %v1240 = vpop.f32.mrf.mxu0
      %v1241 = vadd.f32 %v784, %v1240
      %1242 = vmatprep.mubr.f32.mxu0 0.0
      %1243 = vmatmul.mubr.f32.gmra.mxu0 %v589
      %v1244 = vpop.f32.mrf.mxu0
      %v1245 = vadd.f32 %v788, %v1244
      %v1246 = vpop.f32.mrf.mxu0
      %v1247 = vadd.f32 %v790, %v1246
      %1248 = vmatprep.mubr.f32.mxu0 0.0
      %1249 = vmatmul.mubr.f32.gmra.mxu0 %v592
      %v1250 = vpop.f32.mrf.mxu0
      %v1251 = vadd.f32 %v794, %v1250
      %v1252 = vpop.f32.mrf.mxu0
      %v1253 = vadd.f32 %v796, %v1252
      %1254 = vmatprep.mubr.f32.mxu0 0.0
      %1255 = vmatmul.mubr.f32.gmra.mxu0 %v595
      %v1256 = vpop.f32.mrf.mxu0
      %v1257 = vadd.f32 %v800, %v1256
      %v1258 = vpop.f32.mrf.mxu0
      %v1259 = vadd.f32 %v802, %v1258
      %1260 = vmatprep.mubr.f32.mxu0 0.0
      %1261 = vmatmul.mubr.f32.gmra.mxu0 %v598
      %v1262 = vpop.f32.mrf.mxu0
      %v1263 = vadd.f32 %v806, %v1262
      %v1264 = vpop.f32.mrf.mxu0
      %v1265 = vadd.f32 %v808, %v1264
      %1266 = vmatprep.mubr.f32.mxu0 0.0
      %1267 = vmatmul.mubr.f32.gmra.mxu0 %v601
      %v1268 = vpop.f32.mrf.mxu0
      %v1269 = vadd.f32 %v812, %v1268
      %v1270 = vpop.f32.mrf.mxu0
      %v1271 = vadd.f32 %v814, %v1270
      %1272 = vmatprep.mubr.f32.mxu0 0.0
      %1273 = vmatmul.mubr.f32.gmra.mxu0 %v604
      %v1274 = vpop.f32.mrf.mxu0
      %v1275 = vadd.f32 %v818, %v1274
      %v1276 = vpop.f32.mrf.mxu0
      %v1277 = vadd.f32 %v820, %v1276
      %1278 = vmatprep.mubr.f32.mxu0 0.0
      %1279 = vmatmul.mubr.f32.gmra.mxu0 %v607
      %v1280 = vpop.f32.mrf.mxu0
      %v1281 = vadd.f32 %v824, %v1280
      %v1282 = vpop.f32.mrf.mxu0
      %v1283 = vadd.f32 %v826, %v1282
      %1284 = vmatprep.mubr.f32.mxu0 0.0
      %1285 = vmatmul.mubr.f32.gmra.mxu0 %v610
      %v1286 = vpop.f32.mrf.mxu0
      %v1287 = vadd.f32 %v830, %v1286
      %v1288 = vpop.f32.mrf.mxu0
      %v1289 = vadd.f32 %v832, %v1288
      %1290 = vmatprep.mubr.f32.mxu0 0.0
      %1291 = vmatmul.mubr.f32.gmra.mxu0 %v613
      %v1292 = vpop.f32.mrf.mxu0
      %v1293 = vadd.f32 %v836, %v1292
      %v1294 = vpop.f32.mrf.mxu0
      %v1295 = vadd.f32 %v838, %v1294
      %1296 = vmatprep.mubr.f32.mxu0 0.0
      %1297 = vmatmul.mubr.f32.gmra.mxu0 %v616
      %v1298 = vpop.f32.mrf.mxu0
      %v1299 = vadd.f32 %v842, %v1298
      %v1300 = vpop.f32.mrf.mxu0
      %v1301 = vadd.f32 %v844, %v1300
      %1302 = vmatprep.mubr.f32.mxu0 0.0
      %1303 = vmatmul.mubr.f32.gmra.mxu0 %v619
      %v1304 = vpop.f32.mrf.mxu0
      %v1305 = vadd.f32 %v848, %v1304
      %v1306 = vpop.f32.mrf.mxu0
      %v1307 = vadd.f32 %v850, %v1306
      %1308 = vmatprep.mubr.f32.mxu0 0.0
      %1309 = vmatmul.mubr.f32.gmra.mxu0 %v622
      %v1310 = vpop.f32.mrf.mxu0
      %v1311 = vadd.f32 %v854, %v1310
      %v1312 = vpop.f32.mrf.mxu0
      %v1313 = vadd.f32 %v856, %v1312
      %1314 = vmatprep.mubr.f32.mxu0 0.0
      %1315 = vmatmul.mubr.f32.gmra.mxu0 %v625
      %v1316 = vpop.f32.mrf.mxu0
      %v1317 = vadd.f32 %v860, %v1316
      %v1318 = vpop.f32.mrf.mxu0
      %v1319 = vadd.f32 %v862, %v1318
      %1320 = vdwg.mxu0
      %1321 = vmatprep.subr.mxu0 0.0
      %1322 = vmatpush1.msra.mxu0 0.0
      %1323 = vmatprep.subr.mxu0 0.0
      %1324 = vmatpush1.msra.mxu0 0.0
      %1325 = vmatprep.subr.mxu0 0.0
      %1326 = vmatpush1.msra.mxu0 0.0
      %1327 = vmatprep.subr.mxu0 0.0
      %1328 = vmatpush1.msra.mxu0 0.0
      %1329 = vmatprep.subr.mxu0 0.0
      %1330 = vmatpush1.msra.mxu0 0.0
      %1331 = vmatprep.subr.mxu0 0.0
      %1332 = vmatpush1.msra.mxu0 0.0
      %1333 = vmatprep.subr.mxu0 0.0
      %1334 = vmatpush1.msra.mxu0 0.0
      %1335 = vmatprep.subr.mxu0 0.0
      %1336 = vmatpush1.msra.mxu0 0.0
      %1337 = vmatprep.subr.mxu0 0.0
      %1338 = vmatpush1.msra.mxu0 0.0
      %1339 = vmatprep.subr.mxu0 0.0
      %1340 = vmatpush1.msra.mxu0 0.0
      %1341 = vmatprep.subr.mxu0 0.0
      %1342 = vmatpush1.msra.mxu0 0.0
      %1343 = vmatprep.subr.mxu0 0.0
      %1344 = vmatpush1.msra.mxu0 0.0
      %1345 = vmatprep.subr.mxu0 %v1098
      %1346 = vmatpush1.msra.mxu0 %v1095
      %1347 = vmatprep.subr.mxu0 %v529
      %1348 = vmatpush1.msra.mxu0 %v528
      %1349 = vmatprep.subr.mxu0 %v525
      %1350 = vmatpush1.msra.mxu0 %v524
      %1351 = vmatprep.subr.mxu0 %v521
      %1352 = vmatpush1.msra.mxu0 %v520
      %1353 = vmatprep.subr.mxu0 0.0
      %1354 = vmatpush2.msra.mxu0 0.0
      %1355 = vmatprep.subr.mxu0 0.0
      %1356 = vmatpush2.msra.mxu0 0.0
      %1357 = vmatprep.subr.mxu0 0.0
      %1358 = vmatpush2.msra.mxu0 0.0
      %1359 = vmatprep.subr.mxu0 0.0
      %1360 = vmatpush2.msra.mxu0 0.0
      %1361 = vmatprep.subr.mxu0 0.0
      %1362 = vmatpush2.msra.mxu0 0.0
      %1363 = vmatprep.subr.mxu0 0.0
      %1364 = vmatpush2.msra.mxu0 0.0
      %1365 = vmatprep.subr.mxu0 0.0
      %1366 = vmatpush2.msra.mxu0 0.0
      %1367 = vmatprep.subr.mxu0 0.0
      %1368 = vmatpush2.msra.mxu0 0.0
      %1369 = vmatprep.subr.mxu0 0.0
      %1370 = vmatpush2.msra.mxu0 0.0
      %1371 = vmatprep.subr.mxu0 0.0
      %1372 = vmatpush2.msra.mxu0 0.0
      %1373 = vmatprep.subr.mxu0 0.0
      %1374 = vmatpush2.msra.mxu0 0.0
      %1375 = vmatprep.subr.mxu0 0.0
      %1376 = vmatpush2.msra.mxu0 0.0
      %1377 = vmatprep.subr.mxu0 0.0
      %1378 = vmatpush2.msra.mxu0 0.0
      %1379 = vmatprep.subr.mxu0 0.0
      %1380 = vmatpush2.msra.mxu0 0.0
      %1381 = vmatprep.subr.mxu0 0.0
      %1382 = vmatpush2.msra.mxu0 0.0
      %1383 = vmatprep.subr.mxu0 0.0
      %1384 = vmatpush2.msra.mxu0 0.0
      %1385 = vmatprep.mubr.f32.mxu0 0.0
      %1386 = vmatmul.mubr.f32.gmra.mxu0 %v1086
      %v1387 = vpop.f32.mrf.mxu0
      %v1388 = vadd.f32 %v931, %v1387
      %v1389 = vpop.f32.mrf.mxu0
      %v1390 = vadd.f32 %v933, %v1389
      %1391 = vmatprep.mubr.f32.mxu0 0.0
      %1392 = vmatmul.mubr.f32.gmra.mxu0 %v553
      %v1393 = vpop.f32.mrf.mxu0
      %v1394 = vadd.f32 %v937, %v1393
      %v1395 = vpop.f32.mrf.mxu0
      %v1396 = vadd.f32 %v939, %v1395
      %1397 = vmatprep.mubr.f32.mxu0 0.0
      %1398 = vmatmul.mubr.f32.gmra.mxu0 %v556
      %v1399 = vpop.f32.mrf.mxu0
      %v1400 = vadd.f32 %v943, %v1399
      %v1401 = vpop.f32.mrf.mxu0
      %v1402 = vadd.f32 %v945, %v1401
      %1403 = vmatprep.mubr.f32.mxu0 0.0
      %1404 = vmatmul.mubr.f32.gmra.mxu0 %v559
      %v1405 = vpop.f32.mrf.mxu0
      %v1406 = vadd.f32 %v949, %v1405
      %v1407 = vpop.f32.mrf.mxu0
      %v1408 = vadd.f32 %v951, %v1407
      %1409 = vmatprep.mubr.f32.mxu0 0.0
      %1410 = vmatmul.mubr.f32.gmra.mxu0 %v562
      %v1411 = vpop.f32.mrf.mxu0
      %v1412 = vadd.f32 %v955, %v1411
      %v1413 = vpop.f32.mrf.mxu0
      %v1414 = vadd.f32 %v957, %v1413
      %1415 = vmatprep.mubr.f32.mxu0 0.0
      %1416 = vmatmul.mubr.f32.gmra.mxu0 %v565
      %v1417 = vpop.f32.mrf.mxu0
      %v1418 = vadd.f32 %v961, %v1417
      %v1419 = vpop.f32.mrf.mxu0
      %v1420 = vadd.f32 %v963, %v1419
      %1421 = vmatprep.mubr.f32.mxu0 0.0
      %1422 = vmatmul.mubr.f32.gmra.mxu0 %v568
      %v1423 = vpop.f32.mrf.mxu0
      %v1424 = vadd.f32 %v967, %v1423
      %v1425 = vpop.f32.mrf.mxu0
      %v1426 = vadd.f32 %v969, %v1425
      %1427 = vmatprep.mubr.f32.mxu0 0.0
      %1428 = vmatmul.mubr.f32.gmra.mxu0 %v571
      %v1429 = vpop.f32.mrf.mxu0
      %v1430 = vadd.f32 %v973, %v1429
      %v1431 = vpop.f32.mrf.mxu0
      %v1432 = vadd.f32 %v975, %v1431
      %1433 = vmatprep.mubr.f32.mxu0 0.0
      %1434 = vmatmul.mubr.f32.gmra.mxu0 %v574
      %v1435 = vpop.f32.mrf.mxu0
      %v1436 = vadd.f32 %v979, %v1435
      %v1437 = vpop.f32.mrf.mxu0
      %v1438 = vadd.f32 %v981, %v1437
      %1439 = vmatprep.mubr.f32.mxu0 0.0
      %1440 = vmatmul.mubr.f32.gmra.mxu0 %v577
      %v1441 = vpop.f32.mrf.mxu0
      %v1442 = vadd.f32 %v985, %v1441
      %v1443 = vpop.f32.mrf.mxu0
      %v1444 = vadd.f32 %v987, %v1443
      %1445 = vmatprep.mubr.f32.mxu0 0.0
      %1446 = vmatmul.mubr.f32.gmra.mxu0 %v580
      %v1447 = vpop.f32.mrf.mxu0
      %v1448 = vadd.f32 %v991, %v1447
      %v1449 = vpop.f32.mrf.mxu0
      %v1450 = vadd.f32 %v993, %v1449
      %1451 = vmatprep.mubr.f32.mxu0 0.0
      %1452 = vmatmul.mubr.f32.gmra.mxu0 %v583
      %v1453 = vpop.f32.mrf.mxu0
      %v1454 = vadd.f32 %v997, %v1453
      %v1455 = vpop.f32.mrf.mxu0
      %v1456 = vadd.f32 %v999, %v1455
      %1457 = vmatprep.mubr.f32.mxu0 0.0
      %1458 = vmatmul.mubr.f32.gmra.mxu0 %v586
      %v1459 = vpop.f32.mrf.mxu0
      %v1460 = vadd.f32 %v1003, %v1459
      %v1461 = vpop.f32.mrf.mxu0
      %v1462 = vadd.f32 %v1005, %v1461
      %1463 = vmatprep.mubr.f32.mxu0 0.0
      %1464 = vmatmul.mubr.f32.gmra.mxu0 %v589
      %v1465 = vpop.f32.mrf.mxu0
      %v1466 = vadd.f32 %v1009, %v1465
      %v1467 = vpop.f32.mrf.mxu0
      %v1468 = vadd.f32 %v1011, %v1467
      %1469 = vmatprep.mubr.f32.mxu0 0.0
      %1470 = vmatmul.mubr.f32.gmra.mxu0 %v592
      %v1471 = vpop.f32.mrf.mxu0
      %v1472 = vadd.f32 %v1015, %v1471
      %v1473 = vpop.f32.mrf.mxu0
      %v1474 = vadd.f32 %v1017, %v1473
      %1475 = vmatprep.mubr.f32.mxu0 0.0
      %1476 = vmatmul.mubr.f32.gmra.mxu0 %v595
      %v1477 = vpop.f32.mrf.mxu0
      %v1478 = vadd.f32 %v1021, %v1477
      %v1479 = vpop.f32.mrf.mxu0
      %v1480 = vadd.f32 %v1023, %v1479
      %1481 = vmatprep.mubr.f32.mxu0 0.0
      %1482 = vmatmul.mubr.f32.gmra.mxu0 %v598
      %v1483 = vpop.f32.mrf.mxu0
      %v1484 = vadd.f32 %v1027, %v1483
      %v1485 = vpop.f32.mrf.mxu0
      %v1486 = vadd.f32 %v1029, %v1485
      %1487 = vmatprep.mubr.f32.mxu0 0.0
      %1488 = vmatmul.mubr.f32.gmra.mxu0 %v601
      %v1489 = vpop.f32.mrf.mxu0
      %v1490 = vadd.f32 %v1033, %v1489
      %v1491 = vpop.f32.mrf.mxu0
      %v1492 = vadd.f32 %v1035, %v1491
      %1493 = vmatprep.mubr.f32.mxu0 0.0
      %1494 = vmatmul.mubr.f32.gmra.mxu0 %v604
      %v1495 = vpop.f32.mrf.mxu0
      %v1496 = vadd.f32 %v1039, %v1495
      %v1497 = vpop.f32.mrf.mxu0
      %v1498 = vadd.f32 %v1041, %v1497
      %1499 = vmatprep.mubr.f32.mxu0 0.0
      %1500 = vmatmul.mubr.f32.gmra.mxu0 %v607
      %v1501 = vpop.f32.mrf.mxu0
      %v1502 = vadd.f32 %v1045, %v1501
      %v1503 = vpop.f32.mrf.mxu0
      %v1504 = vadd.f32 %v1047, %v1503
      %1505 = vmatprep.mubr.f32.mxu0 0.0
      %1506 = vmatmul.mubr.f32.gmra.mxu0 %v610
      %v1507 = vpop.f32.mrf.mxu0
      %v1508 = vadd.f32 %v1051, %v1507
      %v1509 = vpop.f32.mrf.mxu0
      %v1510 = vadd.f32 %v1053, %v1509
      %1511 = vmatprep.mubr.f32.mxu0 0.0
      %1512 = vmatmul.mubr.f32.gmra.mxu0 %v613
      %v1513 = vpop.f32.mrf.mxu0
      %v1514 = vadd.f32 %v1057, %v1513
      %v1515 = vpop.f32.mrf.mxu0
      %v1516 = vadd.f32 %v1059, %v1515
      %1517 = vmatprep.mubr.f32.mxu0 0.0
      %1518 = vmatmul.mubr.f32.gmra.mxu0 %v616
      %v1519 = vpop.f32.mrf.mxu0
      %v1520 = vadd.f32 %v1063, %v1519
      %v1521 = vpop.f32.mrf.mxu0
      %v1522 = vadd.f32 %v1065, %v1521
      %1523 = vmatprep.mubr.f32.mxu0 0.0
      %1524 = vmatmul.mubr.f32.gmra.mxu0 %v619
      %v1525 = vpop.f32.mrf.mxu0
      %v1526 = vadd.f32 %v1069, %v1525
      %v1527 = vpop.f32.mrf.mxu0
      %v1528 = vadd.f32 %v1071, %v1527
      %1529 = vmatprep.mubr.f32.mxu0 0.0
      %1530 = vmatmul.mubr.f32.gmra.mxu0 %v622
      %v1531 = vpop.f32.mrf.mxu0
      %v1532 = vadd.f32 %v1075, %v1531
      %v1533 = vpop.f32.mrf.mxu0
      %v1534 = vadd.f32 %v1077, %v1533
      %1535 = vmatprep.mubr.f32.mxu0 0.0
      %1536 = vmatmul.mubr.f32.gmra.mxu0 %v625
      %v1537 = vpop.f32.mrf.mxu0
      %v1538 = vadd.f32 %v1081, %v1537
      %v1539 = vpop.f32.mrf.mxu0
      %v1540 = vadd.f32 %v1083, %v1539
      %1541 = vdwg.mxu0
      %s1542 = scalar_lea.vmem %s453, 256
      %v1543 = vld [vmem:[%s1542] sm:$0xff]
      %v1544 = vld [vmem:[%s1542 + $0x8] sm:$0xff]
      %v1545 = vld [vmem:[%s1542 + $0x10] sm:$0xff]
      %v1546 = vld [vmem:[%s1542 + $0x18] sm:$0xff]
      %v1547 = vld [vmem:[%s1542 + $0x20] sm:$0xff]
      %v1548 = vld [vmem:[%s1542 + $0x28] sm:$0xff]
      %v1549 = vld [vmem:[%s1542 + $0x30] sm:$0xff]
      %v1550 = vld [vmem:[%s1542 + $0x38] sm:$0xff]
      %v1551 = vld [vmem:[%s1542 + $0x40] sm:$0xff]
      %v1552 = vld [vmem:[%s1542 + $0x48] sm:$0xff]
      %v1553 = vld [vmem:[%s1542 + $0x50] sm:$0xff]
      %v1554 = vld [vmem:[%s1542 + $0x58] sm:$0xff]
      %v1555 = vld [vmem:[%s1542 + $0x60] sm:$0xf]
      %v1556 = vld [vmem:[%s1542 + $0x68] sm:$0xf]
      %v1557 = vld [vmem:[%s1542 + $0x70] sm:$0xf]
      %v1558 = vld [vmem:[%s1542 + $0x78] sm:$0xf]
      %v1560 = vsel %vm551, %v517, 0
      %v1563 = vsel %vm630, %v1555, 0
      %v1566 = vsel %vm630, %v1556, 0
      %v1569 = vsel %vm630, %v1557, 0
      %v1572 = vsel %vm630, %v1558, 0
      %1574 = vmatprep.subr.mxu0 0.0
      %1575 = vmatpush1.msra.mxu0 0.0
      %1576 = vmatprep.subr.mxu0 0.0
      %1577 = vmatpush1.msra.mxu0 0.0
      %1578 = vmatprep.subr.mxu0 0.0
      %1579 = vmatpush1.msra.mxu0 0.0
      %1580 = vmatprep.subr.mxu0 0.0
      %1581 = vmatpush1.msra.mxu0 0.0
      %1582 = vmatprep.subr.mxu0 0.0
      %1583 = vmatpush1.msra.mxu0 0.0
      %1584 = vmatprep.subr.mxu0 0.0
      %1585 = vmatpush1.msra.mxu0 0.0
      %1586 = vmatprep.subr.mxu0 0.0
      %1587 = vmatpush1.msra.mxu0 0.0
      %1588 = vmatprep.subr.mxu0 0.0
      %1589 = vmatpush1.msra.mxu0 0.0
      %1590 = vmatprep.subr.mxu0 0.0
      %1591 = vmatpush1.msra.mxu0 0.0
      %1592 = vmatprep.subr.mxu0 0.0
      %1593 = vmatpush1.msra.mxu0 0.0
      %1594 = vmatprep.subr.mxu0 0.0
      %1595 = vmatpush1.msra.mxu0 0.0
      %1596 = vmatprep.subr.mxu0 0.0
      %1597 = vmatpush1.msra.mxu0 0.0
      %1598 = vmatprep.subr.mxu0 %v1566
      %1599 = vmatpush1.msra.mxu0 %v1563
      %1600 = vmatprep.subr.mxu0 %v1552
      %1601 = vmatpush1.msra.mxu0 %v1551
      %1602 = vmatprep.subr.mxu0 %v1548
      %1603 = vmatpush1.msra.mxu0 %v1547
      %1604 = vmatprep.subr.mxu0 %v1544
      %1605 = vmatpush1.msra.mxu0 %v1543
      %1606 = vmatprep.subr.mxu0 0.0
      %1607 = vmatpush2.msra.mxu0 0.0
      %1608 = vmatprep.subr.mxu0 0.0
      %1609 = vmatpush2.msra.mxu0 0.0
      %1610 = vmatprep.subr.mxu0 0.0
      %1611 = vmatpush2.msra.mxu0 0.0
      %1612 = vmatprep.subr.mxu0 0.0
      %1613 = vmatpush2.msra.mxu0 0.0
      %1614 = vmatprep.subr.mxu0 0.0
      %1615 = vmatpush2.msra.mxu0 0.0
      %1616 = vmatprep.subr.mxu0 0.0
      %1617 = vmatpush2.msra.mxu0 0.0
      %1618 = vmatprep.subr.mxu0 0.0
      %1619 = vmatpush2.msra.mxu0 0.0
      %1620 = vmatprep.subr.mxu0 0.0
      %1621 = vmatpush2.msra.mxu0 0.0
      %1622 = vmatprep.subr.mxu0 0.0
      %1623 = vmatpush2.msra.mxu0 0.0
      %1624 = vmatprep.subr.mxu0 0.0
      %1625 = vmatpush2.msra.mxu0 0.0
      %1626 = vmatprep.subr.mxu0 0.0
      %1627 = vmatpush2.msra.mxu0 0.0
      %1628 = vmatprep.subr.mxu0 0.0
      %1629 = vmatpush2.msra.mxu0 0.0
      %1630 = vmatprep.subr.mxu0 0.0
      %1631 = vmatpush2.msra.mxu0 0.0
      %1632 = vmatprep.subr.mxu0 0.0
      %1633 = vmatpush2.msra.mxu0 0.0
      %1634 = vmatprep.subr.mxu0 0.0
      %1635 = vmatpush2.msra.mxu0 0.0
      %1636 = vmatprep.subr.mxu0 0.0
      %1637 = vmatpush2.msra.mxu0 0.0
      %1638 = vmatprep.mubr.f32.mxu0 0.0
      %1639 = vmatmul.mubr.f32.gmra.mxu0 %v556
      %v1640 = vpop.f32.mrf.mxu0
      %v1641 = vadd.f32 0.0, %v1640
      %v1642 = vpop.f32.mrf.mxu0
      %v1643 = vadd.f32 0.0, %v1642
      %1644 = vmatprep.mubr.f32.mxu0 0.0
      %1645 = vmatmul.mubr.f32.gmra.mxu0 %v559
      %v1646 = vpop.f32.mrf.mxu0
      %v1647 = vadd.f32 0.0, %v1646
      %v1648 = vpop.f32.mrf.mxu0
      %v1649 = vadd.f32 0.0, %v1648
      %1650 = vmatprep.mubr.f32.mxu0 0.0
      %1651 = vmatmul.mubr.f32.gmra.mxu0 %v562
      %v1652 = vpop.f32.mrf.mxu0
      %v1653 = vadd.f32 0.0, %v1652
      %v1654 = vpop.f32.mrf.mxu0
      %v1655 = vadd.f32 0.0, %v1654
      %1656 = vmatprep.mubr.f32.mxu0 0.0
      %1657 = vmatmul.mubr.f32.gmra.mxu0 %v565
      %v1658 = vpop.f32.mrf.mxu0
      %v1659 = vadd.f32 0.0, %v1658
      %v1660 = vpop.f32.mrf.mxu0
      %v1661 = vadd.f32 0.0, %v1660
      %1662 = vmatprep.mubr.f32.mxu0 0.0
      %1663 = vmatmul.mubr.f32.gmra.mxu0 %v568
      %v1664 = vpop.f32.mrf.mxu0
      %v1665 = vadd.f32 0.0, %v1664
      %v1666 = vpop.f32.mrf.mxu0
      %v1667 = vadd.f32 0.0, %v1666
      %1668 = vmatprep.mubr.f32.mxu0 0.0
      %1669 = vmatmul.mubr.f32.gmra.mxu0 %v571
      %v1670 = vpop.f32.mrf.mxu0
      %v1671 = vadd.f32 0.0, %v1670
      %v1672 = vpop.f32.mrf.mxu0
      %v1673 = vadd.f32 0.0, %v1672
      %1674 = vmatprep.mubr.f32.mxu0 0.0
      %1675 = vmatmul.mubr.f32.gmra.mxu0 %v574
      %v1676 = vpop.f32.mrf.mxu0
      %v1677 = vadd.f32 0.0, %v1676
      %v1678 = vpop.f32.mrf.mxu0
      %v1679 = vadd.f32 0.0, %v1678
      %1680 = vmatprep.mubr.f32.mxu0 0.0
      %1681 = vmatmul.mubr.f32.gmra.mxu0 %v577
      %v1682 = vpop.f32.mrf.mxu0
      %v1683 = vadd.f32 0.0, %v1682
      %v1684 = vpop.f32.mrf.mxu0
      %v1685 = vadd.f32 0.0, %v1684
      %1686 = vmatprep.mubr.f32.mxu0 0.0
      %1687 = vmatmul.mubr.f32.gmra.mxu0 %v580
      %v1688 = vpop.f32.mrf.mxu0
      %v1689 = vadd.f32 0.0, %v1688
      %v1690 = vpop.f32.mrf.mxu0
      %v1691 = vadd.f32 0.0, %v1690
      %1692 = vmatprep.mubr.f32.mxu0 0.0
      %1693 = vmatmul.mubr.f32.gmra.mxu0 %v583
      %v1694 = vpop.f32.mrf.mxu0
      %v1695 = vadd.f32 0.0, %v1694
      %v1696 = vpop.f32.mrf.mxu0
      %v1697 = vadd.f32 0.0, %v1696
      %1698 = vmatprep.mubr.f32.mxu0 0.0
      %1699 = vmatmul.mubr.f32.gmra.mxu0 %v586
      %v1700 = vpop.f32.mrf.mxu0
      %v1701 = vadd.f32 0.0, %v1700
      %v1702 = vpop.f32.mrf.mxu0
      %v1703 = vadd.f32 0.0, %v1702
      %1704 = vmatprep.mubr.f32.mxu0 0.0
      %1705 = vmatmul.mubr.f32.gmra.mxu0 %v589
      %v1706 = vpop.f32.mrf.mxu0
      %v1707 = vadd.f32 0.0, %v1706
      %v1708 = vpop.f32.mrf.mxu0
      %v1709 = vadd.f32 0.0, %v1708
      %1710 = vmatprep.mubr.f32.mxu0 0.0
      %1711 = vmatmul.mubr.f32.gmra.mxu0 %v592
      %v1712 = vpop.f32.mrf.mxu0
      %v1713 = vadd.f32 0.0, %v1712
      %v1714 = vpop.f32.mrf.mxu0
      %v1715 = vadd.f32 0.0, %v1714
      %1716 = vmatprep.mubr.f32.mxu0 0.0
      %1717 = vmatmul.mubr.f32.gmra.mxu0 %v595
      %v1718 = vpop.f32.mrf.mxu0
      %v1719 = vadd.f32 0.0, %v1718
      %v1720 = vpop.f32.mrf.mxu0
      %v1721 = vadd.f32 0.0, %v1720
      %1722 = vmatprep.mubr.f32.mxu0 0.0
      %1723 = vmatmul.mubr.f32.gmra.mxu0 %v598
      %v1724 = vpop.f32.mrf.mxu0
      %v1725 = vadd.f32 0.0, %v1724
      %v1726 = vpop.f32.mrf.mxu0
      %v1727 = vadd.f32 0.0, %v1726
      %1728 = vmatprep.mubr.f32.mxu0 0.0
      %1729 = vmatmul.mubr.f32.gmra.mxu0 %v601
      %v1730 = vpop.f32.mrf.mxu0
      %v1731 = vadd.f32 0.0, %v1730
      %v1732 = vpop.f32.mrf.mxu0
      %v1733 = vadd.f32 0.0, %v1732
      %1734 = vmatprep.mubr.f32.mxu0 0.0
      %1735 = vmatmul.mubr.f32.gmra.mxu0 %v604
      %v1736 = vpop.f32.mrf.mxu0
      %v1737 = vadd.f32 0.0, %v1736
      %v1738 = vpop.f32.mrf.mxu0
      %v1739 = vadd.f32 0.0, %v1738
      %1740 = vmatprep.mubr.f32.mxu0 0.0
      %1741 = vmatmul.mubr.f32.gmra.mxu0 %v607
      %v1742 = vpop.f32.mrf.mxu0
      %v1743 = vadd.f32 0.0, %v1742
      %v1744 = vpop.f32.mrf.mxu0
      %v1745 = vadd.f32 0.0, %v1744
      %1746 = vmatprep.mubr.f32.mxu0 0.0
      %1747 = vmatmul.mubr.f32.gmra.mxu0 %v610
      %v1748 = vpop.f32.mrf.mxu0
      %v1749 = vadd.f32 0.0, %v1748
      %v1750 = vpop.f32.mrf.mxu0
      %v1751 = vadd.f32 0.0, %v1750
      %1752 = vmatprep.mubr.f32.mxu0 0.0
      %1753 = vmatmul.mubr.f32.gmra.mxu0 %v613
      %v1754 = vpop.f32.mrf.mxu0
      %v1755 = vadd.f32 0.0, %v1754
      %v1756 = vpop.f32.mrf.mxu0
      %v1757 = vadd.f32 0.0, %v1756
      %1758 = vmatprep.mubr.f32.mxu0 0.0
      %1759 = vmatmul.mubr.f32.gmra.mxu0 %v616
      %v1760 = vpop.f32.mrf.mxu0
      %v1761 = vadd.f32 0.0, %v1760
      %v1762 = vpop.f32.mrf.mxu0
      %v1763 = vadd.f32 0.0, %v1762
      %1764 = vmatprep.mubr.f32.mxu0 0.0
      %1765 = vmatmul.mubr.f32.gmra.mxu0 %v619
      %v1766 = vpop.f32.mrf.mxu0
      %v1767 = vadd.f32 0.0, %v1766
      %v1768 = vpop.f32.mrf.mxu0
      %v1769 = vadd.f32 0.0, %v1768
      %1770 = vmatprep.mubr.f32.mxu0 0.0
      %1771 = vmatmul.mubr.f32.gmra.mxu0 %v622
      %v1772 = vpop.f32.mrf.mxu0
      %v1773 = vadd.f32 0.0, %v1772
      %v1774 = vpop.f32.mrf.mxu0
      %v1775 = vadd.f32 0.0, %v1774
      %1776 = vmatprep.mubr.f32.mxu0 0.0
      %1777 = vmatmul.mubr.f32.gmra.mxu0 %v625
      %v1778 = vpop.f32.mrf.mxu0
      %v1779 = vadd.f32 0.0, %v1778
      %v1780 = vpop.f32.mrf.mxu0
      %v1781 = vadd.f32 0.0, %v1780
      %1782 = vmatprep.mubr.f32.mxu0 0.0
      %1783 = vmatmul.mubr.f32.gmra.mxu0 %v628
      %v1784 = vpop.f32.mrf.mxu0
      %v1785 = vadd.f32 0.0, %v1784
      %v1786 = vpop.f32.mrf.mxu0
      %v1787 = vadd.f32 0.0, %v1786
      %1788 = vmatprep.mubr.f32.mxu0 0.0
      %1789 = vmatmul.mubr.f32.gmra.mxu0 %v1560
      %v1790 = vpop.f32.mrf.mxu0
      %v1791 = vadd.f32 0.0, %v1790
      %v1792 = vpop.f32.mrf.mxu0
      %v1793 = vadd.f32 0.0, %v1792
      %1794 = vdwg.mxu0
      %1795 = vmatprep.subr.mxu0 0.0
      %1796 = vmatpush1.msra.mxu0 0.0
      %1797 = vmatprep.subr.mxu0 0.0
      %1798 = vmatpush1.msra.mxu0 0.0
      %1799 = vmatprep.subr.mxu0 0.0
      %1800 = vmatpush1.msra.mxu0 0.0
      %1801 = vmatprep.subr.mxu0 0.0
      %1802 = vmatpush1.msra.mxu0 0.0
      %1803 = vmatprep.subr.mxu0 0.0
      %1804 = vmatpush1.msra.mxu0 0.0
      %1805 = vmatprep.subr.mxu0 0.0
      %1806 = vmatpush1.msra.mxu0 0.0
      %1807 = vmatprep.subr.mxu0 0.0
      %1808 = vmatpush1.msra.mxu0 0.0
      %1809 = vmatprep.subr.mxu0 0.0
      %1810 = vmatpush1.msra.mxu0 0.0
      %1811 = vmatprep.subr.mxu0 0.0
      %1812 = vmatpush1.msra.mxu0 0.0
      %1813 = vmatprep.subr.mxu0 0.0
      %1814 = vmatpush1.msra.mxu0 0.0
      %1815 = vmatprep.subr.mxu0 0.0
      %1816 = vmatpush1.msra.mxu0 0.0
      %1817 = vmatprep.subr.mxu0 0.0
      %1818 = vmatpush1.msra.mxu0 0.0
      %1819 = vmatprep.subr.mxu0 %v1572
      %1820 = vmatpush1.msra.mxu0 %v1569
      %1821 = vmatprep.subr.mxu0 %v1554
      %1822 = vmatpush1.msra.mxu0 %v1553
      %1823 = vmatprep.subr.mxu0 %v1550
      %1824 = vmatpush1.msra.mxu0 %v1549
      %1825 = vmatprep.subr.mxu0 %v1546
      %1826 = vmatpush1.msra.mxu0 %v1545
      %1827 = vmatprep.subr.mxu0 0.0
      %1828 = vmatpush2.msra.mxu0 0.0
      %1829 = vmatprep.subr.mxu0 0.0
      %1830 = vmatpush2.msra.mxu0 0.0
      %1831 = vmatprep.subr.mxu0 0.0
      %1832 = vmatpush2.msra.mxu0 0.0
      %1833 = vmatprep.subr.mxu0 0.0
      %1834 = vmatpush2.msra.mxu0 0.0
      %1835 = vmatprep.subr.mxu0 0.0
      %1836 = vmatpush2.msra.mxu0 0.0
      %1837 = vmatprep.subr.mxu0 0.0
      %1838 = vmatpush2.msra.mxu0 0.0
      %1839 = vmatprep.subr.mxu0 0.0
      %1840 = vmatpush2.msra.mxu0 0.0
      %1841 = vmatprep.subr.mxu0 0.0
      %1842 = vmatpush2.msra.mxu0 0.0
      %1843 = vmatprep.subr.mxu0 0.0
      %1844 = vmatpush2.msra.mxu0 0.0
      %1845 = vmatprep.subr.mxu0 0.0
      %1846 = vmatpush2.msra.mxu0 0.0
      %1847 = vmatprep.subr.mxu0 0.0
      %1848 = vmatpush2.msra.mxu0 0.0
      %1849 = vmatprep.subr.mxu0 0.0
      %1850 = vmatpush2.msra.mxu0 0.0
      %1851 = vmatprep.subr.mxu0 0.0
      %1852 = vmatpush2.msra.mxu0 0.0
      %1853 = vmatprep.subr.mxu0 0.0
      %1854 = vmatpush2.msra.mxu0 0.0
      %1855 = vmatprep.subr.mxu0 0.0
      %1856 = vmatpush2.msra.mxu0 0.0
      %1857 = vmatprep.subr.mxu0 0.0
      %1858 = vmatpush2.msra.mxu0 0.0
      %1859 = vmatprep.mubr.f32.mxu0 0.0
      %1860 = vmatmul.mubr.f32.gmra.mxu0 %v556
      %v1861 = vpop.f32.mrf.mxu0
      %v1862 = vadd.f32 0.0, %v1861
      %v1863 = vpop.f32.mrf.mxu0
      %v1864 = vadd.f32 0.0, %v1863
      %1865 = vmatprep.mubr.f32.mxu0 0.0
      %1866 = vmatmul.mubr.f32.gmra.mxu0 %v559
      %v1867 = vpop.f32.mrf.mxu0
      %v1868 = vadd.f32 0.0, %v1867
      %v1869 = vpop.f32.mrf.mxu0
      %v1870 = vadd.f32 0.0, %v1869
      %1871 = vmatprep.mubr.f32.mxu0 0.0
      %1872 = vmatmul.mubr.f32.gmra.mxu0 %v562
      %v1873 = vpop.f32.mrf.mxu0
      %v1874 = vadd.f32 0.0, %v1873
      %v1875 = vpop.f32.mrf.mxu0
      %v1876 = vadd.f32 0.0, %v1875
      %1877 = vmatprep.mubr.f32.mxu0 0.0
      %1878 = vmatmul.mubr.f32.gmra.mxu0 %v565
      %v1879 = vpop.f32.mrf.mxu0
      %v1880 = vadd.f32 0.0, %v1879
      %v1881 = vpop.f32.mrf.mxu0
      %v1882 = vadd.f32 0.0, %v1881
      %1883 = vmatprep.mubr.f32.mxu0 0.0
      %1884 = vmatmul.mubr.f32.gmra.mxu0 %v568
      %v1885 = vpop.f32.mrf.mxu0
      %v1886 = vadd.f32 0.0, %v1885
      %v1887 = vpop.f32.mrf.mxu0
      %v1888 = vadd.f32 0.0, %v1887
      %1889 = vmatprep.mubr.f32.mxu0 0.0
      %1890 = vmatmul.mubr.f32.gmra.mxu0 %v571
      %v1891 = vpop.f32.mrf.mxu0
      %v1892 = vadd.f32 0.0, %v1891
      %v1893 = vpop.f32.mrf.mxu0
      %v1894 = vadd.f32 0.0, %v1893
      %1895 = vmatprep.mubr.f32.mxu0 0.0
      %1896 = vmatmul.mubr.f32.gmra.mxu0 %v574
      %v1897 = vpop.f32.mrf.mxu0
      %v1898 = vadd.f32 0.0, %v1897
      %v1899 = vpop.f32.mrf.mxu0
      %v1900 = vadd.f32 0.0, %v1899
      %1901 = vmatprep.mubr.f32.mxu0 0.0
      %1902 = vmatmul.mubr.f32.gmra.mxu0 %v577
      %v1903 = vpop.f32.mrf.mxu0
      %v1904 = vadd.f32 0.0, %v1903
      %v1905 = vpop.f32.mrf.mxu0
      %v1906 = vadd.f32 0.0, %v1905
      %1907 = vmatprep.mubr.f32.mxu0 0.0
      %1908 = vmatmul.mubr.f32.gmra.mxu0 %v580
      %v1909 = vpop.f32.mrf.mxu0
      %v1910 = vadd.f32 0.0, %v1909
      %v1911 = vpop.f32.mrf.mxu0
      %v1912 = vadd.f32 0.0, %v1911
      %1913 = vmatprep.mubr.f32.mxu0 0.0
      %1914 = vmatmul.mubr.f32.gmra.mxu0 %v583
      %v1915 = vpop.f32.mrf.mxu0
      %v1916 = vadd.f32 0.0, %v1915
      %v1917 = vpop.f32.mrf.mxu0
      %v1918 = vadd.f32 0.0, %v1917
      %1919 = vmatprep.mubr.f32.mxu0 0.0
      %1920 = vmatmul.mubr.f32.gmra.mxu0 %v586
      %v1921 = vpop.f32.mrf.mxu0
      %v1922 = vadd.f32 0.0, %v1921
      %v1923 = vpop.f32.mrf.mxu0
      %v1924 = vadd.f32 0.0, %v1923
      %1925 = vmatprep.mubr.f32.mxu0 0.0
      %1926 = vmatmul.mubr.f32.gmra.mxu0 %v589
      %v1927 = vpop.f32.mrf.mxu0
      %v1928 = vadd.f32 0.0, %v1927
      %v1929 = vpop.f32.mrf.mxu0
      %v1930 = vadd.f32 0.0, %v1929
      %1931 = vmatprep.mubr.f32.mxu0 0.0
      %1932 = vmatmul.mubr.f32.gmra.mxu0 %v592
      %v1933 = vpop.f32.mrf.mxu0
      %v1934 = vadd.f32 0.0, %v1933
      %v1935 = vpop.f32.mrf.mxu0
      %v1936 = vadd.f32 0.0, %v1935
      %1937 = vmatprep.mubr.f32.mxu0 0.0
      %1938 = vmatmul.mubr.f32.gmra.mxu0 %v595
      %v1939 = vpop.f32.mrf.mxu0
      %v1940 = vadd.f32 0.0, %v1939
      %v1941 = vpop.f32.mrf.mxu0
      %v1942 = vadd.f32 0.0, %v1941
      %1943 = vmatprep.mubr.f32.mxu0 0.0
      %1944 = vmatmul.mubr.f32.gmra.mxu0 %v598
      %v1945 = vpop.f32.mrf.mxu0
      %v1946 = vadd.f32 0.0, %v1945
      %v1947 = vpop.f32.mrf.mxu0
      %v1948 = vadd.f32 0.0, %v1947
      %1949 = vmatprep.mubr.f32.mxu0 0.0
      %1950 = vmatmul.mubr.f32.gmra.mxu0 %v601
      %v1951 = vpop.f32.mrf.mxu0
      %v1952 = vadd.f32 0.0, %v1951
      %v1953 = vpop.f32.mrf.mxu0
      %v1954 = vadd.f32 0.0, %v1953
      %1955 = vmatprep.mubr.f32.mxu0 0.0
      %1956 = vmatmul.mubr.f32.gmra.mxu0 %v604
      %v1957 = vpop.f32.mrf.mxu0
      %v1958 = vadd.f32 0.0, %v1957
      %v1959 = vpop.f32.mrf.mxu0
      %v1960 = vadd.f32 0.0, %v1959
      %1961 = vmatprep.mubr.f32.mxu0 0.0
      %1962 = vmatmul.mubr.f32.gmra.mxu0 %v607
      %v1963 = vpop.f32.mrf.mxu0
      %v1964 = vadd.f32 0.0, %v1963
      %v1965 = vpop.f32.mrf.mxu0
      %v1966 = vadd.f32 0.0, %v1965
      %1967 = vmatprep.mubr.f32.mxu0 0.0
      %1968 = vmatmul.mubr.f32.gmra.mxu0 %v610
      %v1969 = vpop.f32.mrf.mxu0
      %v1970 = vadd.f32 0.0, %v1969
      %v1971 = vpop.f32.mrf.mxu0
      %v1972 = vadd.f32 0.0, %v1971
      %1973 = vmatprep.mubr.f32.mxu0 0.0
      %1974 = vmatmul.mubr.f32.gmra.mxu0 %v613
      %v1975 = vpop.f32.mrf.mxu0
      %v1976 = vadd.f32 0.0, %v1975
      %v1977 = vpop.f32.mrf.mxu0
      %v1978 = vadd.f32 0.0, %v1977
      %1979 = vmatprep.mubr.f32.mxu0 0.0
      %1980 = vmatmul.mubr.f32.gmra.mxu0 %v616
      %v1981 = vpop.f32.mrf.mxu0
      %v1982 = vadd.f32 0.0, %v1981
      %v1983 = vpop.f32.mrf.mxu0
      %v1984 = vadd.f32 0.0, %v1983
      %1985 = vmatprep.mubr.f32.mxu0 0.0
      %1986 = vmatmul.mubr.f32.gmra.mxu0 %v619
      %v1987 = vpop.f32.mrf.mxu0
      %v1988 = vadd.f32 0.0, %v1987
      %v1989 = vpop.f32.mrf.mxu0
      %v1990 = vadd.f32 0.0, %v1989
      %1991 = vmatprep.mubr.f32.mxu0 0.0
      %1992 = vmatmul.mubr.f32.gmra.mxu0 %v622
      %v1993 = vpop.f32.mrf.mxu0
      %v1994 = vadd.f32 0.0, %v1993
      %v1995 = vpop.f32.mrf.mxu0
      %v1996 = vadd.f32 0.0, %v1995
      %1997 = vmatprep.mubr.f32.mxu0 0.0
      %1998 = vmatmul.mubr.f32.gmra.mxu0 %v625
      %v1999 = vpop.f32.mrf.mxu0
      %v2000 = vadd.f32 0.0, %v1999
      %v2001 = vpop.f32.mrf.mxu0
      %v2002 = vadd.f32 0.0, %v2001
      %2003 = vmatprep.mubr.f32.mxu0 0.0
      %2004 = vmatmul.mubr.f32.gmra.mxu0 %v628
      %v2005 = vpop.f32.mrf.mxu0
      %v2006 = vadd.f32 0.0, %v2005
      %v2007 = vpop.f32.mrf.mxu0
      %v2008 = vadd.f32 0.0, %v2007
      %2009 = vmatprep.mubr.f32.mxu0 0.0
      %2010 = vmatmul.mubr.f32.gmra.mxu0 %v1560
      %v2011 = vpop.f32.mrf.mxu0
      %v2012 = vadd.f32 0.0, %v2011
      %v2013 = vpop.f32.mrf.mxu0
      %v2014 = vadd.f32 0.0, %v2013
      %2015 = vdwg.mxu0
      %v2016 = vadd.f32 %v1167, %v1641
      %v2017 = vadd.f32 %v1169, %v1643
      %v2018 = vadd.f32 %v1388, %v1862
      %v2019 = vadd.f32 %v1390, %v1864
      %v2020 = vadd.f32 %v1173, %v1647
      %v2021 = vadd.f32 %v1175, %v1649
      %v2022 = vadd.f32 %v1394, %v1868
      %v2023 = vadd.f32 %v1396, %v1870
      %v2024 = vadd.f32 %v1179, %v1653
      %v2025 = vadd.f32 %v1181, %v1655
      %v2026 = vadd.f32 %v1400, %v1874
      %v2027 = vadd.f32 %v1402, %v1876
      %v2028 = vadd.f32 %v1185, %v1659
      %v2029 = vadd.f32 %v1187, %v1661
      %v2030 = vadd.f32 %v1406, %v1880
      %v2031 = vadd.f32 %v1408, %v1882
      %v2032 = vadd.f32 %v1191, %v1665
      %v2033 = vadd.f32 %v1193, %v1667
      %v2034 = vadd.f32 %v1412, %v1886
      %v2035 = vadd.f32 %v1414, %v1888
      %v2036 = vadd.f32 %v1197, %v1671
      %v2037 = vadd.f32 %v1199, %v1673
      %v2038 = vadd.f32 %v1418, %v1892
      %v2039 = vadd.f32 %v1420, %v1894
      %v2040 = vadd.f32 %v1203, %v1677
      %v2041 = vadd.f32 %v1205, %v1679
      %v2042 = vadd.f32 %v1424, %v1898
      %v2043 = vadd.f32 %v1426, %v1900
      %v2044 = vadd.f32 %v1209, %v1683
      %v2045 = vadd.f32 %v1211, %v1685
      %v2046 = vadd.f32 %v1430, %v1904
      %v2047 = vadd.f32 %v1432, %v1906
      %v2048 = vadd.f32 %v1215, %v1689
      %v2049 = vadd.f32 %v1217, %v1691
      %v2050 = vadd.f32 %v1436, %v1910
      %v2051 = vadd.f32 %v1438, %v1912
      %v2052 = vadd.f32 %v1221, %v1695
      %v2053 = vadd.f32 %v1223, %v1697
      %v2054 = vadd.f32 %v1442, %v1916
      %v2055 = vadd.f32 %v1444, %v1918
      %v2056 = vadd.f32 %v1227, %v1701
      %v2057 = vadd.f32 %v1229, %v1703
      %v2058 = vadd.f32 %v1448, %v1922
      %v2059 = vadd.f32 %v1450, %v1924
      %v2060 = vadd.f32 %v1233, %v1707
      %v2061 = vadd.f32 %v1235, %v1709
      %v2062 = vadd.f32 %v1454, %v1928
      %v2063 = vadd.f32 %v1456, %v1930
      %v2064 = vadd.f32 %v1239, %v1713
      %v2065 = vadd.f32 %v1241, %v1715
      %v2066 = vadd.f32 %v1460, %v1934
      %v2067 = vadd.f32 %v1462, %v1936
      %v2068 = vadd.f32 %v1245, %v1719
      %v2069 = vadd.f32 %v1247, %v1721
      %v2070 = vadd.f32 %v1466, %v1940
      %v2071 = vadd.f32 %v1468, %v1942
      %v2072 = vadd.f32 %v1251, %v1725
      %v2073 = vadd.f32 %v1253, %v1727
      %v2074 = vadd.f32 %v1472, %v1946
      %v2075 = vadd.f32 %v1474, %v1948
      %v2076 = vadd.f32 %v1257, %v1731
      %v2077 = vadd.f32 %v1259, %v1733
      %v2078 = vadd.f32 %v1478, %v1952
      %v2079 = vadd.f32 %v1480, %v1954
      %v2080 = vadd.f32 %v1263, %v1737
      %v2081 = vadd.f32 %v1265, %v1739
      %v2082 = vadd.f32 %v1484, %v1958
      %v2083 = vadd.f32 %v1486, %v1960
      %v2084 = vadd.f32 %v1269, %v1743
      %v2085 = vadd.f32 %v1271, %v1745
      %v2086 = vadd.f32 %v1490, %v1964
      %v2087 = vadd.f32 %v1492, %v1966
      %v2088 = vadd.f32 %v1275, %v1749
      %v2089 = vadd.f32 %v1277, %v1751
      %v2090 = vadd.f32 %v1496, %v1970
      %v2091 = vadd.f32 %v1498, %v1972
      %v2092 = vadd.f32 %v1281, %v1755
      %v2093 = vadd.f32 %v1283, %v1757
      %v2094 = vadd.f32 %v1502, %v1976
      %v2095 = vadd.f32 %v1504, %v1978
      %v2096 = vadd.f32 %v1287, %v1761
      %v2097 = vadd.f32 %v1289, %v1763
      %v2098 = vadd.f32 %v1508, %v1982
      %v2099 = vadd.f32 %v1510, %v1984
      %v2100 = vadd.f32 %v1293, %v1767
      %v2101 = vadd.f32 %v1295, %v1769
      %v2102 = vadd.f32 %v1514, %v1988
      %v2103 = vadd.f32 %v1516, %v1990
      %v2104 = vadd.f32 %v1299, %v1773
      %v2105 = vadd.f32 %v1301, %v1775
      %v2106 = vadd.f32 %v1520, %v1994
      %v2107 = vadd.f32 %v1522, %v1996
      %v2108 = vadd.f32 %v1305, %v1779
      %v2109 = vadd.f32 %v1307, %v1781
      %v2110 = vadd.f32 %v1526, %v2000
      %v2111 = vadd.f32 %v1528, %v2002
      %v2112 = vadd.f32 %v1311, %v1785
      %v2113 = vadd.f32 %v1313, %v1787
      %v2114 = vadd.f32 %v1532, %v2006
      %v2115 = vadd.f32 %v1534, %v2008
      %v2116 = vadd.f32 %v1317, %v1791
      %v2117 = vadd.f32 %v1319, %v1793
      %v2118 = vadd.f32 %v1538, %v2012
      %v2119 = vadd.f32 %v1540, %v2014
      %v2120 = vld [vmem:[%s457] sm:$0xf]
      %v2122 = vlaneseq
      %v2123 = vshrl.u32 %v2122, 7
      %v2124 = vsub.s32 0, %v2123
      %v2125 = vrot.slane %v2120, %v2124
      %v2126 = vlaneseq
      %v2127 = vshrl.u32 %v2126, 7
      %v2128 = vsub.s32 1, %v2127
      %v2129 = vrot.slane %v2120, %v2128
      %v2130 = vlaneseq
      %v2131 = vshrl.u32 %v2130, 7
      %v2132 = vsub.s32 2, %v2131
      %v2133 = vrot.slane %v2120, %v2132
      %v2134 = vlaneseq
      %v2135 = vshrl.u32 %v2134, 7
      %v2136 = vsub.s32 3, %v2135
      %v2137 = vrot.slane %v2120, %v2136
      %v2142 = vadd.f32 %v2016, %v2125
      %v2143 = vadd.f32 %v2017, %v2129
      %v2144 = vadd.f32 %v2018, %v2133
      %v2145 = vadd.f32 %v2019, %v2137
      %v2146 = vadd.f32 %v2020, %v2125
      %v2147 = vadd.f32 %v2021, %v2129
      %v2148 = vadd.f32 %v2022, %v2133
      %v2149 = vadd.f32 %v2023, %v2137
      %v2150 = vadd.f32 %v2024, %v2125
      %v2151 = vadd.f32 %v2025, %v2129
      %v2152 = vadd.f32 %v2026, %v2133
      %v2153 = vadd.f32 %v2027, %v2137
      %v2154 = vadd.f32 %v2028, %v2125
      %v2155 = vadd.f32 %v2029, %v2129
      %v2156 = vadd.f32 %v2030, %v2133
      %v2157 = vadd.f32 %v2031, %v2137
      %v2158 = vadd.f32 %v2032, %v2125
      %v2159 = vadd.f32 %v2033, %v2129
      %v2160 = vadd.f32 %v2034, %v2133
      %v2161 = vadd.f32 %v2035, %v2137
      %v2162 = vadd.f32 %v2036, %v2125
      %v2163 = vadd.f32 %v2037, %v2129
      %v2164 = vadd.f32 %v2038, %v2133
      %v2165 = vadd.f32 %v2039, %v2137
      %v2166 = vadd.f32 %v2040, %v2125
      %v2167 = vadd.f32 %v2041, %v2129
      %v2168 = vadd.f32 %v2042, %v2133
      %v2169 = vadd.f32 %v2043, %v2137
      %v2170 = vadd.f32 %v2044, %v2125
      %v2171 = vadd.f32 %v2045, %v2129
      %v2172 = vadd.f32 %v2046, %v2133
      %v2173 = vadd.f32 %v2047, %v2137
      %v2174 = vadd.f32 %v2048, %v2125
      %v2175 = vadd.f32 %v2049, %v2129
      %v2176 = vadd.f32 %v2050, %v2133
      %v2177 = vadd.f32 %v2051, %v2137
      %v2178 = vadd.f32 %v2052, %v2125
      %v2179 = vadd.f32 %v2053, %v2129
      %v2180 = vadd.f32 %v2054, %v2133
      %v2181 = vadd.f32 %v2055, %v2137
      %v2182 = vadd.f32 %v2056, %v2125
      %v2183 = vadd.f32 %v2057, %v2129
      %v2184 = vadd.f32 %v2058, %v2133
      %v2185 = vadd.f32 %v2059, %v2137
      %v2186 = vadd.f32 %v2060, %v2125
      %v2187 = vadd.f32 %v2061, %v2129
      %v2188 = vadd.f32 %v2062, %v2133
      %v2189 = vadd.f32 %v2063, %v2137
      %v2190 = vadd.f32 %v2064, %v2125
      %v2191 = vadd.f32 %v2065, %v2129
      %v2192 = vadd.f32 %v2066, %v2133
      %v2193 = vadd.f32 %v2067, %v2137
      %v2194 = vadd.f32 %v2068, %v2125
      %v2195 = vadd.f32 %v2069, %v2129
      %v2196 = vadd.f32 %v2070, %v2133
      %v2197 = vadd.f32 %v2071, %v2137
      %v2198 = vadd.f32 %v2072, %v2125
      %v2199 = vadd.f32 %v2073, %v2129
      %v2200 = vadd.f32 %v2074, %v2133
      %v2201 = vadd.f32 %v2075, %v2137
      %v2202 = vadd.f32 %v2076, %v2125
      %v2203 = vadd.f32 %v2077, %v2129
      %v2204 = vadd.f32 %v2078, %v2133
      %v2205 = vadd.f32 %v2079, %v2137
      %v2206 = vadd.f32 %v2080, %v2125
      %v2207 = vadd.f32 %v2081, %v2129
      %v2208 = vadd.f32 %v2082, %v2133
      %v2209 = vadd.f32 %v2083, %v2137
      %v2210 = vadd.f32 %v2084, %v2125
      %v2211 = vadd.f32 %v2085, %v2129
      %v2212 = vadd.f32 %v2086, %v2133
      %v2213 = vadd.f32 %v2087, %v2137
      %v2214 = vadd.f32 %v2088, %v2125
      %v2215 = vadd.f32 %v2089, %v2129
      %v2216 = vadd.f32 %v2090, %v2133
      %v2217 = vadd.f32 %v2091, %v2137
      %v2218 = vadd.f32 %v2092, %v2125
      %v2219 = vadd.f32 %v2093, %v2129
      %v2220 = vadd.f32 %v2094, %v2133
      %v2221 = vadd.f32 %v2095, %v2137
      %v2222 = vadd.f32 %v2096, %v2125
      %v2223 = vadd.f32 %v2097, %v2129
      %v2224 = vadd.f32 %v2098, %v2133
      %v2225 = vadd.f32 %v2099, %v2137
      %v2226 = vadd.f32 %v2100, %v2125
      %v2227 = vadd.f32 %v2101, %v2129
      %v2228 = vadd.f32 %v2102, %v2133
      %v2229 = vadd.f32 %v2103, %v2137
      %v2230 = vadd.f32 %v2104, %v2125
      %v2231 = vadd.f32 %v2105, %v2129
      %v2232 = vadd.f32 %v2106, %v2133
      %v2233 = vadd.f32 %v2107, %v2137
      %v2234 = vadd.f32 %v2108, %v2125
      %v2235 = vadd.f32 %v2109, %v2129
      %v2236 = vadd.f32 %v2110, %v2133
      %v2237 = vadd.f32 %v2111, %v2137
      %v2238 = vadd.f32 %v2112, %v2125
      %v2239 = vadd.f32 %v2113, %v2129
      %v2240 = vadd.f32 %v2114, %v2133
      %v2241 = vadd.f32 %v2115, %v2137
      %v2242 = vadd.f32 %v2116, %v2125
      %v2243 = vadd.f32 %v2117, %v2129
      %v2244 = vadd.f32 %v2118, %v2133
      %v2245 = vadd.f32 %v2119, %v2137
      %v2246 = vmax.f32 %v2142, 0.0
      %v2247 = vmax.f32 %v2143, 0.0
      %v2248 = vmax.f32 %v2144, 0.0
      %v2249 = vmax.f32 %v2145, 0.0
      %v2250 = vmax.f32 %v2146, 0.0
      %v2251 = vmax.f32 %v2147, 0.0
      %v2252 = vmax.f32 %v2148, 0.0
      %v2253 = vmax.f32 %v2149, 0.0
      %v2254 = vmax.f32 %v2150, 0.0
      %v2255 = vmax.f32 %v2151, 0.0
      %v2256 = vmax.f32 %v2152, 0.0
      %v2257 = vmax.f32 %v2153, 0.0
      %v2258 = vmax.f32 %v2154, 0.0
      %v2259 = vmax.f32 %v2155, 0.0
      %v2260 = vmax.f32 %v2156, 0.0
      %v2261 = vmax.f32 %v2157, 0.0
      %v2262 = vmax.f32 %v2158, 0.0
      %v2263 = vmax.f32 %v2159, 0.0
      %v2264 = vmax.f32 %v2160, 0.0
      %v2265 = vmax.f32 %v2161, 0.0
      %v2266 = vmax.f32 %v2162, 0.0
      %v2267 = vmax.f32 %v2163, 0.0
      %v2268 = vmax.f32 %v2164, 0.0
      %v2269 = vmax.f32 %v2165, 0.0
      %v2270 = vmax.f32 %v2166, 0.0
      %v2271 = vmax.f32 %v2167, 0.0
      %v2272 = vmax.f32 %v2168, 0.0
      %v2273 = vmax.f32 %v2169, 0.0
      %v2274 = vmax.f32 %v2170, 0.0
      %v2275 = vmax.f32 %v2171, 0.0
      %v2276 = vmax.f32 %v2172, 0.0
      %v2277 = vmax.f32 %v2173, 0.0
      %v2278 = vmax.f32 %v2174, 0.0
      %v2279 = vmax.f32 %v2175, 0.0
      %v2280 = vmax.f32 %v2176, 0.0
      %v2281 = vmax.f32 %v2177, 0.0
      %v2282 = vmax.f32 %v2178, 0.0
      %v2283 = vmax.f32 %v2179, 0.0
      %v2284 = vmax.f32 %v2180, 0.0
      %v2285 = vmax.f32 %v2181, 0.0
      %v2286 = vmax.f32 %v2182, 0.0
      %v2287 = vmax.f32 %v2183, 0.0
      %v2288 = vmax.f32 %v2184, 0.0
      %v2289 = vmax.f32 %v2185, 0.0
      %v2290 = vmax.f32 %v2186, 0.0
      %v2291 = vmax.f32 %v2187, 0.0
      %v2292 = vmax.f32 %v2188, 0.0
      %v2293 = vmax.f32 %v2189, 0.0
      %v2294 = vmax.f32 %v2190, 0.0
      %v2295 = vmax.f32 %v2191, 0.0
      %v2296 = vmax.f32 %v2192, 0.0
      %v2297 = vmax.f32 %v2193, 0.0
      %v2298 = vmax.f32 %v2194, 0.0
      %v2299 = vmax.f32 %v2195, 0.0
      %v2300 = vmax.f32 %v2196, 0.0
      %v2301 = vmax.f32 %v2197, 0.0
      %v2302 = vmax.f32 %v2198, 0.0
      %v2303 = vmax.f32 %v2199, 0.0
      %v2304 = vmax.f32 %v2200, 0.0
      %v2305 = vmax.f32 %v2201, 0.0
      %v2306 = vmax.f32 %v2202, 0.0
      %v2307 = vmax.f32 %v2203, 0.0
      %v2308 = vmax.f32 %v2204, 0.0
      %v2309 = vmax.f32 %v2205, 0.0
      %v2310 = vmax.f32 %v2206, 0.0
      %v2311 = vmax.f32 %v2207, 0.0
      %v2312 = vmax.f32 %v2208, 0.0
      %v2313 = vmax.f32 %v2209, 0.0
      %v2314 = vmax.f32 %v2210, 0.0
      %v2315 = vmax.f32 %v2211, 0.0
      %v2316 = vmax.f32 %v2212, 0.0
      %v2317 = vmax.f32 %v2213, 0.0
      %v2318 = vmax.f32 %v2214, 0.0
      %v2319 = vmax.f32 %v2215, 0.0
      %v2320 = vmax.f32 %v2216, 0.0
      %v2321 = vmax.f32 %v2217, 0.0
      %v2322 = vmax.f32 %v2218, 0.0
      %v2323 = vmax.f32 %v2219, 0.0
      %v2324 = vmax.f32 %v2220, 0.0
      %v2325 = vmax.f32 %v2221, 0.0
      %v2326 = vmax.f32 %v2222, 0.0
      %v2327 = vmax.f32 %v2223, 0.0
      %v2328 = vmax.f32 %v2224, 0.0
      %v2329 = vmax.f32 %v2225, 0.0
      %v2330 = vmax.f32 %v2226, 0.0
      %v2331 = vmax.f32 %v2227, 0.0
      %v2332 = vmax.f32 %v2228, 0.0
      %v2333 = vmax.f32 %v2229, 0.0
      %v2334 = vmax.f32 %v2230, 0.0
      %v2335 = vmax.f32 %v2231, 0.0
      %v2336 = vmax.f32 %v2232, 0.0
      %v2337 = vmax.f32 %v2233, 0.0
      %v2338 = vmax.f32 %v2234, 0.0
      %v2339 = vmax.f32 %v2235, 0.0
      %v2340 = vmax.f32 %v2236, 0.0
      %v2341 = vmax.f32 %v2237, 0.0
      %v2342 = vmax.f32 %v2238, 0.0
      %v2343 = vmax.f32 %v2239, 0.0
      %v2344 = vmax.f32 %v2240, 0.0
      %v2345 = vmax.f32 %v2241, 0.0
      %v2346 = vmax.f32 %v2242, 0.0
      %v2347 = vmax.f32 %v2243, 0.0
      %v2348 = vmax.f32 %v2244, 0.0
      %v2349 = vmax.f32 %v2245, 0.0
      %v2350 = vld [vmem:[%s462] sm:$0xff]
      %v2351 = vld [vmem:[%s462 + $0x8] sm:$0xff]
      %v2352 = vld [vmem:[%s462 + $0x10] sm:$0xff]
      %v2353 = vld [vmem:[%s462 + $0x18] sm:$0xff]
      %v2354 = vld [vmem:[%s462 + $0x20] sm:$0xff]
      %v2355 = vld [vmem:[%s462 + $0x28] sm:$0xff]
      %v2356 = vld [vmem:[%s462 + $0x30] sm:$0xff]
      %v2357 = vld [vmem:[%s462 + $0x38] sm:$0xff]
      %v2358 = vld [vmem:[%s462 + $0x40] sm:$0xff]
      %v2359 = vld [vmem:[%s462 + $0x48] sm:$0xff]
      %v2360 = vld [vmem:[%s462 + $0x50] sm:$0xff]
      %v2361 = vld [vmem:[%s462 + $0x58] sm:$0xff]
      %v2362 = vld [vmem:[%s462 + $0x60] sm:$0xff]
      %v2363 = vld [vmem:[%s462 + $0x68] sm:$0xff]
      %v2364 = vld [vmem:[%s462 + $0x70] sm:$0xff]
      %v2365 = vld [vmem:[%s462 + $0x78] sm:$0xff]
      %v2366 = vld [vmem:[%s462 + $0x80] sm:$0xff]
      %v2367 = vld [vmem:[%s462 + $0x88] sm:$0xff]
      %v2368 = vld [vmem:[%s462 + $0x90] sm:$0xff]
      %v2369 = vld [vmem:[%s462 + $0x98] sm:$0xff]
      %v2370 = vld [vmem:[%s462 + $0xa0] sm:$0xff]
      %v2371 = vld [vmem:[%s462 + $0xa8] sm:$0xff]
      %v2372 = vld [vmem:[%s462 + $0xb0] sm:$0xff]
      %v2373 = vld [vmem:[%s462 + $0xb8] sm:$0xff]
      %v2374 = vld [vmem:[%s462 + $0xc0] sm:$0xff]
      %v2375 = vld [vmem:[%s462 + $0xc8] sm:$0xff]
      %v2376 = vld [vmem:[%s462 + $0xd0] sm:$0xff]
      %v2377 = vld [vmem:[%s462 + $0xd8] sm:$0xff]
      %v2378 = vld [vmem:[%s462 + $0xe0] sm:$0xff]
      %v2379 = vld [vmem:[%s462 + $0xe8] sm:$0xff]
      %v2380 = vld [vmem:[%s462 + $0xf0] sm:$0xff]
      %v2381 = vld [vmem:[%s462 + $0xf8] sm:$0xff]
      %v2382 = vld [vmem:[%s462 + $0x100] sm:$0xff]
      %v2383 = vld [vmem:[%s462 + $0x108] sm:$0xff]
      %v2384 = vld [vmem:[%s462 + $0x110] sm:$0xff]
      %v2385 = vld [vmem:[%s462 + $0x118] sm:$0xff]
      %v2386 = vld [vmem:[%s462 + $0x120] sm:$0xff]
      %v2387 = vld [vmem:[%s462 + $0x128] sm:$0xff]
      %v2388 = vld [vmem:[%s462 + $0x130] sm:$0xff]
      %v2389 = vld [vmem:[%s462 + $0x138] sm:$0xff]
      %v2390 = vld [vmem:[%s462 + $0x140] sm:$0xff]
      %v2391 = vld [vmem:[%s462 + $0x148] sm:$0xff]
      %v2392 = vld [vmem:[%s462 + $0x150] sm:$0xff]
      %v2393 = vld [vmem:[%s462 + $0x158] sm:$0xff]
      %v2394 = vld [vmem:[%s462 + $0x160] sm:$0xff]
      %v2395 = vld [vmem:[%s462 + $0x168] sm:$0xff]
      %v2396 = vld [vmem:[%s462 + $0x170] sm:$0xff]
      %v2397 = vld [vmem:[%s462 + $0x178] sm:$0xff]
      %v2398 = vld [vmem:[%s462 + $0x180] sm:$0xff]
      %v2399 = vld [vmem:[%s462 + $0x188] sm:$0xff]
      %v2400 = vld [vmem:[%s462 + $0x190] sm:$0xff]
      %v2401 = vld [vmem:[%s462 + $0x198] sm:$0xff]
      %v2402 = vld [vmem:[%s462 + $0x1a0] sm:$0xff]
      %v2403 = vld [vmem:[%s462 + $0x1a8] sm:$0xff]
      %v2404 = vld [vmem:[%s462 + $0x1b0] sm:$0xff]
      %v2405 = vld [vmem:[%s462 + $0x1b8] sm:$0xff]
      %v2406 = vld [vmem:[%s462 + $0x1c0] sm:$0xff]
      %v2407 = vld [vmem:[%s462 + $0x1c8] sm:$0xff]
      %v2408 = vld [vmem:[%s462 + $0x1d0] sm:$0xff]
      %v2409 = vld [vmem:[%s462 + $0x1d8] sm:$0xff]
      %v2410 = vld [vmem:[%s462 + $0x1e0] sm:$0xff]
      %v2411 = vld [vmem:[%s462 + $0x1e8] sm:$0xff]
      %v2412 = vld [vmem:[%s462 + $0x1f0] sm:$0xff]
      %v2413 = vld [vmem:[%s462 + $0x1f8] sm:$0xff]
      %v2414 = vld [vmem:[%s462 + $0x200] sm:$0xff]
      %v2415 = vld [vmem:[%s462 + $0x208] sm:$0xff]
      %v2416 = vld [vmem:[%s462 + $0x210] sm:$0xff]
      %v2417 = vld [vmem:[%s462 + $0x218] sm:$0xff]
      %v2418 = vld [vmem:[%s462 + $0x220] sm:$0xff]
      %v2419 = vld [vmem:[%s462 + $0x228] sm:$0xff]
      %v2420 = vld [vmem:[%s462 + $0x230] sm:$0xff]
      %v2421 = vld [vmem:[%s462 + $0x238] sm:$0xff]
      %v2422 = vld [vmem:[%s462 + $0x240] sm:$0xff]
      %v2423 = vld [vmem:[%s462 + $0x248] sm:$0xff]
      %v2424 = vld [vmem:[%s462 + $0x250] sm:$0xff]
      %v2425 = vld [vmem:[%s462 + $0x258] sm:$0xff]
      %v2426 = vld [vmem:[%s462 + $0x260] sm:$0xff]
      %v2427 = vld [vmem:[%s462 + $0x268] sm:$0xff]
      %v2428 = vld [vmem:[%s462 + $0x270] sm:$0xff]
      %v2429 = vld [vmem:[%s462 + $0x278] sm:$0xff]
      %v2430 = vld [vmem:[%s462 + $0x280] sm:$0xff]
      %v2431 = vld [vmem:[%s462 + $0x288] sm:$0xff]
      %v2432 = vld [vmem:[%s462 + $0x290] sm:$0xff]
      %v2433 = vld [vmem:[%s462 + $0x298] sm:$0xff]
      %v2434 = vld [vmem:[%s462 + $0x2a0] sm:$0xff]
      %v2435 = vld [vmem:[%s462 + $0x2a8] sm:$0xff]
      %v2436 = vld [vmem:[%s462 + $0x2b0] sm:$0xff]
      %v2437 = vld [vmem:[%s462 + $0x2b8] sm:$0xff]
      %v2438 = vld [vmem:[%s462 + $0x2c0] sm:$0xff]
      %v2439 = vld [vmem:[%s462 + $0x2c8] sm:$0xff]
      %v2440 = vld [vmem:[%s462 + $0x2d0] sm:$0xff]
      %v2441 = vld [vmem:[%s462 + $0x2d8] sm:$0xff]
      %v2442 = vld [vmem:[%s462 + $0x2e0] sm:$0xff]
      %v2443 = vld [vmem:[%s462 + $0x2e8] sm:$0xff]
      %v2444 = vld [vmem:[%s462 + $0x2f0] sm:$0xff]
      %v2445 = vld [vmem:[%s462 + $0x2f8] sm:$0xff]
      %v2446 = vld [vmem:[%s462 + $0x300] sm:$0xff]
      %v2447 = vld [vmem:[%s462 + $0x308] sm:$0xff]
      %v2448 = vld [vmem:[%s462 + $0x310] sm:$0xff]
      %v2449 = vld [vmem:[%s462 + $0x318] sm:$0xff]
      %v2450 = vld [vmem:[%s462 + $0x320] sm:$0xff]
      %v2451 = vld [vmem:[%s462 + $0x328] sm:$0xff]
      %v2452 = vld [vmem:[%s462 + $0x330] sm:$0xff]
      %v2453 = vld [vmem:[%s462 + $0x338] sm:$0xff]
      %v2454 = vld [vmem:[%s462 + $0x340] sm:$0xff]
      %v2455 = vld [vmem:[%s462 + $0x348] sm:$0xff]
      %v2456 = vld [vmem:[%s462 + $0x350] sm:$0xff]
      %v2457 = vld [vmem:[%s462 + $0x358] sm:$0xff]
      %v2458 = vld [vmem:[%s462 + $0x360] sm:$0xff]
      %v2459 = vld [vmem:[%s462 + $0x368] sm:$0xff]
      %v2460 = vld [vmem:[%s462 + $0x370] sm:$0xff]
      %v2461 = vld [vmem:[%s462 + $0x378] sm:$0xff]
      %v2462 = vld [vmem:[%s462 + $0x380] sm:$0xff]
      %v2463 = vld [vmem:[%s462 + $0x388] sm:$0xff]
      %v2464 = vld [vmem:[%s462 + $0x390] sm:$0xff]
      %v2465 = vld [vmem:[%s462 + $0x398] sm:$0xff]
      %v2466 = vld [vmem:[%s462 + $0x3a0] sm:$0xff]
      %v2467 = vld [vmem:[%s462 + $0x3a8] sm:$0xff]
      %v2468 = vld [vmem:[%s462 + $0x3b0] sm:$0xff]
      %v2469 = vld [vmem:[%s462 + $0x3b8] sm:$0xff]
      %v2470 = vld [vmem:[%s462 + $0x3c0] sm:$0xff]
      %v2471 = vld [vmem:[%s462 + $0x3c8] sm:$0xff]
      %v2472 = vld [vmem:[%s462 + $0x3d0] sm:$0xff]
      %v2473 = vld [vmem:[%s462 + $0x3d8] sm:$0xff]
      %v2474 = vld [vmem:[%s462 + $0x3e0] sm:$0xff]
      %v2475 = vld [vmem:[%s462 + $0x3e8] sm:$0xff]
      %v2476 = vld [vmem:[%s462 + $0x3f0] sm:$0xff]
      %v2477 = vld [vmem:[%s462 + $0x3f8] sm:$0xff]
      %v2478 = vld [vmem:[%s462 + $0x400] sm:$0xff]
      %v2479 = vld [vmem:[%s462 + $0x408] sm:$0xff]
      %v2480 = vld [vmem:[%s462 + $0x410] sm:$0xff]
      %v2481 = vld [vmem:[%s462 + $0x418] sm:$0xff]
      %v2482 = vld [vmem:[%s462 + $0x420] sm:$0xff]
      %v2483 = vld [vmem:[%s462 + $0x428] sm:$0xff]
      %v2484 = vld [vmem:[%s462 + $0x430] sm:$0xff]
      %v2485 = vld [vmem:[%s462 + $0x438] sm:$0xff]
      %v2486 = vld [vmem:[%s462 + $0x440] sm:$0xff]
      %v2487 = vld [vmem:[%s462 + $0x448] sm:$0xff]
      %v2488 = vld [vmem:[%s462 + $0x450] sm:$0xff]
      %v2489 = vld [vmem:[%s462 + $0x458] sm:$0xff]
      %v2490 = vld [vmem:[%s462 + $0x460] sm:$0xff]
      %v2491 = vld [vmem:[%s462 + $0x468] sm:$0xff]
      %v2492 = vld [vmem:[%s462 + $0x470] sm:$0xff]
      %v2493 = vld [vmem:[%s462 + $0x478] sm:$0xff]
      %v2494 = vld [vmem:[%s462 + $0x480] sm:$0xff]
      %v2495 = vld [vmem:[%s462 + $0x488] sm:$0xff]
      %v2496 = vld [vmem:[%s462 + $0x490] sm:$0xff]
      %v2497 = vld [vmem:[%s462 + $0x498] sm:$0xff]
      %v2498 = vld [vmem:[%s462 + $0x4a0] sm:$0xff]
      %v2499 = vld [vmem:[%s462 + $0x4a8] sm:$0xff]
      %v2500 = vld [vmem:[%s462 + $0x4b0] sm:$0xff]
      %v2501 = vld [vmem:[%s462 + $0x4b8] sm:$0xff]
      %v2502 = vld [vmem:[%s462 + $0x4c0] sm:$0xff]
      %v2503 = vld [vmem:[%s462 + $0x4c8] sm:$0xff]
      %v2504 = vld [vmem:[%s462 + $0x4d0] sm:$0xff]
      %v2505 = vld [vmem:[%s462 + $0x4d8] sm:$0xff]
      %v2506 = vld [vmem:[%s462 + $0x4e0] sm:$0xff]
      %v2507 = vld [vmem:[%s462 + $0x4e8] sm:$0xff]
      %v2508 = vld [vmem:[%s462 + $0x4f0] sm:$0xff]
      %v2509 = vld [vmem:[%s462 + $0x4f8] sm:$0xff]
      %v2510 = vld [vmem:[%s462 + $0x500] sm:$0xff]
      %v2511 = vld [vmem:[%s462 + $0x508] sm:$0xff]
      %v2512 = vld [vmem:[%s462 + $0x510] sm:$0xff]
      %v2513 = vld [vmem:[%s462 + $0x518] sm:$0xff]
      %v2514 = vld [vmem:[%s462 + $0x520] sm:$0xff]
      %v2515 = vld [vmem:[%s462 + $0x528] sm:$0xff]
      %v2516 = vld [vmem:[%s462 + $0x530] sm:$0xff]
      %v2517 = vld [vmem:[%s462 + $0x538] sm:$0xff]
      %v2518 = vld [vmem:[%s462 + $0x540] sm:$0xff]
      %v2519 = vld [vmem:[%s462 + $0x548] sm:$0xff]
      %v2520 = vld [vmem:[%s462 + $0x550] sm:$0xff]
      %v2521 = vld [vmem:[%s462 + $0x558] sm:$0xff]
      %v2522 = vld [vmem:[%s462 + $0x560] sm:$0xff]
      %v2523 = vld [vmem:[%s462 + $0x568] sm:$0xff]
      %v2524 = vld [vmem:[%s462 + $0x570] sm:$0xff]
      %v2525 = vld [vmem:[%s462 + $0x578] sm:$0xff]
      %v2526 = vld [vmem:[%s462 + $0x580] sm:$0xff]
      %v2527 = vld [vmem:[%s462 + $0x588] sm:$0xff]
      %v2528 = vld [vmem:[%s462 + $0x590] sm:$0xff]
      %v2529 = vld [vmem:[%s462 + $0x598] sm:$0xff]
      %v2530 = vld [vmem:[%s462 + $0x5a0] sm:$0xff]
      %v2531 = vld [vmem:[%s462 + $0x5a8] sm:$0xff]
      %v2532 = vld [vmem:[%s462 + $0x5b0] sm:$0xff]
      %v2533 = vld [vmem:[%s462 + $0x5b8] sm:$0xff]
      %v2534 = vld [vmem:[%s462 + $0x5c0] sm:$0xff]
      %v2535 = vld [vmem:[%s462 + $0x5c8] sm:$0xff]
      %v2536 = vld [vmem:[%s462 + $0x5d0] sm:$0xff]
      %v2537 = vld [vmem:[%s462 + $0x5d8] sm:$0xff]
      %v2538 = vld [vmem:[%s462 + $0x5e0] sm:$0xff]
      %v2539 = vld [vmem:[%s462 + $0x5e8] sm:$0xff]
      %v2540 = vld [vmem:[%s462 + $0x5f0] sm:$0xff]
      %v2541 = vld [vmem:[%s462 + $0x5f8] sm:$0xff]
      %v2542 = vld [vmem:[%s462 + $0x600] sm:$0xff]
      %v2543 = vld [vmem:[%s462 + $0x608] sm:$0xff]
      %v2544 = vld [vmem:[%s462 + $0x610] sm:$0xff]
      %v2545 = vld [vmem:[%s462 + $0x618] sm:$0xff]
      %v2546 = vld [vmem:[%s462 + $0x620] sm:$0xff]
      %v2547 = vld [vmem:[%s462 + $0x628] sm:$0xff]
      %v2548 = vld [vmem:[%s462 + $0x630] sm:$0xff]
      %v2549 = vld [vmem:[%s462 + $0x638] sm:$0xff]
      %v2550 = vld [vmem:[%s462 + $0x640] sm:$0xff]
      %v2551 = vld [vmem:[%s462 + $0x648] sm:$0xff]
      %v2552 = vld [vmem:[%s462 + $0x650] sm:$0xff]
      %v2553 = vld [vmem:[%s462 + $0x658] sm:$0xff]
      %v2554 = vld [vmem:[%s462 + $0x660] sm:$0xff]
      %v2555 = vld [vmem:[%s462 + $0x668] sm:$0xff]
      %v2556 = vld [vmem:[%s462 + $0x670] sm:$0xff]
      %v2557 = vld [vmem:[%s462 + $0x678] sm:$0xff]
      %v2558 = vld [vmem:[%s462 + $0x680] sm:$0xff]
      %v2559 = vld [vmem:[%s462 + $0x688] sm:$0xff]
      %v2560 = vld [vmem:[%s462 + $0x690] sm:$0xff]
      %v2561 = vld [vmem:[%s462 + $0x698] sm:$0xff]
      %v2562 = vld [vmem:[%s462 + $0x6a0] sm:$0xff]
      %v2563 = vld [vmem:[%s462 + $0x6a8] sm:$0xff]
      %v2564 = vld [vmem:[%s462 + $0x6b0] sm:$0xff]
      %v2565 = vld [vmem:[%s462 + $0x6b8] sm:$0xff]
      %v2566 = vld [vmem:[%s462 + $0x6c0] sm:$0xff]
      %v2567 = vld [vmem:[%s462 + $0x6c8] sm:$0xff]
      %v2568 = vld [vmem:[%s462 + $0x6d0] sm:$0xff]
      %v2569 = vld [vmem:[%s462 + $0x6d8] sm:$0xff]
      %v2570 = vld [vmem:[%s462 + $0x6e0] sm:$0xff]
      %v2571 = vld [vmem:[%s462 + $0x6e8] sm:$0xff]
      %v2572 = vld [vmem:[%s462 + $0x6f0] sm:$0xff]
      %v2573 = vld [vmem:[%s462 + $0x6f8] sm:$0xff]
      %v2574 = vld [vmem:[%s462 + $0x700] sm:$0xff]
      %v2575 = vld [vmem:[%s462 + $0x708] sm:$0xff]
      %v2576 = vld [vmem:[%s462 + $0x710] sm:$0xff]
      %v2577 = vld [vmem:[%s462 + $0x718] sm:$0xff]
      %v2578 = vld [vmem:[%s462 + $0x720] sm:$0xff]
      %v2579 = vld [vmem:[%s462 + $0x728] sm:$0xff]
      %v2580 = vld [vmem:[%s462 + $0x730] sm:$0xff]
      %v2581 = vld [vmem:[%s462 + $0x738] sm:$0xff]
      %v2582 = vld [vmem:[%s462 + $0x740] sm:$0xff]
      %v2583 = vld [vmem:[%s462 + $0x748] sm:$0xff]
      %v2584 = vld [vmem:[%s462 + $0x750] sm:$0xff]
      %v2585 = vld [vmem:[%s462 + $0x758] sm:$0xff]
      %v2586 = vld [vmem:[%s462 + $0x760] sm:$0xff]
      %v2587 = vld [vmem:[%s462 + $0x768] sm:$0xff]
      %v2588 = vld [vmem:[%s462 + $0x770] sm:$0xff]
      %v2589 = vld [vmem:[%s462 + $0x778] sm:$0xff]
      %v2590 = vld [vmem:[%s462 + $0x780] sm:$0xff]
      %v2591 = vld [vmem:[%s462 + $0x788] sm:$0xff]
      %v2592 = vld [vmem:[%s462 + $0x790] sm:$0xff]
      %v2593 = vld [vmem:[%s462 + $0x798] sm:$0xff]
      %v2594 = vld [vmem:[%s462 + $0x7a0] sm:$0xff]
      %v2595 = vld [vmem:[%s462 + $0x7a8] sm:$0xff]
      %v2596 = vld [vmem:[%s462 + $0x7b0] sm:$0xff]
      %v2597 = vld [vmem:[%s462 + $0x7b8] sm:$0xff]
      %v2598 = vld [vmem:[%s462 + $0x7c0] sm:$0xff]
      %v2599 = vld [vmem:[%s462 + $0x7c8] sm:$0xff]
      %v2600 = vld [vmem:[%s462 + $0x7d0] sm:$0xff]
      %v2601 = vld [vmem:[%s462 + $0x7d8] sm:$0xff]
      %v2602 = vld [vmem:[%s462 + $0x7e0] sm:$0xff]
      %v2603 = vld [vmem:[%s462 + $0x7e8] sm:$0xff]
      %v2604 = vld [vmem:[%s462 + $0x7f0] sm:$0xff]
      %v2605 = vld [vmem:[%s462 + $0x7f8] sm:$0xff]
      %v2606 = vld [vmem:[%s462 + $0x800] sm:$0xff]
      %v2607 = vld [vmem:[%s462 + $0x808] sm:$0xff]
      %v2608 = vld [vmem:[%s462 + $0x810] sm:$0xff]
      %v2609 = vld [vmem:[%s462 + $0x818] sm:$0xff]
      %v2610 = vld [vmem:[%s462 + $0x820] sm:$0xff]
      %v2611 = vld [vmem:[%s462 + $0x828] sm:$0xff]
      %v2612 = vld [vmem:[%s462 + $0x830] sm:$0xff]
      %v2613 = vld [vmem:[%s462 + $0x838] sm:$0xff]
      %v2614 = vld [vmem:[%s462 + $0x840] sm:$0xff]
      %v2615 = vld [vmem:[%s462 + $0x848] sm:$0xff]
      %v2616 = vld [vmem:[%s462 + $0x850] sm:$0xff]
      %v2617 = vld [vmem:[%s462 + $0x858] sm:$0xff]
      %v2618 = vld [vmem:[%s462 + $0x860] sm:$0xff]
      %v2619 = vld [vmem:[%s462 + $0x868] sm:$0xff]
      %v2620 = vld [vmem:[%s462 + $0x870] sm:$0xff]
      %v2621 = vld [vmem:[%s462 + $0x878] sm:$0xff]
      %v2622 = vld [vmem:[%s462 + $0x880] sm:$0xff]
      %v2623 = vld [vmem:[%s462 + $0x888] sm:$0xff]
      %v2624 = vld [vmem:[%s462 + $0x890] sm:$0xff]
      %v2625 = vld [vmem:[%s462 + $0x898] sm:$0xff]
      %v2626 = vld [vmem:[%s462 + $0x8a0] sm:$0xff]
      %v2627 = vld [vmem:[%s462 + $0x8a8] sm:$0xff]
      %v2628 = vld [vmem:[%s462 + $0x8b0] sm:$0xff]
      %v2629 = vld [vmem:[%s462 + $0x8b8] sm:$0xff]
      %v2630 = vld [vmem:[%s462 + $0x8c0] sm:$0xff]
      %v2631 = vld [vmem:[%s462 + $0x8c8] sm:$0xff]
      %v2632 = vld [vmem:[%s462 + $0x8d0] sm:$0xff]
      %v2633 = vld [vmem:[%s462 + $0x8d8] sm:$0xff]
      %v2634 = vld [vmem:[%s462 + $0x8e0] sm:$0xff]
      %v2635 = vld [vmem:[%s462 + $0x8e8] sm:$0xff]
      %v2636 = vld [vmem:[%s462 + $0x8f0] sm:$0xff]
      %v2637 = vld [vmem:[%s462 + $0x8f8] sm:$0xff]
      %v2638 = vld [vmem:[%s462 + $0x900] sm:$0xff]
      %v2639 = vld [vmem:[%s462 + $0x908] sm:$0xff]
      %v2640 = vld [vmem:[%s462 + $0x910] sm:$0xff]
      %v2641 = vld [vmem:[%s462 + $0x918] sm:$0xff]
      %v2642 = vld [vmem:[%s462 + $0x920] sm:$0xff]
      %v2643 = vld [vmem:[%s462 + $0x928] sm:$0xff]
      %v2644 = vld [vmem:[%s462 + $0x930] sm:$0xff]
      %v2645 = vld [vmem:[%s462 + $0x938] sm:$0xff]
      %v2646 = vld [vmem:[%s462 + $0x940] sm:$0xff]
      %v2647 = vld [vmem:[%s462 + $0x948] sm:$0xff]
      %v2648 = vld [vmem:[%s462 + $0x950] sm:$0xff]
      %v2649 = vld [vmem:[%s462 + $0x958] sm:$0xff]
      %v2650 = vld [vmem:[%s462 + $0x960] sm:$0xff]
      %v2651 = vld [vmem:[%s462 + $0x968] sm:$0xff]
      %v2652 = vld [vmem:[%s462 + $0x970] sm:$0xff]
      %v2653 = vld [vmem:[%s462 + $0x978] sm:$0xff]
      %v2654 = vld [vmem:[%s462 + $0x980] sm:$0xff]
      %v2655 = vld [vmem:[%s462 + $0x988] sm:$0xff]
      %v2656 = vld [vmem:[%s462 + $0x990] sm:$0xff]
      %v2657 = vld [vmem:[%s462 + $0x998] sm:$0xff]
      %v2658 = vld [vmem:[%s462 + $0x9a0] sm:$0xff]
      %v2659 = vld [vmem:[%s462 + $0x9a8] sm:$0xff]
      %v2660 = vld [vmem:[%s462 + $0x9b0] sm:$0xff]
      %v2661 = vld [vmem:[%s462 + $0x9b8] sm:$0xff]
      %s2662 = scalar_lea.vmem %s462, 2496
      %v2663 = vld [vmem:[%s2662] sm:$0xff]
      %v2664 = vld [vmem:[%s2662 + $0x8] sm:$0xff]
      %v2665 = vld [vmem:[%s2662 + $0x10] sm:$0xff]
      %v2666 = vld [vmem:[%s2662 + $0x18] sm:$0xff]
      %v2667 = vld [vmem:[%s2662 + $0x20] sm:$0xff]
      %v2668 = vld [vmem:[%s2662 + $0x28] sm:$0xff]
      %v2669 = vld [vmem:[%s2662 + $0x30] sm:$0xff]
      %v2670 = vld [vmem:[%s2662 + $0x38] sm:$0xff]
      %v2671 = vld [vmem:[%s2662 + $0x40] sm:$0xff]
      %v2672 = vld [vmem:[%s2662 + $0x48] sm:$0xff]
      %v2673 = vld [vmem:[%s2662 + $0x50] sm:$0xff]
      %v2674 = vld [vmem:[%s2662 + $0x58] sm:$0xff]
      %v2675 = vld [vmem:[%s2662 + $0x60] sm:$0xff]
      %v2676 = vld [vmem:[%s2662 + $0x68] sm:$0xff]
      %v2677 = vld [vmem:[%s2662 + $0x70] sm:$0xff]
      %v2678 = vld [vmem:[%s2662 + $0x78] sm:$0xff]
      %v2679 = vld [vmem:[%s2662 + $0x80] sm:$0xff]
      %v2680 = vld [vmem:[%s2662 + $0x88] sm:$0xff]
      %v2681 = vld [vmem:[%s2662 + $0x90] sm:$0xff]
      %v2682 = vld [vmem:[%s2662 + $0x98] sm:$0xff]
      %v2683 = vld [vmem:[%s2662 + $0xa0] sm:$0xff]
      %v2684 = vld [vmem:[%s2662 + $0xa8] sm:$0xff]
      %v2685 = vld [vmem:[%s2662 + $0xb0] sm:$0xff]
      %v2686 = vld [vmem:[%s2662 + $0xb8] sm:$0xff]
      %v2687 = vld [vmem:[%s2662 + $0xc0] sm:$0xff]
      %v2688 = vld [vmem:[%s2662 + $0xc8] sm:$0xff]
      %v2689 = vld [vmem:[%s2662 + $0xd0] sm:$0xff]
      %v2690 = vld [vmem:[%s2662 + $0xd8] sm:$0xff]
      %v2691 = vld [vmem:[%s2662 + $0xe0] sm:$0xff]
      %v2692 = vld [vmem:[%s2662 + $0xe8] sm:$0xff]
      %v2693 = vld [vmem:[%s2662 + $0xf0] sm:$0xff]
      %v2694 = vld [vmem:[%s2662 + $0xf8] sm:$0xff]
      %v2695 = vld [vmem:[%s2662 + $0x100] sm:$0xff]
      %v2696 = vld [vmem:[%s2662 + $0x108] sm:$0xff]
      %v2697 = vld [vmem:[%s2662 + $0x110] sm:$0xff]
      %v2698 = vld [vmem:[%s2662 + $0x118] sm:$0xff]
      %v2699 = vld [vmem:[%s2662 + $0x120] sm:$0xff]
      %v2700 = vld [vmem:[%s2662 + $0x128] sm:$0xff]
      %v2701 = vld [vmem:[%s2662 + $0x130] sm:$0xff]
      %v2702 = vld [vmem:[%s2662 + $0x138] sm:$0xff]
      %v2703 = vld [vmem:[%s2662 + $0x140] sm:$0xff]
      %v2704 = vld [vmem:[%s2662 + $0x148] sm:$0xff]
      %v2705 = vld [vmem:[%s2662 + $0x150] sm:$0xff]
      %v2706 = vld [vmem:[%s2662 + $0x158] sm:$0xff]
      %v2707 = vld [vmem:[%s2662 + $0x160] sm:$0xff]
      %v2708 = vld [vmem:[%s2662 + $0x168] sm:$0xff]
      %v2709 = vld [vmem:[%s2662 + $0x170] sm:$0xff]
      %v2710 = vld [vmem:[%s2662 + $0x178] sm:$0xff]
      %v2711 = vld [vmem:[%s2662 + $0x180] sm:$0xff]
      %v2712 = vld [vmem:[%s2662 + $0x188] sm:$0xff]
      %v2713 = vld [vmem:[%s2662 + $0x190] sm:$0xff]
      %v2714 = vld [vmem:[%s2662 + $0x198] sm:$0xff]
      %v2715 = vld [vmem:[%s2662 + $0x1a0] sm:$0xff]
      %v2716 = vld [vmem:[%s2662 + $0x1a8] sm:$0xff]
      %v2717 = vld [vmem:[%s2662 + $0x1b0] sm:$0xff]
      %v2718 = vld [vmem:[%s2662 + $0x1b8] sm:$0xff]
      %v2719 = vld [vmem:[%s2662 + $0x1c0] sm:$0xff]
      %v2720 = vld [vmem:[%s2662 + $0x1c8] sm:$0xff]
      %v2721 = vld [vmem:[%s2662 + $0x1d0] sm:$0xff]
      %v2722 = vld [vmem:[%s2662 + $0x1d8] sm:$0xff]
      %v2723 = vld [vmem:[%s2662 + $0x1e0] sm:$0xff]
      %v2724 = vld [vmem:[%s2662 + $0x1e8] sm:$0xff]
      %v2725 = vld [vmem:[%s2662 + $0x1f0] sm:$0xff]
      %v2726 = vld [vmem:[%s2662 + $0x1f8] sm:$0xff]
      %v2727 = vld [vmem:[%s2662 + $0x200] sm:$0xff]
      %v2728 = vld [vmem:[%s2662 + $0x208] sm:$0xff]
      %v2729 = vld [vmem:[%s2662 + $0x210] sm:$0xff]
      %v2730 = vld [vmem:[%s2662 + $0x218] sm:$0xff]
      %v2731 = vld [vmem:[%s2662 + $0x220] sm:$0xff]
      %v2732 = vld [vmem:[%s2662 + $0x228] sm:$0xff]
      %v2733 = vld [vmem:[%s2662 + $0x230] sm:$0xff]
      %v2734 = vld [vmem:[%s2662 + $0x238] sm:$0xff]
      %v2735 = vld [vmem:[%s2662 + $0x240] sm:$0xff]
      %v2736 = vld [vmem:[%s2662 + $0x248] sm:$0xff]
      %v2737 = vld [vmem:[%s2662 + $0x250] sm:$0xff]
      %v2738 = vld [vmem:[%s2662 + $0x258] sm:$0xff]
      %v2739 = vld [vmem:[%s2662 + $0x260] sm:$0xff]
      %v2740 = vld [vmem:[%s2662 + $0x268] sm:$0xff]
      %v2741 = vld [vmem:[%s2662 + $0x270] sm:$0xff]
      %v2742 = vld [vmem:[%s2662 + $0x278] sm:$0xff]
      %v2743 = vld [vmem:[%s2662 + $0x280] sm:$0xff]
      %v2744 = vld [vmem:[%s2662 + $0x288] sm:$0xff]
      %v2745 = vld [vmem:[%s2662 + $0x290] sm:$0xff]
      %v2746 = vld [vmem:[%s2662 + $0x298] sm:$0xff]
      %v2747 = vld [vmem:[%s2662 + $0x2a0] sm:$0xff]
      %v2748 = vld [vmem:[%s2662 + $0x2a8] sm:$0xff]
      %v2749 = vld [vmem:[%s2662 + $0x2b0] sm:$0xff]
      %v2750 = vld [vmem:[%s2662 + $0x2b8] sm:$0xff]
      %v2751 = vld [vmem:[%s2662 + $0x2c0] sm:$0xff]
      %v2752 = vld [vmem:[%s2662 + $0x2c8] sm:$0xff]
      %v2753 = vld [vmem:[%s2662 + $0x2d0] sm:$0xff]
      %v2754 = vld [vmem:[%s2662 + $0x2d8] sm:$0xff]
      %v2755 = vld [vmem:[%s2662 + $0x2e0] sm:$0xff]
      %v2756 = vld [vmem:[%s2662 + $0x2e8] sm:$0xff]
      %v2757 = vld [vmem:[%s2662 + $0x2f0] sm:$0xff]
      %v2758 = vld [vmem:[%s2662 + $0x2f8] sm:$0xff]
      %v2759 = vld [vmem:[%s2662 + $0x300] sm:$0xff]
      %v2760 = vld [vmem:[%s2662 + $0x308] sm:$0xff]
      %v2761 = vld [vmem:[%s2662 + $0x310] sm:$0xff]
      %v2762 = vld [vmem:[%s2662 + $0x318] sm:$0xff]
      %v2763 = vld [vmem:[%s2662 + $0x320] sm:$0xff]
      %v2764 = vld [vmem:[%s2662 + $0x328] sm:$0xff]
      %v2765 = vld [vmem:[%s2662 + $0x330] sm:$0xff]
      %v2766 = vld [vmem:[%s2662 + $0x338] sm:$0xff]
      %v2767 = vld [vmem:[%s2662 + $0x340] sm:$0xff]
      %v2768 = vld [vmem:[%s2662 + $0x348] sm:$0xff]
      %v2769 = vld [vmem:[%s2662 + $0x350] sm:$0xff]
      %v2770 = vld [vmem:[%s2662 + $0x358] sm:$0xff]
      %v2771 = vld [vmem:[%s2662 + $0x360] sm:$0xff]
      %v2772 = vld [vmem:[%s2662 + $0x368] sm:$0xff]
      %v2773 = vld [vmem:[%s2662 + $0x370] sm:$0xff]
      %v2774 = vld [vmem:[%s2662 + $0x378] sm:$0xff]
      %v2775 = vld [vmem:[%s2662 + $0x380] sm:$0xff]
      %v2776 = vld [vmem:[%s2662 + $0x388] sm:$0xff]
      %v2777 = vld [vmem:[%s2662 + $0x390] sm:$0xff]
      %v2778 = vld [vmem:[%s2662 + $0x398] sm:$0xff]
      %v2779 = vld [vmem:[%s2662 + $0x3a0] sm:$0xff]
      %v2780 = vld [vmem:[%s2662 + $0x3a8] sm:$0xff]
      %v2781 = vld [vmem:[%s2662 + $0x3b0] sm:$0xff]
      %v2782 = vld [vmem:[%s2662 + $0x3b8] sm:$0xff]
      %v2783 = vld [vmem:[%s2662 + $0x3c0] sm:$0xff]
      %v2784 = vld [vmem:[%s2662 + $0x3c8] sm:$0xff]
      %v2785 = vld [vmem:[%s2662 + $0x3d0] sm:$0xff]
      %v2786 = vld [vmem:[%s2662 + $0x3d8] sm:$0xff]
      %v2787 = vld [vmem:[%s2662 + $0x3e0] sm:$0xff]
      %v2788 = vld [vmem:[%s2662 + $0x3e8] sm:$0xff]
      %v2789 = vld [vmem:[%s2662 + $0x3f0] sm:$0xff]
      %v2790 = vld [vmem:[%s2662 + $0x3f8] sm:$0xff]
      %v2791 = vld [vmem:[%s2662 + $0x400] sm:$0xff]
      %v2792 = vld [vmem:[%s2662 + $0x408] sm:$0xff]
      %v2793 = vld [vmem:[%s2662 + $0x410] sm:$0xff]
      %v2794 = vld [vmem:[%s2662 + $0x418] sm:$0xff]
      %v2795 = vld [vmem:[%s2662 + $0x420] sm:$0xff]
      %v2796 = vld [vmem:[%s2662 + $0x428] sm:$0xff]
      %v2797 = vld [vmem:[%s2662 + $0x430] sm:$0xff]
      %v2798 = vld [vmem:[%s2662 + $0x438] sm:$0xff]
      %v2799 = vld [vmem:[%s2662 + $0x440] sm:$0xff]
      %v2800 = vld [vmem:[%s2662 + $0x448] sm:$0xff]
      %v2801 = vld [vmem:[%s2662 + $0x450] sm:$0xff]
      %v2802 = vld [vmem:[%s2662 + $0x458] sm:$0xff]
      %v2803 = vld [vmem:[%s2662 + $0x460] sm:$0xff]
      %v2804 = vld [vmem:[%s2662 + $0x468] sm:$0xff]
      %v2805 = vld [vmem:[%s2662 + $0x470] sm:$0xff]
      %v2806 = vld [vmem:[%s2662 + $0x478] sm:$0xff]
      %v2807 = vld [vmem:[%s2662 + $0x480] sm:$0xff]
      %v2808 = vld [vmem:[%s2662 + $0x488] sm:$0xff]
      %v2809 = vld [vmem:[%s2662 + $0x490] sm:$0xff]
      %v2810 = vld [vmem:[%s2662 + $0x498] sm:$0xff]
      %v2811 = vld [vmem:[%s2662 + $0x4a0] sm:$0xff]
      %v2812 = vld [vmem:[%s2662 + $0x4a8] sm:$0xff]
      %v2813 = vld [vmem:[%s2662 + $0x4b0] sm:$0xff]
      %v2814 = vld [vmem:[%s2662 + $0x4b8] sm:$0xff]
      %v2815 = vld [vmem:[%s2662 + $0x4c0] sm:$0xff]
      %v2816 = vld [vmem:[%s2662 + $0x4c8] sm:$0xff]
      %v2817 = vld [vmem:[%s2662 + $0x4d0] sm:$0xff]
      %v2818 = vld [vmem:[%s2662 + $0x4d8] sm:$0xff]
      %v2819 = vld [vmem:[%s2662 + $0x4e0] sm:$0xff]
      %v2820 = vld [vmem:[%s2662 + $0x4e8] sm:$0xff]
      %v2821 = vld [vmem:[%s2662 + $0x4f0] sm:$0xff]
      %v2822 = vld [vmem:[%s2662 + $0x4f8] sm:$0xff]
      %v2823 = vld [vmem:[%s2662 + $0x500] sm:$0xff]
      %v2824 = vld [vmem:[%s2662 + $0x508] sm:$0xff]
      %v2825 = vld [vmem:[%s2662 + $0x510] sm:$0xff]
      %v2826 = vld [vmem:[%s2662 + $0x518] sm:$0xff]
      %v2827 = vld [vmem:[%s2662 + $0x520] sm:$0xff]
      %v2828 = vld [vmem:[%s2662 + $0x528] sm:$0xff]
      %v2829 = vld [vmem:[%s2662 + $0x530] sm:$0xff]
      %v2830 = vld [vmem:[%s2662 + $0x538] sm:$0xff]
      %v2831 = vld [vmem:[%s2662 + $0x540] sm:$0xff]
      %v2832 = vld [vmem:[%s2662 + $0x548] sm:$0xff]
      %v2833 = vld [vmem:[%s2662 + $0x550] sm:$0xff]
      %v2834 = vld [vmem:[%s2662 + $0x558] sm:$0xff]
      %v2835 = vld [vmem:[%s2662 + $0x560] sm:$0xff]
      %v2836 = vld [vmem:[%s2662 + $0x568] sm:$0xff]
      %v2837 = vld [vmem:[%s2662 + $0x570] sm:$0xff]
      %v2838 = vld [vmem:[%s2662 + $0x578] sm:$0xff]
      %v2839 = vld [vmem:[%s2662 + $0x580] sm:$0xff]
      %v2840 = vld [vmem:[%s2662 + $0x588] sm:$0xff]
      %v2841 = vld [vmem:[%s2662 + $0x590] sm:$0xff]
      %v2842 = vld [vmem:[%s2662 + $0x598] sm:$0xff]
      %v2843 = vld [vmem:[%s2662 + $0x5a0] sm:$0xff]
      %v2844 = vld [vmem:[%s2662 + $0x5a8] sm:$0xff]
      %v2845 = vld [vmem:[%s2662 + $0x5b0] sm:$0xff]
      %v2846 = vld [vmem:[%s2662 + $0x5b8] sm:$0xff]
      %v2847 = vld [vmem:[%s2662 + $0x5c0] sm:$0xff]
      %v2848 = vld [vmem:[%s2662 + $0x5c8] sm:$0xff]
      %v2849 = vld [vmem:[%s2662 + $0x5d0] sm:$0xff]
      %v2850 = vld [vmem:[%s2662 + $0x5d8] sm:$0xff]
      %v2851 = vld [vmem:[%s2662 + $0x5e0] sm:$0xff]
      %v2852 = vld [vmem:[%s2662 + $0x5e8] sm:$0xff]
      %v2853 = vld [vmem:[%s2662 + $0x5f0] sm:$0xff]
      %v2854 = vld [vmem:[%s2662 + $0x5f8] sm:$0xff]
      %v2855 = vld [vmem:[%s2662 + $0x600] sm:$0xff]
      %v2856 = vld [vmem:[%s2662 + $0x608] sm:$0xff]
      %v2857 = vld [vmem:[%s2662 + $0x610] sm:$0xff]
      %v2858 = vld [vmem:[%s2662 + $0x618] sm:$0xff]
      %v2859 = vld [vmem:[%s2662 + $0x620] sm:$0xff]
      %v2860 = vld [vmem:[%s2662 + $0x628] sm:$0xff]
      %v2861 = vld [vmem:[%s2662 + $0x630] sm:$0xff]
      %v2862 = vld [vmem:[%s2662 + $0x638] sm:$0xff]
      %v2863 = vld [vmem:[%s2662 + $0x640] sm:$0xff]
      %v2864 = vld [vmem:[%s2662 + $0x648] sm:$0xff]
      %v2865 = vld [vmem:[%s2662 + $0x650] sm:$0xff]
      %v2866 = vld [vmem:[%s2662 + $0x658] sm:$0xff]
      %v2867 = vld [vmem:[%s2662 + $0x660] sm:$0xff]
      %v2868 = vld [vmem:[%s2662 + $0x668] sm:$0xff]
      %v2869 = vld [vmem:[%s2662 + $0x670] sm:$0xff]
      %v2870 = vld [vmem:[%s2662 + $0x678] sm:$0xff]
      %v2871 = vld [vmem:[%s2662 + $0x680] sm:$0xff]
      %v2872 = vld [vmem:[%s2662 + $0x688] sm:$0xff]
      %v2873 = vld [vmem:[%s2662 + $0x690] sm:$0xff]
      %v2874 = vld [vmem:[%s2662 + $0x698] sm:$0xff]
      %v2875 = vld [vmem:[%s2662 + $0x6a0] sm:$0xff]
      %v2876 = vld [vmem:[%s2662 + $0x6a8] sm:$0xff]
      %v2877 = vld [vmem:[%s2662 + $0x6b0] sm:$0xff]
      %v2878 = vld [vmem:[%s2662 + $0x6b8] sm:$0xff]
      %v2879 = vld [vmem:[%s2662 + $0x6c0] sm:$0xff]
      %v2880 = vld [vmem:[%s2662 + $0x6c8] sm:$0xff]
      %v2881 = vld [vmem:[%s2662 + $0x6d0] sm:$0xff]
      %v2882 = vld [vmem:[%s2662 + $0x6d8] sm:$0xff]
      %v2883 = vld [vmem:[%s2662 + $0x6e0] sm:$0xff]
      %v2884 = vld [vmem:[%s2662 + $0x6e8] sm:$0xff]
      %v2885 = vld [vmem:[%s2662 + $0x6f0] sm:$0xff]
      %v2886 = vld [vmem:[%s2662 + $0x6f8] sm:$0xff]
      %v2887 = vld [vmem:[%s2662 + $0x700] sm:$0xff]
      %v2888 = vld [vmem:[%s2662 + $0x708] sm:$0xff]
      %v2889 = vld [vmem:[%s2662 + $0x710] sm:$0xff]
      %v2890 = vld [vmem:[%s2662 + $0x718] sm:$0xff]
      %v2891 = vld [vmem:[%s2662 + $0x720] sm:$0xff]
      %v2892 = vld [vmem:[%s2662 + $0x728] sm:$0xff]
      %v2893 = vld [vmem:[%s2662 + $0x730] sm:$0xff]
      %v2894 = vld [vmem:[%s2662 + $0x738] sm:$0xff]
      %v2895 = vld [vmem:[%s2662 + $0x740] sm:$0xff]
      %v2896 = vld [vmem:[%s2662 + $0x748] sm:$0xff]
      %v2897 = vld [vmem:[%s2662 + $0x750] sm:$0xff]
      %v2898 = vld [vmem:[%s2662 + $0x758] sm:$0xff]
      %v2899 = vld [vmem:[%s2662 + $0x760] sm:$0xff]
      %v2900 = vld [vmem:[%s2662 + $0x768] sm:$0xff]
      %v2901 = vld [vmem:[%s2662 + $0x770] sm:$0xff]
      %v2902 = vld [vmem:[%s2662 + $0x778] sm:$0xff]
      %v2903 = vld [vmem:[%s2662 + $0x780] sm:$0xff]
      %v2904 = vld [vmem:[%s2662 + $0x788] sm:$0xff]
      %v2905 = vld [vmem:[%s2662 + $0x790] sm:$0xff]
      %v2906 = vld [vmem:[%s2662 + $0x798] sm:$0xff]
      %v2907 = vld [vmem:[%s2662 + $0x7a0] sm:$0xff]
      %v2908 = vld [vmem:[%s2662 + $0x7a8] sm:$0xff]
      %v2909 = vld [vmem:[%s2662 + $0x7b0] sm:$0xff]
      %v2910 = vld [vmem:[%s2662 + $0x7b8] sm:$0xff]
      %v2911 = vld [vmem:[%s2662 + $0x7c0] sm:$0xff]
      %v2912 = vld [vmem:[%s2662 + $0x7c8] sm:$0xff]
      %v2913 = vld [vmem:[%s2662 + $0x7d0] sm:$0xff]
      %v2914 = vld [vmem:[%s2662 + $0x7d8] sm:$0xff]
      %v2915 = vld [vmem:[%s2662 + $0x7e0] sm:$0xff]
      %v2916 = vld [vmem:[%s2662 + $0x7e8] sm:$0xff]
      %v2917 = vld [vmem:[%s2662 + $0x7f0] sm:$0xff]
      %v2918 = vld [vmem:[%s2662 + $0x7f8] sm:$0xff]
      %v2919 = vld [vmem:[%s2662 + $0x800] sm:$0xff]
      %v2920 = vld [vmem:[%s2662 + $0x808] sm:$0xff]
      %v2921 = vld [vmem:[%s2662 + $0x810] sm:$0xff]
      %v2922 = vld [vmem:[%s2662 + $0x818] sm:$0xff]
      %v2923 = vld [vmem:[%s2662 + $0x820] sm:$0xff]
      %v2924 = vld [vmem:[%s2662 + $0x828] sm:$0xff]
      %v2925 = vld [vmem:[%s2662 + $0x830] sm:$0xff]
      %v2926 = vld [vmem:[%s2662 + $0x838] sm:$0xff]
      %v2927 = vld [vmem:[%s2662 + $0x840] sm:$0xff]
      %v2928 = vld [vmem:[%s2662 + $0x848] sm:$0xff]
      %v2929 = vld [vmem:[%s2662 + $0x850] sm:$0xff]
      %v2930 = vld [vmem:[%s2662 + $0x858] sm:$0xff]
      %v2931 = vld [vmem:[%s2662 + $0x860] sm:$0xff]
      %v2932 = vld [vmem:[%s2662 + $0x868] sm:$0xff]
      %v2933 = vld [vmem:[%s2662 + $0x870] sm:$0xff]
      %v2934 = vld [vmem:[%s2662 + $0x878] sm:$0xff]
      %v2935 = vld [vmem:[%s2662 + $0x880] sm:$0xff]
      %v2936 = vld [vmem:[%s2662 + $0x888] sm:$0xff]
      %v2937 = vld [vmem:[%s2662 + $0x890] sm:$0xff]
      %v2938 = vld [vmem:[%s2662 + $0x898] sm:$0xff]
      %v2939 = vld [vmem:[%s2662 + $0x8a0] sm:$0xff]
      %v2940 = vld [vmem:[%s2662 + $0x8a8] sm:$0xff]
      %v2941 = vld [vmem:[%s2662 + $0x8b0] sm:$0xff]
      %v2942 = vld [vmem:[%s2662 + $0x8b8] sm:$0xff]
      %v2943 = vld [vmem:[%s2662 + $0x8c0] sm:$0xff]
      %v2944 = vld [vmem:[%s2662 + $0x8c8] sm:$0xff]
      %v2945 = vld [vmem:[%s2662 + $0x8d0] sm:$0xff]
      %v2946 = vld [vmem:[%s2662 + $0x8d8] sm:$0xff]
      %v2947 = vld [vmem:[%s2662 + $0x8e0] sm:$0xff]
      %v2948 = vld [vmem:[%s2662 + $0x8e8] sm:$0xff]
      %v2949 = vld [vmem:[%s2662 + $0x8f0] sm:$0xff]
      %v2950 = vld [vmem:[%s2662 + $0x8f8] sm:$0xff]
      %v2951 = vld [vmem:[%s2662 + $0x900] sm:$0xff]
      %v2952 = vld [vmem:[%s2662 + $0x908] sm:$0xff]
      %v2953 = vld [vmem:[%s2662 + $0x910] sm:$0xff]
      %v2954 = vld [vmem:[%s2662 + $0x918] sm:$0xff]
      %v2955 = vld [vmem:[%s2662 + $0x920] sm:$0xff]
      %v2956 = vld [vmem:[%s2662 + $0x928] sm:$0xff]
      %v2957 = vld [vmem:[%s2662 + $0x930] sm:$0xff]
      %v2958 = vld [vmem:[%s2662 + $0x938] sm:$0xff]
      %v2959 = vld [vmem:[%s2662 + $0x940] sm:$0xff]
      %v2960 = vld [vmem:[%s2662 + $0x948] sm:$0xff]
      %v2961 = vld [vmem:[%s2662 + $0x950] sm:$0xff]
      %v2962 = vld [vmem:[%s2662 + $0x958] sm:$0xff]
      %v2963 = vld [vmem:[%s2662 + $0x960] sm:$0xff]
      %v2964 = vld [vmem:[%s2662 + $0x968] sm:$0xff]
      %v2965 = vld [vmem:[%s2662 + $0x970] sm:$0xff]
      %v2966 = vld [vmem:[%s2662 + $0x978] sm:$0xff]
      %v2967 = vld [vmem:[%s2662 + $0x980] sm:$0xff]
      %v2968 = vld [vmem:[%s2662 + $0x988] sm:$0xff]
      %v2969 = vld [vmem:[%s2662 + $0x990] sm:$0xff]
      %v2970 = vld [vmem:[%s2662 + $0x998] sm:$0xff]
      %v2971 = vld [vmem:[%s2662 + $0x9a0] sm:$0xff]
      %v2972 = vld [vmem:[%s2662 + $0x9a8] sm:$0xff]
      %v2973 = vld [vmem:[%s2662 + $0x9b0] sm:$0xff]
      %v2974 = vld [vmem:[%s2662 + $0x9b8] sm:$0xff]
      %vm2975 = vcmask 261120
      %v2977 = vsel %vm2975, %v2253, 0
      %v2980 = vsel %vm2975, %v2257, 0
      %v2983 = vsel %vm2975, %v2261, 0
      %v2986 = vsel %vm2975, %v2265, 0
      %v2989 = vsel %vm2975, %v2269, 0
      %v2992 = vsel %vm2975, %v2273, 0
      %v2995 = vsel %vm2975, %v2277, 0
      %v2998 = vsel %vm2975, %v2281, 0
      %v3001 = vsel %vm2975, %v2285, 0
      %v3004 = vsel %vm2975, %v2289, 0
      %v3007 = vsel %vm2975, %v2293, 0
      %v3010 = vsel %vm2975, %v2297, 0
      %v3013 = vsel %vm2975, %v2301, 0
      %v3016 = vsel %vm2975, %v2305, 0
      %v3019 = vsel %vm2975, %v2309, 0
      %v3022 = vsel %vm2975, %v2313, 0
      %v3025 = vsel %vm2975, %v2317, 0
      %v3028 = vsel %vm2975, %v2321, 0
      %v3031 = vsel %vm2975, %v2325, 0
      %v3034 = vsel %vm2975, %v2329, 0
      %v3037 = vsel %vm2975, %v2333, 0
      %v3040 = vsel %vm2975, %v2337, 0
      %v3043 = vsel %vm2975, %v2341, 0
      %v3046 = vsel %vm2975, %v2345, 0
      %3048 = vmatprep.subr.mxu0 %v2754
      %3049 = vmatpush1.msra.mxu0 %v2753
      %3050 = vmatprep.subr.mxu0 %v2748
      %3051 = vmatpush1.msra.mxu0 %v2747
      %3052 = vmatprep.subr.mxu0 %v2742
      %3053 = vmatpush1.msra.mxu0 %v2741
      %3054 = vmatprep.subr.mxu0 %v2736
      %3055 = vmatpush1.msra.mxu0 %v2735
      %3056 = vmatprep.subr.mxu0 %v2730
      %3057 = vmatpush1.msra.mxu0 %v2729
      %3058 = vmatprep.subr.mxu0 %v2724
      %3059 = vmatpush1.msra.mxu0 %v2723
      %3060 = vmatprep.subr.mxu0 %v2718
      %3061 = vmatpush1.msra.mxu0 %v2717
      %3062 = vmatprep.subr.mxu0 %v2712
      %3063 = vmatpush1.msra.mxu0 %v2711
      %3064 = vmatprep.subr.mxu0 %v2706
      %3065 = vmatpush1.msra.mxu0 %v2705
      %3066 = vmatprep.subr.mxu0 %v2700
      %3067 = vmatpush1.msra.mxu0 %v2699
      %3068 = vmatprep.subr.mxu0 %v2694
      %3069 = vmatpush1.msra.mxu0 %v2693
      %3070 = vmatprep.subr.mxu0 %v2688
      %3071 = vmatpush1.msra.mxu0 %v2687
      %3072 = vmatprep.subr.mxu0 %v2682
      %3073 = vmatpush1.msra.mxu0 %v2681
      %3074 = vmatprep.subr.mxu0 %v2676
      %3075 = vmatpush1.msra.mxu0 %v2675
      %3076 = vmatprep.subr.mxu0 %v2670
      %3077 = vmatpush1.msra.mxu0 %v2669
      %3078 = vmatprep.subr.mxu0 %v2664
      %3079 = vmatpush1.msra.mxu0 %v2663
      %3080 = vmatprep.subr.mxu0 %v2850
      %3081 = vmatpush2.msra.mxu0 %v2849
      %3082 = vmatprep.subr.mxu0 %v2844
      %3083 = vmatpush2.msra.mxu0 %v2843
      %3084 = vmatprep.subr.mxu0 %v2838
      %3085 = vmatpush2.msra.mxu0 %v2837
      %3086 = vmatprep.subr.mxu0 %v2832
      %3087 = vmatpush2.msra.mxu0 %v2831
      %3088 = vmatprep.subr.mxu0 %v2826
      %3089 = vmatpush2.msra.mxu0 %v2825
      %3090 = vmatprep.subr.mxu0 %v2820
      %3091 = vmatpush2.msra.mxu0 %v2819
      %3092 = vmatprep.subr.mxu0 %v2814
      %3093 = vmatpush2.msra.mxu0 %v2813
      %3094 = vmatprep.subr.mxu0 %v2808
      %3095 = vmatpush2.msra.mxu0 %v2807
      %3096 = vmatprep.subr.mxu0 %v2802
      %3097 = vmatpush2.msra.mxu0 %v2801
      %3098 = vmatprep.subr.mxu0 %v2796
      %3099 = vmatpush2.msra.mxu0 %v2795
      %3100 = vmatprep.subr.mxu0 %v2790
      %3101 = vmatpush2.msra.mxu0 %v2789
      %3102 = vmatprep.subr.mxu0 %v2784
      %3103 = vmatpush2.msra.mxu0 %v2783
      %3104 = vmatprep.subr.mxu0 %v2778
      %3105 = vmatpush2.msra.mxu0 %v2777
      %3106 = vmatprep.subr.mxu0 %v2772
      %3107 = vmatpush2.msra.mxu0 %v2771
      %3108 = vmatprep.subr.mxu0 %v2766
      %3109 = vmatpush2.msra.mxu0 %v2765
      %3110 = vmatprep.subr.mxu0 %v2760
      %3111 = vmatpush2.msra.mxu0 %v2759
      %3112 = vmatprep.mubr.f32.mxu0 %v2251
      %3113 = vmatmul.mubr.f32.gmra.mxu0 %v2250
      %v3114 = vpop.f32.mrf.mxu0
      %v3115 = vadd.f32 0.0, %v3114
      %v3116 = vpop.f32.mrf.mxu0
      %v3117 = vadd.f32 0.0, %v3116
      %3118 = vmatprep.mubr.f32.mxu0 %v2255
      %3119 = vmatmul.mubr.f32.gmra.mxu0 %v2254
      %v3120 = vpop.f32.mrf.mxu0
      %v3121 = vadd.f32 0.0, %v3120
      %v3122 = vpop.f32.mrf.mxu0
      %v3123 = vadd.f32 0.0, %v3122
      %3124 = vmatprep.mubr.f32.mxu0 %v2259
      %3125 = vmatmul.mubr.f32.gmra.mxu0 %v2258
      %v3126 = vpop.f32.mrf.mxu0
      %v3127 = vadd.f32 0.0, %v3126
      %v3128 = vpop.f32.mrf.mxu0
      %v3129 = vadd.f32 0.0, %v3128
      %3130 = vmatprep.mubr.f32.mxu0 %v2263
      %3131 = vmatmul.mubr.f32.gmra.mxu0 %v2262
      %v3132 = vpop.f32.mrf.mxu0
      %v3133 = vadd.f32 0.0, %v3132
      %v3134 = vpop.f32.mrf.mxu0
      %v3135 = vadd.f32 0.0, %v3134
      %3136 = vmatprep.mubr.f32.mxu0 %v2267
      %3137 = vmatmul.mubr.f32.gmra.mxu0 %v2266
      %v3138 = vpop.f32.mrf.mxu0
      %v3139 = vadd.f32 0.0, %v3138
      %v3140 = vpop.f32.mrf.mxu0
      %v3141 = vadd.f32 0.0, %v3140
      %3142 = vmatprep.mubr.f32.mxu0 %v2271
      %3143 = vmatmul.mubr.f32.gmra.mxu0 %v2270
      %v3144 = vpop.f32.mrf.mxu0
      %v3145 = vadd.f32 0.0, %v3144
      %v3146 = vpop.f32.mrf.mxu0
      %v3147 = vadd.f32 0.0, %v3146
      %3148 = vmatprep.mubr.f32.mxu0 %v2275
      %3149 = vmatmul.mubr.f32.gmra.mxu0 %v2274
      %v3150 = vpop.f32.mrf.mxu0
      %v3151 = vadd.f32 0.0, %v3150
      %v3152 = vpop.f32.mrf.mxu0
      %v3153 = vadd.f32 0.0, %v3152
      %3154 = vmatprep.mubr.f32.mxu0 %v2279
      %3155 = vmatmul.mubr.f32.gmra.mxu0 %v2278
      %v3156 = vpop.f32.mrf.mxu0
      %v3157 = vadd.f32 0.0, %v3156
      %v3158 = vpop.f32.mrf.mxu0
      %v3159 = vadd.f32 0.0, %v3158
      %3160 = vmatprep.mubr.f32.mxu0 %v2283
      %3161 = vmatmul.mubr.f32.gmra.mxu0 %v2282
      %v3162 = vpop.f32.mrf.mxu0
      %v3163 = vadd.f32 0.0, %v3162
      %v3164 = vpop.f32.mrf.mxu0
      %v3165 = vadd.f32 0.0, %v3164
      %3166 = vmatprep.mubr.f32.mxu0 %v2287
      %3167 = vmatmul.mubr.f32.gmra.mxu0 %v2286
      %v3168 = vpop.f32.mrf.mxu0
      %v3169 = vadd.f32 0.0, %v3168
      %v3170 = vpop.f32.mrf.mxu0
      %v3171 = vadd.f32 0.0, %v3170
      %3172 = vmatprep.mubr.f32.mxu0 %v2291
      %3173 = vmatmul.mubr.f32.gmra.mxu0 %v2290
      %v3174 = vpop.f32.mrf.mxu0
      %v3175 = vadd.f32 0.0, %v3174
      %v3176 = vpop.f32.mrf.mxu0
      %v3177 = vadd.f32 0.0, %v3176
      %3178 = vmatprep.mubr.f32.mxu0 %v2295
      %3179 = vmatmul.mubr.f32.gmra.mxu0 %v2294
      %v3180 = vpop.f32.mrf.mxu0
      %v3181 = vadd.f32 0.0, %v3180
      %v3182 = vpop.f32.mrf.mxu0
      %v3183 = vadd.f32 0.0, %v3182
      %3184 = vmatprep.mubr.f32.mxu0 %v2299
      %3185 = vmatmul.mubr.f32.gmra.mxu0 %v2298
      %v3186 = vpop.f32.mrf.mxu0
      %v3187 = vadd.f32 0.0, %v3186
      %v3188 = vpop.f32.mrf.mxu0
      %v3189 = vadd.f32 0.0, %v3188
      %3190 = vmatprep.mubr.f32.mxu0 %v2303
      %3191 = vmatmul.mubr.f32.gmra.mxu0 %v2302
      %v3192 = vpop.f32.mrf.mxu0
      %v3193 = vadd.f32 0.0, %v3192
      %v3194 = vpop.f32.mrf.mxu0
      %v3195 = vadd.f32 0.0, %v3194
      %3196 = vmatprep.mubr.f32.mxu0 %v2307
      %3197 = vmatmul.mubr.f32.gmra.mxu0 %v2306
      %v3198 = vpop.f32.mrf.mxu0
      %v3199 = vadd.f32 0.0, %v3198
      %v3200 = vpop.f32.mrf.mxu0
      %v3201 = vadd.f32 0.0, %v3200
      %3202 = vmatprep.mubr.f32.mxu0 %v2311
      %3203 = vmatmul.mubr.f32.gmra.mxu0 %v2310
      %v3204 = vpop.f32.mrf.mxu0
      %v3205 = vadd.f32 0.0, %v3204
      %v3206 = vpop.f32.mrf.mxu0
      %v3207 = vadd.f32 0.0, %v3206
      %3208 = vmatprep.mubr.f32.mxu0 %v2315
      %3209 = vmatmul.mubr.f32.gmra.mxu0 %v2314
      %v3210 = vpop.f32.mrf.mxu0
      %v3211 = vadd.f32 0.0, %v3210
      %v3212 = vpop.f32.mrf.mxu0
      %v3213 = vadd.f32 0.0, %v3212
      %3214 = vmatprep.mubr.f32.mxu0 %v2319
      %3215 = vmatmul.mubr.f32.gmra.mxu0 %v2318
      %v3216 = vpop.f32.mrf.mxu0
      %v3217 = vadd.f32 0.0, %v3216
      %v3218 = vpop.f32.mrf.mxu0
      %v3219 = vadd.f32 0.0, %v3218
      %3220 = vmatprep.mubr.f32.mxu0 %v2323
      %3221 = vmatmul.mubr.f32.gmra.mxu0 %v2322
      %v3222 = vpop.f32.mrf.mxu0
      %v3223 = vadd.f32 0.0, %v3222
      %v3224 = vpop.f32.mrf.mxu0
      %v3225 = vadd.f32 0.0, %v3224
      %3226 = vmatprep.mubr.f32.mxu0 %v2327
      %3227 = vmatmul.mubr.f32.gmra.mxu0 %v2326
      %v3228 = vpop.f32.mrf.mxu0
      %v3229 = vadd.f32 0.0, %v3228
      %v3230 = vpop.f32.mrf.mxu0
      %v3231 = vadd.f32 0.0, %v3230
      %3232 = vmatprep.mubr.f32.mxu0 %v2331
      %3233 = vmatmul.mubr.f32.gmra.mxu0 %v2330
      %v3234 = vpop.f32.mrf.mxu0
      %v3235 = vadd.f32 0.0, %v3234
      %v3236 = vpop.f32.mrf.mxu0
      %v3237 = vadd.f32 0.0, %v3236
      %3238 = vmatprep.mubr.f32.mxu0 %v2335
      %3239 = vmatmul.mubr.f32.gmra.mxu0 %v2334
      %v3240 = vpop.f32.mrf.mxu0
      %v3241 = vadd.f32 0.0, %v3240
      %v3242 = vpop.f32.mrf.mxu0
      %v3243 = vadd.f32 0.0, %v3242
      %3244 = vmatprep.mubr.f32.mxu0 %v2339
      %3245 = vmatmul.mubr.f32.gmra.mxu0 %v2338
      %v3246 = vpop.f32.mrf.mxu0
      %v3247 = vadd.f32 0.0, %v3246
      %v3248 = vpop.f32.mrf.mxu0
      %v3249 = vadd.f32 0.0, %v3248
      %3250 = vmatprep.mubr.f32.mxu0 %v2343
      %3251 = vmatmul.mubr.f32.gmra.mxu0 %v2342
      %v3252 = vpop.f32.mrf.mxu0
      %v3253 = vadd.f32 0.0, %v3252
      %v3254 = vpop.f32.mrf.mxu0
      %v3255 = vadd.f32 0.0, %v3254
      %3256 = vdwg.mxu0
      %3257 = vmatprep.subr.mxu0 %v2946
      %3258 = vmatpush1.msra.mxu0 %v2945
      %3259 = vmatprep.subr.mxu0 %v2940
      %3260 = vmatpush1.msra.mxu0 %v2939
      %3261 = vmatprep.subr.mxu0 %v2934
      %3262 = vmatpush1.msra.mxu0 %v2933
      %3263 = vmatprep.subr.mxu0 %v2928
      %3264 = vmatpush1.msra.mxu0 %v2927
      %3265 = vmatprep.subr.mxu0 %v2922
      %3266 = vmatpush1.msra.mxu0 %v2921
      %3267 = vmatprep.subr.mxu0 %v2916
      %3268 = vmatpush1.msra.mxu0 %v2915
      %3269 = vmatprep.subr.mxu0 %v2910
      %3270 = vmatpush1.msra.mxu0 %v2909
      %3271 = vmatprep.subr.mxu0 %v2904
      %3272 = vmatpush1.msra.mxu0 %v2903
      %3273 = vmatprep.subr.mxu0 %v2898
      %3274 = vmatpush1.msra.mxu0 %v2897
      %3275 = vmatprep.subr.mxu0 %v2892
      %3276 = vmatpush1.msra.mxu0 %v2891
      %3277 = vmatprep.subr.mxu0 %v2886
      %3278 = vmatpush1.msra.mxu0 %v2885
      %3279 = vmatprep.subr.mxu0 %v2880
      %3280 = vmatpush1.msra.mxu0 %v2879
      %3281 = vmatprep.subr.mxu0 %v2874
      %3282 = vmatpush1.msra.mxu0 %v2873
      %3283 = vmatprep.subr.mxu0 %v2868
      %3284 = vmatpush1.msra.mxu0 %v2867
      %3285 = vmatprep.subr.mxu0 %v2862
      %3286 = vmatpush1.msra.mxu0 %v2861
      %3287 = vmatprep.subr.mxu0 %v2856
      %3288 = vmatpush1.msra.mxu0 %v2855
      %3289 = vmatprep.subr.mxu0 0.0
      %3290 = vmatpush2.msra.mxu0 0.0
      %3291 = vmatprep.subr.mxu0 0.0
      %3292 = vmatpush2.msra.mxu0 0.0
      %3293 = vmatprep.subr.mxu0 0.0
      %3294 = vmatpush2.msra.mxu0 0.0
      %3295 = vmatprep.subr.mxu0 0.0
      %3296 = vmatpush2.msra.mxu0 0.0
      %3297 = vmatprep.subr.mxu0 0.0
      %3298 = vmatpush2.msra.mxu0 0.0
      %3299 = vmatprep.subr.mxu0 0.0
      %3300 = vmatpush2.msra.mxu0 0.0
      %3301 = vmatprep.subr.mxu0 0.0
      %3302 = vmatpush2.msra.mxu0 0.0
      %3303 = vmatprep.subr.mxu0 0.0
      %3304 = vmatpush2.msra.mxu0 0.0
      %3305 = vmatprep.subr.mxu0 0.0
      %3306 = vmatpush2.msra.mxu0 0.0
      %3307 = vmatprep.subr.mxu0 0.0
      %3308 = vmatpush2.msra.mxu0 0.0
      %3309 = vmatprep.subr.mxu0 0.0
      %3310 = vmatpush2.msra.mxu0 0.0
      %3311 = vmatprep.subr.mxu0 0.0
      %3312 = vmatpush2.msra.mxu0 0.0
      %3313 = vmatprep.subr.mxu0 %v2970
      %3314 = vmatpush2.msra.mxu0 %v2969
      %3315 = vmatprep.subr.mxu0 %v2964
      %3316 = vmatpush2.msra.mxu0 %v2963
      %3317 = vmatprep.subr.mxu0 %v2958
      %3318 = vmatpush2.msra.mxu0 %v2957
      %3319 = vmatprep.subr.mxu0 %v2952
      %3320 = vmatpush2.msra.mxu0 %v2951
      %3321 = vmatprep.mubr.f32.mxu0 %v2977
      %3322 = vmatmul.mubr.f32.gmra.mxu0 %v2252
      %v3323 = vpop.f32.mrf.mxu0
      %v3324 = vadd.f32 %v3115, %v3323
      %v3325 = vpop.f32.mrf.mxu0
      %v3326 = vadd.f32 %v3117, %v3325
      %3327 = vmatprep.mubr.f32.mxu0 %v2980
      %3328 = vmatmul.mubr.f32.gmra.mxu0 %v2256
      %v3329 = vpop.f32.mrf.mxu0
      %v3330 = vadd.f32 %v3121, %v3329
      %v3331 = vpop.f32.mrf.mxu0
      %v3332 = vadd.f32 %v3123, %v3331
      %3333 = vmatprep.mubr.f32.mxu0 %v2983
      %3334 = vmatmul.mubr.f32.gmra.mxu0 %v2260
      %v3335 = vpop.f32.mrf.mxu0
      %v3336 = vadd.f32 %v3127, %v3335
      %v3337 = vpop.f32.mrf.mxu0
      %v3338 = vadd.f32 %v3129, %v3337
      %3339 = vmatprep.mubr.f32.mxu0 %v2986
      %3340 = vmatmul.mubr.f32.gmra.mxu0 %v2264
      %v3341 = vpop.f32.mrf.mxu0
      %v3342 = vadd.f32 %v3133, %v3341
      %v3343 = vpop.f32.mrf.mxu0
      %v3344 = vadd.f32 %v3135, %v3343
      %3345 = vmatprep.mubr.f32.mxu0 %v2989
      %3346 = vmatmul.mubr.f32.gmra.mxu0 %v2268
      %v3347 = vpop.f32.mrf.mxu0
      %v3348 = vadd.f32 %v3139, %v3347
      %v3349 = vpop.f32.mrf.mxu0
      %v3350 = vadd.f32 %v3141, %v3349
      %3351 = vmatprep.mubr.f32.mxu0 %v2992
      %3352 = vmatmul.mubr.f32.gmra.mxu0 %v2272
      %v3353 = vpop.f32.mrf.mxu0
      %v3354 = vadd.f32 %v3145, %v3353
      %v3355 = vpop.f32.mrf.mxu0
      %v3356 = vadd.f32 %v3147, %v3355
      %3357 = vmatprep.mubr.f32.mxu0 %v2995
      %3358 = vmatmul.mubr.f32.gmra.mxu0 %v2276
      %v3359 = vpop.f32.mrf.mxu0
      %v3360 = vadd.f32 %v3151, %v3359
      %v3361 = vpop.f32.mrf.mxu0
      %v3362 = vadd.f32 %v3153, %v3361
      %3363 = vmatprep.mubr.f32.mxu0 %v2998
      %3364 = vmatmul.mubr.f32.gmra.mxu0 %v2280
      %v3365 = vpop.f32.mrf.mxu0
      %v3366 = vadd.f32 %v3157, %v3365
      %v3367 = vpop.f32.mrf.mxu0
      %v3368 = vadd.f32 %v3159, %v3367
      %3369 = vmatprep.mubr.f32.mxu0 %v3001
      %3370 = vmatmul.mubr.f32.gmra.mxu0 %v2284
      %v3371 = vpop.f32.mrf.mxu0
      %v3372 = vadd.f32 %v3163, %v3371
      %v3373 = vpop.f32.mrf.mxu0
      %v3374 = vadd.f32 %v3165, %v3373
      %3375 = vmatprep.mubr.f32.mxu0 %v3004
      %3376 = vmatmul.mubr.f32.gmra.mxu0 %v2288
      %v3377 = vpop.f32.mrf.mxu0
      %v3378 = vadd.f32 %v3169, %v3377
      %v3379 = vpop.f32.mrf.mxu0
      %v3380 = vadd.f32 %v3171, %v3379
      %3381 = vmatprep.mubr.f32.mxu0 %v3007
      %3382 = vmatmul.mubr.f32.gmra.mxu0 %v2292
      %v3383 = vpop.f32.mrf.mxu0
      %v3384 = vadd.f32 %v3175, %v3383
      %v3385 = vpop.f32.mrf.mxu0
      %v3386 = vadd.f32 %v3177, %v3385
      %3387 = vmatprep.mubr.f32.mxu0 %v3010
      %3388 = vmatmul.mubr.f32.gmra.mxu0 %v2296
      %v3389 = vpop.f32.mrf.mxu0
      %v3390 = vadd.f32 %v3181, %v3389
      %v3391 = vpop.f32.mrf.mxu0
      %v3392 = vadd.f32 %v3183, %v3391
      %3393 = vmatprep.mubr.f32.mxu0 %v3013
      %3394 = vmatmul.mubr.f32.gmra.mxu0 %v2300
      %v3395 = vpop.f32.mrf.mxu0
      %v3396 = vadd.f32 %v3187, %v3395
      %v3397 = vpop.f32.mrf.mxu0
      %v3398 = vadd.f32 %v3189, %v3397
      %3399 = vmatprep.mubr.f32.mxu0 %v3016
      %3400 = vmatmul.mubr.f32.gmra.mxu0 %v2304
      %v3401 = vpop.f32.mrf.mxu0
      %v3402 = vadd.f32 %v3193, %v3401
      %v3403 = vpop.f32.mrf.mxu0
      %v3404 = vadd.f32 %v3195, %v3403
      %3405 = vmatprep.mubr.f32.mxu0 %v3019
      %3406 = vmatmul.mubr.f32.gmra.mxu0 %v2308
      %v3407 = vpop.f32.mrf.mxu0
      %v3408 = vadd.f32 %v3199, %v3407
      %v3409 = vpop.f32.mrf.mxu0
      %v3410 = vadd.f32 %v3201, %v3409
      %3411 = vmatprep.mubr.f32.mxu0 %v3022
      %3412 = vmatmul.mubr.f32.gmra.mxu0 %v2312
      %v3413 = vpop.f32.mrf.mxu0
      %v3414 = vadd.f32 %v3205, %v3413
      %v3415 = vpop.f32.mrf.mxu0
      %v3416 = vadd.f32 %v3207, %v3415
      %3417 = vmatprep.mubr.f32.mxu0 %v3025
      %3418 = vmatmul.mubr.f32.gmra.mxu0 %v2316
      %v3419 = vpop.f32.mrf.mxu0
      %v3420 = vadd.f32 %v3211, %v3419
      %v3421 = vpop.f32.mrf.mxu0
      %v3422 = vadd.f32 %v3213, %v3421
      %3423 = vmatprep.mubr.f32.mxu0 %v3028
      %3424 = vmatmul.mubr.f32.gmra.mxu0 %v2320
      %v3425 = vpop.f32.mrf.mxu0
      %v3426 = vadd.f32 %v3217, %v3425
      %v3427 = vpop.f32.mrf.mxu0
      %v3428 = vadd.f32 %v3219, %v3427
      %3429 = vmatprep.mubr.f32.mxu0 %v3031
      %3430 = vmatmul.mubr.f32.gmra.mxu0 %v2324
      %v3431 = vpop.f32.mrf.mxu0
      %v3432 = vadd.f32 %v3223, %v3431
      %v3433 = vpop.f32.mrf.mxu0
      %v3434 = vadd.f32 %v3225, %v3433
      %3435 = vmatprep.mubr.f32.mxu0 %v3034
      %3436 = vmatmul.mubr.f32.gmra.mxu0 %v2328
      %v3437 = vpop.f32.mrf.mxu0
      %v3438 = vadd.f32 %v3229, %v3437
      %v3439 = vpop.f32.mrf.mxu0
      %v3440 = vadd.f32 %v3231, %v3439
      %3441 = vmatprep.mubr.f32.mxu0 %v3037
      %3442 = vmatmul.mubr.f32.gmra.mxu0 %v2332
      %v3443 = vpop.f32.mrf.mxu0
      %v3444 = vadd.f32 %v3235, %v3443
      %v3445 = vpop.f32.mrf.mxu0
      %v3446 = vadd.f32 %v3237, %v3445
      %3447 = vmatprep.mubr.f32.mxu0 %v3040
      %3448 = vmatmul.mubr.f32.gmra.mxu0 %v2336
      %v3449 = vpop.f32.mrf.mxu0
      %v3450 = vadd.f32 %v3241, %v3449
      %v3451 = vpop.f32.mrf.mxu0
      %v3452 = vadd.f32 %v3243, %v3451
      %3453 = vmatprep.mubr.f32.mxu0 %v3043
      %3454 = vmatmul.mubr.f32.gmra.mxu0 %v2340
      %v3455 = vpop.f32.mrf.mxu0
      %v3456 = vadd.f32 %v3247, %v3455
      %v3457 = vpop.f32.mrf.mxu0
      %v3458 = vadd.f32 %v3249, %v3457
      %3459 = vmatprep.mubr.f32.mxu0 %v3046
      %3460 = vmatmul.mubr.f32.gmra.mxu0 %v2344
      %v3461 = vpop.f32.mrf.mxu0
      %v3462 = vadd.f32 %v3253, %v3461
      %v3463 = vpop.f32.mrf.mxu0
      %v3464 = vadd.f32 %v3255, %v3463
      %3465 = vdwg.mxu0
      %3466 = vmatprep.subr.mxu0 %v2756
      %3467 = vmatpush1.msra.mxu0 %v2755
      %3468 = vmatprep.subr.mxu0 %v2750
      %3469 = vmatpush1.msra.mxu0 %v2749
      %3470 = vmatprep.subr.mxu0 %v2744
      %3471 = vmatpush1.msra.mxu0 %v2743
      %3472 = vmatprep.subr.mxu0 %v2738
      %3473 = vmatpush1.msra.mxu0 %v2737
      %3474 = vmatprep.subr.mxu0 %v2732
      %3475 = vmatpush1.msra.mxu0 %v2731
      %3476 = vmatprep.subr.mxu0 %v2726
      %3477 = vmatpush1.msra.mxu0 %v2725
      %3478 = vmatprep.subr.mxu0 %v2720
      %3479 = vmatpush1.msra.mxu0 %v2719
      %3480 = vmatprep.subr.mxu0 %v2714
      %3481 = vmatpush1.msra.mxu0 %v2713
      %3482 = vmatprep.subr.mxu0 %v2708
      %3483 = vmatpush1.msra.mxu0 %v2707
      %3484 = vmatprep.subr.mxu0 %v2702
      %3485 = vmatpush1.msra.mxu0 %v2701
      %3486 = vmatprep.subr.mxu0 %v2696
      %3487 = vmatpush1.msra.mxu0 %v2695
      %3488 = vmatprep.subr.mxu0 %v2690
      %3489 = vmatpush1.msra.mxu0 %v2689
      %3490 = vmatprep.subr.mxu0 %v2684
      %3491 = vmatpush1.msra.mxu0 %v2683
      %3492 = vmatprep.subr.mxu0 %v2678
      %3493 = vmatpush1.msra.mxu0 %v2677
      %3494 = vmatprep.subr.mxu0 %v2672
      %3495 = vmatpush1.msra.mxu0 %v2671
      %3496 = vmatprep.subr.mxu0 %v2666
      %3497 = vmatpush1.msra.mxu0 %v2665
      %3498 = vmatprep.subr.mxu0 %v2852
      %3499 = vmatpush2.msra.mxu0 %v2851
      %3500 = vmatprep.subr.mxu0 %v2846
      %3501 = vmatpush2.msra.mxu0 %v2845
      %3502 = vmatprep.subr.mxu0 %v2840
      %3503 = vmatpush2.msra.mxu0 %v2839
      %3504 = vmatprep.subr.mxu0 %v2834
      %3505 = vmatpush2.msra.mxu0 %v2833
      %3506 = vmatprep.subr.mxu0 %v2828
      %3507 = vmatpush2.msra.mxu0 %v2827
      %3508 = vmatprep.subr.mxu0 %v2822
      %3509 = vmatpush2.msra.mxu0 %v2821
      %3510 = vmatprep.subr.mxu0 %v2816
      %3511 = vmatpush2.msra.mxu0 %v2815
      %3512 = vmatprep.subr.mxu0 %v2810
      %3513 = vmatpush2.msra.mxu0 %v2809
      %3514 = vmatprep.subr.mxu0 %v2804
      %3515 = vmatpush2.msra.mxu0 %v2803
      %3516 = vmatprep.subr.mxu0 %v2798
      %3517 = vmatpush2.msra.mxu0 %v2797
      %3518 = vmatprep.subr.mxu0 %v2792
      %3519 = vmatpush2.msra.mxu0 %v2791
      %3520 = vmatprep.subr.mxu0 %v2786
      %3521 = vmatpush2.msra.mxu0 %v2785
      %3522 = vmatprep.subr.mxu0 %v2780
      %3523 = vmatpush2.msra.mxu0 %v2779
      %3524 = vmatprep.subr.mxu0 %v2774
      %3525 = vmatpush2.msra.mxu0 %v2773
      %3526 = vmatprep.subr.mxu0 %v2768
      %3527 = vmatpush2.msra.mxu0 %v2767
      %3528 = vmatprep.subr.mxu0 %v2762
      %3529 = vmatpush2.msra.mxu0 %v2761
      %3530 = vmatprep.mubr.f32.mxu0 %v2251
      %3531 = vmatmul.mubr.f32.gmra.mxu0 %v2250
      %v3532 = vpop.f32.mrf.mxu0
      %v3533 = vadd.f32 0.0, %v3532
      %v3534 = vpop.f32.mrf.mxu0
      %v3535 = vadd.f32 0.0, %v3534
      %3536 = vmatprep.mubr.f32.mxu0 %v2255
      %3537 = vmatmul.mubr.f32.gmra.mxu0 %v2254
      %v3538 = vpop.f32.mrf.mxu0
      %v3539 = vadd.f32 0.0, %v3538
      %v3540 = vpop.f32.mrf.mxu0
      %v3541 = vadd.f32 0.0, %v3540
      %3542 = vmatprep.mubr.f32.mxu0 %v2259
      %3543 = vmatmul.mubr.f32.gmra.mxu0 %v2258
      %v3544 = vpop.f32.mrf.mxu0
      %v3545 = vadd.f32 0.0, %v3544
      %v3546 = vpop.f32.mrf.mxu0
      %v3547 = vadd.f32 0.0, %v3546
      %3548 = vmatprep.mubr.f32.mxu0 %v2263
      %3549 = vmatmul.mubr.f32.gmra.mxu0 %v2262
      %v3550 = vpop.f32.mrf.mxu0
      %v3551 = vadd.f32 0.0, %v3550
      %v3552 = vpop.f32.mrf.mxu0
      %v3553 = vadd.f32 0.0, %v3552
      %3554 = vmatprep.mubr.f32.mxu0 %v2267
      %3555 = vmatmul.mubr.f32.gmra.mxu0 %v2266
      %v3556 = vpop.f32.mrf.mxu0
      %v3557 = vadd.f32 0.0, %v3556
      %v3558 = vpop.f32.mrf.mxu0
      %v3559 = vadd.f32 0.0, %v3558
      %3560 = vmatprep.mubr.f32.mxu0 %v2271
      %3561 = vmatmul.mubr.f32.gmra.mxu0 %v2270
      %v3562 = vpop.f32.mrf.mxu0
      %v3563 = vadd.f32 0.0, %v3562
      %v3564 = vpop.f32.mrf.mxu0
      %v3565 = vadd.f32 0.0, %v3564
      %3566 = vmatprep.mubr.f32.mxu0 %v2275
      %3567 = vmatmul.mubr.f32.gmra.mxu0 %v2274
      %v3568 = vpop.f32.mrf.mxu0
      %v3569 = vadd.f32 0.0, %v3568
      %v3570 = vpop.f32.mrf.mxu0
      %v3571 = vadd.f32 0.0, %v3570
      %3572 = vmatprep.mubr.f32.mxu0 %v2279
      %3573 = vmatmul.mubr.f32.gmra.mxu0 %v2278
      %v3574 = vpop.f32.mrf.mxu0
      %v3575 = vadd.f32 0.0, %v3574
      %v3576 = vpop.f32.mrf.mxu0
      %v3577 = vadd.f32 0.0, %v3576
      %3578 = vmatprep.mubr.f32.mxu0 %v2283
      %3579 = vmatmul.mubr.f32.gmra.mxu0 %v2282
      %v3580 = vpop.f32.mrf.mxu0
      %v3581 = vadd.f32 0.0, %v3580
      %v3582 = vpop.f32.mrf.mxu0
      %v3583 = vadd.f32 0.0, %v3582
      %3584 = vmatprep.mubr.f32.mxu0 %v2287
      %3585 = vmatmul.mubr.f32.gmra.mxu0 %v2286
      %v3586 = vpop.f32.mrf.mxu0
      %v3587 = vadd.f32 0.0, %v3586
      %v3588 = vpop.f32.mrf.mxu0
      %v3589 = vadd.f32 0.0, %v3588
      %3590 = vmatprep.mubr.f32.mxu0 %v2291
      %3591 = vmatmul.mubr.f32.gmra.mxu0 %v2290
      %v3592 = vpop.f32.mrf.mxu0
      %v3593 = vadd.f32 0.0, %v3592
      %v3594 = vpop.f32.mrf.mxu0
      %v3595 = vadd.f32 0.0, %v3594
      %3596 = vmatprep.mubr.f32.mxu0 %v2295
      %3597 = vmatmul.mubr.f32.gmra.mxu0 %v2294
      %v3598 = vpop.f32.mrf.mxu0
      %v3599 = vadd.f32 0.0, %v3598
      %v3600 = vpop.f32.mrf.mxu0
      %v3601 = vadd.f32 0.0, %v3600
      %3602 = vmatprep.mubr.f32.mxu0 %v2299
      %3603 = vmatmul.mubr.f32.gmra.mxu0 %v2298
      %v3604 = vpop.f32.mrf.mxu0
      %v3605 = vadd.f32 0.0, %v3604
      %v3606 = vpop.f32.mrf.mxu0
      %v3607 = vadd.f32 0.0, %v3606
      %3608 = vmatprep.mubr.f32.mxu0 %v2303
      %3609 = vmatmul.mubr.f32.gmra.mxu0 %v2302
      %v3610 = vpop.f32.mrf.mxu0
      %v3611 = vadd.f32 0.0, %v3610
      %v3612 = vpop.f32.mrf.mxu0
      %v3613 = vadd.f32 0.0, %v3612
      %3614 = vmatprep.mubr.f32.mxu0 %v2307
      %3615 = vmatmul.mubr.f32.gmra.mxu0 %v2306
      %v3616 = vpop.f32.mrf.mxu0
      %v3617 = vadd.f32 0.0, %v3616
      %v3618 = vpop.f32.mrf.mxu0
      %v3619 = vadd.f32 0.0, %v3618
      %3620 = vmatprep.mubr.f32.mxu0 %v2311
      %3621 = vmatmul.mubr.f32.gmra.mxu0 %v2310
      %v3622 = vpop.f32.mrf.mxu0
      %v3623 = vadd.f32 0.0, %v3622
      %v3624 = vpop.f32.mrf.mxu0
      %v3625 = vadd.f32 0.0, %v3624
      %3626 = vmatprep.mubr.f32.mxu0 %v2315
      %3627 = vmatmul.mubr.f32.gmra.mxu0 %v2314
      %v3628 = vpop.f32.mrf.mxu0
      %v3629 = vadd.f32 0.0, %v3628
      %v3630 = vpop.f32.mrf.mxu0
      %v3631 = vadd.f32 0.0, %v3630
      %3632 = vmatprep.mubr.f32.mxu0 %v2319
      %3633 = vmatmul.mubr.f32.gmra.mxu0 %v2318
      %v3634 = vpop.f32.mrf.mxu0
      %v3635 = vadd.f32 0.0, %v3634
      %v3636 = vpop.f32.mrf.mxu0
      %v3637 = vadd.f32 0.0, %v3636
      %3638 = vmatprep.mubr.f32.mxu0 %v2323
      %3639 = vmatmul.mubr.f32.gmra.mxu0 %v2322
      %v3640 = vpop.f32.mrf.mxu0
      %v3641 = vadd.f32 0.0, %v3640
      %v3642 = vpop.f32.mrf.mxu0
      %v3643 = vadd.f32 0.0, %v3642
      %3644 = vmatprep.mubr.f32.mxu0 %v2327
      %3645 = vmatmul.mubr.f32.gmra.mxu0 %v2326
      %v3646 = vpop.f32.mrf.mxu0
      %v3647 = vadd.f32 0.0, %v3646
      %v3648 = vpop.f32.mrf.mxu0
      %v3649 = vadd.f32 0.0, %v3648
      %3650 = vmatprep.mubr.f32.mxu0 %v2331
      %3651 = vmatmul.mubr.f32.gmra.mxu0 %v2330
      %v3652 = vpop.f32.mrf.mxu0
      %v3653 = vadd.f32 0.0, %v3652
      %v3654 = vpop.f32.mrf.mxu0
      %v3655 = vadd.f32 0.0, %v3654
      %3656 = vmatprep.mubr.f32.mxu0 %v2335
      %3657 = vmatmul.mubr.f32.gmra.mxu0 %v2334
      %v3658 = vpop.f32.mrf.mxu0
      %v3659 = vadd.f32 0.0, %v3658
      %v3660 = vpop.f32.mrf.mxu0
      %v3661 = vadd.f32 0.0, %v3660
      %3662 = vmatprep.mubr.f32.mxu0 %v2339
      %3663 = vmatmul.mubr.f32.gmra.mxu0 %v2338
      %v3664 = vpop.f32.mrf.mxu0
      %v3665 = vadd.f32 0.0, %v3664
      %v3666 = vpop.f32.mrf.mxu0
      %v3667 = vadd.f32 0.0, %v3666
      %3668 = vmatprep.mubr.f32.mxu0 %v2343
      %3669 = vmatmul.mubr.f32.gmra.mxu0 %v2342
      %v3670 = vpop.f32.mrf.mxu0
      %v3671 = vadd.f32 0.0, %v3670
      %v3672 = vpop.f32.mrf.mxu0
      %v3673 = vadd.f32 0.0, %v3672
      %3674 = vdwg.mxu0
      %3675 = vmatprep.subr.mxu0 %v2948
      %3676 = vmatpush1.msra.mxu0 %v2947
      %3677 = vmatprep.subr.mxu0 %v2942
      %3678 = vmatpush1.msra.mxu0 %v2941
      %3679 = vmatprep.subr.mxu0 %v2936
      %3680 = vmatpush1.msra.mxu0 %v2935
      %3681 = vmatprep.subr.mxu0 %v2930
      %3682 = vmatpush1.msra.mxu0 %v2929
      %3683 = vmatprep.subr.mxu0 %v2924
      %3684 = vmatpush1.msra.mxu0 %v2923
      %3685 = vmatprep.subr.mxu0 %v2918
      %3686 = vmatpush1.msra.mxu0 %v2917
      %3687 = vmatprep.subr.mxu0 %v2912
      %3688 = vmatpush1.msra.mxu0 %v2911
      %3689 = vmatprep.subr.mxu0 %v2906
      %3690 = vmatpush1.msra.mxu0 %v2905
      %3691 = vmatprep.subr.mxu0 %v2900
      %3692 = vmatpush1.msra.mxu0 %v2899
      %3693 = vmatprep.subr.mxu0 %v2894
      %3694 = vmatpush1.msra.mxu0 %v2893
      %3695 = vmatprep.subr.mxu0 %v2888
      %3696 = vmatpush1.msra.mxu0 %v2887
      %3697 = vmatprep.subr.mxu0 %v2882
      %3698 = vmatpush1.msra.mxu0 %v2881
      %3699 = vmatprep.subr.mxu0 %v2876
      %3700 = vmatpush1.msra.mxu0 %v2875
      %3701 = vmatprep.subr.mxu0 %v2870
      %3702 = vmatpush1.msra.mxu0 %v2869
      %3703 = vmatprep.subr.mxu0 %v2864
      %3704 = vmatpush1.msra.mxu0 %v2863
      %3705 = vmatprep.subr.mxu0 %v2858
      %3706 = vmatpush1.msra.mxu0 %v2857
      %3707 = vmatprep.subr.mxu0 0.0
      %3708 = vmatpush2.msra.mxu0 0.0
      %3709 = vmatprep.subr.mxu0 0.0
      %3710 = vmatpush2.msra.mxu0 0.0
      %3711 = vmatprep.subr.mxu0 0.0
      %3712 = vmatpush2.msra.mxu0 0.0
      %3713 = vmatprep.subr.mxu0 0.0
      %3714 = vmatpush2.msra.mxu0 0.0
      %3715 = vmatprep.subr.mxu0 0.0
      %3716 = vmatpush2.msra.mxu0 0.0
      %3717 = vmatprep.subr.mxu0 0.0
      %3718 = vmatpush2.msra.mxu0 0.0
      %3719 = vmatprep.subr.mxu0 0.0
      %3720 = vmatpush2.msra.mxu0 0.0
      %3721 = vmatprep.subr.mxu0 0.0
      %3722 = vmatpush2.msra.mxu0 0.0
      %3723 = vmatprep.subr.mxu0 0.0
      %3724 = vmatpush2.msra.mxu0 0.0
      %3725 = vmatprep.subr.mxu0 0.0
      %3726 = vmatpush2.msra.mxu0 0.0
      %3727 = vmatprep.subr.mxu0 0.0
      %3728 = vmatpush2.msra.mxu0 0.0
      %3729 = vmatprep.subr.mxu0 0.0
      %3730 = vmatpush2.msra.mxu0 0.0
      %3731 = vmatprep.subr.mxu0 %v2972
      %3732 = vmatpush2.msra.mxu0 %v2971
      %3733 = vmatprep.subr.mxu0 %v2966
      %3734 = vmatpush2.msra.mxu0 %v2965
      %3735 = vmatprep.subr.mxu0 %v2960
      %3736 = vmatpush2.msra.mxu0 %v2959
      %3737 = vmatprep.subr.mxu0 %v2954
      %3738 = vmatpush2.msra.mxu0 %v2953
      %3739 = vmatprep.mubr.f32.mxu0 %v2977
      %3740 = vmatmul.mubr.f32.gmra.mxu0 %v2252
      %v3741 = vpop.f32.mrf.mxu0
      %v3742 = vadd.f32 %v3533, %v3741
      %v3743 = vpop.f32.mrf.mxu0
      %v3744 = vadd.f32 %v3535, %v3743
      %3745 = vmatprep.mubr.f32.mxu0 %v2980
      %3746 = vmatmul.mubr.f32.gmra.mxu0 %v2256
      %v3747 = vpop.f32.mrf.mxu0
      %v3748 = vadd.f32 %v3539, %v3747
      %v3749 = vpop.f32.mrf.mxu0
      %v3750 = vadd.f32 %v3541, %v3749
      %3751 = vmatprep.mubr.f32.mxu0 %v2983
      %3752 = vmatmul.mubr.f32.gmra.mxu0 %v2260
      %v3753 = vpop.f32.mrf.mxu0
      %v3754 = vadd.f32 %v3545, %v3753
      %v3755 = vpop.f32.mrf.mxu0
      %v3756 = vadd.f32 %v3547, %v3755
      %3757 = vmatprep.mubr.f32.mxu0 %v2986
      %3758 = vmatmul.mubr.f32.gmra.mxu0 %v2264
      %v3759 = vpop.f32.mrf.mxu0
      %v3760 = vadd.f32 %v3551, %v3759
      %v3761 = vpop.f32.mrf.mxu0
      %v3762 = vadd.f32 %v3553, %v3761
      %3763 = vmatprep.mubr.f32.mxu0 %v2989
      %3764 = vmatmul.mubr.f32.gmra.mxu0 %v2268
      %v3765 = vpop.f32.mrf.mxu0
      %v3766 = vadd.f32 %v3557, %v3765
      %v3767 = vpop.f32.mrf.mxu0
      %v3768 = vadd.f32 %v3559, %v3767
      %3769 = vmatprep.mubr.f32.mxu0 %v2992
      %3770 = vmatmul.mubr.f32.gmra.mxu0 %v2272
      %v3771 = vpop.f32.mrf.mxu0
      %v3772 = vadd.f32 %v3563, %v3771
      %v3773 = vpop.f32.mrf.mxu0
      %v3774 = vadd.f32 %v3565, %v3773
      %3775 = vmatprep.mubr.f32.mxu0 %v2995
      %3776 = vmatmul.mubr.f32.gmra.mxu0 %v2276
      %v3777 = vpop.f32.mrf.mxu0
      %v3778 = vadd.f32 %v3569, %v3777
      %v3779 = vpop.f32.mrf.mxu0
      %v3780 = vadd.f32 %v3571, %v3779
      %3781 = vmatprep.mubr.f32.mxu0 %v2998
      %3782 = vmatmul.mubr.f32.gmra.mxu0 %v2280
      %v3783 = vpop.f32.mrf.mxu0
      %v3784 = vadd.f32 %v3575, %v3783
      %v3785 = vpop.f32.mrf.mxu0
      %v3786 = vadd.f32 %v3577, %v3785
      %3787 = vmatprep.mubr.f32.mxu0 %v3001
      %3788 = vmatmul.mubr.f32.gmra.mxu0 %v2284
      %v3789 = vpop.f32.mrf.mxu0
      %v3790 = vadd.f32 %v3581, %v3789
      %v3791 = vpop.f32.mrf.mxu0
      %v3792 = vadd.f32 %v3583, %v3791
      %3793 = vmatprep.mubr.f32.mxu0 %v3004
      %3794 = vmatmul.mubr.f32.gmra.mxu0 %v2288
      %v3795 = vpop.f32.mrf.mxu0
      %v3796 = vadd.f32 %v3587, %v3795
      %v3797 = vpop.f32.mrf.mxu0
      %v3798 = vadd.f32 %v3589, %v3797
      %3799 = vmatprep.mubr.f32.mxu0 %v3007
      %3800 = vmatmul.mubr.f32.gmra.mxu0 %v2292
      %v3801 = vpop.f32.mrf.mxu0
      %v3802 = vadd.f32 %v3593, %v3801
      %v3803 = vpop.f32.mrf.mxu0
      %v3804 = vadd.f32 %v3595, %v3803
      %3805 = vmatprep.mubr.f32.mxu0 %v3010
      %3806 = vmatmul.mubr.f32.gmra.mxu0 %v2296
      %v3807 = vpop.f32.mrf.mxu0
      %v3808 = vadd.f32 %v3599, %v3807
      %v3809 = vpop.f32.mrf.mxu0
      %v3810 = vadd.f32 %v3601, %v3809
      %3811 = vmatprep.mubr.f32.mxu0 %v3013
      %3812 = vmatmul.mubr.f32.gmra.mxu0 %v2300
      %v3813 = vpop.f32.mrf.mxu0
      %v3814 = vadd.f32 %v3605, %v3813
      %v3815 = vpop.f32.mrf.mxu0
      %v3816 = vadd.f32 %v3607, %v3815
      %3817 = vmatprep.mubr.f32.mxu0 %v3016
      %3818 = vmatmul.mubr.f32.gmra.mxu0 %v2304
      %v3819 = vpop.f32.mrf.mxu0
      %v3820 = vadd.f32 %v3611, %v3819
      %v3821 = vpop.f32.mrf.mxu0
      %v3822 = vadd.f32 %v3613, %v3821
      %3823 = vmatprep.mubr.f32.mxu0 %v3019
      %3824 = vmatmul.mubr.f32.gmra.mxu0 %v2308
      %v3825 = vpop.f32.mrf.mxu0
      %v3826 = vadd.f32 %v3617, %v3825
      %v3827 = vpop.f32.mrf.mxu0
      %v3828 = vadd.f32 %v3619, %v3827
      %3829 = vmatprep.mubr.f32.mxu0 %v3022
      %3830 = vmatmul.mubr.f32.gmra.mxu0 %v2312
      %v3831 = vpop.f32.mrf.mxu0
      %v3832 = vadd.f32 %v3623, %v3831
      %v3833 = vpop.f32.mrf.mxu0
      %v3834 = vadd.f32 %v3625, %v3833
      %3835 = vmatprep.mubr.f32.mxu0 %v3025
      %3836 = vmatmul.mubr.f32.gmra.mxu0 %v2316
      %v3837 = vpop.f32.mrf.mxu0
      %v3838 = vadd.f32 %v3629, %v3837
      %v3839 = vpop.f32.mrf.mxu0
      %v3840 = vadd.f32 %v3631, %v3839
      %3841 = vmatprep.mubr.f32.mxu0 %v3028
      %3842 = vmatmul.mubr.f32.gmra.mxu0 %v2320
      %v3843 = vpop.f32.mrf.mxu0
      %v3844 = vadd.f32 %v3635, %v3843
      %v3845 = vpop.f32.mrf.mxu0
      %v3846 = vadd.f32 %v3637, %v3845
      %3847 = vmatprep.mubr.f32.mxu0 %v3031
      %3848 = vmatmul.mubr.f32.gmra.mxu0 %v2324
      %v3849 = vpop.f32.mrf.mxu0
      %v3850 = vadd.f32 %v3641, %v3849
      %v3851 = vpop.f32.mrf.mxu0
      %v3852 = vadd.f32 %v3643, %v3851
      %3853 = vmatprep.mubr.f32.mxu0 %v3034
      %3854 = vmatmul.mubr.f32.gmra.mxu0 %v2328
      %v3855 = vpop.f32.mrf.mxu0
      %v3856 = vadd.f32 %v3647, %v3855
      %v3857 = vpop.f32.mrf.mxu0
      %v3858 = vadd.f32 %v3649, %v3857
      %3859 = vmatprep.mubr.f32.mxu0 %v3037
      %3860 = vmatmul.mubr.f32.gmra.mxu0 %v2332
      %v3861 = vpop.f32.mrf.mxu0
      %v3862 = vadd.f32 %v3653, %v3861
      %v3863 = vpop.f32.mrf.mxu0
      %v3864 = vadd.f32 %v3655, %v3863
      %3865 = vmatprep.mubr.f32.mxu0 %v3040
      %3866 = vmatmul.mubr.f32.gmra.mxu0 %v2336
      %v3867 = vpop.f32.mrf.mxu0
      %v3868 = vadd.f32 %v3659, %v3867
      %v3869 = vpop.f32.mrf.mxu0
      %v3870 = vadd.f32 %v3661, %v3869
      %3871 = vmatprep.mubr.f32.mxu0 %v3043
      %3872 = vmatmul.mubr.f32.gmra.mxu0 %v2340
      %v3873 = vpop.f32.mrf.mxu0
      %v3874 = vadd.f32 %v3665, %v3873
      %v3875 = vpop.f32.mrf.mxu0
      %v3876 = vadd.f32 %v3667, %v3875
      %3877 = vmatprep.mubr.f32.mxu0 %v3046
      %3878 = vmatmul.mubr.f32.gmra.mxu0 %v2344
      %v3879 = vpop.f32.mrf.mxu0
      %v3880 = vadd.f32 %v3671, %v3879
      %v3881 = vpop.f32.mrf.mxu0
      %v3882 = vadd.f32 %v3673, %v3881
      %3883 = vdwg.mxu0
      %3884 = vmatprep.subr.mxu0 %v2758
      %3885 = vmatpush1.msra.mxu0 %v2757
      %3886 = vmatprep.subr.mxu0 %v2752
      %3887 = vmatpush1.msra.mxu0 %v2751
      %3888 = vmatprep.subr.mxu0 %v2746
      %3889 = vmatpush1.msra.mxu0 %v2745
      %3890 = vmatprep.subr.mxu0 %v2740
      %3891 = vmatpush1.msra.mxu0 %v2739
      %3892 = vmatprep.subr.mxu0 %v2734
      %3893 = vmatpush1.msra.mxu0 %v2733
      %3894 = vmatprep.subr.mxu0 %v2728
      %3895 = vmatpush1.msra.mxu0 %v2727
      %3896 = vmatprep.subr.mxu0 %v2722
      %3897 = vmatpush1.msra.mxu0 %v2721
      %3898 = vmatprep.subr.mxu0 %v2716
      %3899 = vmatpush1.msra.mxu0 %v2715
      %3900 = vmatprep.subr.mxu0 %v2710
      %3901 = vmatpush1.msra.mxu0 %v2709
      %3902 = vmatprep.subr.mxu0 %v2704
      %3903 = vmatpush1.msra.mxu0 %v2703
      %3904 = vmatprep.subr.mxu0 %v2698
      %3905 = vmatpush1.msra.mxu0 %v2697
      %3906 = vmatprep.subr.mxu0 %v2692
      %3907 = vmatpush1.msra.mxu0 %v2691
      %3908 = vmatprep.subr.mxu0 %v2686
      %3909 = vmatpush1.msra.mxu0 %v2685
      %3910 = vmatprep.subr.mxu0 %v2680
      %3911 = vmatpush1.msra.mxu0 %v2679
      %3912 = vmatprep.subr.mxu0 %v2674
      %3913 = vmatpush1.msra.mxu0 %v2673
      %3914 = vmatprep.subr.mxu0 %v2668
      %3915 = vmatpush1.msra.mxu0 %v2667
      %3916 = vmatprep.subr.mxu0 %v2854
      %3917 = vmatpush2.msra.mxu0 %v2853
      %3918 = vmatprep.subr.mxu0 %v2848
      %3919 = vmatpush2.msra.mxu0 %v2847
      %3920 = vmatprep.subr.mxu0 %v2842
      %3921 = vmatpush2.msra.mxu0 %v2841
      %3922 = vmatprep.subr.mxu0 %v2836
      %3923 = vmatpush2.msra.mxu0 %v2835
      %3924 = vmatprep.subr.mxu0 %v2830
      %3925 = vmatpush2.msra.mxu0 %v2829
      %3926 = vmatprep.subr.mxu0 %v2824
      %3927 = vmatpush2.msra.mxu0 %v2823
      %3928 = vmatprep.subr.mxu0 %v2818
      %3929 = vmatpush2.msra.mxu0 %v2817
      %3930 = vmatprep.subr.mxu0 %v2812
      %3931 = vmatpush2.msra.mxu0 %v2811
      %3932 = vmatprep.subr.mxu0 %v2806
      %3933 = vmatpush2.msra.mxu0 %v2805
      %3934 = vmatprep.subr.mxu0 %v2800
      %3935 = vmatpush2.msra.mxu0 %v2799
      %3936 = vmatprep.subr.mxu0 %v2794
      %3937 = vmatpush2.msra.mxu0 %v2793
      %3938 = vmatprep.subr.mxu0 %v2788
      %3939 = vmatpush2.msra.mxu0 %v2787
      %3940 = vmatprep.subr.mxu0 %v2782
      %3941 = vmatpush2.msra.mxu0 %v2781
      %3942 = vmatprep.subr.mxu0 %v2776
      %3943 = vmatpush2.msra.mxu0 %v2775
      %3944 = vmatprep.subr.mxu0 %v2770
      %3945 = vmatpush2.msra.mxu0 %v2769
      %3946 = vmatprep.subr.mxu0 %v2764
      %3947 = vmatpush2.msra.mxu0 %v2763
      %3948 = vmatprep.mubr.f32.mxu0 %v2251
      %3949 = vmatmul.mubr.f32.gmra.mxu0 %v2250
      %v3950 = vpop.f32.mrf.mxu0
      %v3951 = vadd.f32 0.0, %v3950
      %v3952 = vpop.f32.mrf.mxu0
      %v3953 = vadd.f32 0.0, %v3952
      %3954 = vmatprep.mubr.f32.mxu0 %v2255
      %3955 = vmatmul.mubr.f32.gmra.mxu0 %v2254
      %v3956 = vpop.f32.mrf.mxu0
      %v3957 = vadd.f32 0.0, %v3956
      %v3958 = vpop.f32.mrf.mxu0
      %v3959 = vadd.f32 0.0, %v3958
      %3960 = vmatprep.mubr.f32.mxu0 %v2259
      %3961 = vmatmul.mubr.f32.gmra.mxu0 %v2258
      %v3962 = vpop.f32.mrf.mxu0
      %v3963 = vadd.f32 0.0, %v3962
      %v3964 = vpop.f32.mrf.mxu0
      %v3965 = vadd.f32 0.0, %v3964
      %3966 = vmatprep.mubr.f32.mxu0 %v2263
      %3967 = vmatmul.mubr.f32.gmra.mxu0 %v2262
      %v3968 = vpop.f32.mrf.mxu0
      %v3969 = vadd.f32 0.0, %v3968
      %v3970 = vpop.f32.mrf.mxu0
      %v3971 = vadd.f32 0.0, %v3970
      %3972 = vmatprep.mubr.f32.mxu0 %v2267
      %3973 = vmatmul.mubr.f32.gmra.mxu0 %v2266
      %v3974 = vpop.f32.mrf.mxu0
      %v3975 = vadd.f32 0.0, %v3974
      %v3976 = vpop.f32.mrf.mxu0
      %v3977 = vadd.f32 0.0, %v3976
      %3978 = vmatprep.mubr.f32.mxu0 %v2271
      %3979 = vmatmul.mubr.f32.gmra.mxu0 %v2270
      %v3980 = vpop.f32.mrf.mxu0
      %v3981 = vadd.f32 0.0, %v3980
      %v3982 = vpop.f32.mrf.mxu0
      %v3983 = vadd.f32 0.0, %v3982
      %3984 = vmatprep.mubr.f32.mxu0 %v2275
      %3985 = vmatmul.mubr.f32.gmra.mxu0 %v2274
      %v3986 = vpop.f32.mrf.mxu0
      %v3987 = vadd.f32 0.0, %v3986
      %v3988 = vpop.f32.mrf.mxu0
      %v3989 = vadd.f32 0.0, %v3988
      %3990 = vmatprep.mubr.f32.mxu0 %v2279
      %3991 = vmatmul.mubr.f32.gmra.mxu0 %v2278
      %v3992 = vpop.f32.mrf.mxu0
      %v3993 = vadd.f32 0.0, %v3992
      %v3994 = vpop.f32.mrf.mxu0
      %v3995 = vadd.f32 0.0, %v3994
      %3996 = vmatprep.mubr.f32.mxu0 %v2283
      %3997 = vmatmul.mubr.f32.gmra.mxu0 %v2282
      %v3998 = vpop.f32.mrf.mxu0
      %v3999 = vadd.f32 0.0, %v3998
      %v4000 = vpop.f32.mrf.mxu0
      %v4001 = vadd.f32 0.0, %v4000
      %4002 = vmatprep.mubr.f32.mxu0 %v2287
      %4003 = vmatmul.mubr.f32.gmra.mxu0 %v2286
      %v4004 = vpop.f32.mrf.mxu0
      %v4005 = vadd.f32 0.0, %v4004
      %v4006 = vpop.f32.mrf.mxu0
      %v4007 = vadd.f32 0.0, %v4006
      %4008 = vmatprep.mubr.f32.mxu0 %v2291
      %4009 = vmatmul.mubr.f32.gmra.mxu0 %v2290
      %v4010 = vpop.f32.mrf.mxu0
      %v4011 = vadd.f32 0.0, %v4010
      %v4012 = vpop.f32.mrf.mxu0
      %v4013 = vadd.f32 0.0, %v4012
      %4014 = vmatprep.mubr.f32.mxu0 %v2295
      %4015 = vmatmul.mubr.f32.gmra.mxu0 %v2294
      %v4016 = vpop.f32.mrf.mxu0
      %v4017 = vadd.f32 0.0, %v4016
      %v4018 = vpop.f32.mrf.mxu0
      %v4019 = vadd.f32 0.0, %v4018
      %4020 = vmatprep.mubr.f32.mxu0 %v2299
      %4021 = vmatmul.mubr.f32.gmra.mxu0 %v2298
      %v4022 = vpop.f32.mrf.mxu0
      %v4023 = vadd.f32 0.0, %v4022
      %v4024 = vpop.f32.mrf.mxu0
      %v4025 = vadd.f32 0.0, %v4024
      %4026 = vmatprep.mubr.f32.mxu0 %v2303
      %4027 = vmatmul.mubr.f32.gmra.mxu0 %v2302
      %v4028 = vpop.f32.mrf.mxu0
      %v4029 = vadd.f32 0.0, %v4028
      %v4030 = vpop.f32.mrf.mxu0
      %v4031 = vadd.f32 0.0, %v4030
      %4032 = vmatprep.mubr.f32.mxu0 %v2307
      %4033 = vmatmul.mubr.f32.gmra.mxu0 %v2306
      %v4034 = vpop.f32.mrf.mxu0
      %v4035 = vadd.f32 0.0, %v4034
      %v4036 = vpop.f32.mrf.mxu0
      %v4037 = vadd.f32 0.0, %v4036
      %4038 = vmatprep.mubr.f32.mxu0 %v2311
      %4039 = vmatmul.mubr.f32.gmra.mxu0 %v2310
      %v4040 = vpop.f32.mrf.mxu0
      %v4041 = vadd.f32 0.0, %v4040
      %v4042 = vpop.f32.mrf.mxu0
      %v4043 = vadd.f32 0.0, %v4042
      %4044 = vmatprep.mubr.f32.mxu0 %v2315
      %4045 = vmatmul.mubr.f32.gmra.mxu0 %v2314
      %v4046 = vpop.f32.mrf.mxu0
      %v4047 = vadd.f32 0.0, %v4046
      %v4048 = vpop.f32.mrf.mxu0
      %v4049 = vadd.f32 0.0, %v4048
      %4050 = vmatprep.mubr.f32.mxu0 %v2319
      %4051 = vmatmul.mubr.f32.gmra.mxu0 %v2318
      %v4052 = vpop.f32.mrf.mxu0
      %v4053 = vadd.f32 0.0, %v4052
      %v4054 = vpop.f32.mrf.mxu0
      %v4055 = vadd.f32 0.0, %v4054
      %4056 = vmatprep.mubr.f32.mxu0 %v2323
      %4057 = vmatmul.mubr.f32.gmra.mxu0 %v2322
      %v4058 = vpop.f32.mrf.mxu0
      %v4059 = vadd.f32 0.0, %v4058
      %v4060 = vpop.f32.mrf.mxu0
      %v4061 = vadd.f32 0.0, %v4060
      %4062 = vmatprep.mubr.f32.mxu0 %v2327
      %4063 = vmatmul.mubr.f32.gmra.mxu0 %v2326
      %v4064 = vpop.f32.mrf.mxu0
      %v4065 = vadd.f32 0.0, %v4064
      %v4066 = vpop.f32.mrf.mxu0
      %v4067 = vadd.f32 0.0, %v4066
      %4068 = vmatprep.mubr.f32.mxu0 %v2331
      %4069 = vmatmul.mubr.f32.gmra.mxu0 %v2330
      %v4070 = vpop.f32.mrf.mxu0
      %v4071 = vadd.f32 0.0, %v4070
      %v4072 = vpop.f32.mrf.mxu0
      %v4073 = vadd.f32 0.0, %v4072
      %4074 = vmatprep.mubr.f32.mxu0 %v2335
      %4075 = vmatmul.mubr.f32.gmra.mxu0 %v2334
      %v4076 = vpop.f32.mrf.mxu0
      %v4077 = vadd.f32 0.0, %v4076
      %v4078 = vpop.f32.mrf.mxu0
      %v4079 = vadd.f32 0.0, %v4078
      %4080 = vmatprep.mubr.f32.mxu0 %v2339
      %4081 = vmatmul.mubr.f32.gmra.mxu0 %v2338
      %v4082 = vpop.f32.mrf.mxu0
      %v4083 = vadd.f32 0.0, %v4082
      %v4084 = vpop.f32.mrf.mxu0
      %v4085 = vadd.f32 0.0, %v4084
      %4086 = vmatprep.mubr.f32.mxu0 %v2343
      %4087 = vmatmul.mubr.f32.gmra.mxu0 %v2342
      %v4088 = vpop.f32.mrf.mxu0
      %v4089 = vadd.f32 0.0, %v4088
      %v4090 = vpop.f32.mrf.mxu0
      %v4091 = vadd.f32 0.0, %v4090
      %4092 = vdwg.mxu0
      %4093 = vmatprep.subr.mxu0 %v2950
      %4094 = vmatpush1.msra.mxu0 %v2949
      %4095 = vmatprep.subr.mxu0 %v2944
      %4096 = vmatpush1.msra.mxu0 %v2943
      %4097 = vmatprep.subr.mxu0 %v2938
      %4098 = vmatpush1.msra.mxu0 %v2937
      %4099 = vmatprep.subr.mxu0 %v2932
      %4100 = vmatpush1.msra.mxu0 %v2931
      %4101 = vmatprep.subr.mxu0 %v2926
      %4102 = vmatpush1.msra.mxu0 %v2925
      %4103 = vmatprep.subr.mxu0 %v2920
      %4104 = vmatpush1.msra.mxu0 %v2919
      %4105 = vmatprep.subr.mxu0 %v2914
      %4106 = vmatpush1.msra.mxu0 %v2913
      %4107 = vmatprep.subr.mxu0 %v2908
      %4108 = vmatpush1.msra.mxu0 %v2907
      %4109 = vmatprep.subr.mxu0 %v2902
      %4110 = vmatpush1.msra.mxu0 %v2901
      %4111 = vmatprep.subr.mxu0 %v2896
      %4112 = vmatpush1.msra.mxu0 %v2895
      %4113 = vmatprep.subr.mxu0 %v2890
      %4114 = vmatpush1.msra.mxu0 %v2889
      %4115 = vmatprep.subr.mxu0 %v2884
      %4116 = vmatpush1.msra.mxu0 %v2883
      %4117 = vmatprep.subr.mxu0 %v2878
      %4118 = vmatpush1.msra.mxu0 %v2877
      %4119 = vmatprep.subr.mxu0 %v2872
      %4120 = vmatpush1.msra.mxu0 %v2871
      %4121 = vmatprep.subr.mxu0 %v2866
      %4122 = vmatpush1.msra.mxu0 %v2865
      %4123 = vmatprep.subr.mxu0 %v2860
      %4124 = vmatpush1.msra.mxu0 %v2859
      %4125 = vmatprep.subr.mxu0 0.0
      %4126 = vmatpush2.msra.mxu0 0.0
      %4127 = vmatprep.subr.mxu0 0.0
      %4128 = vmatpush2.msra.mxu0 0.0
      %4129 = vmatprep.subr.mxu0 0.0
      %4130 = vmatpush2.msra.mxu0 0.0
      %4131 = vmatprep.subr.mxu0 0.0
      %4132 = vmatpush2.msra.mxu0 0.0
      %4133 = vmatprep.subr.mxu0 0.0
      %4134 = vmatpush2.msra.mxu0 0.0
      %4135 = vmatprep.subr.mxu0 0.0
      %4136 = vmatpush2.msra.mxu0 0.0
      %4137 = vmatprep.subr.mxu0 0.0
      %4138 = vmatpush2.msra.mxu0 0.0
      %4139 = vmatprep.subr.mxu0 0.0
      %4140 = vmatpush2.msra.mxu0 0.0
      %4141 = vmatprep.subr.mxu0 0.0
      %4142 = vmatpush2.msra.mxu0 0.0
      %4143 = vmatprep.subr.mxu0 0.0
      %4144 = vmatpush2.msra.mxu0 0.0
      %4145 = vmatprep.subr.mxu0 0.0
      %4146 = vmatpush2.msra.mxu0 0.0
      %4147 = vmatprep.subr.mxu0 0.0
      %4148 = vmatpush2.msra.mxu0 0.0
      %4149 = vmatprep.subr.mxu0 %v2974
      %4150 = vmatpush2.msra.mxu0 %v2973
      %4151 = vmatprep.subr.mxu0 %v2968
      %4152 = vmatpush2.msra.mxu0 %v2967
      %4153 = vmatprep.subr.mxu0 %v2962
      %4154 = vmatpush2.msra.mxu0 %v2961
      %4155 = vmatprep.subr.mxu0 %v2956
      %4156 = vmatpush2.msra.mxu0 %v2955
      %4157 = vmatprep.mubr.f32.mxu0 %v2977
      %4158 = vmatmul.mubr.f32.gmra.mxu0 %v2252
      %v4159 = vpop.f32.mrf.mxu0
      %v4160 = vadd.f32 %v3951, %v4159
      %v4161 = vpop.f32.mrf.mxu0
      %v4162 = vadd.f32 %v3953, %v4161
      %4163 = vmatprep.mubr.f32.mxu0 %v2980
      %4164 = vmatmul.mubr.f32.gmra.mxu0 %v2256
      %v4165 = vpop.f32.mrf.mxu0
      %v4166 = vadd.f32 %v3957, %v4165
      %v4167 = vpop.f32.mrf.mxu0
      %v4168 = vadd.f32 %v3959, %v4167
      %4169 = vmatprep.mubr.f32.mxu0 %v2983
      %4170 = vmatmul.mubr.f32.gmra.mxu0 %v2260
      %v4171 = vpop.f32.mrf.mxu0
      %v4172 = vadd.f32 %v3963, %v4171
      %v4173 = vpop.f32.mrf.mxu0
      %v4174 = vadd.f32 %v3965, %v4173
      %4175 = vmatprep.mubr.f32.mxu0 %v2986
      %4176 = vmatmul.mubr.f32.gmra.mxu0 %v2264
      %v4177 = vpop.f32.mrf.mxu0
      %v4178 = vadd.f32 %v3969, %v4177
      %v4179 = vpop.f32.mrf.mxu0
      %v4180 = vadd.f32 %v3971, %v4179
      %4181 = vmatprep.mubr.f32.mxu0 %v2989
      %4182 = vmatmul.mubr.f32.gmra.mxu0 %v2268
      %v4183 = vpop.f32.mrf.mxu0
      %v4184 = vadd.f32 %v3975, %v4183
      %v4185 = vpop.f32.mrf.mxu0
      %v4186 = vadd.f32 %v3977, %v4185
      %4187 = vmatprep.mubr.f32.mxu0 %v2992
      %4188 = vmatmul.mubr.f32.gmra.mxu0 %v2272
      %v4189 = vpop.f32.mrf.mxu0
      %v4190 = vadd.f32 %v3981, %v4189
      %v4191 = vpop.f32.mrf.mxu0
      %v4192 = vadd.f32 %v3983, %v4191
      %4193 = vmatprep.mubr.f32.mxu0 %v2995
      %4194 = vmatmul.mubr.f32.gmra.mxu0 %v2276
      %v4195 = vpop.f32.mrf.mxu0
      %v4196 = vadd.f32 %v3987, %v4195
      %v4197 = vpop.f32.mrf.mxu0
      %v4198 = vadd.f32 %v3989, %v4197
      %4199 = vmatprep.mubr.f32.mxu0 %v2998
      %4200 = vmatmul.mubr.f32.gmra.mxu0 %v2280
      %v4201 = vpop.f32.mrf.mxu0
      %v4202 = vadd.f32 %v3993, %v4201
      %v4203 = vpop.f32.mrf.mxu0
      %v4204 = vadd.f32 %v3995, %v4203
      %4205 = vmatprep.mubr.f32.mxu0 %v3001
      %4206 = vmatmul.mubr.f32.gmra.mxu0 %v2284
      %v4207 = vpop.f32.mrf.mxu0
      %v4208 = vadd.f32 %v3999, %v4207
      %v4209 = vpop.f32.mrf.mxu0
      %v4210 = vadd.f32 %v4001, %v4209
      %4211 = vmatprep.mubr.f32.mxu0 %v3004
      %4212 = vmatmul.mubr.f32.gmra.mxu0 %v2288
      %v4213 = vpop.f32.mrf.mxu0
      %v4214 = vadd.f32 %v4005, %v4213
      %v4215 = vpop.f32.mrf.mxu0
      %v4216 = vadd.f32 %v4007, %v4215
      %4217 = vmatprep.mubr.f32.mxu0 %v3007
      %4218 = vmatmul.mubr.f32.gmra.mxu0 %v2292
      %v4219 = vpop.f32.mrf.mxu0
      %v4220 = vadd.f32 %v4011, %v4219
      %v4221 = vpop.f32.mrf.mxu0
      %v4222 = vadd.f32 %v4013, %v4221
      %4223 = vmatprep.mubr.f32.mxu0 %v3010
      %4224 = vmatmul.mubr.f32.gmra.mxu0 %v2296
      %v4225 = vpop.f32.mrf.mxu0
      %v4226 = vadd.f32 %v4017, %v4225
      %v4227 = vpop.f32.mrf.mxu0
      %v4228 = vadd.f32 %v4019, %v4227
      %4229 = vmatprep.mubr.f32.mxu0 %v3013
      %4230 = vmatmul.mubr.f32.gmra.mxu0 %v2300
      %v4231 = vpop.f32.mrf.mxu0
      %v4232 = vadd.f32 %v4023, %v4231
      %v4233 = vpop.f32.mrf.mxu0
      %v4234 = vadd.f32 %v4025, %v4233
      %4235 = vmatprep.mubr.f32.mxu0 %v3016
      %4236 = vmatmul.mubr.f32.gmra.mxu0 %v2304
      %v4237 = vpop.f32.mrf.mxu0
      %v4238 = vadd.f32 %v4029, %v4237
      %v4239 = vpop.f32.mrf.mxu0
      %v4240 = vadd.f32 %v4031, %v4239
      %4241 = vmatprep.mubr.f32.mxu0 %v3019
      %4242 = vmatmul.mubr.f32.gmra.mxu0 %v2308
      %v4243 = vpop.f32.mrf.mxu0
      %v4244 = vadd.f32 %v4035, %v4243
      %v4245 = vpop.f32.mrf.mxu0
      %v4246 = vadd.f32 %v4037, %v4245
      %4247 = vmatprep.mubr.f32.mxu0 %v3022
      %4248 = vmatmul.mubr.f32.gmra.mxu0 %v2312
      %v4249 = vpop.f32.mrf.mxu0
      %v4250 = vadd.f32 %v4041, %v4249
      %v4251 = vpop.f32.mrf.mxu0
      %v4252 = vadd.f32 %v4043, %v4251
      %4253 = vmatprep.mubr.f32.mxu0 %v3025
      %4254 = vmatmul.mubr.f32.gmra.mxu0 %v2316
      %v4255 = vpop.f32.mrf.mxu0
      %v4256 = vadd.f32 %v4047, %v4255
      %v4257 = vpop.f32.mrf.mxu0
      %v4258 = vadd.f32 %v4049, %v4257
      %4259 = vmatprep.mubr.f32.mxu0 %v3028
      %4260 = vmatmul.mubr.f32.gmra.mxu0 %v2320
      %v4261 = vpop.f32.mrf.mxu0
      %v4262 = vadd.f32 %v4053, %v4261
      %v4263 = vpop.f32.mrf.mxu0
      %v4264 = vadd.f32 %v4055, %v4263
      %4265 = vmatprep.mubr.f32.mxu0 %v3031
      %4266 = vmatmul.mubr.f32.gmra.mxu0 %v2324
      %v4267 = vpop.f32.mrf.mxu0
      %v4268 = vadd.f32 %v4059, %v4267
      %v4269 = vpop.f32.mrf.mxu0
      %v4270 = vadd.f32 %v4061, %v4269
      %4271 = vmatprep.mubr.f32.mxu0 %v3034
      %4272 = vmatmul.mubr.f32.gmra.mxu0 %v2328
      %v4273 = vpop.f32.mrf.mxu0
      %v4274 = vadd.f32 %v4065, %v4273
      %v4275 = vpop.f32.mrf.mxu0
      %v4276 = vadd.f32 %v4067, %v4275
      %4277 = vmatprep.mubr.f32.mxu0 %v3037
      %4278 = vmatmul.mubr.f32.gmra.mxu0 %v2332
      %v4279 = vpop.f32.mrf.mxu0
      %v4280 = vadd.f32 %v4071, %v4279
      %v4281 = vpop.f32.mrf.mxu0
      %v4282 = vadd.f32 %v4073, %v4281
      %4283 = vmatprep.mubr.f32.mxu0 %v3040
      %4284 = vmatmul.mubr.f32.gmra.mxu0 %v2336
      %v4285 = vpop.f32.mrf.mxu0
      %v4286 = vadd.f32 %v4077, %v4285
      %v4287 = vpop.f32.mrf.mxu0
      %v4288 = vadd.f32 %v4079, %v4287
      %4289 = vmatprep.mubr.f32.mxu0 %v3043
      %4290 = vmatmul.mubr.f32.gmra.mxu0 %v2340
      %v4291 = vpop.f32.mrf.mxu0
      %v4292 = vadd.f32 %v4083, %v4291
      %v4293 = vpop.f32.mrf.mxu0
      %v4294 = vadd.f32 %v4085, %v4293
      %4295 = vmatprep.mubr.f32.mxu0 %v3046
      %4296 = vmatmul.mubr.f32.gmra.mxu0 %v2344
      %v4297 = vpop.f32.mrf.mxu0
      %v4298 = vadd.f32 %v4089, %v4297
      %v4299 = vpop.f32.mrf.mxu0
      %v4300 = vadd.f32 %v4091, %v4299
      %4301 = vdwg.mxu0
      %v4303 = vsel %vm2975, %v2249, 0
      %4305 = vmatprep.subr.mxu0 %v2441
      %4306 = vmatpush1.msra.mxu0 %v2440
      %4307 = vmatprep.subr.mxu0 %v2435
      %4308 = vmatpush1.msra.mxu0 %v2434
      %4309 = vmatprep.subr.mxu0 %v2429
      %4310 = vmatpush1.msra.mxu0 %v2428
      %4311 = vmatprep.subr.mxu0 %v2423
      %4312 = vmatpush1.msra.mxu0 %v2422
      %4313 = vmatprep.subr.mxu0 %v2417
      %4314 = vmatpush1.msra.mxu0 %v2416
      %4315 = vmatprep.subr.mxu0 %v2411
      %4316 = vmatpush1.msra.mxu0 %v2410
      %4317 = vmatprep.subr.mxu0 %v2405
      %4318 = vmatpush1.msra.mxu0 %v2404
      %4319 = vmatprep.subr.mxu0 %v2399
      %4320 = vmatpush1.msra.mxu0 %v2398
      %4321 = vmatprep.subr.mxu0 %v2393
      %4322 = vmatpush1.msra.mxu0 %v2392
      %4323 = vmatprep.subr.mxu0 %v2387
      %4324 = vmatpush1.msra.mxu0 %v2386
      %4325 = vmatprep.subr.mxu0 %v2381
      %4326 = vmatpush1.msra.mxu0 %v2380
      %4327 = vmatprep.subr.mxu0 %v2375
      %4328 = vmatpush1.msra.mxu0 %v2374
      %4329 = vmatprep.subr.mxu0 %v2369
      %4330 = vmatpush1.msra.mxu0 %v2368
      %4331 = vmatprep.subr.mxu0 %v2363
      %4332 = vmatpush1.msra.mxu0 %v2362
      %4333 = vmatprep.subr.mxu0 %v2357
      %4334 = vmatpush1.msra.mxu0 %v2356
      %4335 = vmatprep.subr.mxu0 %v2351
      %4336 = vmatpush1.msra.mxu0 %v2350
      %4337 = vmatprep.subr.mxu0 %v2537
      %4338 = vmatpush2.msra.mxu0 %v2536
      %4339 = vmatprep.subr.mxu0 %v2531
      %4340 = vmatpush2.msra.mxu0 %v2530
      %4341 = vmatprep.subr.mxu0 %v2525
      %4342 = vmatpush2.msra.mxu0 %v2524
      %4343 = vmatprep.subr.mxu0 %v2519
      %4344 = vmatpush2.msra.mxu0 %v2518
      %4345 = vmatprep.subr.mxu0 %v2513
      %4346 = vmatpush2.msra.mxu0 %v2512
      %4347 = vmatprep.subr.mxu0 %v2507
      %4348 = vmatpush2.msra.mxu0 %v2506
      %4349 = vmatprep.subr.mxu0 %v2501
      %4350 = vmatpush2.msra.mxu0 %v2500
      %4351 = vmatprep.subr.mxu0 %v2495
      %4352 = vmatpush2.msra.mxu0 %v2494
      %4353 = vmatprep.subr.mxu0 %v2489
      %4354 = vmatpush2.msra.mxu0 %v2488
      %4355 = vmatprep.subr.mxu0 %v2483
      %4356 = vmatpush2.msra.mxu0 %v2482
      %4357 = vmatprep.subr.mxu0 %v2477
      %4358 = vmatpush2.msra.mxu0 %v2476
      %4359 = vmatprep.subr.mxu0 %v2471
      %4360 = vmatpush2.msra.mxu0 %v2470
      %4361 = vmatprep.subr.mxu0 %v2465
      %4362 = vmatpush2.msra.mxu0 %v2464
      %4363 = vmatprep.subr.mxu0 %v2459
      %4364 = vmatpush2.msra.mxu0 %v2458
      %4365 = vmatprep.subr.mxu0 %v2453
      %4366 = vmatpush2.msra.mxu0 %v2452
      %4367 = vmatprep.subr.mxu0 %v2447
      %4368 = vmatpush2.msra.mxu0 %v2446
      %4369 = vmatprep.mubr.f32.mxu0 %v2247
      %4370 = vmatmul.mubr.f32.gmra.mxu0 %v2246
      %v4371 = vpop.f32.mrf.mxu0
      %v4372 = vadd.f32 %v3324, %v4371
      %v4373 = vpop.f32.mrf.mxu0
      %v4374 = vadd.f32 %v3326, %v4373
      %4375 = vmatprep.mubr.f32.mxu0 %v2251
      %4376 = vmatmul.mubr.f32.gmra.mxu0 %v2250
      %v4377 = vpop.f32.mrf.mxu0
      %v4378 = vadd.f32 %v3330, %v4377
      %v4379 = vpop.f32.mrf.mxu0
      %v4380 = vadd.f32 %v3332, %v4379
      %4381 = vmatprep.mubr.f32.mxu0 %v2255
      %4382 = vmatmul.mubr.f32.gmra.mxu0 %v2254
      %v4383 = vpop.f32.mrf.mxu0
      %v4384 = vadd.f32 %v3336, %v4383
      %v4385 = vpop.f32.mrf.mxu0
      %v4386 = vadd.f32 %v3338, %v4385
      %4387 = vmatprep.mubr.f32.mxu0 %v2259
      %4388 = vmatmul.mubr.f32.gmra.mxu0 %v2258
      %v4389 = vpop.f32.mrf.mxu0
      %v4390 = vadd.f32 %v3342, %v4389
      %v4391 = vpop.f32.mrf.mxu0
      %v4392 = vadd.f32 %v3344, %v4391
      %4393 = vmatprep.mubr.f32.mxu0 %v2263
      %4394 = vmatmul.mubr.f32.gmra.mxu0 %v2262
      %v4395 = vpop.f32.mrf.mxu0
      %v4396 = vadd.f32 %v3348, %v4395
      %v4397 = vpop.f32.mrf.mxu0
      %v4398 = vadd.f32 %v3350, %v4397
      %4399 = vmatprep.mubr.f32.mxu0 %v2267
      %4400 = vmatmul.mubr.f32.gmra.mxu0 %v2266
      %v4401 = vpop.f32.mrf.mxu0
      %v4402 = vadd.f32 %v3354, %v4401
      %v4403 = vpop.f32.mrf.mxu0
      %v4404 = vadd.f32 %v3356, %v4403
      %4405 = vmatprep.mubr.f32.mxu0 %v2271
      %4406 = vmatmul.mubr.f32.gmra.mxu0 %v2270
      %v4407 = vpop.f32.mrf.mxu0
      %v4408 = vadd.f32 %v3360, %v4407
      %v4409 = vpop.f32.mrf.mxu0
      %v4410 = vadd.f32 %v3362, %v4409
      %4411 = vmatprep.mubr.f32.mxu0 %v2275
      %4412 = vmatmul.mubr.f32.gmra.mxu0 %v2274
      %v4413 = vpop.f32.mrf.mxu0
      %v4414 = vadd.f32 %v3366, %v4413
      %v4415 = vpop.f32.mrf.mxu0
      %v4416 = vadd.f32 %v3368, %v4415
      %4417 = vmatprep.mubr.f32.mxu0 %v2279
      %4418 = vmatmul.mubr.f32.gmra.mxu0 %v2278
      %v4419 = vpop.f32.mrf.mxu0
      %v4420 = vadd.f32 %v3372, %v4419
      %v4421 = vpop.f32.mrf.mxu0
      %v4422 = vadd.f32 %v3374, %v4421
      %4423 = vmatprep.mubr.f32.mxu0 %v2283
      %4424 = vmatmul.mubr.f32.gmra.mxu0 %v2282
      %v4425 = vpop.f32.mrf.mxu0
      %v4426 = vadd.f32 %v3378, %v4425
      %v4427 = vpop.f32.mrf.mxu0
      %v4428 = vadd.f32 %v3380, %v4427
      %4429 = vmatprep.mubr.f32.mxu0 %v2287
      %4430 = vmatmul.mubr.f32.gmra.mxu0 %v2286
      %v4431 = vpop.f32.mrf.mxu0
      %v4432 = vadd.f32 %v3384, %v4431
      %v4433 = vpop.f32.mrf.mxu0
      %v4434 = vadd.f32 %v3386, %v4433
      %4435 = vmatprep.mubr.f32.mxu0 %v2291
      %4436 = vmatmul.mubr.f32.gmra.mxu0 %v2290
      %v4437 = vpop.f32.mrf.mxu0
      %v4438 = vadd.f32 %v3390, %v4437
      %v4439 = vpop.f32.mrf.mxu0
      %v4440 = vadd.f32 %v3392, %v4439
      %4441 = vmatprep.mubr.f32.mxu0 %v2295
      %4442 = vmatmul.mubr.f32.gmra.mxu0 %v2294
      %v4443 = vpop.f32.mrf.mxu0
      %v4444 = vadd.f32 %v3396, %v4443
      %v4445 = vpop.f32.mrf.mxu0
      %v4446 = vadd.f32 %v3398, %v4445
      %4447 = vmatprep.mubr.f32.mxu0 %v2299
      %4448 = vmatmul.mubr.f32.gmra.mxu0 %v2298
      %v4449 = vpop.f32.mrf.mxu0
      %v4450 = vadd.f32 %v3402, %v4449
      %v4451 = vpop.f32.mrf.mxu0
      %v4452 = vadd.f32 %v3404, %v4451
      %4453 = vmatprep.mubr.f32.mxu0 %v2303
      %4454 = vmatmul.mubr.f32.gmra.mxu0 %v2302
      %v4455 = vpop.f32.mrf.mxu0
      %v4456 = vadd.f32 %v3408, %v4455
      %v4457 = vpop.f32.mrf.mxu0
      %v4458 = vadd.f32 %v3410, %v4457
      %4459 = vmatprep.mubr.f32.mxu0 %v2307
      %4460 = vmatmul.mubr.f32.gmra.mxu0 %v2306
      %v4461 = vpop.f32.mrf.mxu0
      %v4462 = vadd.f32 %v3414, %v4461
      %v4463 = vpop.f32.mrf.mxu0
      %v4464 = vadd.f32 %v3416, %v4463
      %4465 = vmatprep.mubr.f32.mxu0 %v2311
      %4466 = vmatmul.mubr.f32.gmra.mxu0 %v2310
      %v4467 = vpop.f32.mrf.mxu0
      %v4468 = vadd.f32 %v3420, %v4467
      %v4469 = vpop.f32.mrf.mxu0
      %v4470 = vadd.f32 %v3422, %v4469
      %4471 = vmatprep.mubr.f32.mxu0 %v2315
      %4472 = vmatmul.mubr.f32.gmra.mxu0 %v2314
      %v4473 = vpop.f32.mrf.mxu0
      %v4474 = vadd.f32 %v3426, %v4473
      %v4475 = vpop.f32.mrf.mxu0
      %v4476 = vadd.f32 %v3428, %v4475
      %4477 = vmatprep.mubr.f32.mxu0 %v2319
      %4478 = vmatmul.mubr.f32.gmra.mxu0 %v2318
      %v4479 = vpop.f32.mrf.mxu0
      %v4480 = vadd.f32 %v3432, %v4479
      %v4481 = vpop.f32.mrf.mxu0
      %v4482 = vadd.f32 %v3434, %v4481
      %4483 = vmatprep.mubr.f32.mxu0 %v2323
      %4484 = vmatmul.mubr.f32.gmra.mxu0 %v2322
      %v4485 = vpop.f32.mrf.mxu0
      %v4486 = vadd.f32 %v3438, %v4485
      %v4487 = vpop.f32.mrf.mxu0
      %v4488 = vadd.f32 %v3440, %v4487
      %4489 = vmatprep.mubr.f32.mxu0 %v2327
      %4490 = vmatmul.mubr.f32.gmra.mxu0 %v2326
      %v4491 = vpop.f32.mrf.mxu0
      %v4492 = vadd.f32 %v3444, %v4491
      %v4493 = vpop.f32.mrf.mxu0
      %v4494 = vadd.f32 %v3446, %v4493
      %4495 = vmatprep.mubr.f32.mxu0 %v2331
      %4496 = vmatmul.mubr.f32.gmra.mxu0 %v2330
      %v4497 = vpop.f32.mrf.mxu0
      %v4498 = vadd.f32 %v3450, %v4497
      %v4499 = vpop.f32.mrf.mxu0
      %v4500 = vadd.f32 %v3452, %v4499
      %4501 = vmatprep.mubr.f32.mxu0 %v2335
      %4502 = vmatmul.mubr.f32.gmra.mxu0 %v2334
      %v4503 = vpop.f32.mrf.mxu0
      %v4504 = vadd.f32 %v3456, %v4503
      %v4505 = vpop.f32.mrf.mxu0
      %v4506 = vadd.f32 %v3458, %v4505
      %4507 = vmatprep.mubr.f32.mxu0 %v2339
      %4508 = vmatmul.mubr.f32.gmra.mxu0 %v2338
      %v4509 = vpop.f32.mrf.mxu0
      %v4510 = vadd.f32 %v3462, %v4509
      %v4511 = vpop.f32.mrf.mxu0
      %v4512 = vadd.f32 %v3464, %v4511
      %4513 = vdwg.mxu0
      %4514 = vmatprep.subr.mxu0 %v2633
      %4515 = vmatpush1.msra.mxu0 %v2632
      %4516 = vmatprep.subr.mxu0 %v2627
      %4517 = vmatpush1.msra.mxu0 %v2626
      %4518 = vmatprep.subr.mxu0 %v2621
      %4519 = vmatpush1.msra.mxu0 %v2620
      %4520 = vmatprep.subr.mxu0 %v2615
      %4521 = vmatpush1.msra.mxu0 %v2614
      %4522 = vmatprep.subr.mxu0 %v2609
      %4523 = vmatpush1.msra.mxu0 %v2608
      %4524 = vmatprep.subr.mxu0 %v2603
      %4525 = vmatpush1.msra.mxu0 %v2602
      %4526 = vmatprep.subr.mxu0 %v2597
      %4527 = vmatpush1.msra.mxu0 %v2596
      %4528 = vmatprep.subr.mxu0 %v2591
      %4529 = vmatpush1.msra.mxu0 %v2590
      %4530 = vmatprep.subr.mxu0 %v2585
      %4531 = vmatpush1.msra.mxu0 %v2584
      %4532 = vmatprep.subr.mxu0 %v2579
      %4533 = vmatpush1.msra.mxu0 %v2578
      %4534 = vmatprep.subr.mxu0 %v2573
      %4535 = vmatpush1.msra.mxu0 %v2572
      %4536 = vmatprep.subr.mxu0 %v2567
      %4537 = vmatpush1.msra.mxu0 %v2566
      %4538 = vmatprep.subr.mxu0 %v2561
      %4539 = vmatpush1.msra.mxu0 %v2560
      %4540 = vmatprep.subr.mxu0 %v2555
      %4541 = vmatpush1.msra.mxu0 %v2554
      %4542 = vmatprep.subr.mxu0 %v2549
      %4543 = vmatpush1.msra.mxu0 %v2548
      %4544 = vmatprep.subr.mxu0 %v2543
      %4545 = vmatpush1.msra.mxu0 %v2542
      %4546 = vmatprep.subr.mxu0 0.0
      %4547 = vmatpush2.msra.mxu0 0.0
      %4548 = vmatprep.subr.mxu0 0.0
      %4549 = vmatpush2.msra.mxu0 0.0
      %4550 = vmatprep.subr.mxu0 0.0
      %4551 = vmatpush2.msra.mxu0 0.0
      %4552 = vmatprep.subr.mxu0 0.0
      %4553 = vmatpush2.msra.mxu0 0.0
      %4554 = vmatprep.subr.mxu0 0.0
      %4555 = vmatpush2.msra.mxu0 0.0
      %4556 = vmatprep.subr.mxu0 0.0
      %4557 = vmatpush2.msra.mxu0 0.0
      %4558 = vmatprep.subr.mxu0 0.0
      %4559 = vmatpush2.msra.mxu0 0.0
      %4560 = vmatprep.subr.mxu0 0.0
      %4561 = vmatpush2.msra.mxu0 0.0
      %4562 = vmatprep.subr.mxu0 0.0
      %4563 = vmatpush2.msra.mxu0 0.0
      %4564 = vmatprep.subr.mxu0 0.0
      %4565 = vmatpush2.msra.mxu0 0.0
      %4566 = vmatprep.subr.mxu0 0.0
      %4567 = vmatpush2.msra.mxu0 0.0
      %4568 = vmatprep.subr.mxu0 0.0
      %4569 = vmatpush2.msra.mxu0 0.0
      %4570 = vmatprep.subr.mxu0 %v2657
      %4571 = vmatpush2.msra.mxu0 %v2656
      %4572 = vmatprep.subr.mxu0 %v2651
      %4573 = vmatpush2.msra.mxu0 %v2650
      %4574 = vmatprep.subr.mxu0 %v2645
      %4575 = vmatpush2.msra.mxu0 %v2644
      %4576 = vmatprep.subr.mxu0 %v2639
      %4577 = vmatpush2.msra.mxu0 %v2638
      %4578 = vmatprep.mubr.f32.mxu0 %v4303
      %4579 = vmatmul.mubr.f32.gmra.mxu0 %v2248
      %v4580 = vpop.f32.mrf.mxu0
      %v4581 = vadd.f32 %v4372, %v4580
      %v4582 = vpop.f32.mrf.mxu0
      %v4583 = vadd.f32 %v4374, %v4582
      %4584 = vmatprep.mubr.f32.mxu0 %v2977
      %4585 = vmatmul.mubr.f32.gmra.mxu0 %v2252
      %v4586 = vpop.f32.mrf.mxu0
      %v4587 = vadd.f32 %v4378, %v4586
      %v4588 = vpop.f32.mrf.mxu0
      %v4589 = vadd.f32 %v4380, %v4588
      %4590 = vmatprep.mubr.f32.mxu0 %v2980
      %4591 = vmatmul.mubr.f32.gmra.mxu0 %v2256
      %v4592 = vpop.f32.mrf.mxu0
      %v4593 = vadd.f32 %v4384, %v4592
      %v4594 = vpop.f32.mrf.mxu0
      %v4595 = vadd.f32 %v4386, %v4594
      %4596 = vmatprep.mubr.f32.mxu0 %v2983
      %4597 = vmatmul.mubr.f32.gmra.mxu0 %v2260
      %v4598 = vpop.f32.mrf.mxu0
      %v4599 = vadd.f32 %v4390, %v4598
      %v4600 = vpop.f32.mrf.mxu0
      %v4601 = vadd.f32 %v4392, %v4600
      %4602 = vmatprep.mubr.f32.mxu0 %v2986
      %4603 = vmatmul.mubr.f32.gmra.mxu0 %v2264
      %v4604 = vpop.f32.mrf.mxu0
      %v4605 = vadd.f32 %v4396, %v4604
      %v4606 = vpop.f32.mrf.mxu0
      %v4607 = vadd.f32 %v4398, %v4606
      %4608 = vmatprep.mubr.f32.mxu0 %v2989
      %4609 = vmatmul.mubr.f32.gmra.mxu0 %v2268
      %v4610 = vpop.f32.mrf.mxu0
      %v4611 = vadd.f32 %v4402, %v4610
      %v4612 = vpop.f32.mrf.mxu0
      %v4613 = vadd.f32 %v4404, %v4612
      %4614 = vmatprep.mubr.f32.mxu0 %v2992
      %4615 = vmatmul.mubr.f32.gmra.mxu0 %v2272
      %v4616 = vpop.f32.mrf.mxu0
      %v4617 = vadd.f32 %v4408, %v4616
      %v4618 = vpop.f32.mrf.mxu0
      %v4619 = vadd.f32 %v4410, %v4618
      %4620 = vmatprep.mubr.f32.mxu0 %v2995
      %4621 = vmatmul.mubr.f32.gmra.mxu0 %v2276
      %v4622 = vpop.f32.mrf.mxu0
      %v4623 = vadd.f32 %v4414, %v4622
      %v4624 = vpop.f32.mrf.mxu0
      %v4625 = vadd.f32 %v4416, %v4624
      %4626 = vmatprep.mubr.f32.mxu0 %v2998
      %4627 = vmatmul.mubr.f32.gmra.mxu0 %v2280
      %v4628 = vpop.f32.mrf.mxu0
      %v4629 = vadd.f32 %v4420, %v4628
      %v4630 = vpop.f32.mrf.mxu0
      %v4631 = vadd.f32 %v4422, %v4630
      %4632 = vmatprep.mubr.f32.mxu0 %v3001
      %4633 = vmatmul.mubr.f32.gmra.mxu0 %v2284
      %v4634 = vpop.f32.mrf.mxu0
      %v4635 = vadd.f32 %v4426, %v4634
      %v4636 = vpop.f32.mrf.mxu0
      %v4637 = vadd.f32 %v4428, %v4636
      %4638 = vmatprep.mubr.f32.mxu0 %v3004
      %4639 = vmatmul.mubr.f32.gmra.mxu0 %v2288
      %v4640 = vpop.f32.mrf.mxu0
      %v4641 = vadd.f32 %v4432, %v4640
      %v4642 = vpop.f32.mrf.mxu0
      %v4643 = vadd.f32 %v4434, %v4642
      %4644 = vmatprep.mubr.f32.mxu0 %v3007
      %4645 = vmatmul.mubr.f32.gmra.mxu0 %v2292
      %v4646 = vpop.f32.mrf.mxu0
      %v4647 = vadd.f32 %v4438, %v4646
      %v4648 = vpop.f32.mrf.mxu0
      %v4649 = vadd.f32 %v4440, %v4648
      %4650 = vmatprep.mubr.f32.mxu0 %v3010
      %4651 = vmatmul.mubr.f32.gmra.mxu0 %v2296
      %v4652 = vpop.f32.mrf.mxu0
      %v4653 = vadd.f32 %v4444, %v4652
      %v4654 = vpop.f32.mrf.mxu0
      %v4655 = vadd.f32 %v4446, %v4654
      %4656 = vmatprep.mubr.f32.mxu0 %v3013
      %4657 = vmatmul.mubr.f32.gmra.mxu0 %v2300
      %v4658 = vpop.f32.mrf.mxu0
      %v4659 = vadd.f32 %v4450, %v4658
      %v4660 = vpop.f32.mrf.mxu0
      %v4661 = vadd.f32 %v4452, %v4660
      %4662 = vmatprep.mubr.f32.mxu0 %v3016
      %4663 = vmatmul.mubr.f32.gmra.mxu0 %v2304
      %v4664 = vpop.f32.mrf.mxu0
      %v4665 = vadd.f32 %v4456, %v4664
      %v4666 = vpop.f32.mrf.mxu0
      %v4667 = vadd.f32 %v4458, %v4666
      %4668 = vmatprep.mubr.f32.mxu0 %v3019
      %4669 = vmatmul.mubr.f32.gmra.mxu0 %v2308
      %v4670 = vpop.f32.mrf.mxu0
      %v4671 = vadd.f32 %v4462, %v4670
      %v4672 = vpop.f32.mrf.mxu0
      %v4673 = vadd.f32 %v4464, %v4672
      %4674 = vmatprep.mubr.f32.mxu0 %v3022
      %4675 = vmatmul.mubr.f32.gmra.mxu0 %v2312
      %v4676 = vpop.f32.mrf.mxu0
      %v4677 = vadd.f32 %v4468, %v4676
      %v4678 = vpop.f32.mrf.mxu0
      %v4679 = vadd.f32 %v4470, %v4678
      %4680 = vmatprep.mubr.f32.mxu0 %v3025
      %4681 = vmatmul.mubr.f32.gmra.mxu0 %v2316
      %v4682 = vpop.f32.mrf.mxu0
      %v4683 = vadd.f32 %v4474, %v4682
      %v4684 = vpop.f32.mrf.mxu0
      %v4685 = vadd.f32 %v4476, %v4684
      %4686 = vmatprep.mubr.f32.mxu0 %v3028
      %4687 = vmatmul.mubr.f32.gmra.mxu0 %v2320
      %v4688 = vpop.f32.mrf.mxu0
      %v4689 = vadd.f32 %v4480, %v4688
      %v4690 = vpop.f32.mrf.mxu0
      %v4691 = vadd.f32 %v4482, %v4690
      %4692 = vmatprep.mubr.f32.mxu0 %v3031
      %4693 = vmatmul.mubr.f32.gmra.mxu0 %v2324
      %v4694 = vpop.f32.mrf.mxu0
      %v4695 = vadd.f32 %v4486, %v4694
      %v4696 = vpop.f32.mrf.mxu0
      %v4697 = vadd.f32 %v4488, %v4696
      %4698 = vmatprep.mubr.f32.mxu0 %v3034
      %4699 = vmatmul.mubr.f32.gmra.mxu0 %v2328
      %v4700 = vpop.f32.mrf.mxu0
      %v4701 = vadd.f32 %v4492, %v4700
      %v4702 = vpop.f32.mrf.mxu0
      %v4703 = vadd.f32 %v4494, %v4702
      %4704 = vmatprep.mubr.f32.mxu0 %v3037
      %4705 = vmatmul.mubr.f32.gmra.mxu0 %v2332
      %v4706 = vpop.f32.mrf.mxu0
      %v4707 = vadd.f32 %v4498, %v4706
      %v4708 = vpop.f32.mrf.mxu0
      %v4709 = vadd.f32 %v4500, %v4708
      %4710 = vmatprep.mubr.f32.mxu0 %v3040
      %4711 = vmatmul.mubr.f32.gmra.mxu0 %v2336
      %v4712 = vpop.f32.mrf.mxu0
      %v4713 = vadd.f32 %v4504, %v4712
      %v4714 = vpop.f32.mrf.mxu0
      %v4715 = vadd.f32 %v4506, %v4714
      %4716 = vmatprep.mubr.f32.mxu0 %v3043
      %4717 = vmatmul.mubr.f32.gmra.mxu0 %v2340
      %v4718 = vpop.f32.mrf.mxu0
      %v4719 = vadd.f32 %v4510, %v4718
      %v4720 = vpop.f32.mrf.mxu0
      %v4721 = vadd.f32 %v4512, %v4720
      %4722 = vdwg.mxu0
      %4723 = vmatprep.subr.mxu0 %v2443
      %4724 = vmatpush1.msra.mxu0 %v2442
      %4725 = vmatprep.subr.mxu0 %v2437
      %4726 = vmatpush1.msra.mxu0 %v2436
      %4727 = vmatprep.subr.mxu0 %v2431
      %4728 = vmatpush1.msra.mxu0 %v2430
      %4729 = vmatprep.subr.mxu0 %v2425
      %4730 = vmatpush1.msra.mxu0 %v2424
      %4731 = vmatprep.subr.mxu0 %v2419
      %4732 = vmatpush1.msra.mxu0 %v2418
      %4733 = vmatprep.subr.mxu0 %v2413
      %4734 = vmatpush1.msra.mxu0 %v2412
      %4735 = vmatprep.subr.mxu0 %v2407
      %4736 = vmatpush1.msra.mxu0 %v2406
      %4737 = vmatprep.subr.mxu0 %v2401
      %4738 = vmatpush1.msra.mxu0 %v2400
      %4739 = vmatprep.subr.mxu0 %v2395
      %4740 = vmatpush1.msra.mxu0 %v2394
      %4741 = vmatprep.subr.mxu0 %v2389
      %4742 = vmatpush1.msra.mxu0 %v2388
      %4743 = vmatprep.subr.mxu0 %v2383
      %4744 = vmatpush1.msra.mxu0 %v2382
      %4745 = vmatprep.subr.mxu0 %v2377
      %4746 = vmatpush1.msra.mxu0 %v2376
      %4747 = vmatprep.subr.mxu0 %v2371
      %4748 = vmatpush1.msra.mxu0 %v2370
      %4749 = vmatprep.subr.mxu0 %v2365
      %4750 = vmatpush1.msra.mxu0 %v2364
      %4751 = vmatprep.subr.mxu0 %v2359
      %4752 = vmatpush1.msra.mxu0 %v2358
      %4753 = vmatprep.subr.mxu0 %v2353
      %4754 = vmatpush1.msra.mxu0 %v2352
      %4755 = vmatprep.subr.mxu0 %v2539
      %4756 = vmatpush2.msra.mxu0 %v2538
      %4757 = vmatprep.subr.mxu0 %v2533
      %4758 = vmatpush2.msra.mxu0 %v2532
      %4759 = vmatprep.subr.mxu0 %v2527
      %4760 = vmatpush2.msra.mxu0 %v2526
      %4761 = vmatprep.subr.mxu0 %v2521
      %4762 = vmatpush2.msra.mxu0 %v2520
      %4763 = vmatprep.subr.mxu0 %v2515
      %4764 = vmatpush2.msra.mxu0 %v2514
      %4765 = vmatprep.subr.mxu0 %v2509
      %4766 = vmatpush2.msra.mxu0 %v2508
      %4767 = vmatprep.subr.mxu0 %v2503
      %4768 = vmatpush2.msra.mxu0 %v2502
      %4769 = vmatprep.subr.mxu0 %v2497
      %4770 = vmatpush2.msra.mxu0 %v2496
      %4771 = vmatprep.subr.mxu0 %v2491
      %4772 = vmatpush2.msra.mxu0 %v2490
      %4773 = vmatprep.subr.mxu0 %v2485
      %4774 = vmatpush2.msra.mxu0 %v2484
      %4775 = vmatprep.subr.mxu0 %v2479
      %4776 = vmatpush2.msra.mxu0 %v2478
      %4777 = vmatprep.subr.mxu0 %v2473
      %4778 = vmatpush2.msra.mxu0 %v2472
      %4779 = vmatprep.subr.mxu0 %v2467
      %4780 = vmatpush2.msra.mxu0 %v2466
      %4781 = vmatprep.subr.mxu0 %v2461
      %4782 = vmatpush2.msra.mxu0 %v2460
      %4783 = vmatprep.subr.mxu0 %v2455
      %4784 = vmatpush2.msra.mxu0 %v2454
      %4785 = vmatprep.subr.mxu0 %v2449
      %4786 = vmatpush2.msra.mxu0 %v2448
      %4787 = vmatprep.mubr.f32.mxu0 %v2247
      %4788 = vmatmul.mubr.f32.gmra.mxu0 %v2246
      %v4789 = vpop.f32.mrf.mxu0
      %v4790 = vadd.f32 %v3742, %v4789
      %v4791 = vpop.f32.mrf.mxu0
      %v4792 = vadd.f32 %v3744, %v4791
      %4793 = vmatprep.mubr.f32.mxu0 %v2251
      %4794 = vmatmul.mubr.f32.gmra.mxu0 %v2250
      %v4795 = vpop.f32.mrf.mxu0
      %v4796 = vadd.f32 %v3748, %v4795
      %v4797 = vpop.f32.mrf.mxu0
      %v4798 = vadd.f32 %v3750, %v4797
      %4799 = vmatprep.mubr.f32.mxu0 %v2255
      %4800 = vmatmul.mubr.f32.gmra.mxu0 %v2254
      %v4801 = vpop.f32.mrf.mxu0
      %v4802 = vadd.f32 %v3754, %v4801
      %v4803 = vpop.f32.mrf.mxu0
      %v4804 = vadd.f32 %v3756, %v4803
      %4805 = vmatprep.mubr.f32.mxu0 %v2259
      %4806 = vmatmul.mubr.f32.gmra.mxu0 %v2258
      %v4807 = vpop.f32.mrf.mxu0
      %v4808 = vadd.f32 %v3760, %v4807
      %v4809 = vpop.f32.mrf.mxu0
      %v4810 = vadd.f32 %v3762, %v4809
      %4811 = vmatprep.mubr.f32.mxu0 %v2263
      %4812 = vmatmul.mubr.f32.gmra.mxu0 %v2262
      %v4813 = vpop.f32.mrf.mxu0
      %v4814 = vadd.f32 %v3766, %v4813
      %v4815 = vpop.f32.mrf.mxu0
      %v4816 = vadd.f32 %v3768, %v4815
      %4817 = vmatprep.mubr.f32.mxu0 %v2267
      %4818 = vmatmul.mubr.f32.gmra.mxu0 %v2266
      %v4819 = vpop.f32.mrf.mxu0
      %v4820 = vadd.f32 %v3772, %v4819
      %v4821 = vpop.f32.mrf.mxu0
      %v4822 = vadd.f32 %v3774, %v4821
      %4823 = vmatprep.mubr.f32.mxu0 %v2271
      %4824 = vmatmul.mubr.f32.gmra.mxu0 %v2270
      %v4825 = vpop.f32.mrf.mxu0
      %v4826 = vadd.f32 %v3778, %v4825
      %v4827 = vpop.f32.mrf.mxu0
      %v4828 = vadd.f32 %v3780, %v4827
      %4829 = vmatprep.mubr.f32.mxu0 %v2275
      %4830 = vmatmul.mubr.f32.gmra.mxu0 %v2274
      %v4831 = vpop.f32.mrf.mxu0
      %v4832 = vadd.f32 %v3784, %v4831
      %v4833 = vpop.f32.mrf.mxu0
      %v4834 = vadd.f32 %v3786, %v4833
      %4835 = vmatprep.mubr.f32.mxu0 %v2279
      %4836 = vmatmul.mubr.f32.gmra.mxu0 %v2278
      %v4837 = vpop.f32.mrf.mxu0
      %v4838 = vadd.f32 %v3790, %v4837
      %v4839 = vpop.f32.mrf.mxu0
      %v4840 = vadd.f32 %v3792, %v4839
      %4841 = vmatprep.mubr.f32.mxu0 %v2283
      %4842 = vmatmul.mubr.f32.gmra.mxu0 %v2282
      %v4843 = vpop.f32.mrf.mxu0
      %v4844 = vadd.f32 %v3796, %v4843
      %v4845 = vpop.f32.mrf.mxu0
      %v4846 = vadd.f32 %v3798, %v4845
      %4847 = vmatprep.mubr.f32.mxu0 %v2287
      %4848 = vmatmul.mubr.f32.gmra.mxu0 %v2286
      %v4849 = vpop.f32.mrf.mxu0
      %v4850 = vadd.f32 %v3802, %v4849
      %v4851 = vpop.f32.mrf.mxu0
      %v4852 = vadd.f32 %v3804, %v4851
      %4853 = vmatprep.mubr.f32.mxu0 %v2291
      %4854 = vmatmul.mubr.f32.gmra.mxu0 %v2290
      %v4855 = vpop.f32.mrf.mxu0
      %v4856 = vadd.f32 %v3808, %v4855
      %v4857 = vpop.f32.mrf.mxu0
      %v4858 = vadd.f32 %v3810, %v4857
      %4859 = vmatprep.mubr.f32.mxu0 %v2295
      %4860 = vmatmul.mubr.f32.gmra.mxu0 %v2294
      %v4861 = vpop.f32.mrf.mxu0
      %v4862 = vadd.f32 %v3814, %v4861
      %v4863 = vpop.f32.mrf.mxu0
      %v4864 = vadd.f32 %v3816, %v4863
      %4865 = vmatprep.mubr.f32.mxu0 %v2299
      %4866 = vmatmul.mubr.f32.gmra.mxu0 %v2298
      %v4867 = vpop.f32.mrf.mxu0
      %v4868 = vadd.f32 %v3820, %v4867
      %v4869 = vpop.f32.mrf.mxu0
      %v4870 = vadd.f32 %v3822, %v4869
      %4871 = vmatprep.mubr.f32.mxu0 %v2303
      %4872 = vmatmul.mubr.f32.gmra.mxu0 %v2302
      %v4873 = vpop.f32.mrf.mxu0
      %v4874 = vadd.f32 %v3826, %v4873
      %v4875 = vpop.f32.mrf.mxu0
      %v4876 = vadd.f32 %v3828, %v4875
      %4877 = vmatprep.mubr.f32.mxu0 %v2307
      %4878 = vmatmul.mubr.f32.gmra.mxu0 %v2306
      %v4879 = vpop.f32.mrf.mxu0
      %v4880 = vadd.f32 %v3832, %v4879
      %v4881 = vpop.f32.mrf.mxu0
      %v4882 = vadd.f32 %v3834, %v4881
      %4883 = vmatprep.mubr.f32.mxu0 %v2311
      %4884 = vmatmul.mubr.f32.gmra.mxu0 %v2310
      %v4885 = vpop.f32.mrf.mxu0
      %v4886 = vadd.f32 %v3838, %v4885
      %v4887 = vpop.f32.mrf.mxu0
      %v4888 = vadd.f32 %v3840, %v4887
      %4889 = vmatprep.mubr.f32.mxu0 %v2315
      %4890 = vmatmul.mubr.f32.gmra.mxu0 %v2314
      %v4891 = vpop.f32.mrf.mxu0
      %v4892 = vadd.f32 %v3844, %v4891
      %v4893 = vpop.f32.mrf.mxu0
      %v4894 = vadd.f32 %v3846, %v4893
      %4895 = vmatprep.mubr.f32.mxu0 %v2319
      %4896 = vmatmul.mubr.f32.gmra.mxu0 %v2318
      %v4897 = vpop.f32.mrf.mxu0
      %v4898 = vadd.f32 %v3850, %v4897
      %v4899 = vpop.f32.mrf.mxu0
      %v4900 = vadd.f32 %v3852, %v4899
      %4901 = vmatprep.mubr.f32.mxu0 %v2323
      %4902 = vmatmul.mubr.f32.gmra.mxu0 %v2322
      %v4903 = vpop.f32.mrf.mxu0
      %v4904 = vadd.f32 %v3856, %v4903
      %v4905 = vpop.f32.mrf.mxu0
      %v4906 = vadd.f32 %v3858, %v4905
      %4907 = vmatprep.mubr.f32.mxu0 %v2327
      %4908 = vmatmul.mubr.f32.gmra.mxu0 %v2326
      %v4909 = vpop.f32.mrf.mxu0
      %v4910 = vadd.f32 %v3862, %v4909
      %v4911 = vpop.f32.mrf.mxu0
      %v4912 = vadd.f32 %v3864, %v4911
      %4913 = vmatprep.mubr.f32.mxu0 %v2331
      %4914 = vmatmul.mubr.f32.gmra.mxu0 %v2330
      %v4915 = vpop.f32.mrf.mxu0
      %v4916 = vadd.f32 %v3868, %v4915
      %v4917 = vpop.f32.mrf.mxu0
      %v4918 = vadd.f32 %v3870, %v4917
      %4919 = vmatprep.mubr.f32.mxu0 %v2335
      %4920 = vmatmul.mubr.f32.gmra.mxu0 %v2334
      %v4921 = vpop.f32.mrf.mxu0
      %v4922 = vadd.f32 %v3874, %v4921
      %v4923 = vpop.f32.mrf.mxu0
      %v4924 = vadd.f32 %v3876, %v4923
      %4925 = vmatprep.mubr.f32.mxu0 %v2339
      %4926 = vmatmul.mubr.f32.gmra.mxu0 %v2338
      %v4927 = vpop.f32.mrf.mxu0
      %v4928 = vadd.f32 %v3880, %v4927
      %v4929 = vpop.f32.mrf.mxu0
      %v4930 = vadd.f32 %v3882, %v4929
      %4931 = vdwg.mxu0
      %4932 = vmatprep.subr.mxu0 %v2635
      %4933 = vmatpush1.msra.mxu0 %v2634
      %4934 = vmatprep.subr.mxu0 %v2629
      %4935 = vmatpush1.msra.mxu0 %v2628
      %4936 = vmatprep.subr.mxu0 %v2623
      %4937 = vmatpush1.msra.mxu0 %v2622
      %4938 = vmatprep.subr.mxu0 %v2617
      %4939 = vmatpush1.msra.mxu0 %v2616
      %4940 = vmatprep.subr.mxu0 %v2611
      %4941 = vmatpush1.msra.mxu0 %v2610
      %4942 = vmatprep.subr.mxu0 %v2605
      %4943 = vmatpush1.msra.mxu0 %v2604
      %4944 = vmatprep.subr.mxu0 %v2599
      %4945 = vmatpush1.msra.mxu0 %v2598
      %4946 = vmatprep.subr.mxu0 %v2593
      %4947 = vmatpush1.msra.mxu0 %v2592
      %4948 = vmatprep.subr.mxu0 %v2587
      %4949 = vmatpush1.msra.mxu0 %v2586
      %4950 = vmatprep.subr.mxu0 %v2581
      %4951 = vmatpush1.msra.mxu0 %v2580
      %4952 = vmatprep.subr.mxu0 %v2575
      %4953 = vmatpush1.msra.mxu0 %v2574
      %4954 = vmatprep.subr.mxu0 %v2569
      %4955 = vmatpush1.msra.mxu0 %v2568
      %4956 = vmatprep.subr.mxu0 %v2563
      %4957 = vmatpush1.msra.mxu0 %v2562
      %4958 = vmatprep.subr.mxu0 %v2557
      %4959 = vmatpush1.msra.mxu0 %v2556
      %4960 = vmatprep.subr.mxu0 %v2551
      %4961 = vmatpush1.msra.mxu0 %v2550
      %4962 = vmatprep.subr.mxu0 %v2545
      %4963 = vmatpush1.msra.mxu0 %v2544
      %4964 = vmatprep.subr.mxu0 0.0
      %4965 = vmatpush2.msra.mxu0 0.0
      %4966 = vmatprep.subr.mxu0 0.0
      %4967 = vmatpush2.msra.mxu0 0.0
      %4968 = vmatprep.subr.mxu0 0.0
      %4969 = vmatpush2.msra.mxu0 0.0
      %4970 = vmatprep.subr.mxu0 0.0
      %4971 = vmatpush2.msra.mxu0 0.0
      %4972 = vmatprep.subr.mxu0 0.0
      %4973 = vmatpush2.msra.mxu0 0.0
      %4974 = vmatprep.subr.mxu0 0.0
      %4975 = vmatpush2.msra.mxu0 0.0
      %4976 = vmatprep.subr.mxu0 0.0
      %4977 = vmatpush2.msra.mxu0 0.0
      %4978 = vmatprep.subr.mxu0 0.0
      %4979 = vmatpush2.msra.mxu0 0.0
      %4980 = vmatprep.subr.mxu0 0.0
      %4981 = vmatpush2.msra.mxu0 0.0
      %4982 = vmatprep.subr.mxu0 0.0
      %4983 = vmatpush2.msra.mxu0 0.0
      %4984 = vmatprep.subr.mxu0 0.0
      %4985 = vmatpush2.msra.mxu0 0.0
      %4986 = vmatprep.subr.mxu0 0.0
      %4987 = vmatpush2.msra.mxu0 0.0
      %4988 = vmatprep.subr.mxu0 %v2659
      %4989 = vmatpush2.msra.mxu0 %v2658
      %4990 = vmatprep.subr.mxu0 %v2653
      %4991 = vmatpush2.msra.mxu0 %v2652
      %4992 = vmatprep.subr.mxu0 %v2647
      %4993 = vmatpush2.msra.mxu0 %v2646
      %4994 = vmatprep.subr.mxu0 %v2641
      %4995 = vmatpush2.msra.mxu0 %v2640
      %4996 = vmatprep.mubr.f32.mxu0 %v4303
      %4997 = vmatmul.mubr.f32.gmra.mxu0 %v2248
      %v4998 = vpop.f32.mrf.mxu0
      %v4999 = vadd.f32 %v4790, %v4998
      %v5000 = vpop.f32.mrf.mxu0
      %v5001 = vadd.f32 %v4792, %v5000
      %5002 = vmatprep.mubr.f32.mxu0 %v2977
      %5003 = vmatmul.mubr.f32.gmra.mxu0 %v2252
      %v5004 = vpop.f32.mrf.mxu0
      %v5005 = vadd.f32 %v4796, %v5004
      %v5006 = vpop.f32.mrf.mxu0
      %v5007 = vadd.f32 %v4798, %v5006
      %5008 = vmatprep.mubr.f32.mxu0 %v2980
      %5009 = vmatmul.mubr.f32.gmra.mxu0 %v2256
      %v5010 = vpop.f32.mrf.mxu0
      %v5011 = vadd.f32 %v4802, %v5010
      %v5012 = vpop.f32.mrf.mxu0
      %v5013 = vadd.f32 %v4804, %v5012
      %5014 = vmatprep.mubr.f32.mxu0 %v2983
      %5015 = vmatmul.mubr.f32.gmra.mxu0 %v2260
      %v5016 = vpop.f32.mrf.mxu0
      %v5017 = vadd.f32 %v4808, %v5016
      %v5018 = vpop.f32.mrf.mxu0
      %v5019 = vadd.f32 %v4810, %v5018
      %5020 = vmatprep.mubr.f32.mxu0 %v2986
      %5021 = vmatmul.mubr.f32.gmra.mxu0 %v2264
      %v5022 = vpop.f32.mrf.mxu0
      %v5023 = vadd.f32 %v4814, %v5022
      %v5024 = vpop.f32.mrf.mxu0
      %v5025 = vadd.f32 %v4816, %v5024
      %5026 = vmatprep.mubr.f32.mxu0 %v2989
      %5027 = vmatmul.mubr.f32.gmra.mxu0 %v2268
      %v5028 = vpop.f32.mrf.mxu0
      %v5029 = vadd.f32 %v4820, %v5028
      %v5030 = vpop.f32.mrf.mxu0
      %v5031 = vadd.f32 %v4822, %v5030
      %5032 = vmatprep.mubr.f32.mxu0 %v2992
      %5033 = vmatmul.mubr.f32.gmra.mxu0 %v2272
      %v5034 = vpop.f32.mrf.mxu0
      %v5035 = vadd.f32 %v4826, %v5034
      %v5036 = vpop.f32.mrf.mxu0
      %v5037 = vadd.f32 %v4828, %v5036
      %5038 = vmatprep.mubr.f32.mxu0 %v2995
      %5039 = vmatmul.mubr.f32.gmra.mxu0 %v2276
      %v5040 = vpop.f32.mrf.mxu0
      %v5041 = vadd.f32 %v4832, %v5040
      %v5042 = vpop.f32.mrf.mxu0
      %v5043 = vadd.f32 %v4834, %v5042
      %5044 = vmatprep.mubr.f32.mxu0 %v2998
      %5045 = vmatmul.mubr.f32.gmra.mxu0 %v2280
      %v5046 = vpop.f32.mrf.mxu0
      %v5047 = vadd.f32 %v4838, %v5046
      %v5048 = vpop.f32.mrf.mxu0
      %v5049 = vadd.f32 %v4840, %v5048
      %5050 = vmatprep.mubr.f32.mxu0 %v3001
      %5051 = vmatmul.mubr.f32.gmra.mxu0 %v2284
      %v5052 = vpop.f32.mrf.mxu0
      %v5053 = vadd.f32 %v4844, %v5052
      %v5054 = vpop.f32.mrf.mxu0
      %v5055 = vadd.f32 %v4846, %v5054
      %5056 = vmatprep.mubr.f32.mxu0 %v3004
      %5057 = vmatmul.mubr.f32.gmra.mxu0 %v2288
      %v5058 = vpop.f32.mrf.mxu0
      %v5059 = vadd.f32 %v4850, %v5058
      %v5060 = vpop.f32.mrf.mxu0
      %v5061 = vadd.f32 %v4852, %v5060
      %5062 = vmatprep.mubr.f32.mxu0 %v3007
      %5063 = vmatmul.mubr.f32.gmra.mxu0 %v2292
      %v5064 = vpop.f32.mrf.mxu0
      %v5065 = vadd.f32 %v4856, %v5064
      %v5066 = vpop.f32.mrf.mxu0
      %v5067 = vadd.f32 %v4858, %v5066
      %5068 = vmatprep.mubr.f32.mxu0 %v3010
      %5069 = vmatmul.mubr.f32.gmra.mxu0 %v2296
      %v5070 = vpop.f32.mrf.mxu0
      %v5071 = vadd.f32 %v4862, %v5070
      %v5072 = vpop.f32.mrf.mxu0
      %v5073 = vadd.f32 %v4864, %v5072
      %5074 = vmatprep.mubr.f32.mxu0 %v3013
      %5075 = vmatmul.mubr.f32.gmra.mxu0 %v2300
      %v5076 = vpop.f32.mrf.mxu0
      %v5077 = vadd.f32 %v4868, %v5076
      %v5078 = vpop.f32.mrf.mxu0
      %v5079 = vadd.f32 %v4870, %v5078
      %5080 = vmatprep.mubr.f32.mxu0 %v3016
      %5081 = vmatmul.mubr.f32.gmra.mxu0 %v2304
      %v5082 = vpop.f32.mrf.mxu0
      %v5083 = vadd.f32 %v4874, %v5082
      %v5084 = vpop.f32.mrf.mxu0
      %v5085 = vadd.f32 %v4876, %v5084
      %5086 = vmatprep.mubr.f32.mxu0 %v3019
      %5087 = vmatmul.mubr.f32.gmra.mxu0 %v2308
      %v5088 = vpop.f32.mrf.mxu0
      %v5089 = vadd.f32 %v4880, %v5088
      %v5090 = vpop.f32.mrf.mxu0
      %v5091 = vadd.f32 %v4882, %v5090
      %5092 = vmatprep.mubr.f32.mxu0 %v3022
      %5093 = vmatmul.mubr.f32.gmra.mxu0 %v2312
      %v5094 = vpop.f32.mrf.mxu0
      %v5095 = vadd.f32 %v4886, %v5094
      %v5096 = vpop.f32.mrf.mxu0
      %v5097 = vadd.f32 %v4888, %v5096
      %5098 = vmatprep.mubr.f32.mxu0 %v3025
      %5099 = vmatmul.mubr.f32.gmra.mxu0 %v2316
      %v5100 = vpop.f32.mrf.mxu0
      %v5101 = vadd.f32 %v4892, %v5100
      %v5102 = vpop.f32.mrf.mxu0
      %v5103 = vadd.f32 %v4894, %v5102
      %5104 = vmatprep.mubr.f32.mxu0 %v3028
      %5105 = vmatmul.mubr.f32.gmra.mxu0 %v2320
      %v5106 = vpop.f32.mrf.mxu0
      %v5107 = vadd.f32 %v4898, %v5106
      %v5108 = vpop.f32.mrf.mxu0
      %v5109 = vadd.f32 %v4900, %v5108
      %5110 = vmatprep.mubr.f32.mxu0 %v3031
      %5111 = vmatmul.mubr.f32.gmra.mxu0 %v2324
      %v5112 = vpop.f32.mrf.mxu0
      %v5113 = vadd.f32 %v4904, %v5112
      %v5114 = vpop.f32.mrf.mxu0
      %v5115 = vadd.f32 %v4906, %v5114
      %5116 = vmatprep.mubr.f32.mxu0 %v3034
      %5117 = vmatmul.mubr.f32.gmra.mxu0 %v2328
      %v5118 = vpop.f32.mrf.mxu0
      %v5119 = vadd.f32 %v4910, %v5118
      %v5120 = vpop.f32.mrf.mxu0
      %v5121 = vadd.f32 %v4912, %v5120
      %5122 = vmatprep.mubr.f32.mxu0 %v3037
      %5123 = vmatmul.mubr.f32.gmra.mxu0 %v2332
      %v5124 = vpop.f32.mrf.mxu0
      %v5125 = vadd.f32 %v4916, %v5124
      %v5126 = vpop.f32.mrf.mxu0
      %v5127 = vadd.f32 %v4918, %v5126
      %5128 = vmatprep.mubr.f32.mxu0 %v3040
      %5129 = vmatmul.mubr.f32.gmra.mxu0 %v2336
      %v5130 = vpop.f32.mrf.mxu0
      %v5131 = vadd.f32 %v4922, %v5130
      %v5132 = vpop.f32.mrf.mxu0
      %v5133 = vadd.f32 %v4924, %v5132
      %5134 = vmatprep.mubr.f32.mxu0 %v3043
      %5135 = vmatmul.mubr.f32.gmra.mxu0 %v2340
      %v5136 = vpop.f32.mrf.mxu0
      %v5137 = vadd.f32 %v4928, %v5136
      %v5138 = vpop.f32.mrf.mxu0
      %v5139 = vadd.f32 %v4930, %v5138
      %5140 = vdwg.mxu0
      %5141 = vmatprep.subr.mxu0 %v2445
      %5142 = vmatpush1.msra.mxu0 %v2444
      %5143 = vmatprep.subr.mxu0 %v2439
      %5144 = vmatpush1.msra.mxu0 %v2438
      %5145 = vmatprep.subr.mxu0 %v2433
      %5146 = vmatpush1.msra.mxu0 %v2432
      %5147 = vmatprep.subr.mxu0 %v2427
      %5148 = vmatpush1.msra.mxu0 %v2426
      %5149 = vmatprep.subr.mxu0 %v2421
      %5150 = vmatpush1.msra.mxu0 %v2420
      %5151 = vmatprep.subr.mxu0 %v2415
      %5152 = vmatpush1.msra.mxu0 %v2414
      %5153 = vmatprep.subr.mxu0 %v2409
      %5154 = vmatpush1.msra.mxu0 %v2408
      %5155 = vmatprep.subr.mxu0 %v2403
      %5156 = vmatpush1.msra.mxu0 %v2402
      %5157 = vmatprep.subr.mxu0 %v2397
      %5158 = vmatpush1.msra.mxu0 %v2396
      %5159 = vmatprep.subr.mxu0 %v2391
      %5160 = vmatpush1.msra.mxu0 %v2390
      %5161 = vmatprep.subr.mxu0 %v2385
      %5162 = vmatpush1.msra.mxu0 %v2384
      %5163 = vmatprep.subr.mxu0 %v2379
      %5164 = vmatpush1.msra.mxu0 %v2378
      %5165 = vmatprep.subr.mxu0 %v2373
      %5166 = vmatpush1.msra.mxu0 %v2372
      %5167 = vmatprep.subr.mxu0 %v2367
      %5168 = vmatpush1.msra.mxu0 %v2366
      %5169 = vmatprep.subr.mxu0 %v2361
      %5170 = vmatpush1.msra.mxu0 %v2360
      %5171 = vmatprep.subr.mxu0 %v2355
      %5172 = vmatpush1.msra.mxu0 %v2354
      %5173 = vmatprep.subr.mxu0 %v2541
      %5174 = vmatpush2.msra.mxu0 %v2540
      %5175 = vmatprep.subr.mxu0 %v2535
      %5176 = vmatpush2.msra.mxu0 %v2534
      %5177 = vmatprep.subr.mxu0 %v2529
      %5178 = vmatpush2.msra.mxu0 %v2528
      %5179 = vmatprep.subr.mxu0 %v2523
      %5180 = vmatpush2.msra.mxu0 %v2522
      %5181 = vmatprep.subr.mxu0 %v2517
      %5182 = vmatpush2.msra.mxu0 %v2516
      %5183 = vmatprep.subr.mxu0 %v2511
      %5184 = vmatpush2.msra.mxu0 %v2510
      %5185 = vmatprep.subr.mxu0 %v2505
      %5186 = vmatpush2.msra.mxu0 %v2504
      %5187 = vmatprep.subr.mxu0 %v2499
      %5188 = vmatpush2.msra.mxu0 %v2498
      %5189 = vmatprep.subr.mxu0 %v2493
      %5190 = vmatpush2.msra.mxu0 %v2492
      %5191 = vmatprep.subr.mxu0 %v2487
      %5192 = vmatpush2.msra.mxu0 %v2486
      %5193 = vmatprep.subr.mxu0 %v2481
      %5194 = vmatpush2.msra.mxu0 %v2480
      %5195 = vmatprep.subr.mxu0 %v2475
      %5196 = vmatpush2.msra.mxu0 %v2474
      %5197 = vmatprep.subr.mxu0 %v2469
      %5198 = vmatpush2.msra.mxu0 %v2468
      %5199 = vmatprep.subr.mxu0 %v2463
      %5200 = vmatpush2.msra.mxu0 %v2462
      %5201 = vmatprep.subr.mxu0 %v2457
      %5202 = vmatpush2.msra.mxu0 %v2456
      %5203 = vmatprep.subr.mxu0 %v2451
      %5204 = vmatpush2.msra.mxu0 %v2450
      %5205 = vmatprep.mubr.f32.mxu0 %v2247
      %5206 = vmatmul.mubr.f32.gmra.mxu0 %v2246
      %v5207 = vpop.f32.mrf.mxu0
      %v5208 = vadd.f32 %v4160, %v5207
      %v5209 = vpop.f32.mrf.mxu0
      %v5210 = vadd.f32 %v4162, %v5209
      %5211 = vmatprep.mubr.f32.mxu0 %v2251
      %5212 = vmatmul.mubr.f32.gmra.mxu0 %v2250
      %v5213 = vpop.f32.mrf.mxu0
      %v5214 = vadd.f32 %v4166, %v5213
      %v5215 = vpop.f32.mrf.mxu0
      %v5216 = vadd.f32 %v4168, %v5215
      %5217 = vmatprep.mubr.f32.mxu0 %v2255
      %5218 = vmatmul.mubr.f32.gmra.mxu0 %v2254
      %v5219 = vpop.f32.mrf.mxu0
      %v5220 = vadd.f32 %v4172, %v5219
      %v5221 = vpop.f32.mrf.mxu0
      %v5222 = vadd.f32 %v4174, %v5221
      %5223 = vmatprep.mubr.f32.mxu0 %v2259
      %5224 = vmatmul.mubr.f32.gmra.mxu0 %v2258
      %v5225 = vpop.f32.mrf.mxu0
      %v5226 = vadd.f32 %v4178, %v5225
      %v5227 = vpop.f32.mrf.mxu0
      %v5228 = vadd.f32 %v4180, %v5227
      %5229 = vmatprep.mubr.f32.mxu0 %v2263
      %5230 = vmatmul.mubr.f32.gmra.mxu0 %v2262
      %v5231 = vpop.f32.mrf.mxu0
      %v5232 = vadd.f32 %v4184, %v5231
      %v5233 = vpop.f32.mrf.mxu0
      %v5234 = vadd.f32 %v4186, %v5233
      %5235 = vmatprep.mubr.f32.mxu0 %v2267
      %5236 = vmatmul.mubr.f32.gmra.mxu0 %v2266
      %v5237 = vpop.f32.mrf.mxu0
      %v5238 = vadd.f32 %v4190, %v5237
      %v5239 = vpop.f32.mrf.mxu0
      %v5240 = vadd.f32 %v4192, %v5239
      %5241 = vmatprep.mubr.f32.mxu0 %v2271
      %5242 = vmatmul.mubr.f32.gmra.mxu0 %v2270
      %v5243 = vpop.f32.mrf.mxu0
      %v5244 = vadd.f32 %v4196, %v5243
      %v5245 = vpop.f32.mrf.mxu0
      %v5246 = vadd.f32 %v4198, %v5245
      %5247 = vmatprep.mubr.f32.mxu0 %v2275
      %5248 = vmatmul.mubr.f32.gmra.mxu0 %v2274
      %v5249 = vpop.f32.mrf.mxu0
      %v5250 = vadd.f32 %v4202, %v5249
      %v5251 = vpop.f32.mrf.mxu0
      %v5252 = vadd.f32 %v4204, %v5251
      %5253 = vmatprep.mubr.f32.mxu0 %v2279
      %5254 = vmatmul.mubr.f32.gmra.mxu0 %v2278
      %v5255 = vpop.f32.mrf.mxu0
      %v5256 = vadd.f32 %v4208, %v5255
      %v5257 = vpop.f32.mrf.mxu0
      %v5258 = vadd.f32 %v4210, %v5257
      %5259 = vmatprep.mubr.f32.mxu0 %v2283
      %5260 = vmatmul.mubr.f32.gmra.mxu0 %v2282
      %v5261 = vpop.f32.mrf.mxu0
      %v5262 = vadd.f32 %v4214, %v5261
      %v5263 = vpop.f32.mrf.mxu0
      %v5264 = vadd.f32 %v4216, %v5263
      %5265 = vmatprep.mubr.f32.mxu0 %v2287
      %5266 = vmatmul.mubr.f32.gmra.mxu0 %v2286
      %v5267 = vpop.f32.mrf.mxu0
      %v5268 = vadd.f32 %v4220, %v5267
      %v5269 = vpop.f32.mrf.mxu0
      %v5270 = vadd.f32 %v4222, %v5269
      %5271 = vmatprep.mubr.f32.mxu0 %v2291
      %5272 = vmatmul.mubr.f32.gmra.mxu0 %v2290
      %v5273 = vpop.f32.mrf.mxu0
      %v5274 = vadd.f32 %v4226, %v5273
      %v5275 = vpop.f32.mrf.mxu0
      %v5276 = vadd.f32 %v4228, %v5275
      %5277 = vmatprep.mubr.f32.mxu0 %v2295
      %5278 = vmatmul.mubr.f32.gmra.mxu0 %v2294
      %v5279 = vpop.f32.mrf.mxu0
      %v5280 = vadd.f32 %v4232, %v5279
      %v5281 = vpop.f32.mrf.mxu0
      %v5282 = vadd.f32 %v4234, %v5281
      %5283 = vmatprep.mubr.f32.mxu0 %v2299
      %5284 = vmatmul.mubr.f32.gmra.mxu0 %v2298
      %v5285 = vpop.f32.mrf.mxu0
      %v5286 = vadd.f32 %v4238, %v5285
      %v5287 = vpop.f32.mrf.mxu0
      %v5288 = vadd.f32 %v4240, %v5287
      %5289 = vmatprep.mubr.f32.mxu0 %v2303
      %5290 = vmatmul.mubr.f32.gmra.mxu0 %v2302
      %v5291 = vpop.f32.mrf.mxu0
      %v5292 = vadd.f32 %v4244, %v5291
      %v5293 = vpop.f32.mrf.mxu0
      %v5294 = vadd.f32 %v4246, %v5293
      %5295 = vmatprep.mubr.f32.mxu0 %v2307
      %5296 = vmatmul.mubr.f32.gmra.mxu0 %v2306
      %v5297 = vpop.f32.mrf.mxu0
      %v5298 = vadd.f32 %v4250, %v5297
      %v5299 = vpop.f32.mrf.mxu0
      %v5300 = vadd.f32 %v4252, %v5299
      %5301 = vmatprep.mubr.f32.mxu0 %v2311
      %5302 = vmatmul.mubr.f32.gmra.mxu0 %v2310
      %v5303 = vpop.f32.mrf.mxu0
      %v5304 = vadd.f32 %v4256, %v5303
      %v5305 = vpop.f32.mrf.mxu0
      %v5306 = vadd.f32 %v4258, %v5305
      %5307 = vmatprep.mubr.f32.mxu0 %v2315
      %5308 = vmatmul.mubr.f32.gmra.mxu0 %v2314
      %v5309 = vpop.f32.mrf.mxu0
      %v5310 = vadd.f32 %v4262, %v5309
      %v5311 = vpop.f32.mrf.mxu0
      %v5312 = vadd.f32 %v4264, %v5311
      %5313 = vmatprep.mubr.f32.mxu0 %v2319
      %5314 = vmatmul.mubr.f32.gmra.mxu0 %v2318
      %v5315 = vpop.f32.mrf.mxu0
      %v5316 = vadd.f32 %v4268, %v5315
      %v5317 = vpop.f32.mrf.mxu0
      %v5318 = vadd.f32 %v4270, %v5317
      %5319 = vmatprep.mubr.f32.mxu0 %v2323
      %5320 = vmatmul.mubr.f32.gmra.mxu0 %v2322
      %v5321 = vpop.f32.mrf.mxu0
      %v5322 = vadd.f32 %v4274, %v5321
      %v5323 = vpop.f32.mrf.mxu0
      %v5324 = vadd.f32 %v4276, %v5323
      %5325 = vmatprep.mubr.f32.mxu0 %v2327
      %5326 = vmatmul.mubr.f32.gmra.mxu0 %v2326
      %v5327 = vpop.f32.mrf.mxu0
      %v5328 = vadd.f32 %v4280, %v5327
      %v5329 = vpop.f32.mrf.mxu0
      %v5330 = vadd.f32 %v4282, %v5329
      %5331 = vmatprep.mubr.f32.mxu0 %v2331
      %5332 = vmatmul.mubr.f32.gmra.mxu0 %v2330
      %v5333 = vpop.f32.mrf.mxu0
      %v5334 = vadd.f32 %v4286, %v5333
      %v5335 = vpop.f32.mrf.mxu0
      %v5336 = vadd.f32 %v4288, %v5335
      %5337 = vmatprep.mubr.f32.mxu0 %v2335
      %5338 = vmatmul.mubr.f32.gmra.mxu0 %v2334
      %v5339 = vpop.f32.mrf.mxu0
      %v5340 = vadd.f32 %v4292, %v5339
      %v5341 = vpop.f32.mrf.mxu0
      %v5342 = vadd.f32 %v4294, %v5341
      %5343 = vmatprep.mubr.f32.mxu0 %v2339
      %5344 = vmatmul.mubr.f32.gmra.mxu0 %v2338
      %v5345 = vpop.f32.mrf.mxu0
      %v5346 = vadd.f32 %v4298, %v5345
      %v5347 = vpop.f32.mrf.mxu0
      %v5348 = vadd.f32 %v4300, %v5347
      %5349 = vdwg.mxu0
      %5350 = vmatprep.subr.mxu0 %v2637
      %5351 = vmatpush1.msra.mxu0 %v2636
      %5352 = vmatprep.subr.mxu0 %v2631
      %5353 = vmatpush1.msra.mxu0 %v2630
      %5354 = vmatprep.subr.mxu0 %v2625
      %5355 = vmatpush1.msra.mxu0 %v2624
      %5356 = vmatprep.subr.mxu0 %v2619
      %5357 = vmatpush1.msra.mxu0 %v2618
      %5358 = vmatprep.subr.mxu0 %v2613
      %5359 = vmatpush1.msra.mxu0 %v2612
      %5360 = vmatprep.subr.mxu0 %v2607
      %5361 = vmatpush1.msra.mxu0 %v2606
      %5362 = vmatprep.subr.mxu0 %v2601
      %5363 = vmatpush1.msra.mxu0 %v2600
      %5364 = vmatprep.subr.mxu0 %v2595
      %5365 = vmatpush1.msra.mxu0 %v2594
      %5366 = vmatprep.subr.mxu0 %v2589
      %5367 = vmatpush1.msra.mxu0 %v2588
      %5368 = vmatprep.subr.mxu0 %v2583
      %5369 = vmatpush1.msra.mxu0 %v2582
      %5370 = vmatprep.subr.mxu0 %v2577
      %5371 = vmatpush1.msra.mxu0 %v2576
      %5372 = vmatprep.subr.mxu0 %v2571
      %5373 = vmatpush1.msra.mxu0 %v2570
      %5374 = vmatprep.subr.mxu0 %v2565
      %5375 = vmatpush1.msra.mxu0 %v2564
      %5376 = vmatprep.subr.mxu0 %v2559
      %5377 = vmatpush1.msra.mxu0 %v2558
      %5378 = vmatprep.subr.mxu0 %v2553
      %5379 = vmatpush1.msra.mxu0 %v2552
      %5380 = vmatprep.subr.mxu0 %v2547
      %5381 = vmatpush1.msra.mxu0 %v2546
      %5382 = vmatprep.subr.mxu0 0.0
      %5383 = vmatpush2.msra.mxu0 0.0
      %5384 = vmatprep.subr.mxu0 0.0
      %5385 = vmatpush2.msra.mxu0 0.0
      %5386 = vmatprep.subr.mxu0 0.0
      %5387 = vmatpush2.msra.mxu0 0.0
      %5388 = vmatprep.subr.mxu0 0.0
      %5389 = vmatpush2.msra.mxu0 0.0
      %5390 = vmatprep.subr.mxu0 0.0
      %5391 = vmatpush2.msra.mxu0 0.0
      %5392 = vmatprep.subr.mxu0 0.0
      %5393 = vmatpush2.msra.mxu0 0.0
      %5394 = vmatprep.subr.mxu0 0.0
      %5395 = vmatpush2.msra.mxu0 0.0
      %5396 = vmatprep.subr.mxu0 0.0
      %5397 = vmatpush2.msra.mxu0 0.0
      %5398 = vmatprep.subr.mxu0 0.0
      %5399 = vmatpush2.msra.mxu0 0.0
      %5400 = vmatprep.subr.mxu0 0.0
      %5401 = vmatpush2.msra.mxu0 0.0
      %5402 = vmatprep.subr.mxu0 0.0
      %5403 = vmatpush2.msra.mxu0 0.0
      %5404 = vmatprep.subr.mxu0 0.0
      %5405 = vmatpush2.msra.mxu0 0.0
      %5406 = vmatprep.subr.mxu0 %v2661
      %5407 = vmatpush2.msra.mxu0 %v2660
      %5408 = vmatprep.subr.mxu0 %v2655
      %5409 = vmatpush2.msra.mxu0 %v2654
      %5410 = vmatprep.subr.mxu0 %v2649
      %5411 = vmatpush2.msra.mxu0 %v2648
      %5412 = vmatprep.subr.mxu0 %v2643
      %5413 = vmatpush2.msra.mxu0 %v2642
      %5414 = vmatprep.mubr.f32.mxu0 %v4303
      %5415 = vmatmul.mubr.f32.gmra.mxu0 %v2248
      %v5416 = vpop.f32.mrf.mxu0
      %v5417 = vadd.f32 %v5208, %v5416
      %v5418 = vpop.f32.mrf.mxu0
      %v5419 = vadd.f32 %v5210, %v5418
      %5420 = vmatprep.mubr.f32.mxu0 %v2977
      %5421 = vmatmul.mubr.f32.gmra.mxu0 %v2252
      %v5422 = vpop.f32.mrf.mxu0
      %v5423 = vadd.f32 %v5214, %v5422
      %v5424 = vpop.f32.mrf.mxu0
      %v5425 = vadd.f32 %v5216, %v5424
      %5426 = vmatprep.mubr.f32.mxu0 %v2980
      %5427 = vmatmul.mubr.f32.gmra.mxu0 %v2256
      %v5428 = vpop.f32.mrf.mxu0
      %v5429 = vadd.f32 %v5220, %v5428
      %v5430 = vpop.f32.mrf.mxu0
      %v5431 = vadd.f32 %v5222, %v5430
      %5432 = vmatprep.mubr.f32.mxu0 %v2983
      %5433 = vmatmul.mubr.f32.gmra.mxu0 %v2260
      %v5434 = vpop.f32.mrf.mxu0
      %v5435 = vadd.f32 %v5226, %v5434
      %v5436 = vpop.f32.mrf.mxu0
      %v5437 = vadd.f32 %v5228, %v5436
      %5438 = vmatprep.mubr.f32.mxu0 %v2986
      %5439 = vmatmul.mubr.f32.gmra.mxu0 %v2264
      %v5440 = vpop.f32.mrf.mxu0
      %v5441 = vadd.f32 %v5232, %v5440
      %v5442 = vpop.f32.mrf.mxu0
      %v5443 = vadd.f32 %v5234, %v5442
      %5444 = vmatprep.mubr.f32.mxu0 %v2989
      %5445 = vmatmul.mubr.f32.gmra.mxu0 %v2268
      %v5446 = vpop.f32.mrf.mxu0
      %v5447 = vadd.f32 %v5238, %v5446
      %v5448 = vpop.f32.mrf.mxu0
      %v5449 = vadd.f32 %v5240, %v5448
      %5450 = vmatprep.mubr.f32.mxu0 %v2992
      %5451 = vmatmul.mubr.f32.gmra.mxu0 %v2272
      %v5452 = vpop.f32.mrf.mxu0
      %v5453 = vadd.f32 %v5244, %v5452
      %v5454 = vpop.f32.mrf.mxu0
      %v5455 = vadd.f32 %v5246, %v5454
      %5456 = vmatprep.mubr.f32.mxu0 %v2995
      %5457 = vmatmul.mubr.f32.gmra.mxu0 %v2276
      %v5458 = vpop.f32.mrf.mxu0
      %v5459 = vadd.f32 %v5250, %v5458
      %v5460 = vpop.f32.mrf.mxu0
      %v5461 = vadd.f32 %v5252, %v5460
      %5462 = vmatprep.mubr.f32.mxu0 %v2998
      %5463 = vmatmul.mubr.f32.gmra.mxu0 %v2280
      %v5464 = vpop.f32.mrf.mxu0
      %v5465 = vadd.f32 %v5256, %v5464
      %v5466 = vpop.f32.mrf.mxu0
      %v5467 = vadd.f32 %v5258, %v5466
      %5468 = vmatprep.mubr.f32.mxu0 %v3001
      %5469 = vmatmul.mubr.f32.gmra.mxu0 %v2284
      %v5470 = vpop.f32.mrf.mxu0
      %v5471 = vadd.f32 %v5262, %v5470
      %v5472 = vpop.f32.mrf.mxu0
      %v5473 = vadd.f32 %v5264, %v5472
      %5474 = vmatprep.mubr.f32.mxu0 %v3004
      %5475 = vmatmul.mubr.f32.gmra.mxu0 %v2288
      %v5476 = vpop.f32.mrf.mxu0
      %v5477 = vadd.f32 %v5268, %v5476
      %v5478 = vpop.f32.mrf.mxu0
      %v5479 = vadd.f32 %v5270, %v5478
      %5480 = vmatprep.mubr.f32.mxu0 %v3007
      %5481 = vmatmul.mubr.f32.gmra.mxu0 %v2292
      %v5482 = vpop.f32.mrf.mxu0
      %v5483 = vadd.f32 %v5274, %v5482
      %v5484 = vpop.f32.mrf.mxu0
      %v5485 = vadd.f32 %v5276, %v5484
      %5486 = vmatprep.mubr.f32.mxu0 %v3010
      %5487 = vmatmul.mubr.f32.gmra.mxu0 %v2296
      %v5488 = vpop.f32.mrf.mxu0
      %v5489 = vadd.f32 %v5280, %v5488
      %v5490 = vpop.f32.mrf.mxu0
      %v5491 = vadd.f32 %v5282, %v5490
      %5492 = vmatprep.mubr.f32.mxu0 %v3013
      %5493 = vmatmul.mubr.f32.gmra.mxu0 %v2300
      %v5494 = vpop.f32.mrf.mxu0
      %v5495 = vadd.f32 %v5286, %v5494
      %v5496 = vpop.f32.mrf.mxu0
      %v5497 = vadd.f32 %v5288, %v5496
      %5498 = vmatprep.mubr.f32.mxu0 %v3016
      %5499 = vmatmul.mubr.f32.gmra.mxu0 %v2304
      %v5500 = vpop.f32.mrf.mxu0
      %v5501 = vadd.f32 %v5292, %v5500
      %v5502 = vpop.f32.mrf.mxu0
      %v5503 = vadd.f32 %v5294, %v5502
      %5504 = vmatprep.mubr.f32.mxu0 %v3019
      %5505 = vmatmul.mubr.f32.gmra.mxu0 %v2308
      %v5506 = vpop.f32.mrf.mxu0
      %v5507 = vadd.f32 %v5298, %v5506
      %v5508 = vpop.f32.mrf.mxu0
      %v5509 = vadd.f32 %v5300, %v5508
      %5510 = vmatprep.mubr.f32.mxu0 %v3022
      %5511 = vmatmul.mubr.f32.gmra.mxu0 %v2312
      %v5512 = vpop.f32.mrf.mxu0
      %v5513 = vadd.f32 %v5304, %v5512
      %v5514 = vpop.f32.mrf.mxu0
      %v5515 = vadd.f32 %v5306, %v5514
      %5516 = vmatprep.mubr.f32.mxu0 %v3025
      %5517 = vmatmul.mubr.f32.gmra.mxu0 %v2316
      %v5518 = vpop.f32.mrf.mxu0
      %v5519 = vadd.f32 %v5310, %v5518
      %v5520 = vpop.f32.mrf.mxu0
      %v5521 = vadd.f32 %v5312, %v5520
      %5522 = vmatprep.mubr.f32.mxu0 %v3028
      %5523 = vmatmul.mubr.f32.gmra.mxu0 %v2320
      %v5524 = vpop.f32.mrf.mxu0
      %v5525 = vadd.f32 %v5316, %v5524
      %v5526 = vpop.f32.mrf.mxu0
      %v5527 = vadd.f32 %v5318, %v5526
      %5528 = vmatprep.mubr.f32.mxu0 %v3031
      %5529 = vmatmul.mubr.f32.gmra.mxu0 %v2324
      %v5530 = vpop.f32.mrf.mxu0
      %v5531 = vadd.f32 %v5322, %v5530
      %v5532 = vpop.f32.mrf.mxu0
      %v5533 = vadd.f32 %v5324, %v5532
      %5534 = vmatprep.mubr.f32.mxu0 %v3034
      %5535 = vmatmul.mubr.f32.gmra.mxu0 %v2328
      %v5536 = vpop.f32.mrf.mxu0
      %v5537 = vadd.f32 %v5328, %v5536
      %v5538 = vpop.f32.mrf.mxu0
      %v5539 = vadd.f32 %v5330, %v5538
      %5540 = vmatprep.mubr.f32.mxu0 %v3037
      %5541 = vmatmul.mubr.f32.gmra.mxu0 %v2332
      %v5542 = vpop.f32.mrf.mxu0
      %v5543 = vadd.f32 %v5334, %v5542
      %v5544 = vpop.f32.mrf.mxu0
      %v5545 = vadd.f32 %v5336, %v5544
      %5546 = vmatprep.mubr.f32.mxu0 %v3040
      %5547 = vmatmul.mubr.f32.gmra.mxu0 %v2336
      %v5548 = vpop.f32.mrf.mxu0
      %v5549 = vadd.f32 %v5340, %v5548
      %v5550 = vpop.f32.mrf.mxu0
      %v5551 = vadd.f32 %v5342, %v5550
      %5552 = vmatprep.mubr.f32.mxu0 %v3043
      %5553 = vmatmul.mubr.f32.gmra.mxu0 %v2340
      %v5554 = vpop.f32.mrf.mxu0
      %v5555 = vadd.f32 %v5346, %v5554
      %v5556 = vpop.f32.mrf.mxu0
      %v5557 = vadd.f32 %v5348, %v5556
      %5558 = vdwg.mxu0
      %s5559 = scalar_lea.vmem %s462, 4992
      %v5560 = vld [vmem:[%s5559] sm:$0xff]
      %v5561 = vld [vmem:[%s5559 + $0x8] sm:$0xff]
      %v5562 = vld [vmem:[%s5559 + $0x10] sm:$0xff]
      %v5563 = vld [vmem:[%s5559 + $0x18] sm:$0xff]
      %v5564 = vld [vmem:[%s5559 + $0x20] sm:$0xff]
      %v5565 = vld [vmem:[%s5559 + $0x28] sm:$0xff]
      %v5566 = vld [vmem:[%s5559 + $0x30] sm:$0xff]
      %v5567 = vld [vmem:[%s5559 + $0x38] sm:$0xff]
      %v5568 = vld [vmem:[%s5559 + $0x40] sm:$0xff]
      %v5569 = vld [vmem:[%s5559 + $0x48] sm:$0xff]
      %v5570 = vld [vmem:[%s5559 + $0x50] sm:$0xff]
      %v5571 = vld [vmem:[%s5559 + $0x58] sm:$0xff]
      %v5572 = vld [vmem:[%s5559 + $0x60] sm:$0xff]
      %v5573 = vld [vmem:[%s5559 + $0x68] sm:$0xff]
      %v5574 = vld [vmem:[%s5559 + $0x70] sm:$0xff]
      %v5575 = vld [vmem:[%s5559 + $0x78] sm:$0xff]
      %v5576 = vld [vmem:[%s5559 + $0x80] sm:$0xff]
      %v5577 = vld [vmem:[%s5559 + $0x88] sm:$0xff]
      %v5578 = vld [vmem:[%s5559 + $0x90] sm:$0xff]
      %v5579 = vld [vmem:[%s5559 + $0x98] sm:$0xff]
      %v5580 = vld [vmem:[%s5559 + $0xa0] sm:$0xff]
      %v5581 = vld [vmem:[%s5559 + $0xa8] sm:$0xff]
      %v5582 = vld [vmem:[%s5559 + $0xb0] sm:$0xff]
      %v5583 = vld [vmem:[%s5559 + $0xb8] sm:$0xff]
      %v5584 = vld [vmem:[%s5559 + $0xc0] sm:$0xff]
      %v5585 = vld [vmem:[%s5559 + $0xc8] sm:$0xff]
      %v5586 = vld [vmem:[%s5559 + $0xd0] sm:$0xff]
      %v5587 = vld [vmem:[%s5559 + $0xd8] sm:$0xff]
      %v5588 = vld [vmem:[%s5559 + $0xe0] sm:$0xff]
      %v5589 = vld [vmem:[%s5559 + $0xe8] sm:$0xff]
      %v5590 = vld [vmem:[%s5559 + $0xf0] sm:$0xff]
      %v5591 = vld [vmem:[%s5559 + $0xf8] sm:$0xff]
      %v5592 = vld [vmem:[%s5559 + $0x100] sm:$0xff]
      %v5593 = vld [vmem:[%s5559 + $0x108] sm:$0xff]
      %v5594 = vld [vmem:[%s5559 + $0x110] sm:$0xff]
      %v5595 = vld [vmem:[%s5559 + $0x118] sm:$0xff]
      %v5596 = vld [vmem:[%s5559 + $0x120] sm:$0xff]
      %v5597 = vld [vmem:[%s5559 + $0x128] sm:$0xff]
      %v5598 = vld [vmem:[%s5559 + $0x130] sm:$0xff]
      %v5599 = vld [vmem:[%s5559 + $0x138] sm:$0xff]
      %v5600 = vld [vmem:[%s5559 + $0x140] sm:$0xff]
      %v5601 = vld [vmem:[%s5559 + $0x148] sm:$0xff]
      %v5602 = vld [vmem:[%s5559 + $0x150] sm:$0xff]
      %v5603 = vld [vmem:[%s5559 + $0x158] sm:$0xff]
      %v5604 = vld [vmem:[%s5559 + $0x160] sm:$0xff]
      %v5605 = vld [vmem:[%s5559 + $0x168] sm:$0xff]
      %v5606 = vld [vmem:[%s5559 + $0x170] sm:$0xff]
      %v5607 = vld [vmem:[%s5559 + $0x178] sm:$0xff]
      %v5608 = vld [vmem:[%s5559 + $0x180] sm:$0xff]
      %v5609 = vld [vmem:[%s5559 + $0x188] sm:$0xff]
      %v5610 = vld [vmem:[%s5559 + $0x190] sm:$0xff]
      %v5611 = vld [vmem:[%s5559 + $0x198] sm:$0xff]
      %v5612 = vld [vmem:[%s5559 + $0x1a0] sm:$0xff]
      %v5613 = vld [vmem:[%s5559 + $0x1a8] sm:$0xff]
      %v5614 = vld [vmem:[%s5559 + $0x1b0] sm:$0xff]
      %v5615 = vld [vmem:[%s5559 + $0x1b8] sm:$0xff]
      %v5616 = vld [vmem:[%s5559 + $0x1c0] sm:$0xff]
      %v5617 = vld [vmem:[%s5559 + $0x1c8] sm:$0xff]
      %v5618 = vld [vmem:[%s5559 + $0x1d0] sm:$0xff]
      %v5619 = vld [vmem:[%s5559 + $0x1d8] sm:$0xff]
      %v5620 = vld [vmem:[%s5559 + $0x1e0] sm:$0xff]
      %v5621 = vld [vmem:[%s5559 + $0x1e8] sm:$0xff]
      %v5622 = vld [vmem:[%s5559 + $0x1f0] sm:$0xff]
      %v5623 = vld [vmem:[%s5559 + $0x1f8] sm:$0xff]
      %v5624 = vld [vmem:[%s5559 + $0x200] sm:$0xff]
      %v5625 = vld [vmem:[%s5559 + $0x208] sm:$0xff]
      %v5626 = vld [vmem:[%s5559 + $0x210] sm:$0xff]
      %v5627 = vld [vmem:[%s5559 + $0x218] sm:$0xff]
      %v5628 = vld [vmem:[%s5559 + $0x220] sm:$0xff]
      %v5629 = vld [vmem:[%s5559 + $0x228] sm:$0xff]
      %v5630 = vld [vmem:[%s5559 + $0x230] sm:$0xff]
      %v5631 = vld [vmem:[%s5559 + $0x238] sm:$0xff]
      %v5632 = vld [vmem:[%s5559 + $0x240] sm:$0xff]
      %v5633 = vld [vmem:[%s5559 + $0x248] sm:$0xff]
      %v5634 = vld [vmem:[%s5559 + $0x250] sm:$0xff]
      %v5635 = vld [vmem:[%s5559 + $0x258] sm:$0xff]
      %v5636 = vld [vmem:[%s5559 + $0x260] sm:$0xff]
      %v5637 = vld [vmem:[%s5559 + $0x268] sm:$0xff]
      %v5638 = vld [vmem:[%s5559 + $0x270] sm:$0xff]
      %v5639 = vld [vmem:[%s5559 + $0x278] sm:$0xff]
      %v5640 = vld [vmem:[%s5559 + $0x280] sm:$0xff]
      %v5641 = vld [vmem:[%s5559 + $0x288] sm:$0xff]
      %v5642 = vld [vmem:[%s5559 + $0x290] sm:$0xff]
      %v5643 = vld [vmem:[%s5559 + $0x298] sm:$0xff]
      %v5644 = vld [vmem:[%s5559 + $0x2a0] sm:$0xff]
      %v5645 = vld [vmem:[%s5559 + $0x2a8] sm:$0xff]
      %v5646 = vld [vmem:[%s5559 + $0x2b0] sm:$0xff]
      %v5647 = vld [vmem:[%s5559 + $0x2b8] sm:$0xff]
      %v5648 = vld [vmem:[%s5559 + $0x2c0] sm:$0xff]
      %v5649 = vld [vmem:[%s5559 + $0x2c8] sm:$0xff]
      %v5650 = vld [vmem:[%s5559 + $0x2d0] sm:$0xff]
      %v5651 = vld [vmem:[%s5559 + $0x2d8] sm:$0xff]
      %v5652 = vld [vmem:[%s5559 + $0x2e0] sm:$0xff]
      %v5653 = vld [vmem:[%s5559 + $0x2e8] sm:$0xff]
      %v5654 = vld [vmem:[%s5559 + $0x2f0] sm:$0xff]
      %v5655 = vld [vmem:[%s5559 + $0x2f8] sm:$0xff]
      %v5656 = vld [vmem:[%s5559 + $0x300] sm:$0xff]
      %v5657 = vld [vmem:[%s5559 + $0x308] sm:$0xff]
      %v5658 = vld [vmem:[%s5559 + $0x310] sm:$0xff]
      %v5659 = vld [vmem:[%s5559 + $0x318] sm:$0xff]
      %v5660 = vld [vmem:[%s5559 + $0x320] sm:$0xff]
      %v5661 = vld [vmem:[%s5559 + $0x328] sm:$0xff]
      %v5662 = vld [vmem:[%s5559 + $0x330] sm:$0xff]
      %v5663 = vld [vmem:[%s5559 + $0x338] sm:$0xff]
      %v5664 = vld [vmem:[%s5559 + $0x340] sm:$0xff]
      %v5665 = vld [vmem:[%s5559 + $0x348] sm:$0xff]
      %v5666 = vld [vmem:[%s5559 + $0x350] sm:$0xff]
      %v5667 = vld [vmem:[%s5559 + $0x358] sm:$0xff]
      %v5668 = vld [vmem:[%s5559 + $0x360] sm:$0xff]
      %v5669 = vld [vmem:[%s5559 + $0x368] sm:$0xff]
      %v5670 = vld [vmem:[%s5559 + $0x370] sm:$0xff]
      %v5671 = vld [vmem:[%s5559 + $0x378] sm:$0xff]
      %v5672 = vld [vmem:[%s5559 + $0x380] sm:$0xff]
      %v5673 = vld [vmem:[%s5559 + $0x388] sm:$0xff]
      %v5674 = vld [vmem:[%s5559 + $0x390] sm:$0xff]
      %v5675 = vld [vmem:[%s5559 + $0x398] sm:$0xff]
      %v5676 = vld [vmem:[%s5559 + $0x3a0] sm:$0xff]
      %v5677 = vld [vmem:[%s5559 + $0x3a8] sm:$0xff]
      %v5678 = vld [vmem:[%s5559 + $0x3b0] sm:$0xff]
      %v5679 = vld [vmem:[%s5559 + $0x3b8] sm:$0xff]
      %v5680 = vld [vmem:[%s5559 + $0x3c0] sm:$0xff]
      %v5681 = vld [vmem:[%s5559 + $0x3c8] sm:$0xff]
      %v5682 = vld [vmem:[%s5559 + $0x3d0] sm:$0xff]
      %v5683 = vld [vmem:[%s5559 + $0x3d8] sm:$0xff]
      %v5684 = vld [vmem:[%s5559 + $0x3e0] sm:$0xff]
      %v5685 = vld [vmem:[%s5559 + $0x3e8] sm:$0xff]
      %v5686 = vld [vmem:[%s5559 + $0x3f0] sm:$0xff]
      %v5687 = vld [vmem:[%s5559 + $0x3f8] sm:$0xff]
      %v5688 = vld [vmem:[%s5559 + $0x400] sm:$0xff]
      %v5689 = vld [vmem:[%s5559 + $0x408] sm:$0xff]
      %v5690 = vld [vmem:[%s5559 + $0x410] sm:$0xff]
      %v5691 = vld [vmem:[%s5559 + $0x418] sm:$0xff]
      %v5692 = vld [vmem:[%s5559 + $0x420] sm:$0xff]
      %v5693 = vld [vmem:[%s5559 + $0x428] sm:$0xff]
      %v5694 = vld [vmem:[%s5559 + $0x430] sm:$0xff]
      %v5695 = vld [vmem:[%s5559 + $0x438] sm:$0xff]
      %v5696 = vld [vmem:[%s5559 + $0x440] sm:$0xff]
      %v5697 = vld [vmem:[%s5559 + $0x448] sm:$0xff]
      %v5698 = vld [vmem:[%s5559 + $0x450] sm:$0xff]
      %v5699 = vld [vmem:[%s5559 + $0x458] sm:$0xff]
      %v5700 = vld [vmem:[%s5559 + $0x460] sm:$0xff]
      %v5701 = vld [vmem:[%s5559 + $0x468] sm:$0xff]
      %v5702 = vld [vmem:[%s5559 + $0x470] sm:$0xff]
      %v5703 = vld [vmem:[%s5559 + $0x478] sm:$0xff]
      %v5704 = vld [vmem:[%s5559 + $0x480] sm:$0xff]
      %v5705 = vld [vmem:[%s5559 + $0x488] sm:$0xff]
      %v5706 = vld [vmem:[%s5559 + $0x490] sm:$0xff]
      %v5707 = vld [vmem:[%s5559 + $0x498] sm:$0xff]
      %v5708 = vld [vmem:[%s5559 + $0x4a0] sm:$0xff]
      %v5709 = vld [vmem:[%s5559 + $0x4a8] sm:$0xff]
      %v5710 = vld [vmem:[%s5559 + $0x4b0] sm:$0xff]
      %v5711 = vld [vmem:[%s5559 + $0x4b8] sm:$0xff]
      %v5712 = vld [vmem:[%s5559 + $0x4c0] sm:$0xff]
      %v5713 = vld [vmem:[%s5559 + $0x4c8] sm:$0xff]
      %v5714 = vld [vmem:[%s5559 + $0x4d0] sm:$0xff]
      %v5715 = vld [vmem:[%s5559 + $0x4d8] sm:$0xff]
      %v5716 = vld [vmem:[%s5559 + $0x4e0] sm:$0xff]
      %v5717 = vld [vmem:[%s5559 + $0x4e8] sm:$0xff]
      %v5718 = vld [vmem:[%s5559 + $0x4f0] sm:$0xff]
      %v5719 = vld [vmem:[%s5559 + $0x4f8] sm:$0xff]
      %v5720 = vld [vmem:[%s5559 + $0x500] sm:$0xff]
      %v5721 = vld [vmem:[%s5559 + $0x508] sm:$0xff]
      %v5722 = vld [vmem:[%s5559 + $0x510] sm:$0xff]
      %v5723 = vld [vmem:[%s5559 + $0x518] sm:$0xff]
      %v5724 = vld [vmem:[%s5559 + $0x520] sm:$0xff]
      %v5725 = vld [vmem:[%s5559 + $0x528] sm:$0xff]
      %v5726 = vld [vmem:[%s5559 + $0x530] sm:$0xff]
      %v5727 = vld [vmem:[%s5559 + $0x538] sm:$0xff]
      %v5728 = vld [vmem:[%s5559 + $0x540] sm:$0xff]
      %v5729 = vld [vmem:[%s5559 + $0x548] sm:$0xff]
      %v5730 = vld [vmem:[%s5559 + $0x550] sm:$0xff]
      %v5731 = vld [vmem:[%s5559 + $0x558] sm:$0xff]
      %v5732 = vld [vmem:[%s5559 + $0x560] sm:$0xff]
      %v5733 = vld [vmem:[%s5559 + $0x568] sm:$0xff]
      %v5734 = vld [vmem:[%s5559 + $0x570] sm:$0xff]
      %v5735 = vld [vmem:[%s5559 + $0x578] sm:$0xff]
      %v5736 = vld [vmem:[%s5559 + $0x580] sm:$0xff]
      %v5737 = vld [vmem:[%s5559 + $0x588] sm:$0xff]
      %v5738 = vld [vmem:[%s5559 + $0x590] sm:$0xff]
      %v5739 = vld [vmem:[%s5559 + $0x598] sm:$0xff]
      %v5740 = vld [vmem:[%s5559 + $0x5a0] sm:$0xff]
      %v5741 = vld [vmem:[%s5559 + $0x5a8] sm:$0xff]
      %v5742 = vld [vmem:[%s5559 + $0x5b0] sm:$0xff]
      %v5743 = vld [vmem:[%s5559 + $0x5b8] sm:$0xff]
      %v5744 = vld [vmem:[%s5559 + $0x5c0] sm:$0xff]
      %v5745 = vld [vmem:[%s5559 + $0x5c8] sm:$0xff]
      %v5746 = vld [vmem:[%s5559 + $0x5d0] sm:$0xff]
      %v5747 = vld [vmem:[%s5559 + $0x5d8] sm:$0xff]
      %v5748 = vld [vmem:[%s5559 + $0x5e0] sm:$0xff]
      %v5749 = vld [vmem:[%s5559 + $0x5e8] sm:$0xff]
      %v5750 = vld [vmem:[%s5559 + $0x5f0] sm:$0xff]
      %v5751 = vld [vmem:[%s5559 + $0x5f8] sm:$0xff]
      %v5752 = vld [vmem:[%s5559 + $0x600] sm:$0xff]
      %v5753 = vld [vmem:[%s5559 + $0x608] sm:$0xff]
      %v5754 = vld [vmem:[%s5559 + $0x610] sm:$0xff]
      %v5755 = vld [vmem:[%s5559 + $0x618] sm:$0xff]
      %v5756 = vld [vmem:[%s5559 + $0x620] sm:$0xff]
      %v5757 = vld [vmem:[%s5559 + $0x628] sm:$0xff]
      %v5758 = vld [vmem:[%s5559 + $0x630] sm:$0xff]
      %v5759 = vld [vmem:[%s5559 + $0x638] sm:$0xff]
      %v5760 = vld [vmem:[%s5559 + $0x640] sm:$0xff]
      %v5761 = vld [vmem:[%s5559 + $0x648] sm:$0xff]
      %v5762 = vld [vmem:[%s5559 + $0x650] sm:$0xff]
      %v5763 = vld [vmem:[%s5559 + $0x658] sm:$0xff]
      %v5764 = vld [vmem:[%s5559 + $0x660] sm:$0xff]
      %v5765 = vld [vmem:[%s5559 + $0x668] sm:$0xff]
      %v5766 = vld [vmem:[%s5559 + $0x670] sm:$0xff]
      %v5767 = vld [vmem:[%s5559 + $0x678] sm:$0xff]
      %v5768 = vld [vmem:[%s5559 + $0x680] sm:$0xff]
      %v5769 = vld [vmem:[%s5559 + $0x688] sm:$0xff]
      %v5770 = vld [vmem:[%s5559 + $0x690] sm:$0xff]
      %v5771 = vld [vmem:[%s5559 + $0x698] sm:$0xff]
      %v5772 = vld [vmem:[%s5559 + $0x6a0] sm:$0xff]
      %v5773 = vld [vmem:[%s5559 + $0x6a8] sm:$0xff]
      %v5774 = vld [vmem:[%s5559 + $0x6b0] sm:$0xff]
      %v5775 = vld [vmem:[%s5559 + $0x6b8] sm:$0xff]
      %v5776 = vld [vmem:[%s5559 + $0x6c0] sm:$0xff]
      %v5777 = vld [vmem:[%s5559 + $0x6c8] sm:$0xff]
      %v5778 = vld [vmem:[%s5559 + $0x6d0] sm:$0xff]
      %v5779 = vld [vmem:[%s5559 + $0x6d8] sm:$0xff]
      %v5780 = vld [vmem:[%s5559 + $0x6e0] sm:$0xff]
      %v5781 = vld [vmem:[%s5559 + $0x6e8] sm:$0xff]
      %v5782 = vld [vmem:[%s5559 + $0x6f0] sm:$0xff]
      %v5783 = vld [vmem:[%s5559 + $0x6f8] sm:$0xff]
      %v5784 = vld [vmem:[%s5559 + $0x700] sm:$0xff]
      %v5785 = vld [vmem:[%s5559 + $0x708] sm:$0xff]
      %v5786 = vld [vmem:[%s5559 + $0x710] sm:$0xff]
      %v5787 = vld [vmem:[%s5559 + $0x718] sm:$0xff]
      %v5788 = vld [vmem:[%s5559 + $0x720] sm:$0xff]
      %v5789 = vld [vmem:[%s5559 + $0x728] sm:$0xff]
      %v5790 = vld [vmem:[%s5559 + $0x730] sm:$0xff]
      %v5791 = vld [vmem:[%s5559 + $0x738] sm:$0xff]
      %v5792 = vld [vmem:[%s5559 + $0x740] sm:$0xff]
      %v5793 = vld [vmem:[%s5559 + $0x748] sm:$0xff]
      %v5794 = vld [vmem:[%s5559 + $0x750] sm:$0xff]
      %v5795 = vld [vmem:[%s5559 + $0x758] sm:$0xff]
      %v5796 = vld [vmem:[%s5559 + $0x760] sm:$0xff]
      %v5797 = vld [vmem:[%s5559 + $0x768] sm:$0xff]
      %v5798 = vld [vmem:[%s5559 + $0x770] sm:$0xff]
      %v5799 = vld [vmem:[%s5559 + $0x778] sm:$0xff]
      %v5800 = vld [vmem:[%s5559 + $0x780] sm:$0xff]
      %v5801 = vld [vmem:[%s5559 + $0x788] sm:$0xff]
      %v5802 = vld [vmem:[%s5559 + $0x790] sm:$0xff]
      %v5803 = vld [vmem:[%s5559 + $0x798] sm:$0xff]
      %v5804 = vld [vmem:[%s5559 + $0x7a0] sm:$0xff]
      %v5805 = vld [vmem:[%s5559 + $0x7a8] sm:$0xff]
      %v5806 = vld [vmem:[%s5559 + $0x7b0] sm:$0xff]
      %v5807 = vld [vmem:[%s5559 + $0x7b8] sm:$0xff]
      %v5808 = vld [vmem:[%s5559 + $0x7c0] sm:$0xff]
      %v5809 = vld [vmem:[%s5559 + $0x7c8] sm:$0xff]
      %v5810 = vld [vmem:[%s5559 + $0x7d0] sm:$0xff]
      %v5811 = vld [vmem:[%s5559 + $0x7d8] sm:$0xff]
      %v5812 = vld [vmem:[%s5559 + $0x7e0] sm:$0xff]
      %v5813 = vld [vmem:[%s5559 + $0x7e8] sm:$0xff]
      %v5814 = vld [vmem:[%s5559 + $0x7f0] sm:$0xff]
      %v5815 = vld [vmem:[%s5559 + $0x7f8] sm:$0xff]
      %v5816 = vld [vmem:[%s5559 + $0x800] sm:$0xff]
      %v5817 = vld [vmem:[%s5559 + $0x808] sm:$0xff]
      %v5818 = vld [vmem:[%s5559 + $0x810] sm:$0xff]
      %v5819 = vld [vmem:[%s5559 + $0x818] sm:$0xff]
      %v5820 = vld [vmem:[%s5559 + $0x820] sm:$0xff]
      %v5821 = vld [vmem:[%s5559 + $0x828] sm:$0xff]
      %v5822 = vld [vmem:[%s5559 + $0x830] sm:$0xff]
      %v5823 = vld [vmem:[%s5559 + $0x838] sm:$0xff]
      %v5824 = vld [vmem:[%s5559 + $0x840] sm:$0xff]
      %v5825 = vld [vmem:[%s5559 + $0x848] sm:$0xff]
      %v5826 = vld [vmem:[%s5559 + $0x850] sm:$0xff]
      %v5827 = vld [vmem:[%s5559 + $0x858] sm:$0xff]
      %v5828 = vld [vmem:[%s5559 + $0x860] sm:$0xff]
      %v5829 = vld [vmem:[%s5559 + $0x868] sm:$0xff]
      %v5830 = vld [vmem:[%s5559 + $0x870] sm:$0xff]
      %v5831 = vld [vmem:[%s5559 + $0x878] sm:$0xff]
      %v5832 = vld [vmem:[%s5559 + $0x880] sm:$0xff]
      %v5833 = vld [vmem:[%s5559 + $0x888] sm:$0xff]
      %v5834 = vld [vmem:[%s5559 + $0x890] sm:$0xff]
      %v5835 = vld [vmem:[%s5559 + $0x898] sm:$0xff]
      %v5836 = vld [vmem:[%s5559 + $0x8a0] sm:$0xff]
      %v5837 = vld [vmem:[%s5559 + $0x8a8] sm:$0xff]
      %v5838 = vld [vmem:[%s5559 + $0x8b0] sm:$0xff]
      %v5839 = vld [vmem:[%s5559 + $0x8b8] sm:$0xff]
      %v5840 = vld [vmem:[%s5559 + $0x8c0] sm:$0xff]
      %v5841 = vld [vmem:[%s5559 + $0x8c8] sm:$0xff]
      %v5842 = vld [vmem:[%s5559 + $0x8d0] sm:$0xff]
      %v5843 = vld [vmem:[%s5559 + $0x8d8] sm:$0xff]
      %v5844 = vld [vmem:[%s5559 + $0x8e0] sm:$0xff]
      %v5845 = vld [vmem:[%s5559 + $0x8e8] sm:$0xff]
      %v5846 = vld [vmem:[%s5559 + $0x8f0] sm:$0xff]
      %v5847 = vld [vmem:[%s5559 + $0x8f8] sm:$0xff]
      %v5848 = vld [vmem:[%s5559 + $0x900] sm:$0xff]
      %v5849 = vld [vmem:[%s5559 + $0x908] sm:$0xff]
      %v5850 = vld [vmem:[%s5559 + $0x910] sm:$0xff]
      %v5851 = vld [vmem:[%s5559 + $0x918] sm:$0xff]
      %v5852 = vld [vmem:[%s5559 + $0x920] sm:$0xff]
      %v5853 = vld [vmem:[%s5559 + $0x928] sm:$0xff]
      %v5854 = vld [vmem:[%s5559 + $0x930] sm:$0xff]
      %v5855 = vld [vmem:[%s5559 + $0x938] sm:$0xff]
      %v5856 = vld [vmem:[%s5559 + $0x940] sm:$0xff]
      %v5857 = vld [vmem:[%s5559 + $0x948] sm:$0xff]
      %v5858 = vld [vmem:[%s5559 + $0x950] sm:$0xff]
      %v5859 = vld [vmem:[%s5559 + $0x958] sm:$0xff]
      %v5860 = vld [vmem:[%s5559 + $0x960] sm:$0xff]
      %v5861 = vld [vmem:[%s5559 + $0x968] sm:$0xff]
      %v5862 = vld [vmem:[%s5559 + $0x970] sm:$0xff]
      %v5863 = vld [vmem:[%s5559 + $0x978] sm:$0xff]
      %v5864 = vld [vmem:[%s5559 + $0x980] sm:$0xff]
      %v5865 = vld [vmem:[%s5559 + $0x988] sm:$0xff]
      %v5866 = vld [vmem:[%s5559 + $0x990] sm:$0xff]
      %v5867 = vld [vmem:[%s5559 + $0x998] sm:$0xff]
      %v5868 = vld [vmem:[%s5559 + $0x9a0] sm:$0xff]
      %v5869 = vld [vmem:[%s5559 + $0x9a8] sm:$0xff]
      %v5870 = vld [vmem:[%s5559 + $0x9b0] sm:$0xff]
      %v5871 = vld [vmem:[%s5559 + $0x9b8] sm:$0xff]
      %v5873 = vsel %vm2975, %v2349, 0
      %5875 = vmatprep.subr.mxu0 %v5651
      %5876 = vmatpush1.msra.mxu0 %v5650
      %5877 = vmatprep.subr.mxu0 %v5645
      %5878 = vmatpush1.msra.mxu0 %v5644
      %5879 = vmatprep.subr.mxu0 %v5639
      %5880 = vmatpush1.msra.mxu0 %v5638
      %5881 = vmatprep.subr.mxu0 %v5633
      %5882 = vmatpush1.msra.mxu0 %v5632
      %5883 = vmatprep.subr.mxu0 %v5627
      %5884 = vmatpush1.msra.mxu0 %v5626
      %5885 = vmatprep.subr.mxu0 %v5621
      %5886 = vmatpush1.msra.mxu0 %v5620
      %5887 = vmatprep.subr.mxu0 %v5615
      %5888 = vmatpush1.msra.mxu0 %v5614
      %5889 = vmatprep.subr.mxu0 %v5609
      %5890 = vmatpush1.msra.mxu0 %v5608
      %5891 = vmatprep.subr.mxu0 %v5603
      %5892 = vmatpush1.msra.mxu0 %v5602
      %5893 = vmatprep.subr.mxu0 %v5597
      %5894 = vmatpush1.msra.mxu0 %v5596
      %5895 = vmatprep.subr.mxu0 %v5591
      %5896 = vmatpush1.msra.mxu0 %v5590
      %5897 = vmatprep.subr.mxu0 %v5585
      %5898 = vmatpush1.msra.mxu0 %v5584
      %5899 = vmatprep.subr.mxu0 %v5579
      %5900 = vmatpush1.msra.mxu0 %v5578
      %5901 = vmatprep.subr.mxu0 %v5573
      %5902 = vmatpush1.msra.mxu0 %v5572
      %5903 = vmatprep.subr.mxu0 %v5567
      %5904 = vmatpush1.msra.mxu0 %v5566
      %5905 = vmatprep.subr.mxu0 %v5561
      %5906 = vmatpush1.msra.mxu0 %v5560
      %5907 = vmatprep.subr.mxu0 %v5747
      %5908 = vmatpush2.msra.mxu0 %v5746
      %5909 = vmatprep.subr.mxu0 %v5741
      %5910 = vmatpush2.msra.mxu0 %v5740
      %5911 = vmatprep.subr.mxu0 %v5735
      %5912 = vmatpush2.msra.mxu0 %v5734
      %5913 = vmatprep.subr.mxu0 %v5729
      %5914 = vmatpush2.msra.mxu0 %v5728
      %5915 = vmatprep.subr.mxu0 %v5723
      %5916 = vmatpush2.msra.mxu0 %v5722
      %5917 = vmatprep.subr.mxu0 %v5717
      %5918 = vmatpush2.msra.mxu0 %v5716
      %5919 = vmatprep.subr.mxu0 %v5711
      %5920 = vmatpush2.msra.mxu0 %v5710
      %5921 = vmatprep.subr.mxu0 %v5705
      %5922 = vmatpush2.msra.mxu0 %v5704
      %5923 = vmatprep.subr.mxu0 %v5699
      %5924 = vmatpush2.msra.mxu0 %v5698
      %5925 = vmatprep.subr.mxu0 %v5693
      %5926 = vmatpush2.msra.mxu0 %v5692
      %5927 = vmatprep.subr.mxu0 %v5687
      %5928 = vmatpush2.msra.mxu0 %v5686
      %5929 = vmatprep.subr.mxu0 %v5681
      %5930 = vmatpush2.msra.mxu0 %v5680
      %5931 = vmatprep.subr.mxu0 %v5675
      %5932 = vmatpush2.msra.mxu0 %v5674
      %5933 = vmatprep.subr.mxu0 %v5669
      %5934 = vmatpush2.msra.mxu0 %v5668
      %5935 = vmatprep.subr.mxu0 %v5663
      %5936 = vmatpush2.msra.mxu0 %v5662
      %5937 = vmatprep.subr.mxu0 %v5657
      %5938 = vmatpush2.msra.mxu0 %v5656
      %5939 = vmatprep.mubr.f32.mxu0 %v2255
      %5940 = vmatmul.mubr.f32.gmra.mxu0 %v2254
      %v5941 = vpop.f32.mrf.mxu0
      %v5942 = vadd.f32 0.0, %v5941
      %v5943 = vpop.f32.mrf.mxu0
      %v5944 = vadd.f32 0.0, %v5943
      %5945 = vmatprep.mubr.f32.mxu0 %v2259
      %5946 = vmatmul.mubr.f32.gmra.mxu0 %v2258
      %v5947 = vpop.f32.mrf.mxu0
      %v5948 = vadd.f32 0.0, %v5947
      %v5949 = vpop.f32.mrf.mxu0
      %v5950 = vadd.f32 0.0, %v5949
      %5951 = vmatprep.mubr.f32.mxu0 %v2263
      %5952 = vmatmul.mubr.f32.gmra.mxu0 %v2262
      %v5953 = vpop.f32.mrf.mxu0
      %v5954 = vadd.f32 0.0, %v5953
      %v5955 = vpop.f32.mrf.mxu0
      %v5956 = vadd.f32 0.0, %v5955
      %5957 = vmatprep.mubr.f32.mxu0 %v2267
      %5958 = vmatmul.mubr.f32.gmra.mxu0 %v2266
      %v5959 = vpop.f32.mrf.mxu0
      %v5960 = vadd.f32 0.0, %v5959
      %v5961 = vpop.f32.mrf.mxu0
      %v5962 = vadd.f32 0.0, %v5961
      %5963 = vmatprep.mubr.f32.mxu0 %v2271
      %5964 = vmatmul.mubr.f32.gmra.mxu0 %v2270
      %v5965 = vpop.f32.mrf.mxu0
      %v5966 = vadd.f32 0.0, %v5965
      %v5967 = vpop.f32.mrf.mxu0
      %v5968 = vadd.f32 0.0, %v5967
      %5969 = vmatprep.mubr.f32.mxu0 %v2275
      %5970 = vmatmul.mubr.f32.gmra.mxu0 %v2274
      %v5971 = vpop.f32.mrf.mxu0
      %v5972 = vadd.f32 0.0, %v5971
      %v5973 = vpop.f32.mrf.mxu0
      %v5974 = vadd.f32 0.0, %v5973
      %5975 = vmatprep.mubr.f32.mxu0 %v2279
      %5976 = vmatmul.mubr.f32.gmra.mxu0 %v2278
      %v5977 = vpop.f32.mrf.mxu0
      %v5978 = vadd.f32 0.0, %v5977
      %v5979 = vpop.f32.mrf.mxu0
      %v5980 = vadd.f32 0.0, %v5979
      %5981 = vmatprep.mubr.f32.mxu0 %v2283
      %5982 = vmatmul.mubr.f32.gmra.mxu0 %v2282
      %v5983 = vpop.f32.mrf.mxu0
      %v5984 = vadd.f32 0.0, %v5983
      %v5985 = vpop.f32.mrf.mxu0
      %v5986 = vadd.f32 0.0, %v5985
      %5987 = vmatprep.mubr.f32.mxu0 %v2287
      %5988 = vmatmul.mubr.f32.gmra.mxu0 %v2286
      %v5989 = vpop.f32.mrf.mxu0
      %v5990 = vadd.f32 0.0, %v5989
      %v5991 = vpop.f32.mrf.mxu0
      %v5992 = vadd.f32 0.0, %v5991
      %5993 = vmatprep.mubr.f32.mxu0 %v2291
      %5994 = vmatmul.mubr.f32.gmra.mxu0 %v2290
      %v5995 = vpop.f32.mrf.mxu0
      %v5996 = vadd.f32 0.0, %v5995
      %v5997 = vpop.f32.mrf.mxu0
      %v5998 = vadd.f32 0.0, %v5997
      %5999 = vmatprep.mubr.f32.mxu0 %v2295
      %6000 = vmatmul.mubr.f32.gmra.mxu0 %v2294
      %v6001 = vpop.f32.mrf.mxu0
      %v6002 = vadd.f32 0.0, %v6001
      %v6003 = vpop.f32.mrf.mxu0
      %v6004 = vadd.f32 0.0, %v6003
      %6005 = vmatprep.mubr.f32.mxu0 %v2299
      %6006 = vmatmul.mubr.f32.gmra.mxu0 %v2298
      %v6007 = vpop.f32.mrf.mxu0
      %v6008 = vadd.f32 0.0, %v6007
      %v6009 = vpop.f32.mrf.mxu0
      %v6010 = vadd.f32 0.0, %v6009
      %6011 = vmatprep.mubr.f32.mxu0 %v2303
      %6012 = vmatmul.mubr.f32.gmra.mxu0 %v2302
      %v6013 = vpop.f32.mrf.mxu0
      %v6014 = vadd.f32 0.0, %v6013
      %v6015 = vpop.f32.mrf.mxu0
      %v6016 = vadd.f32 0.0, %v6015
      %6017 = vmatprep.mubr.f32.mxu0 %v2307
      %6018 = vmatmul.mubr.f32.gmra.mxu0 %v2306
      %v6019 = vpop.f32.mrf.mxu0
      %v6020 = vadd.f32 0.0, %v6019
      %v6021 = vpop.f32.mrf.mxu0
      %v6022 = vadd.f32 0.0, %v6021
      %6023 = vmatprep.mubr.f32.mxu0 %v2311
      %6024 = vmatmul.mubr.f32.gmra.mxu0 %v2310
      %v6025 = vpop.f32.mrf.mxu0
      %v6026 = vadd.f32 0.0, %v6025
      %v6027 = vpop.f32.mrf.mxu0
      %v6028 = vadd.f32 0.0, %v6027
      %6029 = vmatprep.mubr.f32.mxu0 %v2315
      %6030 = vmatmul.mubr.f32.gmra.mxu0 %v2314
      %v6031 = vpop.f32.mrf.mxu0
      %v6032 = vadd.f32 0.0, %v6031
      %v6033 = vpop.f32.mrf.mxu0
      %v6034 = vadd.f32 0.0, %v6033
      %6035 = vmatprep.mubr.f32.mxu0 %v2319
      %6036 = vmatmul.mubr.f32.gmra.mxu0 %v2318
      %v6037 = vpop.f32.mrf.mxu0
      %v6038 = vadd.f32 0.0, %v6037
      %v6039 = vpop.f32.mrf.mxu0
      %v6040 = vadd.f32 0.0, %v6039
      %6041 = vmatprep.mubr.f32.mxu0 %v2323
      %6042 = vmatmul.mubr.f32.gmra.mxu0 %v2322
      %v6043 = vpop.f32.mrf.mxu0
      %v6044 = vadd.f32 0.0, %v6043
      %v6045 = vpop.f32.mrf.mxu0
      %v6046 = vadd.f32 0.0, %v6045
      %6047 = vmatprep.mubr.f32.mxu0 %v2327
      %6048 = vmatmul.mubr.f32.gmra.mxu0 %v2326
      %v6049 = vpop.f32.mrf.mxu0
      %v6050 = vadd.f32 0.0, %v6049
      %v6051 = vpop.f32.mrf.mxu0
      %v6052 = vadd.f32 0.0, %v6051
      %6053 = vmatprep.mubr.f32.mxu0 %v2331
      %6054 = vmatmul.mubr.f32.gmra.mxu0 %v2330
      %v6055 = vpop.f32.mrf.mxu0
      %v6056 = vadd.f32 0.0, %v6055
      %v6057 = vpop.f32.mrf.mxu0
      %v6058 = vadd.f32 0.0, %v6057
      %6059 = vmatprep.mubr.f32.mxu0 %v2335
      %6060 = vmatmul.mubr.f32.gmra.mxu0 %v2334
      %v6061 = vpop.f32.mrf.mxu0
      %v6062 = vadd.f32 0.0, %v6061
      %v6063 = vpop.f32.mrf.mxu0
      %v6064 = vadd.f32 0.0, %v6063
      %6065 = vmatprep.mubr.f32.mxu0 %v2339
      %6066 = vmatmul.mubr.f32.gmra.mxu0 %v2338
      %v6067 = vpop.f32.mrf.mxu0
      %v6068 = vadd.f32 0.0, %v6067
      %v6069 = vpop.f32.mrf.mxu0
      %v6070 = vadd.f32 0.0, %v6069
      %6071 = vmatprep.mubr.f32.mxu0 %v2343
      %6072 = vmatmul.mubr.f32.gmra.mxu0 %v2342
      %v6073 = vpop.f32.mrf.mxu0
      %v6074 = vadd.f32 0.0, %v6073
      %v6075 = vpop.f32.mrf.mxu0
      %v6076 = vadd.f32 0.0, %v6075
      %6077 = vmatprep.mubr.f32.mxu0 %v2347
      %6078 = vmatmul.mubr.f32.gmra.mxu0 %v2346
      %v6079 = vpop.f32.mrf.mxu0
      %v6080 = vadd.f32 0.0, %v6079
      %v6081 = vpop.f32.mrf.mxu0
      %v6082 = vadd.f32 0.0, %v6081
      %6083 = vdwg.mxu0
      %6084 = vmatprep.subr.mxu0 %v5843
      %6085 = vmatpush1.msra.mxu0 %v5842
      %6086 = vmatprep.subr.mxu0 %v5837
      %6087 = vmatpush1.msra.mxu0 %v5836
      %6088 = vmatprep.subr.mxu0 %v5831
      %6089 = vmatpush1.msra.mxu0 %v5830
      %6090 = vmatprep.subr.mxu0 %v5825
      %6091 = vmatpush1.msra.mxu0 %v5824
      %6092 = vmatprep.subr.mxu0 %v5819
      %6093 = vmatpush1.msra.mxu0 %v5818
      %6094 = vmatprep.subr.mxu0 %v5813
      %6095 = vmatpush1.msra.mxu0 %v5812
      %6096 = vmatprep.subr.mxu0 %v5807
      %6097 = vmatpush1.msra.mxu0 %v5806
      %6098 = vmatprep.subr.mxu0 %v5801
      %6099 = vmatpush1.msra.mxu0 %v5800
      %6100 = vmatprep.subr.mxu0 %v5795
      %6101 = vmatpush1.msra.mxu0 %v5794
      %6102 = vmatprep.subr.mxu0 %v5789
      %6103 = vmatpush1.msra.mxu0 %v5788
      %6104 = vmatprep.subr.mxu0 %v5783
      %6105 = vmatpush1.msra.mxu0 %v5782
      %6106 = vmatprep.subr.mxu0 %v5777
      %6107 = vmatpush1.msra.mxu0 %v5776
      %6108 = vmatprep.subr.mxu0 %v5771
      %6109 = vmatpush1.msra.mxu0 %v5770
      %6110 = vmatprep.subr.mxu0 %v5765
      %6111 = vmatpush1.msra.mxu0 %v5764
      %6112 = vmatprep.subr.mxu0 %v5759
      %6113 = vmatpush1.msra.mxu0 %v5758
      %6114 = vmatprep.subr.mxu0 %v5753
      %6115 = vmatpush1.msra.mxu0 %v5752
      %6116 = vmatprep.subr.mxu0 0.0
      %6117 = vmatpush2.msra.mxu0 0.0
      %6118 = vmatprep.subr.mxu0 0.0
      %6119 = vmatpush2.msra.mxu0 0.0
      %6120 = vmatprep.subr.mxu0 0.0
      %6121 = vmatpush2.msra.mxu0 0.0
      %6122 = vmatprep.subr.mxu0 0.0
      %6123 = vmatpush2.msra.mxu0 0.0
      %6124 = vmatprep.subr.mxu0 0.0
      %6125 = vmatpush2.msra.mxu0 0.0
      %6126 = vmatprep.subr.mxu0 0.0
      %6127 = vmatpush2.msra.mxu0 0.0
      %6128 = vmatprep.subr.mxu0 0.0
      %6129 = vmatpush2.msra.mxu0 0.0
      %6130 = vmatprep.subr.mxu0 0.0
      %6131 = vmatpush2.msra.mxu0 0.0
      %6132 = vmatprep.subr.mxu0 0.0
      %6133 = vmatpush2.msra.mxu0 0.0
      %6134 = vmatprep.subr.mxu0 0.0
      %6135 = vmatpush2.msra.mxu0 0.0
      %6136 = vmatprep.subr.mxu0 0.0
      %6137 = vmatpush2.msra.mxu0 0.0
      %6138 = vmatprep.subr.mxu0 0.0
      %6139 = vmatpush2.msra.mxu0 0.0
      %6140 = vmatprep.subr.mxu0 %v5867
      %6141 = vmatpush2.msra.mxu0 %v5866
      %6142 = vmatprep.subr.mxu0 %v5861
      %6143 = vmatpush2.msra.mxu0 %v5860
      %6144 = vmatprep.subr.mxu0 %v5855
      %6145 = vmatpush2.msra.mxu0 %v5854
      %6146 = vmatprep.subr.mxu0 %v5849
      %6147 = vmatpush2.msra.mxu0 %v5848
      %6148 = vmatprep.mubr.f32.mxu0 %v2980
      %6149 = vmatmul.mubr.f32.gmra.mxu0 %v2256
      %v6150 = vpop.f32.mrf.mxu0
      %v6151 = vadd.f32 %v5942, %v6150
      %v6152 = vpop.f32.mrf.mxu0
      %v6153 = vadd.f32 %v5944, %v6152
      %6154 = vmatprep.mubr.f32.mxu0 %v2983
      %6155 = vmatmul.mubr.f32.gmra.mxu0 %v2260
      %v6156 = vpop.f32.mrf.mxu0
      %v6157 = vadd.f32 %v5948, %v6156
      %v6158 = vpop.f32.mrf.mxu0
      %v6159 = vadd.f32 %v5950, %v6158
      %6160 = vmatprep.mubr.f32.mxu0 %v2986
      %6161 = vmatmul.mubr.f32.gmra.mxu0 %v2264
      %v6162 = vpop.f32.mrf.mxu0
      %v6163 = vadd.f32 %v5954, %v6162
      %v6164 = vpop.f32.mrf.mxu0
      %v6165 = vadd.f32 %v5956, %v6164
      %6166 = vmatprep.mubr.f32.mxu0 %v2989
      %6167 = vmatmul.mubr.f32.gmra.mxu0 %v2268
      %v6168 = vpop.f32.mrf.mxu0
      %v6169 = vadd.f32 %v5960, %v6168
      %v6170 = vpop.f32.mrf.mxu0
      %v6171 = vadd.f32 %v5962, %v6170
      %6172 = vmatprep.mubr.f32.mxu0 %v2992
      %6173 = vmatmul.mubr.f32.gmra.mxu0 %v2272
      %v6174 = vpop.f32.mrf.mxu0
      %v6175 = vadd.f32 %v5966, %v6174
      %v6176 = vpop.f32.mrf.mxu0
      %v6177 = vadd.f32 %v5968, %v6176
      %6178 = vmatprep.mubr.f32.mxu0 %v2995
      %6179 = vmatmul.mubr.f32.gmra.mxu0 %v2276
      %v6180 = vpop.f32.mrf.mxu0
      %v6181 = vadd.f32 %v5972, %v6180
      %v6182 = vpop.f32.mrf.mxu0
      %v6183 = vadd.f32 %v5974, %v6182
      %6184 = vmatprep.mubr.f32.mxu0 %v2998
      %6185 = vmatmul.mubr.f32.gmra.mxu0 %v2280
      %v6186 = vpop.f32.mrf.mxu0
      %v6187 = vadd.f32 %v5978, %v6186
      %v6188 = vpop.f32.mrf.mxu0
      %v6189 = vadd.f32 %v5980, %v6188
      %6190 = vmatprep.mubr.f32.mxu0 %v3001
      %6191 = vmatmul.mubr.f32.gmra.mxu0 %v2284
      %v6192 = vpop.f32.mrf.mxu0
      %v6193 = vadd.f32 %v5984, %v6192
      %v6194 = vpop.f32.mrf.mxu0
      %v6195 = vadd.f32 %v5986, %v6194
      %6196 = vmatprep.mubr.f32.mxu0 %v3004
      %6197 = vmatmul.mubr.f32.gmra.mxu0 %v2288
      %v6198 = vpop.f32.mrf.mxu0
      %v6199 = vadd.f32 %v5990, %v6198
      %v6200 = vpop.f32.mrf.mxu0
      %v6201 = vadd.f32 %v5992, %v6200
      %6202 = vmatprep.mubr.f32.mxu0 %v3007
      %6203 = vmatmul.mubr.f32.gmra.mxu0 %v2292
      %v6204 = vpop.f32.mrf.mxu0
      %v6205 = vadd.f32 %v5996, %v6204
      %v6206 = vpop.f32.mrf.mxu0
      %v6207 = vadd.f32 %v5998, %v6206
      %6208 = vmatprep.mubr.f32.mxu0 %v3010
      %6209 = vmatmul.mubr.f32.gmra.mxu0 %v2296
      %v6210 = vpop.f32.mrf.mxu0
      %v6211 = vadd.f32 %v6002, %v6210
      %v6212 = vpop.f32.mrf.mxu0
      %v6213 = vadd.f32 %v6004, %v6212
      %6214 = vmatprep.mubr.f32.mxu0 %v3013
      %6215 = vmatmul.mubr.f32.gmra.mxu0 %v2300
      %v6216 = vpop.f32.mrf.mxu0
      %v6217 = vadd.f32 %v6008, %v6216
      %v6218 = vpop.f32.mrf.mxu0
      %v6219 = vadd.f32 %v6010, %v6218
      %6220 = vmatprep.mubr.f32.mxu0 %v3016
      %6221 = vmatmul.mubr.f32.gmra.mxu0 %v2304
      %v6222 = vpop.f32.mrf.mxu0
      %v6223 = vadd.f32 %v6014, %v6222
      %v6224 = vpop.f32.mrf.mxu0
      %v6225 = vadd.f32 %v6016, %v6224
      %6226 = vmatprep.mubr.f32.mxu0 %v3019
      %6227 = vmatmul.mubr.f32.gmra.mxu0 %v2308
      %v6228 = vpop.f32.mrf.mxu0
      %v6229 = vadd.f32 %v6020, %v6228
      %v6230 = vpop.f32.mrf.mxu0
      %v6231 = vadd.f32 %v6022, %v6230
      %6232 = vmatprep.mubr.f32.mxu0 %v3022
      %6233 = vmatmul.mubr.f32.gmra.mxu0 %v2312
      %v6234 = vpop.f32.mrf.mxu0
      %v6235 = vadd.f32 %v6026, %v6234
      %v6236 = vpop.f32.mrf.mxu0
      %v6237 = vadd.f32 %v6028, %v6236
      %6238 = vmatprep.mubr.f32.mxu0 %v3025
      %6239 = vmatmul.mubr.f32.gmra.mxu0 %v2316
      %v6240 = vpop.f32.mrf.mxu0
      %v6241 = vadd.f32 %v6032, %v6240
      %v6242 = vpop.f32.mrf.mxu0
      %v6243 = vadd.f32 %v6034, %v6242
      %6244 = vmatprep.mubr.f32.mxu0 %v3028
      %6245 = vmatmul.mubr.f32.gmra.mxu0 %v2320
      %v6246 = vpop.f32.mrf.mxu0
      %v6247 = vadd.f32 %v6038, %v6246
      %v6248 = vpop.f32.mrf.mxu0
      %v6249 = vadd.f32 %v6040, %v6248
      %6250 = vmatprep.mubr.f32.mxu0 %v3031
      %6251 = vmatmul.mubr.f32.gmra.mxu0 %v2324
      %v6252 = vpop.f32.mrf.mxu0
      %v6253 = vadd.f32 %v6044, %v6252
      %v6254 = vpop.f32.mrf.mxu0
      %v6255 = vadd.f32 %v6046, %v6254
      %6256 = vmatprep.mubr.f32.mxu0 %v3034
      %6257 = vmatmul.mubr.f32.gmra.mxu0 %v2328
      %v6258 = vpop.f32.mrf.mxu0
      %v6259 = vadd.f32 %v6050, %v6258
      %v6260 = vpop.f32.mrf.mxu0
      %v6261 = vadd.f32 %v6052, %v6260
      %6262 = vmatprep.mubr.f32.mxu0 %v3037
      %6263 = vmatmul.mubr.f32.gmra.mxu0 %v2332
      %v6264 = vpop.f32.mrf.mxu0
      %v6265 = vadd.f32 %v6056, %v6264
      %v6266 = vpop.f32.mrf.mxu0
      %v6267 = vadd.f32 %v6058, %v6266
      %6268 = vmatprep.mubr.f32.mxu0 %v3040
      %6269 = vmatmul.mubr.f32.gmra.mxu0 %v2336
      %v6270 = vpop.f32.mrf.mxu0
      %v6271 = vadd.f32 %v6062, %v6270
      %v6272 = vpop.f32.mrf.mxu0
      %v6273 = vadd.f32 %v6064, %v6272
      %6274 = vmatprep.mubr.f32.mxu0 %v3043
      %6275 = vmatmul.mubr.f32.gmra.mxu0 %v2340
      %v6276 = vpop.f32.mrf.mxu0
      %v6277 = vadd.f32 %v6068, %v6276
      %v6278 = vpop.f32.mrf.mxu0
      %v6279 = vadd.f32 %v6070, %v6278
      %6280 = vmatprep.mubr.f32.mxu0 %v3046
      %6281 = vmatmul.mubr.f32.gmra.mxu0 %v2344
      %v6282 = vpop.f32.mrf.mxu0
      %v6283 = vadd.f32 %v6074, %v6282
      %v6284 = vpop.f32.mrf.mxu0
      %v6285 = vadd.f32 %v6076, %v6284
      %6286 = vmatprep.mubr.f32.mxu0 %v5873
      %6287 = vmatmul.mubr.f32.gmra.mxu0 %v2348
      %v6288 = vpop.f32.mrf.mxu0
      %v6289 = vadd.f32 %v6080, %v6288
      %v6290 = vpop.f32.mrf.mxu0
      %v6291 = vadd.f32 %v6082, %v6290
      %6292 = vdwg.mxu0
      %6293 = vmatprep.subr.mxu0 %v5653
      %6294 = vmatpush1.msra.mxu0 %v5652
      %6295 = vmatprep.subr.mxu0 %v5647
      %6296 = vmatpush1.msra.mxu0 %v5646
      %6297 = vmatprep.subr.mxu0 %v5641
      %6298 = vmatpush1.msra.mxu0 %v5640
      %6299 = vmatprep.subr.mxu0 %v5635
      %6300 = vmatpush1.msra.mxu0 %v5634
      %6301 = vmatprep.subr.mxu0 %v5629
      %6302 = vmatpush1.msra.mxu0 %v5628
      %6303 = vmatprep.subr.mxu0 %v5623
      %6304 = vmatpush1.msra.mxu0 %v5622
      %6305 = vmatprep.subr.mxu0 %v5617
      %6306 = vmatpush1.msra.mxu0 %v5616
      %6307 = vmatprep.subr.mxu0 %v5611
      %6308 = vmatpush1.msra.mxu0 %v5610
      %6309 = vmatprep.subr.mxu0 %v5605
      %6310 = vmatpush1.msra.mxu0 %v5604
      %6311 = vmatprep.subr.mxu0 %v5599
      %6312 = vmatpush1.msra.mxu0 %v5598
      %6313 = vmatprep.subr.mxu0 %v5593
      %6314 = vmatpush1.msra.mxu0 %v5592
      %6315 = vmatprep.subr.mxu0 %v5587
      %6316 = vmatpush1.msra.mxu0 %v5586
      %6317 = vmatprep.subr.mxu0 %v5581
      %6318 = vmatpush1.msra.mxu0 %v5580
      %6319 = vmatprep.subr.mxu0 %v5575
      %6320 = vmatpush1.msra.mxu0 %v5574
      %6321 = vmatprep.subr.mxu0 %v5569
      %6322 = vmatpush1.msra.mxu0 %v5568
      %6323 = vmatprep.subr.mxu0 %v5563
      %6324 = vmatpush1.msra.mxu0 %v5562
      %6325 = vmatprep.subr.mxu0 %v5749
      %6326 = vmatpush2.msra.mxu0 %v5748
      %6327 = vmatprep.subr.mxu0 %v5743
      %6328 = vmatpush2.msra.mxu0 %v5742
      %6329 = vmatprep.subr.mxu0 %v5737
      %6330 = vmatpush2.msra.mxu0 %v5736
      %6331 = vmatprep.subr.mxu0 %v5731
      %6332 = vmatpush2.msra.mxu0 %v5730
      %6333 = vmatprep.subr.mxu0 %v5725
      %6334 = vmatpush2.msra.mxu0 %v5724
      %6335 = vmatprep.subr.mxu0 %v5719
      %6336 = vmatpush2.msra.mxu0 %v5718
      %6337 = vmatprep.subr.mxu0 %v5713
      %6338 = vmatpush2.msra.mxu0 %v5712
      %6339 = vmatprep.subr.mxu0 %v5707
      %6340 = vmatpush2.msra.mxu0 %v5706
      %6341 = vmatprep.subr.mxu0 %v5701
      %6342 = vmatpush2.msra.mxu0 %v5700
      %6343 = vmatprep.subr.mxu0 %v5695
      %6344 = vmatpush2.msra.mxu0 %v5694
      %6345 = vmatprep.subr.mxu0 %v5689
      %6346 = vmatpush2.msra.mxu0 %v5688
      %6347 = vmatprep.subr.mxu0 %v5683
      %6348 = vmatpush2.msra.mxu0 %v5682
      %6349 = vmatprep.subr.mxu0 %v5677
      %6350 = vmatpush2.msra.mxu0 %v5676
      %6351 = vmatprep.subr.mxu0 %v5671
      %6352 = vmatpush2.msra.mxu0 %v5670
      %6353 = vmatprep.subr.mxu0 %v5665
      %6354 = vmatpush2.msra.mxu0 %v5664
      %6355 = vmatprep.subr.mxu0 %v5659
      %6356 = vmatpush2.msra.mxu0 %v5658
      %6357 = vmatprep.mubr.f32.mxu0 %v2255
      %6358 = vmatmul.mubr.f32.gmra.mxu0 %v2254
      %v6359 = vpop.f32.mrf.mxu0
      %v6360 = vadd.f32 0.0, %v6359
      %v6361 = vpop.f32.mrf.mxu0
      %v6362 = vadd.f32 0.0, %v6361
      %6363 = vmatprep.mubr.f32.mxu0 %v2259
      %6364 = vmatmul.mubr.f32.gmra.mxu0 %v2258
      %v6365 = vpop.f32.mrf.mxu0
      %v6366 = vadd.f32 0.0, %v6365
      %v6367 = vpop.f32.mrf.mxu0
      %v6368 = vadd.f32 0.0, %v6367
      %6369 = vmatprep.mubr.f32.mxu0 %v2263
      %6370 = vmatmul.mubr.f32.gmra.mxu0 %v2262
      %v6371 = vpop.f32.mrf.mxu0
      %v6372 = vadd.f32 0.0, %v6371
      %v6373 = vpop.f32.mrf.mxu0
      %v6374 = vadd.f32 0.0, %v6373
      %6375 = vmatprep.mubr.f32.mxu0 %v2267
      %6376 = vmatmul.mubr.f32.gmra.mxu0 %v2266
      %v6377 = vpop.f32.mrf.mxu0
      %v6378 = vadd.f32 0.0, %v6377
      %v6379 = vpop.f32.mrf.mxu0
      %v6380 = vadd.f32 0.0, %v6379
      %6381 = vmatprep.mubr.f32.mxu0 %v2271
      %6382 = vmatmul.mubr.f32.gmra.mxu0 %v2270
      %v6383 = vpop.f32.mrf.mxu0
      %v6384 = vadd.f32 0.0, %v6383
      %v6385 = vpop.f32.mrf.mxu0
      %v6386 = vadd.f32 0.0, %v6385
      %6387 = vmatprep.mubr.f32.mxu0 %v2275
      %6388 = vmatmul.mubr.f32.gmra.mxu0 %v2274
      %v6389 = vpop.f32.mrf.mxu0
      %v6390 = vadd.f32 0.0, %v6389
      %v6391 = vpop.f32.mrf.mxu0
      %v6392 = vadd.f32 0.0, %v6391
      %6393 = vmatprep.mubr.f32.mxu0 %v2279
      %6394 = vmatmul.mubr.f32.gmra.mxu0 %v2278
      %v6395 = vpop.f32.mrf.mxu0
      %v6396 = vadd.f32 0.0, %v6395
      %v6397 = vpop.f32.mrf.mxu0
      %v6398 = vadd.f32 0.0, %v6397
      %6399 = vmatprep.mubr.f32.mxu0 %v2283
      %6400 = vmatmul.mubr.f32.gmra.mxu0 %v2282
      %v6401 = vpop.f32.mrf.mxu0
      %v6402 = vadd.f32 0.0, %v6401
      %v6403 = vpop.f32.mrf.mxu0
      %v6404 = vadd.f32 0.0, %v6403
      %6405 = vmatprep.mubr.f32.mxu0 %v2287
      %6406 = vmatmul.mubr.f32.gmra.mxu0 %v2286
      %v6407 = vpop.f32.mrf.mxu0
      %v6408 = vadd.f32 0.0, %v6407
      %v6409 = vpop.f32.mrf.mxu0
      %v6410 = vadd.f32 0.0, %v6409
      %6411 = vmatprep.mubr.f32.mxu0 %v2291
      %6412 = vmatmul.mubr.f32.gmra.mxu0 %v2290
      %v6413 = vpop.f32.mrf.mxu0
      %v6414 = vadd.f32 0.0, %v6413
      %v6415 = vpop.f32.mrf.mxu0
      %v6416 = vadd.f32 0.0, %v6415
      %6417 = vmatprep.mubr.f32.mxu0 %v2295
      %6418 = vmatmul.mubr.f32.gmra.mxu0 %v2294
      %v6419 = vpop.f32.mrf.mxu0
      %v6420 = vadd.f32 0.0, %v6419
      %v6421 = vpop.f32.mrf.mxu0
      %v6422 = vadd.f32 0.0, %v6421
      %6423 = vmatprep.mubr.f32.mxu0 %v2299
      %6424 = vmatmul.mubr.f32.gmra.mxu0 %v2298
      %v6425 = vpop.f32.mrf.mxu0
      %v6426 = vadd.f32 0.0, %v6425
      %v6427 = vpop.f32.mrf.mxu0
      %v6428 = vadd.f32 0.0, %v6427
      %6429 = vmatprep.mubr.f32.mxu0 %v2303
      %6430 = vmatmul.mubr.f32.gmra.mxu0 %v2302
      %v6431 = vpop.f32.mrf.mxu0
      %v6432 = vadd.f32 0.0, %v6431
      %v6433 = vpop.f32.mrf.mxu0
      %v6434 = vadd.f32 0.0, %v6433
      %6435 = vmatprep.mubr.f32.mxu0 %v2307
      %6436 = vmatmul.mubr.f32.gmra.mxu0 %v2306
      %v6437 = vpop.f32.mrf.mxu0
      %v6438 = vadd.f32 0.0, %v6437
      %v6439 = vpop.f32.mrf.mxu0
      %v6440 = vadd.f32 0.0, %v6439
      %6441 = vmatprep.mubr.f32.mxu0 %v2311
      %6442 = vmatmul.mubr.f32.gmra.mxu0 %v2310
      %v6443 = vpop.f32.mrf.mxu0
      %v6444 = vadd.f32 0.0, %v6443
      %v6445 = vpop.f32.mrf.mxu0
      %v6446 = vadd.f32 0.0, %v6445
      %6447 = vmatprep.mubr.f32.mxu0 %v2315
      %6448 = vmatmul.mubr.f32.gmra.mxu0 %v2314
      %v6449 = vpop.f32.mrf.mxu0
      %v6450 = vadd.f32 0.0, %v6449
      %v6451 = vpop.f32.mrf.mxu0
      %v6452 = vadd.f32 0.0, %v6451
      %6453 = vmatprep.mubr.f32.mxu0 %v2319
      %6454 = vmatmul.mubr.f32.gmra.mxu0 %v2318
      %v6455 = vpop.f32.mrf.mxu0
      %v6456 = vadd.f32 0.0, %v6455
      %v6457 = vpop.f32.mrf.mxu0
      %v6458 = vadd.f32 0.0, %v6457
      %6459 = vmatprep.mubr.f32.mxu0 %v2323
      %6460 = vmatmul.mubr.f32.gmra.mxu0 %v2322
      %v6461 = vpop.f32.mrf.mxu0
      %v6462 = vadd.f32 0.0, %v6461
      %v6463 = vpop.f32.mrf.mxu0
      %v6464 = vadd.f32 0.0, %v6463
      %6465 = vmatprep.mubr.f32.mxu0 %v2327
      %6466 = vmatmul.mubr.f32.gmra.mxu0 %v2326
      %v6467 = vpop.f32.mrf.mxu0
      %v6468 = vadd.f32 0.0, %v6467
      %v6469 = vpop.f32.mrf.mxu0
      %v6470 = vadd.f32 0.0, %v6469
      %6471 = vmatprep.mubr.f32.mxu0 %v2331
      %6472 = vmatmul.mubr.f32.gmra.mxu0 %v2330
      %v6473 = vpop.f32.mrf.mxu0
      %v6474 = vadd.f32 0.0, %v6473
      %v6475 = vpop.f32.mrf.mxu0
      %v6476 = vadd.f32 0.0, %v6475
      %6477 = vmatprep.mubr.f32.mxu0 %v2335
      %6478 = vmatmul.mubr.f32.gmra.mxu0 %v2334
      %v6479 = vpop.f32.mrf.mxu0
      %v6480 = vadd.f32 0.0, %v6479
      %v6481 = vpop.f32.mrf.mxu0
      %v6482 = vadd.f32 0.0, %v6481
      %6483 = vmatprep.mubr.f32.mxu0 %v2339
      %6484 = vmatmul.mubr.f32.gmra.mxu0 %v2338
      %v6485 = vpop.f32.mrf.mxu0
      %v6486 = vadd.f32 0.0, %v6485
      %v6487 = vpop.f32.mrf.mxu0
      %v6488 = vadd.f32 0.0, %v6487
      %6489 = vmatprep.mubr.f32.mxu0 %v2343
      %6490 = vmatmul.mubr.f32.gmra.mxu0 %v2342
      %v6491 = vpop.f32.mrf.mxu0
      %v6492 = vadd.f32 0.0, %v6491
      %v6493 = vpop.f32.mrf.mxu0
      %v6494 = vadd.f32 0.0, %v6493
      %6495 = vmatprep.mubr.f32.mxu0 %v2347
      %6496 = vmatmul.mubr.f32.gmra.mxu0 %v2346
      %v6497 = vpop.f32.mrf.mxu0
      %v6498 = vadd.f32 0.0, %v6497
      %v6499 = vpop.f32.mrf.mxu0
      %v6500 = vadd.f32 0.0, %v6499
      %6501 = vdwg.mxu0
      %6502 = vmatprep.subr.mxu0 %v5845
      %6503 = vmatpush1.msra.mxu0 %v5844
      %6504 = vmatprep.subr.mxu0 %v5839
      %6505 = vmatpush1.msra.mxu0 %v5838
      %6506 = vmatprep.subr.mxu0 %v5833
      %6507 = vmatpush1.msra.mxu0 %v5832
      %6508 = vmatprep.subr.mxu0 %v5827
      %6509 = vmatpush1.msra.mxu0 %v5826
      %6510 = vmatprep.subr.mxu0 %v5821
      %6511 = vmatpush1.msra.mxu0 %v5820
      %6512 = vmatprep.subr.mxu0 %v5815
      %6513 = vmatpush1.msra.mxu0 %v5814
      %6514 = vmatprep.subr.mxu0 %v5809
      %6515 = vmatpush1.msra.mxu0 %v5808
      %6516 = vmatprep.subr.mxu0 %v5803
      %6517 = vmatpush1.msra.mxu0 %v5802
      %6518 = vmatprep.subr.mxu0 %v5797
      %6519 = vmatpush1.msra.mxu0 %v5796
      %6520 = vmatprep.subr.mxu0 %v5791
      %6521 = vmatpush1.msra.mxu0 %v5790
      %6522 = vmatprep.subr.mxu0 %v5785
      %6523 = vmatpush1.msra.mxu0 %v5784
      %6524 = vmatprep.subr.mxu0 %v5779
      %6525 = vmatpush1.msra.mxu0 %v5778
      %6526 = vmatprep.subr.mxu0 %v5773
      %6527 = vmatpush1.msra.mxu0 %v5772
      %6528 = vmatprep.subr.mxu0 %v5767
      %6529 = vmatpush1.msra.mxu0 %v5766
      %6530 = vmatprep.subr.mxu0 %v5761
      %6531 = vmatpush1.msra.mxu0 %v5760
      %6532 = vmatprep.subr.mxu0 %v5755
      %6533 = vmatpush1.msra.mxu0 %v5754
      %6534 = vmatprep.subr.mxu0 0.0
      %6535 = vmatpush2.msra.mxu0 0.0
      %6536 = vmatprep.subr.mxu0 0.0
      %6537 = vmatpush2.msra.mxu0 0.0
      %6538 = vmatprep.subr.mxu0 0.0
      %6539 = vmatpush2.msra.mxu0 0.0
      %6540 = vmatprep.subr.mxu0 0.0
      %6541 = vmatpush2.msra.mxu0 0.0
      %6542 = vmatprep.subr.mxu0 0.0
      %6543 = vmatpush2.msra.mxu0 0.0
      %6544 = vmatprep.subr.mxu0 0.0
      %6545 = vmatpush2.msra.mxu0 0.0
      %6546 = vmatprep.subr.mxu0 0.0
      %6547 = vmatpush2.msra.mxu0 0.0
      %6548 = vmatprep.subr.mxu0 0.0
      %6549 = vmatpush2.msra.mxu0 0.0
      %6550 = vmatprep.subr.mxu0 0.0
      %6551 = vmatpush2.msra.mxu0 0.0
      %6552 = vmatprep.subr.mxu0 0.0
      %6553 = vmatpush2.msra.mxu0 0.0
      %6554 = vmatprep.subr.mxu0 0.0
      %6555 = vmatpush2.msra.mxu0 0.0
      %6556 = vmatprep.subr.mxu0 0.0
      %6557 = vmatpush2.msra.mxu0 0.0
      %6558 = vmatprep.subr.mxu0 %v5869
      %6559 = vmatpush2.msra.mxu0 %v5868
      %6560 = vmatprep.subr.mxu0 %v5863
      %6561 = vmatpush2.msra.mxu0 %v5862
      %6562 = vmatprep.subr.mxu0 %v5857
      %6563 = vmatpush2.msra.mxu0 %v5856
      %6564 = vmatprep.subr.mxu0 %v5851
      %6565 = vmatpush2.msra.mxu0 %v5850
      %6566 = vmatprep.mubr.f32.mxu0 %v2980
      %6567 = vmatmul.mubr.f32.gmra.mxu0 %v2256
      %v6568 = vpop.f32.mrf.mxu0
      %v6569 = vadd.f32 %v6360, %v6568
      %v6570 = vpop.f32.mrf.mxu0
      %v6571 = vadd.f32 %v6362, %v6570
      %6572 = vmatprep.mubr.f32.mxu0 %v2983
      %6573 = vmatmul.mubr.f32.gmra.mxu0 %v2260
      %v6574 = vpop.f32.mrf.mxu0
      %v6575 = vadd.f32 %v6366, %v6574
      %v6576 = vpop.f32.mrf.mxu0
      %v6577 = vadd.f32 %v6368, %v6576
      %6578 = vmatprep.mubr.f32.mxu0 %v2986
      %6579 = vmatmul.mubr.f32.gmra.mxu0 %v2264
      %v6580 = vpop.f32.mrf.mxu0
      %v6581 = vadd.f32 %v6372, %v6580
      %v6582 = vpop.f32.mrf.mxu0
      %v6583 = vadd.f32 %v6374, %v6582
      %6584 = vmatprep.mubr.f32.mxu0 %v2989
      %6585 = vmatmul.mubr.f32.gmra.mxu0 %v2268
      %v6586 = vpop.f32.mrf.mxu0
      %v6587 = vadd.f32 %v6378, %v6586
      %v6588 = vpop.f32.mrf.mxu0
      %v6589 = vadd.f32 %v6380, %v6588
      %6590 = vmatprep.mubr.f32.mxu0 %v2992
      %6591 = vmatmul.mubr.f32.gmra.mxu0 %v2272
      %v6592 = vpop.f32.mrf.mxu0
      %v6593 = vadd.f32 %v6384, %v6592
      %v6594 = vpop.f32.mrf.mxu0
      %v6595 = vadd.f32 %v6386, %v6594
      %6596 = vmatprep.mubr.f32.mxu0 %v2995
      %6597 = vmatmul.mubr.f32.gmra.mxu0 %v2276
      %v6598 = vpop.f32.mrf.mxu0
      %v6599 = vadd.f32 %v6390, %v6598
      %v6600 = vpop.f32.mrf.mxu0
      %v6601 = vadd.f32 %v6392, %v6600
      %6602 = vmatprep.mubr.f32.mxu0 %v2998
      %6603 = vmatmul.mubr.f32.gmra.mxu0 %v2280
      %v6604 = vpop.f32.mrf.mxu0
      %v6605 = vadd.f32 %v6396, %v6604
      %v6606 = vpop.f32.mrf.mxu0
      %v6607 = vadd.f32 %v6398, %v6606
      %6608 = vmatprep.mubr.f32.mxu0 %v3001
      %6609 = vmatmul.mubr.f32.gmra.mxu0 %v2284
      %v6610 = vpop.f32.mrf.mxu0
      %v6611 = vadd.f32 %v6402, %v6610
      %v6612 = vpop.f32.mrf.mxu0
      %v6613 = vadd.f32 %v6404, %v6612
      %6614 = vmatprep.mubr.f32.mxu0 %v3004
      %6615 = vmatmul.mubr.f32.gmra.mxu0 %v2288
      %v6616 = vpop.f32.mrf.mxu0
      %v6617 = vadd.f32 %v6408, %v6616
      %v6618 = vpop.f32.mrf.mxu0
      %v6619 = vadd.f32 %v6410, %v6618
      %6620 = vmatprep.mubr.f32.mxu0 %v3007
      %6621 = vmatmul.mubr.f32.gmra.mxu0 %v2292
      %v6622 = vpop.f32.mrf.mxu0
      %v6623 = vadd.f32 %v6414, %v6622
      %v6624 = vpop.f32.mrf.mxu0
      %v6625 = vadd.f32 %v6416, %v6624
      %6626 = vmatprep.mubr.f32.mxu0 %v3010
      %6627 = vmatmul.mubr.f32.gmra.mxu0 %v2296
      %v6628 = vpop.f32.mrf.mxu0
      %v6629 = vadd.f32 %v6420, %v6628
      %v6630 = vpop.f32.mrf.mxu0
      %v6631 = vadd.f32 %v6422, %v6630
      %6632 = vmatprep.mubr.f32.mxu0 %v3013
      %6633 = vmatmul.mubr.f32.gmra.mxu0 %v2300
      %v6634 = vpop.f32.mrf.mxu0
      %v6635 = vadd.f32 %v6426, %v6634
      %v6636 = vpop.f32.mrf.mxu0
      %v6637 = vadd.f32 %v6428, %v6636
      %6638 = vmatprep.mubr.f32.mxu0 %v3016
      %6639 = vmatmul.mubr.f32.gmra.mxu0 %v2304
      %v6640 = vpop.f32.mrf.mxu0
      %v6641 = vadd.f32 %v6432, %v6640
      %v6642 = vpop.f32.mrf.mxu0
      %v6643 = vadd.f32 %v6434, %v6642
      %6644 = vmatprep.mubr.f32.mxu0 %v3019
      %6645 = vmatmul.mubr.f32.gmra.mxu0 %v2308
      %v6646 = vpop.f32.mrf.mxu0
      %v6647 = vadd.f32 %v6438, %v6646
      %v6648 = vpop.f32.mrf.mxu0
      %v6649 = vadd.f32 %v6440, %v6648
      %6650 = vmatprep.mubr.f32.mxu0 %v3022
      %6651 = vmatmul.mubr.f32.gmra.mxu0 %v2312
      %v6652 = vpop.f32.mrf.mxu0
      %v6653 = vadd.f32 %v6444, %v6652
      %v6654 = vpop.f32.mrf.mxu0
      %v6655 = vadd.f32 %v6446, %v6654
      %6656 = vmatprep.mubr.f32.mxu0 %v3025
      %6657 = vmatmul.mubr.f32.gmra.mxu0 %v2316
      %v6658 = vpop.f32.mrf.mxu0
      %v6659 = vadd.f32 %v6450, %v6658
      %v6660 = vpop.f32.mrf.mxu0
      %v6661 = vadd.f32 %v6452, %v6660
      %6662 = vmatprep.mubr.f32.mxu0 %v3028
      %6663 = vmatmul.mubr.f32.gmra.mxu0 %v2320
      %v6664 = vpop.f32.mrf.mxu0
      %v6665 = vadd.f32 %v6456, %v6664
      %v6666 = vpop.f32.mrf.mxu0
      %v6667 = vadd.f32 %v6458, %v6666
      %6668 = vmatprep.mubr.f32.mxu0 %v3031
      %6669 = vmatmul.mubr.f32.gmra.mxu0 %v2324
      %v6670 = vpop.f32.mrf.mxu0
      %v6671 = vadd.f32 %v6462, %v6670
      %v6672 = vpop.f32.mrf.mxu0
      %v6673 = vadd.f32 %v6464, %v6672
      %6674 = vmatprep.mubr.f32.mxu0 %v3034
      %6675 = vmatmul.mubr.f32.gmra.mxu0 %v2328
      %v6676 = vpop.f32.mrf.mxu0
      %v6677 = vadd.f32 %v6468, %v6676
      %v6678 = vpop.f32.mrf.mxu0
      %v6679 = vadd.f32 %v6470, %v6678
      %6680 = vmatprep.mubr.f32.mxu0 %v3037
      %6681 = vmatmul.mubr.f32.gmra.mxu0 %v2332
      %v6682 = vpop.f32.mrf.mxu0
      %v6683 = vadd.f32 %v6474, %v6682
      %v6684 = vpop.f32.mrf.mxu0
      %v6685 = vadd.f32 %v6476, %v6684
      %6686 = vmatprep.mubr.f32.mxu0 %v3040
      %6687 = vmatmul.mubr.f32.gmra.mxu0 %v2336
      %v6688 = vpop.f32.mrf.mxu0
      %v6689 = vadd.f32 %v6480, %v6688
      %v6690 = vpop.f32.mrf.mxu0
      %v6691 = vadd.f32 %v6482, %v6690
      %6692 = vmatprep.mubr.f32.mxu0 %v3043
      %6693 = vmatmul.mubr.f32.gmra.mxu0 %v2340
      %v6694 = vpop.f32.mrf.mxu0
      %v6695 = vadd.f32 %v6486, %v6694
      %v6696 = vpop.f32.mrf.mxu0
      %v6697 = vadd.f32 %v6488, %v6696
      %6698 = vmatprep.mubr.f32.mxu0 %v3046
      %6699 = vmatmul.mubr.f32.gmra.mxu0 %v2344
      %v6700 = vpop.f32.mrf.mxu0
      %v6701 = vadd.f32 %v6492, %v6700
      %v6702 = vpop.f32.mrf.mxu0
      %v6703 = vadd.f32 %v6494, %v6702
      %6704 = vmatprep.mubr.f32.mxu0 %v5873
      %6705 = vmatmul.mubr.f32.gmra.mxu0 %v2348
      %v6706 = vpop.f32.mrf.mxu0
      %v6707 = vadd.f32 %v6498, %v6706
      %v6708 = vpop.f32.mrf.mxu0
      %v6709 = vadd.f32 %v6500, %v6708
      %6710 = vdwg.mxu0
      %6711 = vmatprep.subr.mxu0 %v5655
      %6712 = vmatpush1.msra.mxu0 %v5654
      %6713 = vmatprep.subr.mxu0 %v5649
      %6714 = vmatpush1.msra.mxu0 %v5648
      %6715 = vmatprep.subr.mxu0 %v5643
      %6716 = vmatpush1.msra.mxu0 %v5642
      %6717 = vmatprep.subr.mxu0 %v5637
      %6718 = vmatpush1.msra.mxu0 %v5636
      %6719 = vmatprep.subr.mxu0 %v5631
      %6720 = vmatpush1.msra.mxu0 %v5630
      %6721 = vmatprep.subr.mxu0 %v5625
      %6722 = vmatpush1.msra.mxu0 %v5624
      %6723 = vmatprep.subr.mxu0 %v5619
      %6724 = vmatpush1.msra.mxu0 %v5618
      %6725 = vmatprep.subr.mxu0 %v5613
      %6726 = vmatpush1.msra.mxu0 %v5612
      %6727 = vmatprep.subr.mxu0 %v5607
      %6728 = vmatpush1.msra.mxu0 %v5606
      %6729 = vmatprep.subr.mxu0 %v5601
      %6730 = vmatpush1.msra.mxu0 %v5600
      %6731 = vmatprep.subr.mxu0 %v5595
      %6732 = vmatpush1.msra.mxu0 %v5594
      %6733 = vmatprep.subr.mxu0 %v5589
      %6734 = vmatpush1.msra.mxu0 %v5588
      %6735 = vmatprep.subr.mxu0 %v5583
      %6736 = vmatpush1.msra.mxu0 %v5582
      %6737 = vmatprep.subr.mxu0 %v5577
      %6738 = vmatpush1.msra.mxu0 %v5576
      %6739 = vmatprep.subr.mxu0 %v5571
      %6740 = vmatpush1.msra.mxu0 %v5570
      %6741 = vmatprep.subr.mxu0 %v5565
      %6742 = vmatpush1.msra.mxu0 %v5564
      %6743 = vmatprep.subr.mxu0 %v5751
      %6744 = vmatpush2.msra.mxu0 %v5750
      %6745 = vmatprep.subr.mxu0 %v5745
      %6746 = vmatpush2.msra.mxu0 %v5744
      %6747 = vmatprep.subr.mxu0 %v5739
      %6748 = vmatpush2.msra.mxu0 %v5738
      %6749 = vmatprep.subr.mxu0 %v5733
      %6750 = vmatpush2.msra.mxu0 %v5732
      %6751 = vmatprep.subr.mxu0 %v5727
      %6752 = vmatpush2.msra.mxu0 %v5726
      %6753 = vmatprep.subr.mxu0 %v5721
      %6754 = vmatpush2.msra.mxu0 %v5720
      %6755 = vmatprep.subr.mxu0 %v5715
      %6756 = vmatpush2.msra.mxu0 %v5714
      %6757 = vmatprep.subr.mxu0 %v5709
      %6758 = vmatpush2.msra.mxu0 %v5708
      %6759 = vmatprep.subr.mxu0 %v5703
      %6760 = vmatpush2.msra.mxu0 %v5702
      %6761 = vmatprep.subr.mxu0 %v5697
      %6762 = vmatpush2.msra.mxu0 %v5696
      %6763 = vmatprep.subr.mxu0 %v5691
      %6764 = vmatpush2.msra.mxu0 %v5690
      %6765 = vmatprep.subr.mxu0 %v5685
      %6766 = vmatpush2.msra.mxu0 %v5684
      %6767 = vmatprep.subr.mxu0 %v5679
      %6768 = vmatpush2.msra.mxu0 %v5678
      %6769 = vmatprep.subr.mxu0 %v5673
      %6770 = vmatpush2.msra.mxu0 %v5672
      %6771 = vmatprep.subr.mxu0 %v5667
      %6772 = vmatpush2.msra.mxu0 %v5666
      %6773 = vmatprep.subr.mxu0 %v5661
      %6774 = vmatpush2.msra.mxu0 %v5660
      %6775 = vmatprep.mubr.f32.mxu0 %v2255
      %6776 = vmatmul.mubr.f32.gmra.mxu0 %v2254
      %v6777 = vpop.f32.mrf.mxu0
      %v6778 = vadd.f32 0.0, %v6777
      %v6779 = vpop.f32.mrf.mxu0
      %v6780 = vadd.f32 0.0, %v6779
      %6781 = vmatprep.mubr.f32.mxu0 %v2259
      %6782 = vmatmul.mubr.f32.gmra.mxu0 %v2258
      %v6783 = vpop.f32.mrf.mxu0
      %v6784 = vadd.f32 0.0, %v6783
      %v6785 = vpop.f32.mrf.mxu0
      %v6786 = vadd.f32 0.0, %v6785
      %6787 = vmatprep.mubr.f32.mxu0 %v2263
      %6788 = vmatmul.mubr.f32.gmra.mxu0 %v2262
      %v6789 = vpop.f32.mrf.mxu0
      %v6790 = vadd.f32 0.0, %v6789
      %v6791 = vpop.f32.mrf.mxu0
      %v6792 = vadd.f32 0.0, %v6791
      %6793 = vmatprep.mubr.f32.mxu0 %v2267
      %6794 = vmatmul.mubr.f32.gmra.mxu0 %v2266
      %v6795 = vpop.f32.mrf.mxu0
      %v6796 = vadd.f32 0.0, %v6795
      %v6797 = vpop.f32.mrf.mxu0
      %v6798 = vadd.f32 0.0, %v6797
      %6799 = vmatprep.mubr.f32.mxu0 %v2271
      %6800 = vmatmul.mubr.f32.gmra.mxu0 %v2270
      %v6801 = vpop.f32.mrf.mxu0
      %v6802 = vadd.f32 0.0, %v6801
      %v6803 = vpop.f32.mrf.mxu0
      %v6804 = vadd.f32 0.0, %v6803
      %6805 = vmatprep.mubr.f32.mxu0 %v2275
      %6806 = vmatmul.mubr.f32.gmra.mxu0 %v2274
      %v6807 = vpop.f32.mrf.mxu0
      %v6808 = vadd.f32 0.0, %v6807
      %v6809 = vpop.f32.mrf.mxu0
      %v6810 = vadd.f32 0.0, %v6809
      %6811 = vmatprep.mubr.f32.mxu0 %v2279
      %6812 = vmatmul.mubr.f32.gmra.mxu0 %v2278
      %v6813 = vpop.f32.mrf.mxu0
      %v6814 = vadd.f32 0.0, %v6813
      %v6815 = vpop.f32.mrf.mxu0
      %v6816 = vadd.f32 0.0, %v6815
      %6817 = vmatprep.mubr.f32.mxu0 %v2283
      %6818 = vmatmul.mubr.f32.gmra.mxu0 %v2282
      %v6819 = vpop.f32.mrf.mxu0
      %v6820 = vadd.f32 0.0, %v6819
      %v6821 = vpop.f32.mrf.mxu0
      %v6822 = vadd.f32 0.0, %v6821
      %6823 = vmatprep.mubr.f32.mxu0 %v2287
      %6824 = vmatmul.mubr.f32.gmra.mxu0 %v2286
      %v6825 = vpop.f32.mrf.mxu0
      %v6826 = vadd.f32 0.0, %v6825
      %v6827 = vpop.f32.mrf.mxu0
      %v6828 = vadd.f32 0.0, %v6827
      %6829 = vmatprep.mubr.f32.mxu0 %v2291
      %6830 = vmatmul.mubr.f32.gmra.mxu0 %v2290
      %v6831 = vpop.f32.mrf.mxu0
      %v6832 = vadd.f32 0.0, %v6831
      %v6833 = vpop.f32.mrf.mxu0
      %v6834 = vadd.f32 0.0, %v6833
      %6835 = vmatprep.mubr.f32.mxu0 %v2295
      %6836 = vmatmul.mubr.f32.gmra.mxu0 %v2294
      %v6837 = vpop.f32.mrf.mxu0
      %v6838 = vadd.f32 0.0, %v6837
      %v6839 = vpop.f32.mrf.mxu0
      %v6840 = vadd.f32 0.0, %v6839
      %6841 = vmatprep.mubr.f32.mxu0 %v2299
      %6842 = vmatmul.mubr.f32.gmra.mxu0 %v2298
      %v6843 = vpop.f32.mrf.mxu0
      %v6844 = vadd.f32 0.0, %v6843
      %v6845 = vpop.f32.mrf.mxu0
      %v6846 = vadd.f32 0.0, %v6845
      %6847 = vmatprep.mubr.f32.mxu0 %v2303
      %6848 = vmatmul.mubr.f32.gmra.mxu0 %v2302
      %v6849 = vpop.f32.mrf.mxu0
      %v6850 = vadd.f32 0.0, %v6849
      %v6851 = vpop.f32.mrf.mxu0
      %v6852 = vadd.f32 0.0, %v6851
      %6853 = vmatprep.mubr.f32.mxu0 %v2307
      %6854 = vmatmul.mubr.f32.gmra.mxu0 %v2306
      %v6855 = vpop.f32.mrf.mxu0
      %v6856 = vadd.f32 0.0, %v6855
      %v6857 = vpop.f32.mrf.mxu0
      %v6858 = vadd.f32 0.0, %v6857
      %6859 = vmatprep.mubr.f32.mxu0 %v2311
      %6860 = vmatmul.mubr.f32.gmra.mxu0 %v2310
      %v6861 = vpop.f32.mrf.mxu0
      %v6862 = vadd.f32 0.0, %v6861
      %v6863 = vpop.f32.mrf.mxu0
      %v6864 = vadd.f32 0.0, %v6863
      %6865 = vmatprep.mubr.f32.mxu0 %v2315
      %6866 = vmatmul.mubr.f32.gmra.mxu0 %v2314
      %v6867 = vpop.f32.mrf.mxu0
      %v6868 = vadd.f32 0.0, %v6867
      %v6869 = vpop.f32.mrf.mxu0
      %v6870 = vadd.f32 0.0, %v6869
      %6871 = vmatprep.mubr.f32.mxu0 %v2319
      %6872 = vmatmul.mubr.f32.gmra.mxu0 %v2318
      %v6873 = vpop.f32.mrf.mxu0
      %v6874 = vadd.f32 0.0, %v6873
      %v6875 = vpop.f32.mrf.mxu0
      %v6876 = vadd.f32 0.0, %v6875
      %6877 = vmatprep.mubr.f32.mxu0 %v2323
      %6878 = vmatmul.mubr.f32.gmra.mxu0 %v2322
      %v6879 = vpop.f32.mrf.mxu0
      %v6880 = vadd.f32 0.0, %v6879
      %v6881 = vpop.f32.mrf.mxu0
      %v6882 = vadd.f32 0.0, %v6881
      %6883 = vmatprep.mubr.f32.mxu0 %v2327
      %6884 = vmatmul.mubr.f32.gmra.mxu0 %v2326
      %v6885 = vpop.f32.mrf.mxu0
      %v6886 = vadd.f32 0.0, %v6885
      %v6887 = vpop.f32.mrf.mxu0
      %v6888 = vadd.f32 0.0, %v6887
      %6889 = vmatprep.mubr.f32.mxu0 %v2331
      %6890 = vmatmul.mubr.f32.gmra.mxu0 %v2330
      %v6891 = vpop.f32.mrf.mxu0
      %v6892 = vadd.f32 0.0, %v6891
      %v6893 = vpop.f32.mrf.mxu0
      %v6894 = vadd.f32 0.0, %v6893
      %6895 = vmatprep.mubr.f32.mxu0 %v2335
      %6896 = vmatmul.mubr.f32.gmra.mxu0 %v2334
      %v6897 = vpop.f32.mrf.mxu0
      %v6898 = vadd.f32 0.0, %v6897
      %v6899 = vpop.f32.mrf.mxu0
      %v6900 = vadd.f32 0.0, %v6899
      %6901 = vmatprep.mubr.f32.mxu0 %v2339
      %6902 = vmatmul.mubr.f32.gmra.mxu0 %v2338
      %v6903 = vpop.f32.mrf.mxu0
      %v6904 = vadd.f32 0.0, %v6903
      %v6905 = vpop.f32.mrf.mxu0
      %v6906 = vadd.f32 0.0, %v6905
      %6907 = vmatprep.mubr.f32.mxu0 %v2343
      %6908 = vmatmul.mubr.f32.gmra.mxu0 %v2342
      %v6909 = vpop.f32.mrf.mxu0
      %v6910 = vadd.f32 0.0, %v6909
      %v6911 = vpop.f32.mrf.mxu0
      %v6912 = vadd.f32 0.0, %v6911
      %6913 = vmatprep.mubr.f32.mxu0 %v2347
      %6914 = vmatmul.mubr.f32.gmra.mxu0 %v2346
      %v6915 = vpop.f32.mrf.mxu0
      %v6916 = vadd.f32 0.0, %v6915
      %v6917 = vpop.f32.mrf.mxu0
      %v6918 = vadd.f32 0.0, %v6917
      %6919 = vdwg.mxu0
      %6920 = vmatprep.subr.mxu0 %v5847
      %6921 = vmatpush1.msra.mxu0 %v5846
      %6922 = vmatprep.subr.mxu0 %v5841
      %6923 = vmatpush1.msra.mxu0 %v5840
      %6924 = vmatprep.subr.mxu0 %v5835
      %6925 = vmatpush1.msra.mxu0 %v5834
      %6926 = vmatprep.subr.mxu0 %v5829
      %6927 = vmatpush1.msra.mxu0 %v5828
      %6928 = vmatprep.subr.mxu0 %v5823
      %6929 = vmatpush1.msra.mxu0 %v5822
      %6930 = vmatprep.subr.mxu0 %v5817
      %6931 = vmatpush1.msra.mxu0 %v5816
      %6932 = vmatprep.subr.mxu0 %v5811
      %6933 = vmatpush1.msra.mxu0 %v5810
      %6934 = vmatprep.subr.mxu0 %v5805
      %6935 = vmatpush1.msra.mxu0 %v5804
      %6936 = vmatprep.subr.mxu0 %v5799
      %6937 = vmatpush1.msra.mxu0 %v5798
      %6938 = vmatprep.subr.mxu0 %v5793
      %6939 = vmatpush1.msra.mxu0 %v5792
      %6940 = vmatprep.subr.mxu0 %v5787
      %6941 = vmatpush1.msra.mxu0 %v5786
      %6942 = vmatprep.subr.mxu0 %v5781
      %6943 = vmatpush1.msra.mxu0 %v5780
      %6944 = vmatprep.subr.mxu0 %v5775
      %6945 = vmatpush1.msra.mxu0 %v5774
      %6946 = vmatprep.subr.mxu0 %v5769
      %6947 = vmatpush1.msra.mxu0 %v5768
      %6948 = vmatprep.subr.mxu0 %v5763
      %6949 = vmatpush1.msra.mxu0 %v5762
      %6950 = vmatprep.subr.mxu0 %v5757
      %6951 = vmatpush1.msra.mxu0 %v5756
      %6952 = vmatprep.subr.mxu0 0.0
      %6953 = vmatpush2.msra.mxu0 0.0
      %6954 = vmatprep.subr.mxu0 0.0
      %6955 = vmatpush2.msra.mxu0 0.0
      %6956 = vmatprep.subr.mxu0 0.0
      %6957 = vmatpush2.msra.mxu0 0.0
      %6958 = vmatprep.subr.mxu0 0.0
      %6959 = vmatpush2.msra.mxu0 0.0
      %6960 = vmatprep.subr.mxu0 0.0
      %6961 = vmatpush2.msra.mxu0 0.0
      %6962 = vmatprep.subr.mxu0 0.0
      %6963 = vmatpush2.msra.mxu0 0.0
      %6964 = vmatprep.subr.mxu0 0.0
      %6965 = vmatpush2.msra.mxu0 0.0
      %6966 = vmatprep.subr.mxu0 0.0
      %6967 = vmatpush2.msra.mxu0 0.0
      %6968 = vmatprep.subr.mxu0 0.0
      %6969 = vmatpush2.msra.mxu0 0.0
      %6970 = vmatprep.subr.mxu0 0.0
      %6971 = vmatpush2.msra.mxu0 0.0
      %6972 = vmatprep.subr.mxu0 0.0
      %6973 = vmatpush2.msra.mxu0 0.0
      %6974 = vmatprep.subr.mxu0 0.0
      %6975 = vmatpush2.msra.mxu0 0.0
      %6976 = vmatprep.subr.mxu0 %v5871
      %6977 = vmatpush2.msra.mxu0 %v5870
      %6978 = vmatprep.subr.mxu0 %v5865
      %6979 = vmatpush2.msra.mxu0 %v5864
      %6980 = vmatprep.subr.mxu0 %v5859
      %6981 = vmatpush2.msra.mxu0 %v5858
      %6982 = vmatprep.subr.mxu0 %v5853
      %6983 = vmatpush2.msra.mxu0 %v5852
      %6984 = vmatprep.mubr.f32.mxu0 %v2980
      %6985 = vmatmul.mubr.f32.gmra.mxu0 %v2256
      %v6986 = vpop.f32.mrf.mxu0
      %v6987 = vadd.f32 %v6778, %v6986
      %v6988 = vpop.f32.mrf.mxu0
      %v6989 = vadd.f32 %v6780, %v6988
      %6990 = vmatprep.mubr.f32.mxu0 %v2983
      %6991 = vmatmul.mubr.f32.gmra.mxu0 %v2260
      %v6992 = vpop.f32.mrf.mxu0
      %v6993 = vadd.f32 %v6784, %v6992
      %v6994 = vpop.f32.mrf.mxu0
      %v6995 = vadd.f32 %v6786, %v6994
      %6996 = vmatprep.mubr.f32.mxu0 %v2986
      %6997 = vmatmul.mubr.f32.gmra.mxu0 %v2264
      %v6998 = vpop.f32.mrf.mxu0
      %v6999 = vadd.f32 %v6790, %v6998
      %v7000 = vpop.f32.mrf.mxu0
      %v7001 = vadd.f32 %v6792, %v7000
      %7002 = vmatprep.mubr.f32.mxu0 %v2989
      %7003 = vmatmul.mubr.f32.gmra.mxu0 %v2268
      %v7004 = vpop.f32.mrf.mxu0
      %v7005 = vadd.f32 %v6796, %v7004
      %v7006 = vpop.f32.mrf.mxu0
      %v7007 = vadd.f32 %v6798, %v7006
      %7008 = vmatprep.mubr.f32.mxu0 %v2992
      %7009 = vmatmul.mubr.f32.gmra.mxu0 %v2272
      %v7010 = vpop.f32.mrf.mxu0
      %v7011 = vadd.f32 %v6802, %v7010
      %v7012 = vpop.f32.mrf.mxu0
      %v7013 = vadd.f32 %v6804, %v7012
      %7014 = vmatprep.mubr.f32.mxu0 %v2995
      %7015 = vmatmul.mubr.f32.gmra.mxu0 %v2276
      %v7016 = vpop.f32.mrf.mxu0
      %v7017 = vadd.f32 %v6808, %v7016
      %v7018 = vpop.f32.mrf.mxu0
      %v7019 = vadd.f32 %v6810, %v7018
      %7020 = vmatprep.mubr.f32.mxu0 %v2998
      %7021 = vmatmul.mubr.f32.gmra.mxu0 %v2280
      %v7022 = vpop.f32.mrf.mxu0
      %v7023 = vadd.f32 %v6814, %v7022
      %v7024 = vpop.f32.mrf.mxu0
      %v7025 = vadd.f32 %v6816, %v7024
      %7026 = vmatprep.mubr.f32.mxu0 %v3001
      %7027 = vmatmul.mubr.f32.gmra.mxu0 %v2284
      %v7028 = vpop.f32.mrf.mxu0
      %v7029 = vadd.f32 %v6820, %v7028
      %v7030 = vpop.f32.mrf.mxu0
      %v7031 = vadd.f32 %v6822, %v7030
      %7032 = vmatprep.mubr.f32.mxu0 %v3004
      %7033 = vmatmul.mubr.f32.gmra.mxu0 %v2288
      %v7034 = vpop.f32.mrf.mxu0
      %v7035 = vadd.f32 %v6826, %v7034
      %v7036 = vpop.f32.mrf.mxu0
      %v7037 = vadd.f32 %v6828, %v7036
      %7038 = vmatprep.mubr.f32.mxu0 %v3007
      %7039 = vmatmul.mubr.f32.gmra.mxu0 %v2292
      %v7040 = vpop.f32.mrf.mxu0
      %v7041 = vadd.f32 %v6832, %v7040
      %v7042 = vpop.f32.mrf.mxu0
      %v7043 = vadd.f32 %v6834, %v7042
      %7044 = vmatprep.mubr.f32.mxu0 %v3010
      %7045 = vmatmul.mubr.f32.gmra.mxu0 %v2296
      %v7046 = vpop.f32.mrf.mxu0
      %v7047 = vadd.f32 %v6838, %v7046
      %v7048 = vpop.f32.mrf.mxu0
      %v7049 = vadd.f32 %v6840, %v7048
      %7050 = vmatprep.mubr.f32.mxu0 %v3013
      %7051 = vmatmul.mubr.f32.gmra.mxu0 %v2300
      %v7052 = vpop.f32.mrf.mxu0
      %v7053 = vadd.f32 %v6844, %v7052
      %v7054 = vpop.f32.mrf.mxu0
      %v7055 = vadd.f32 %v6846, %v7054
      %7056 = vmatprep.mubr.f32.mxu0 %v3016
      %7057 = vmatmul.mubr.f32.gmra.mxu0 %v2304
      %v7058 = vpop.f32.mrf.mxu0
      %v7059 = vadd.f32 %v6850, %v7058
      %v7060 = vpop.f32.mrf.mxu0
      %v7061 = vadd.f32 %v6852, %v7060
      %7062 = vmatprep.mubr.f32.mxu0 %v3019
      %7063 = vmatmul.mubr.f32.gmra.mxu0 %v2308
      %v7064 = vpop.f32.mrf.mxu0
      %v7065 = vadd.f32 %v6856, %v7064
      %v7066 = vpop.f32.mrf.mxu0
      %v7067 = vadd.f32 %v6858, %v7066
      %7068 = vmatprep.mubr.f32.mxu0 %v3022
      %7069 = vmatmul.mubr.f32.gmra.mxu0 %v2312
      %v7070 = vpop.f32.mrf.mxu0
      %v7071 = vadd.f32 %v6862, %v7070
      %v7072 = vpop.f32.mrf.mxu0
      %v7073 = vadd.f32 %v6864, %v7072
      %7074 = vmatprep.mubr.f32.mxu0 %v3025
      %7075 = vmatmul.mubr.f32.gmra.mxu0 %v2316
      %v7076 = vpop.f32.mrf.mxu0
      %v7077 = vadd.f32 %v6868, %v7076
      %v7078 = vpop.f32.mrf.mxu0
      %v7079 = vadd.f32 %v6870, %v7078
      %7080 = vmatprep.mubr.f32.mxu0 %v3028
      %7081 = vmatmul.mubr.f32.gmra.mxu0 %v2320
      %v7082 = vpop.f32.mrf.mxu0
      %v7083 = vadd.f32 %v6874, %v7082
      %v7084 = vpop.f32.mrf.mxu0
      %v7085 = vadd.f32 %v6876, %v7084
      %7086 = vmatprep.mubr.f32.mxu0 %v3031
      %7087 = vmatmul.mubr.f32.gmra.mxu0 %v2324
      %v7088 = vpop.f32.mrf.mxu0
      %v7089 = vadd.f32 %v6880, %v7088
      %v7090 = vpop.f32.mrf.mxu0
      %v7091 = vadd.f32 %v6882, %v7090
      %7092 = vmatprep.mubr.f32.mxu0 %v3034
      %7093 = vmatmul.mubr.f32.gmra.mxu0 %v2328
      %v7094 = vpop.f32.mrf.mxu0
      %v7095 = vadd.f32 %v6886, %v7094
      %v7096 = vpop.f32.mrf.mxu0
      %v7097 = vadd.f32 %v6888, %v7096
      %7098 = vmatprep.mubr.f32.mxu0 %v3037
      %7099 = vmatmul.mubr.f32.gmra.mxu0 %v2332
      %v7100 = vpop.f32.mrf.mxu0
      %v7101 = vadd.f32 %v6892, %v7100
      %v7102 = vpop.f32.mrf.mxu0
      %v7103 = vadd.f32 %v6894, %v7102
      %7104 = vmatprep.mubr.f32.mxu0 %v3040
      %7105 = vmatmul.mubr.f32.gmra.mxu0 %v2336
      %v7106 = vpop.f32.mrf.mxu0
      %v7107 = vadd.f32 %v6898, %v7106
      %v7108 = vpop.f32.mrf.mxu0
      %v7109 = vadd.f32 %v6900, %v7108
      %7110 = vmatprep.mubr.f32.mxu0 %v3043
      %7111 = vmatmul.mubr.f32.gmra.mxu0 %v2340
      %v7112 = vpop.f32.mrf.mxu0
      %v7113 = vadd.f32 %v6904, %v7112
      %v7114 = vpop.f32.mrf.mxu0
      %v7115 = vadd.f32 %v6906, %v7114
      %7116 = vmatprep.mubr.f32.mxu0 %v3046
      %7117 = vmatmul.mubr.f32.gmra.mxu0 %v2344
      %v7118 = vpop.f32.mrf.mxu0
      %v7119 = vadd.f32 %v6910, %v7118
      %v7120 = vpop.f32.mrf.mxu0
      %v7121 = vadd.f32 %v6912, %v7120
      %7122 = vmatprep.mubr.f32.mxu0 %v5873
      %7123 = vmatmul.mubr.f32.gmra.mxu0 %v2348
      %v7124 = vpop.f32.mrf.mxu0
      %v7125 = vadd.f32 %v6916, %v7124
      %v7126 = vpop.f32.mrf.mxu0
      %v7127 = vadd.f32 %v6918, %v7126
      %7128 = vdwg.mxu0
      %v7129 = vadd.f32 %v4581, %v6151
      %v7130 = vadd.f32 %v4583, %v6153
      %v7131 = vadd.f32 %v4999, %v6569
      %v7132 = vadd.f32 %v5001, %v6571
      %v7133 = vadd.f32 %v5417, %v6987
      %v7134 = vadd.f32 %v5419, %v6989
      %v7135 = vadd.f32 %v4587, %v6157
      %v7136 = vadd.f32 %v4589, %v6159
      %v7137 = vadd.f32 %v5005, %v6575
      %v7138 = vadd.f32 %v5007, %v6577
      %v7139 = vadd.f32 %v5423, %v6993
      %v7140 = vadd.f32 %v5425, %v6995
      %v7141 = vadd.f32 %v4593, %v6163
      %v7142 = vadd.f32 %v4595, %v6165
      %v7143 = vadd.f32 %v5011, %v6581
      %v7144 = vadd.f32 %v5013, %v6583
      %v7145 = vadd.f32 %v5429, %v6999
      %v7146 = vadd.f32 %v5431, %v7001
      %v7147 = vadd.f32 %v4599, %v6169
      %v7148 = vadd.f32 %v4601, %v6171
      %v7149 = vadd.f32 %v5017, %v6587
      %v7150 = vadd.f32 %v5019, %v6589
      %v7151 = vadd.f32 %v5435, %v7005
      %v7152 = vadd.f32 %v5437, %v7007
      %v7153 = vadd.f32 %v4605, %v6175
      %v7154 = vadd.f32 %v4607, %v6177
      %v7155 = vadd.f32 %v5023, %v6593
      %v7156 = vadd.f32 %v5025, %v6595
      %v7157 = vadd.f32 %v5441, %v7011
      %v7158 = vadd.f32 %v5443, %v7013
      %v7159 = vadd.f32 %v4611, %v6181
      %v7160 = vadd.f32 %v4613, %v6183
      %v7161 = vadd.f32 %v5029, %v6599
      %v7162 = vadd.f32 %v5031, %v6601
      %v7163 = vadd.f32 %v5447, %v7017
      %v7164 = vadd.f32 %v5449, %v7019
      %v7165 = vadd.f32 %v4617, %v6187
      %v7166 = vadd.f32 %v4619, %v6189
      %v7167 = vadd.f32 %v5035, %v6605
      %v7168 = vadd.f32 %v5037, %v6607
      %v7169 = vadd.f32 %v5453, %v7023
      %v7170 = vadd.f32 %v5455, %v7025
      %v7171 = vadd.f32 %v4623, %v6193
      %v7172 = vadd.f32 %v4625, %v6195
      %v7173 = vadd.f32 %v5041, %v6611
      %v7174 = vadd.f32 %v5043, %v6613
      %v7175 = vadd.f32 %v5459, %v7029
      %v7176 = vadd.f32 %v5461, %v7031
      %v7177 = vadd.f32 %v4629, %v6199
      %v7178 = vadd.f32 %v4631, %v6201
      %v7179 = vadd.f32 %v5047, %v6617
      %v7180 = vadd.f32 %v5049, %v6619
      %v7181 = vadd.f32 %v5465, %v7035
      %v7182 = vadd.f32 %v5467, %v7037
      %v7183 = vadd.f32 %v4635, %v6205
      %v7184 = vadd.f32 %v4637, %v6207
      %v7185 = vadd.f32 %v5053, %v6623
      %v7186 = vadd.f32 %v5055, %v6625
      %v7187 = vadd.f32 %v5471, %v7041
      %v7188 = vadd.f32 %v5473, %v7043
      %v7189 = vadd.f32 %v4641, %v6211
      %v7190 = vadd.f32 %v4643, %v6213
      %v7191 = vadd.f32 %v5059, %v6629
      %v7192 = vadd.f32 %v5061, %v6631
      %v7193 = vadd.f32 %v5477, %v7047
      %v7194 = vadd.f32 %v5479, %v7049
      %v7195 = vadd.f32 %v4647, %v6217
      %v7196 = vadd.f32 %v4649, %v6219
      %v7197 = vadd.f32 %v5065, %v6635
      %v7198 = vadd.f32 %v5067, %v6637
      %v7199 = vadd.f32 %v5483, %v7053
      %v7200 = vadd.f32 %v5485, %v7055
      %v7201 = vadd.f32 %v4653, %v6223
      %v7202 = vadd.f32 %v4655, %v6225
      %v7203 = vadd.f32 %v5071, %v6641
      %v7204 = vadd.f32 %v5073, %v6643
      %v7205 = vadd.f32 %v5489, %v7059
      %v7206 = vadd.f32 %v5491, %v7061
      %v7207 = vadd.f32 %v4659, %v6229
      %v7208 = vadd.f32 %v4661, %v6231
      %v7209 = vadd.f32 %v5077, %v6647
      %v7210 = vadd.f32 %v5079, %v6649
      %v7211 = vadd.f32 %v5495, %v7065
      %v7212 = vadd.f32 %v5497, %v7067
      %v7213 = vadd.f32 %v4665, %v6235
      %v7214 = vadd.f32 %v4667, %v6237
      %v7215 = vadd.f32 %v5083, %v6653
      %v7216 = vadd.f32 %v5085, %v6655
      %v7217 = vadd.f32 %v5501, %v7071
      %v7218 = vadd.f32 %v5503, %v7073
      %v7219 = vadd.f32 %v4671, %v6241
      %v7220 = vadd.f32 %v4673, %v6243
      %v7221 = vadd.f32 %v5089, %v6659
      %v7222 = vadd.f32 %v5091, %v6661
      %v7223 = vadd.f32 %v5507, %v7077
      %v7224 = vadd.f32 %v5509, %v7079
      %v7225 = vadd.f32 %v4677, %v6247
      %v7226 = vadd.f32 %v4679, %v6249
      %v7227 = vadd.f32 %v5095, %v6665
      %v7228 = vadd.f32 %v5097, %v6667
      %v7229 = vadd.f32 %v5513, %v7083
      %v7230 = vadd.f32 %v5515, %v7085
      %v7231 = vadd.f32 %v4683, %v6253
      %v7232 = vadd.f32 %v4685, %v6255
      %v7233 = vadd.f32 %v5101, %v6671
      %v7234 = vadd.f32 %v5103, %v6673
      %v7235 = vadd.f32 %v5519, %v7089
      %v7236 = vadd.f32 %v5521, %v7091
      %v7237 = vadd.f32 %v4689, %v6259
      %v7238 = vadd.f32 %v4691, %v6261
      %v7239 = vadd.f32 %v5107, %v6677
      %v7240 = vadd.f32 %v5109, %v6679
      %v7241 = vadd.f32 %v5525, %v7095
      %v7242 = vadd.f32 %v5527, %v7097
      %v7243 = vadd.f32 %v4695, %v6265
      %v7244 = vadd.f32 %v4697, %v6267
      %v7245 = vadd.f32 %v5113, %v6683
      %v7246 = vadd.f32 %v5115, %v6685
      %v7247 = vadd.f32 %v5531, %v7101
      %v7248 = vadd.f32 %v5533, %v7103
      %v7249 = vadd.f32 %v4701, %v6271
      %v7250 = vadd.f32 %v4703, %v6273
      %v7251 = vadd.f32 %v5119, %v6689
      %v7252 = vadd.f32 %v5121, %v6691
      %v7253 = vadd.f32 %v5537, %v7107
      %v7254 = vadd.f32 %v5539, %v7109
      %v7255 = vadd.f32 %v4707, %v6277
      %v7256 = vadd.f32 %v4709, %v6279
      %v7257 = vadd.f32 %v5125, %v6695
      %v7258 = vadd.f32 %v5127, %v6697
      %v7259 = vadd.f32 %v5543, %v7113
      %v7260 = vadd.f32 %v5545, %v7115
      %v7261 = vadd.f32 %v4713, %v6283
      %v7262 = vadd.f32 %v4715, %v6285
      %v7263 = vadd.f32 %v5131, %v6701
      %v7264 = vadd.f32 %v5133, %v6703
      %v7265 = vadd.f32 %v5549, %v7119
      %v7266 = vadd.f32 %v5551, %v7121
      %v7267 = vadd.f32 %v4719, %v6289
      %v7268 = vadd.f32 %v4721, %v6291
      %v7269 = vadd.f32 %v5137, %v6707
      %v7270 = vadd.f32 %v5139, %v6709
      %v7271 = vadd.f32 %v5555, %v7125
      %v7272 = vadd.f32 %v5557, %v7127
      %v7273 = vld [vmem:[%s466] sm:$0x3f]
      %v7275 = vlaneseq
      %v7276 = vshrl.u32 %v7275, 7
      %v7277 = vsub.s32 0, %v7276
      %v7278 = vrot.slane %v7273, %v7277
      %v7279 = vlaneseq
      %v7280 = vshrl.u32 %v7279, 7
      %v7281 = vsub.s32 1, %v7280
      %v7282 = vrot.slane %v7273, %v7281
      %v7283 = vlaneseq
      %v7284 = vshrl.u32 %v7283, 7
      %v7285 = vsub.s32 2, %v7284
      %v7286 = vrot.slane %v7273, %v7285
      %v7287 = vlaneseq
      %v7288 = vshrl.u32 %v7287, 7
      %v7289 = vsub.s32 3, %v7288
      %v7290 = vrot.slane %v7273, %v7289
      %v7291 = vlaneseq
      %v7292 = vshrl.u32 %v7291, 7
      %v7293 = vsub.s32 4, %v7292
      %v7294 = vrot.slane %v7273, %v7293
      %v7295 = vlaneseq
      %v7296 = vshrl.u32 %v7295, 7
      %v7297 = vsub.s32 5, %v7296
      %v7298 = vrot.slane %v7273, %v7297
      %v7305 = vadd.f32 %v7129, %v7278
      %v7306 = vadd.f32 %v7130, %v7282
      %v7307 = vadd.f32 %v7131, %v7286
      %v7308 = vadd.f32 %v7132, %v7290
      %v7309 = vadd.f32 %v7133, %v7294
      %v7310 = vadd.f32 %v7134, %v7298
      %v7311 = vadd.f32 %v7135, %v7278
      %v7312 = vadd.f32 %v7136, %v7282
      %v7313 = vadd.f32 %v7137, %v7286
      %v7314 = vadd.f32 %v7138, %v7290
      %v7315 = vadd.f32 %v7139, %v7294
      %v7316 = vadd.f32 %v7140, %v7298
      %v7317 = vadd.f32 %v7141, %v7278
      %v7318 = vadd.f32 %v7142, %v7282
      %v7319 = vadd.f32 %v7143, %v7286
      %v7320 = vadd.f32 %v7144, %v7290
      %v7321 = vadd.f32 %v7145, %v7294
      %v7322 = vadd.f32 %v7146, %v7298
      %v7323 = vadd.f32 %v7147, %v7278
      %v7324 = vadd.f32 %v7148, %v7282
      %v7325 = vadd.f32 %v7149, %v7286
      %v7326 = vadd.f32 %v7150, %v7290
      %v7327 = vadd.f32 %v7151, %v7294
      %v7328 = vadd.f32 %v7152, %v7298
      %v7329 = vadd.f32 %v7153, %v7278
      %v7330 = vadd.f32 %v7154, %v7282
      %v7331 = vadd.f32 %v7155, %v7286
      %v7332 = vadd.f32 %v7156, %v7290
      %v7333 = vadd.f32 %v7157, %v7294
      %v7334 = vadd.f32 %v7158, %v7298
      %v7335 = vadd.f32 %v7159, %v7278
      %v7336 = vadd.f32 %v7160, %v7282
      %v7337 = vadd.f32 %v7161, %v7286
      %v7338 = vadd.f32 %v7162, %v7290
      %v7339 = vadd.f32 %v7163, %v7294
      %v7340 = vadd.f32 %v7164, %v7298
      %v7341 = vadd.f32 %v7165, %v7278
      %v7342 = vadd.f32 %v7166, %v7282
      %v7343 = vadd.f32 %v7167, %v7286
      %v7344 = vadd.f32 %v7168, %v7290
      %v7345 = vadd.f32 %v7169, %v7294
      %v7346 = vadd.f32 %v7170, %v7298
      %v7347 = vadd.f32 %v7171, %v7278
      %v7348 = vadd.f32 %v7172, %v7282
      %v7349 = vadd.f32 %v7173, %v7286
      %v7350 = vadd.f32 %v7174, %v7290
      %v7351 = vadd.f32 %v7175, %v7294
      %v7352 = vadd.f32 %v7176, %v7298
      %v7353 = vadd.f32 %v7177, %v7278
      %v7354 = vadd.f32 %v7178, %v7282
      %v7355 = vadd.f32 %v7179, %v7286
      %v7356 = vadd.f32 %v7180, %v7290
      %v7357 = vadd.f32 %v7181, %v7294
      %v7358 = vadd.f32 %v7182, %v7298
      %v7359 = vadd.f32 %v7183, %v7278
      %v7360 = vadd.f32 %v7184, %v7282
      %v7361 = vadd.f32 %v7185, %v7286
      %v7362 = vadd.f32 %v7186, %v7290
      %v7363 = vadd.f32 %v7187, %v7294
      %v7364 = vadd.f32 %v7188, %v7298
      %v7365 = vadd.f32 %v7189, %v7278
      %v7366 = vadd.f32 %v7190, %v7282
      %v7367 = vadd.f32 %v7191, %v7286
      %v7368 = vadd.f32 %v7192, %v7290
      %v7369 = vadd.f32 %v7193, %v7294
      %v7370 = vadd.f32 %v7194, %v7298
      %v7371 = vadd.f32 %v7195, %v7278
      %v7372 = vadd.f32 %v7196, %v7282
      %v7373 = vadd.f32 %v7197, %v7286
      %v7374 = vadd.f32 %v7198, %v7290
      %v7375 = vadd.f32 %v7199, %v7294
      %v7376 = vadd.f32 %v7200, %v7298
      %v7377 = vadd.f32 %v7201, %v7278
      %v7378 = vadd.f32 %v7202, %v7282
      %v7379 = vadd.f32 %v7203, %v7286
      %v7380 = vadd.f32 %v7204, %v7290
      %v7381 = vadd.f32 %v7205, %v7294
      %v7382 = vadd.f32 %v7206, %v7298
      %v7383 = vadd.f32 %v7207, %v7278
      %v7384 = vadd.f32 %v7208, %v7282
      %v7385 = vadd.f32 %v7209, %v7286
      %v7386 = vadd.f32 %v7210, %v7290
      %v7387 = vadd.f32 %v7211, %v7294
      %v7388 = vadd.f32 %v7212, %v7298
      %v7389 = vadd.f32 %v7213, %v7278
      %v7390 = vadd.f32 %v7214, %v7282
      %v7391 = vadd.f32 %v7215, %v7286
      %v7392 = vadd.f32 %v7216, %v7290
      %v7393 = vadd.f32 %v7217, %v7294
      %v7394 = vadd.f32 %v7218, %v7298
      %v7395 = vadd.f32 %v7219, %v7278
      %v7396 = vadd.f32 %v7220, %v7282
      %v7397 = vadd.f32 %v7221, %v7286
      %v7398 = vadd.f32 %v7222, %v7290
      %v7399 = vadd.f32 %v7223, %v7294
      %v7400 = vadd.f32 %v7224, %v7298
      %v7401 = vadd.f32 %v7225, %v7278
      %v7402 = vadd.f32 %v7226, %v7282
      %v7403 = vadd.f32 %v7227, %v7286
      %v7404 = vadd.f32 %v7228, %v7290
      %v7405 = vadd.f32 %v7229, %v7294
      %v7406 = vadd.f32 %v7230, %v7298
      %v7407 = vadd.f32 %v7231, %v7278
      %v7408 = vadd.f32 %v7232, %v7282
      %v7409 = vadd.f32 %v7233, %v7286
      %v7410 = vadd.f32 %v7234, %v7290
      %v7411 = vadd.f32 %v7235, %v7294
      %v7412 = vadd.f32 %v7236, %v7298
      %v7413 = vadd.f32 %v7237, %v7278
      %v7414 = vadd.f32 %v7238, %v7282
      %v7415 = vadd.f32 %v7239, %v7286
      %v7416 = vadd.f32 %v7240, %v7290
      %v7417 = vadd.f32 %v7241, %v7294
      %v7418 = vadd.f32 %v7242, %v7298
      %v7419 = vadd.f32 %v7243, %v7278
      %v7420 = vadd.f32 %v7244, %v7282
      %v7421 = vadd.f32 %v7245, %v7286
      %v7422 = vadd.f32 %v7246, %v7290
      %v7423 = vadd.f32 %v7247, %v7294
      %v7424 = vadd.f32 %v7248, %v7298
      %v7425 = vadd.f32 %v7249, %v7278
      %v7426 = vadd.f32 %v7250, %v7282
      %v7427 = vadd.f32 %v7251, %v7286
      %v7428 = vadd.f32 %v7252, %v7290
      %v7429 = vadd.f32 %v7253, %v7294
      %v7430 = vadd.f32 %v7254, %v7298
      %v7431 = vadd.f32 %v7255, %v7278
      %v7432 = vadd.f32 %v7256, %v7282
      %v7433 = vadd.f32 %v7257, %v7286
      %v7434 = vadd.f32 %v7258, %v7290
      %v7435 = vadd.f32 %v7259, %v7294
      %v7436 = vadd.f32 %v7260, %v7298
      %v7437 = vadd.f32 %v7261, %v7278
      %v7438 = vadd.f32 %v7262, %v7282
      %v7439 = vadd.f32 %v7263, %v7286
      %v7440 = vadd.f32 %v7264, %v7290
      %v7441 = vadd.f32 %v7265, %v7294
      %v7442 = vadd.f32 %v7266, %v7298
      %v7443 = vadd.f32 %v7267, %v7278
      %v7444 = vadd.f32 %v7268, %v7282
      %v7445 = vadd.f32 %v7269, %v7286
      %v7446 = vadd.f32 %v7270, %v7290
      %v7447 = vadd.f32 %v7271, %v7294
      %v7448 = vadd.f32 %v7272, %v7298
      %v7449 = vmax.f32 %v7305, 0.0
      %v7450 = vmax.f32 %v7306, 0.0
      %v7451 = vmax.f32 %v7307, 0.0
      %v7452 = vmax.f32 %v7308, 0.0
      %v7453 = vmax.f32 %v7309, 0.0
      %v7454 = vmax.f32 %v7310, 0.0
      %v7455 = vmax.f32 %v7311, 0.0
      %v7456 = vmax.f32 %v7312, 0.0
      %v7457 = vmax.f32 %v7313, 0.0
      %v7458 = vmax.f32 %v7314, 0.0
      %v7459 = vmax.f32 %v7315, 0.0
      %v7460 = vmax.f32 %v7316, 0.0
      %v7461 = vmax.f32 %v7317, 0.0
      %v7462 = vmax.f32 %v7318, 0.0
      %v7463 = vmax.f32 %v7319, 0.0
      %v7464 = vmax.f32 %v7320, 0.0
      %v7465 = vmax.f32 %v7321, 0.0
      %v7466 = vmax.f32 %v7322, 0.0
      %v7467 = vmax.f32 %v7323, 0.0
      %v7468 = vmax.f32 %v7324, 0.0
      %v7469 = vmax.f32 %v7325, 0.0
      %v7470 = vmax.f32 %v7326, 0.0
      %v7471 = vmax.f32 %v7327, 0.0
      %v7472 = vmax.f32 %v7328, 0.0
      %v7473 = vmax.f32 %v7329, 0.0
      %v7474 = vmax.f32 %v7330, 0.0
      %v7475 = vmax.f32 %v7331, 0.0
      %v7476 = vmax.f32 %v7332, 0.0
      %v7477 = vmax.f32 %v7333, 0.0
      %v7478 = vmax.f32 %v7334, 0.0
      %v7479 = vmax.f32 %v7335, 0.0
      %v7480 = vmax.f32 %v7336, 0.0
      %v7481 = vmax.f32 %v7337, 0.0
      %v7482 = vmax.f32 %v7338, 0.0
      %v7483 = vmax.f32 %v7339, 0.0
      %v7484 = vmax.f32 %v7340, 0.0
      %v7485 = vmax.f32 %v7341, 0.0
      %v7486 = vmax.f32 %v7342, 0.0
      %v7487 = vmax.f32 %v7343, 0.0
      %v7488 = vmax.f32 %v7344, 0.0
      %v7489 = vmax.f32 %v7345, 0.0
      %v7490 = vmax.f32 %v7346, 0.0
      %v7491 = vmax.f32 %v7347, 0.0
      %v7492 = vmax.f32 %v7348, 0.0
      %v7493 = vmax.f32 %v7349, 0.0
      %v7494 = vmax.f32 %v7350, 0.0
      %v7495 = vmax.f32 %v7351, 0.0
      %v7496 = vmax.f32 %v7352, 0.0
      %v7497 = vmax.f32 %v7353, 0.0
      %v7498 = vmax.f32 %v7354, 0.0
      %v7499 = vmax.f32 %v7355, 0.0
      %v7500 = vmax.f32 %v7356, 0.0
      %v7501 = vmax.f32 %v7357, 0.0
      %v7502 = vmax.f32 %v7358, 0.0
      %v7503 = vmax.f32 %v7359, 0.0
      %v7504 = vmax.f32 %v7360, 0.0
      %v7505 = vmax.f32 %v7361, 0.0
      %v7506 = vmax.f32 %v7362, 0.0
      %v7507 = vmax.f32 %v7363, 0.0
      %v7508 = vmax.f32 %v7364, 0.0
      %v7509 = vmax.f32 %v7365, 0.0
      %v7510 = vmax.f32 %v7366, 0.0
      %v7511 = vmax.f32 %v7367, 0.0
      %v7512 = vmax.f32 %v7368, 0.0
      %v7513 = vmax.f32 %v7369, 0.0
      %v7514 = vmax.f32 %v7370, 0.0
      %v7515 = vmax.f32 %v7371, 0.0
      %v7516 = vmax.f32 %v7372, 0.0
      %v7517 = vmax.f32 %v7373, 0.0
      %v7518 = vmax.f32 %v7374, 0.0
      %v7519 = vmax.f32 %v7375, 0.0
      %v7520 = vmax.f32 %v7376, 0.0
      %v7521 = vmax.f32 %v7377, 0.0
      %v7522 = vmax.f32 %v7378, 0.0
      %v7523 = vmax.f32 %v7379, 0.0
      %v7524 = vmax.f32 %v7380, 0.0
      %v7525 = vmax.f32 %v7381, 0.0
      %v7526 = vmax.f32 %v7382, 0.0
      %v7527 = vmax.f32 %v7383, 0.0
      %v7528 = vmax.f32 %v7384, 0.0
      %v7529 = vmax.f32 %v7385, 0.0
      %v7530 = vmax.f32 %v7386, 0.0
      %v7531 = vmax.f32 %v7387, 0.0
      %v7532 = vmax.f32 %v7388, 0.0
      %v7533 = vmax.f32 %v7389, 0.0
      %v7534 = vmax.f32 %v7390, 0.0
      %v7535 = vmax.f32 %v7391, 0.0
      %v7536 = vmax.f32 %v7392, 0.0
      %v7537 = vmax.f32 %v7393, 0.0
      %v7538 = vmax.f32 %v7394, 0.0
      %v7539 = vmax.f32 %v7395, 0.0
      %v7540 = vmax.f32 %v7396, 0.0
      %v7541 = vmax.f32 %v7397, 0.0
      %v7542 = vmax.f32 %v7398, 0.0
      %v7543 = vmax.f32 %v7399, 0.0
      %v7544 = vmax.f32 %v7400, 0.0
      %v7545 = vmax.f32 %v7401, 0.0
      %v7546 = vmax.f32 %v7402, 0.0
      %v7547 = vmax.f32 %v7403, 0.0
      %v7548 = vmax.f32 %v7404, 0.0
      %v7549 = vmax.f32 %v7405, 0.0
      %v7550 = vmax.f32 %v7406, 0.0
      %v7551 = vmax.f32 %v7407, 0.0
      %v7552 = vmax.f32 %v7408, 0.0
      %v7553 = vmax.f32 %v7409, 0.0
      %v7554 = vmax.f32 %v7410, 0.0
      %v7555 = vmax.f32 %v7411, 0.0
      %v7556 = vmax.f32 %v7412, 0.0
      %v7557 = vmax.f32 %v7413, 0.0
      %v7558 = vmax.f32 %v7414, 0.0
      %v7559 = vmax.f32 %v7415, 0.0
      %v7560 = vmax.f32 %v7416, 0.0
      %v7561 = vmax.f32 %v7417, 0.0
      %v7562 = vmax.f32 %v7418, 0.0
      %v7563 = vmax.f32 %v7419, 0.0
      %v7564 = vmax.f32 %v7420, 0.0
      %v7565 = vmax.f32 %v7421, 0.0
      %v7566 = vmax.f32 %v7422, 0.0
      %v7567 = vmax.f32 %v7423, 0.0
      %v7568 = vmax.f32 %v7424, 0.0
      %v7569 = vmax.f32 %v7425, 0.0
      %v7570 = vmax.f32 %v7426, 0.0
      %v7571 = vmax.f32 %v7427, 0.0
      %v7572 = vmax.f32 %v7428, 0.0
      %v7573 = vmax.f32 %v7429, 0.0
      %v7574 = vmax.f32 %v7430, 0.0
      %v7575 = vmax.f32 %v7431, 0.0
      %v7576 = vmax.f32 %v7432, 0.0
      %v7577 = vmax.f32 %v7433, 0.0
      %v7578 = vmax.f32 %v7434, 0.0
      %v7579 = vmax.f32 %v7435, 0.0
      %v7580 = vmax.f32 %v7436, 0.0
      %v7581 = vmax.f32 %v7437, 0.0
      %v7582 = vmax.f32 %v7438, 0.0
      %v7583 = vmax.f32 %v7439, 0.0
      %v7584 = vmax.f32 %v7440, 0.0
      %v7585 = vmax.f32 %v7441, 0.0
      %v7586 = vmax.f32 %v7442, 0.0
      %v7587 = vmax.f32 %v7443, 0.0
      %v7588 = vmax.f32 %v7444, 0.0
      %v7589 = vmax.f32 %v7445, 0.0
      %v7590 = vmax.f32 %v7446, 0.0
      %v7591 = vmax.f32 %v7447, 0.0
      %v7592 = vmax.f32 %v7448, 0.0
      %v7593 = vmax.f32 %v7449, %v7452
      %v7594 = vmax.f32 %v7450, %v7453
      %v7595 = vmax.f32 %v7451, %v7454
      %v7596 = vmax.f32 %v7455, %v7458
      %v7597 = vmax.f32 %v7456, %v7459
      %v7598 = vmax.f32 %v7457, %v7460
      %v7599 = vmax.f32 %v7461, %v7464
      %v7600 = vmax.f32 %v7462, %v7465
      %v7601 = vmax.f32 %v7463, %v7466
      %v7602 = vmax.f32 %v7467, %v7470
      %v7603 = vmax.f32 %v7468, %v7471
      %v7604 = vmax.f32 %v7469, %v7472
      %v7605 = vmax.f32 %v7473, %v7476
      %v7606 = vmax.f32 %v7474, %v7477
      %v7607 = vmax.f32 %v7475, %v7478
      %v7608 = vmax.f32 %v7479, %v7482
      %v7609 = vmax.f32 %v7480, %v7483
      %v7610 = vmax.f32 %v7481, %v7484
      %v7611 = vmax.f32 %v7485, %v7488
      %v7612 = vmax.f32 %v7486, %v7489
      %v7613 = vmax.f32 %v7487, %v7490
      %v7614 = vmax.f32 %v7491, %v7494
      %v7615 = vmax.f32 %v7492, %v7495
      %v7616 = vmax.f32 %v7493, %v7496
      %v7617 = vmax.f32 %v7497, %v7500
      %v7618 = vmax.f32 %v7498, %v7501
      %v7619 = vmax.f32 %v7499, %v7502
      %v7620 = vmax.f32 %v7503, %v7506
      %v7621 = vmax.f32 %v7504, %v7507
      %v7622 = vmax.f32 %v7505, %v7508
      %v7623 = vmax.f32 %v7509, %v7512
      %v7624 = vmax.f32 %v7510, %v7513
      %v7625 = vmax.f32 %v7511, %v7514
      %v7626 = vmax.f32 %v7515, %v7518
      %v7627 = vmax.f32 %v7516, %v7519
      %v7628 = vmax.f32 %v7517, %v7520
      %v7629 = vmax.f32 %v7521, %v7524
      %v7630 = vmax.f32 %v7522, %v7525
      %v7631 = vmax.f32 %v7523, %v7526
      %v7632 = vmax.f32 %v7527, %v7530
      %v7633 = vmax.f32 %v7528, %v7531
      %v7634 = vmax.f32 %v7529, %v7532
      %v7635 = vmax.f32 %v7533, %v7536
      %v7636 = vmax.f32 %v7534, %v7537
      %v7637 = vmax.f32 %v7535, %v7538
      %v7638 = vmax.f32 %v7539, %v7542
      %v7639 = vmax.f32 %v7540, %v7543
      %v7640 = vmax.f32 %v7541, %v7544
      %v7641 = vmax.f32 %v7545, %v7548
      %v7642 = vmax.f32 %v7546, %v7549
      %v7643 = vmax.f32 %v7547, %v7550
      %v7644 = vmax.f32 %v7551, %v7554
      %v7645 = vmax.f32 %v7552, %v7555
      %v7646 = vmax.f32 %v7553, %v7556
      %v7647 = vmax.f32 %v7557, %v7560
      %v7648 = vmax.f32 %v7558, %v7561
      %v7649 = vmax.f32 %v7559, %v7562
      %v7650 = vmax.f32 %v7563, %v7566
      %v7651 = vmax.f32 %v7564, %v7567
      %v7652 = vmax.f32 %v7565, %v7568
      %v7653 = vmax.f32 %v7569, %v7572
      %v7654 = vmax.f32 %v7570, %v7573
      %v7655 = vmax.f32 %v7571, %v7574
      %v7656 = vmax.f32 %v7575, %v7578
      %v7657 = vmax.f32 %v7576, %v7579
      %v7658 = vmax.f32 %v7577, %v7580
      %v7659 = vmax.f32 %v7581, %v7584
      %v7660 = vmax.f32 %v7582, %v7585
      %v7661 = vmax.f32 %v7583, %v7586
      %v7662 = vmax.f32 %v7587, %v7590
      %v7663 = vmax.f32 %v7588, %v7591
      %v7664 = vmax.f32 %v7589, %v7592
      %v7665 = vmax.f32 %v7593, %v7596
      %v7666 = vmax.f32 %v7594, %v7597
      %v7667 = vmax.f32 %v7595, %v7598
      %v7668 = vmax.f32 %v7599, %v7602
      %v7669 = vmax.f32 %v7600, %v7603
      %v7670 = vmax.f32 %v7601, %v7604
      %v7671 = vmax.f32 %v7605, %v7608
      %v7672 = vmax.f32 %v7606, %v7609
      %v7673 = vmax.f32 %v7607, %v7610
      %v7674 = vmax.f32 %v7611, %v7614
      %v7675 = vmax.f32 %v7612, %v7615
      %v7676 = vmax.f32 %v7613, %v7616
      %v7677 = vmax.f32 %v7617, %v7620
      %v7678 = vmax.f32 %v7618, %v7621
      %v7679 = vmax.f32 %v7619, %v7622
      %v7680 = vmax.f32 %v7623, %v7626
      %v7681 = vmax.f32 %v7624, %v7627
      %v7682 = vmax.f32 %v7625, %v7628
      %v7683 = vmax.f32 %v7629, %v7632
      %v7684 = vmax.f32 %v7630, %v7633
      %v7685 = vmax.f32 %v7631, %v7634
      %v7686 = vmax.f32 %v7635, %v7638
      %v7687 = vmax.f32 %v7636, %v7639
      %v7688 = vmax.f32 %v7637, %v7640
      %v7689 = vmax.f32 %v7641, %v7644
      %v7690 = vmax.f32 %v7642, %v7645
      %v7691 = vmax.f32 %v7643, %v7646
      %v7692 = vmax.f32 %v7647, %v7650
      %v7693 = vmax.f32 %v7648, %v7651
      %v7694 = vmax.f32 %v7649, %v7652
      %v7695 = vmax.f32 %v7653, %v7656
      %v7696 = vmax.f32 %v7654, %v7657
      %v7697 = vmax.f32 %v7655, %v7658
      %v7698 = vmax.f32 %v7659, %v7662
      %v7699 = vmax.f32 %v7660, %v7663
      %v7700 = vmax.f32 %v7661, %v7664
      %v7701 = vld [vmem:[%s471] sm:$0xff]
      %v7702 = vld [vmem:[%s471 + $0x8] sm:$0xff]
      %v7703 = vld [vmem:[%s471 + $0x10] sm:$0xff]
      %v7704 = vld [vmem:[%s471 + $0x18] sm:$0xff]
      %v7705 = vld [vmem:[%s471 + $0x20] sm:$0xff]
      %v7706 = vld [vmem:[%s471 + $0x28] sm:$0xff]
      %v7707 = vld [vmem:[%s471 + $0x30] sm:$0xff]
      %v7708 = vld [vmem:[%s471 + $0x38] sm:$0xff]
      %v7709 = vld [vmem:[%s471 + $0x40] sm:$0xff]
      %v7710 = vld [vmem:[%s471 + $0x48] sm:$0xff]
      %v7711 = vld [vmem:[%s471 + $0x50] sm:$0xff]
      %v7712 = vld [vmem:[%s471 + $0x58] sm:$0xff]
      %v7713 = vld [vmem:[%s471 + $0x60] sm:$0xff]
      %v7714 = vld [vmem:[%s471 + $0x68] sm:$0xff]
      %v7715 = vld [vmem:[%s471 + $0x70] sm:$0xff]
      %v7716 = vld [vmem:[%s471 + $0x78] sm:$0xff]
      %v7717 = vld [vmem:[%s471 + $0x80] sm:$0xff]
      %v7718 = vld [vmem:[%s471 + $0x88] sm:$0xff]
      %v7719 = vld [vmem:[%s471 + $0x90] sm:$0xff]
      %v7720 = vld [vmem:[%s471 + $0x98] sm:$0xff]
      %v7721 = vld [vmem:[%s471 + $0xa0] sm:$0xff]
      %v7722 = vld [vmem:[%s471 + $0xa8] sm:$0xff]
      %v7723 = vld [vmem:[%s471 + $0xb0] sm:$0xff]
      %v7724 = vld [vmem:[%s471 + $0xb8] sm:$0xff]
      %v7725 = vld [vmem:[%s471 + $0xc0] sm:$0xff]
      %v7726 = vld [vmem:[%s471 + $0xc8] sm:$0xff]
      %v7727 = vld [vmem:[%s471 + $0xd0] sm:$0xff]
      %v7728 = vld [vmem:[%s471 + $0xd8] sm:$0xff]
      %v7729 = vld [vmem:[%s471 + $0xe0] sm:$0xff]
      %v7730 = vld [vmem:[%s471 + $0xe8] sm:$0xff]
      %v7731 = vld [vmem:[%s471 + $0xf0] sm:$0xff]
      %v7732 = vld [vmem:[%s471 + $0xf8] sm:$0xff]
      %v7733 = vld [vmem:[%s471 + $0x100] sm:$0xff]
      %v7734 = vld [vmem:[%s471 + $0x108] sm:$0xff]
      %v7735 = vld [vmem:[%s471 + $0x110] sm:$0xff]
      %v7736 = vld [vmem:[%s471 + $0x118] sm:$0xff]
      %v7737 = vld [vmem:[%s471 + $0x120] sm:$0xff]
      %v7738 = vld [vmem:[%s471 + $0x128] sm:$0xff]
      %v7739 = vld [vmem:[%s471 + $0x130] sm:$0xff]
      %v7740 = vld [vmem:[%s471 + $0x138] sm:$0xff]
      %v7741 = vld [vmem:[%s471 + $0x140] sm:$0xff]
      %v7742 = vld [vmem:[%s471 + $0x148] sm:$0xff]
      %v7743 = vld [vmem:[%s471 + $0x150] sm:$0xff]
      %v7744 = vld [vmem:[%s471 + $0x158] sm:$0xff]
      %v7745 = vld [vmem:[%s471 + $0x160] sm:$0xff]
      %v7746 = vld [vmem:[%s471 + $0x168] sm:$0xff]
      %v7747 = vld [vmem:[%s471 + $0x170] sm:$0xff]
      %v7748 = vld [vmem:[%s471 + $0x178] sm:$0xff]
      %s7749 = scalar_lea.vmem %s471, 384
      %v7750 = vld [vmem:[%s7749] sm:$0xff]
      %v7751 = vld [vmem:[%s7749 + $0x8] sm:$0xff]
      %v7752 = vld [vmem:[%s7749 + $0x10] sm:$0xff]
      %v7753 = vld [vmem:[%s7749 + $0x18] sm:$0xff]
      %v7754 = vld [vmem:[%s7749 + $0x20] sm:$0xff]
      %v7755 = vld [vmem:[%s7749 + $0x28] sm:$0xff]
      %v7756 = vld [vmem:[%s7749 + $0x30] sm:$0xff]
      %v7757 = vld [vmem:[%s7749 + $0x38] sm:$0xff]
      %v7758 = vld [vmem:[%s7749 + $0x40] sm:$0xff]
      %v7759 = vld [vmem:[%s7749 + $0x48] sm:$0xff]
      %v7760 = vld [vmem:[%s7749 + $0x50] sm:$0xff]
      %v7761 = vld [vmem:[%s7749 + $0x58] sm:$0xff]
      %v7762 = vld [vmem:[%s7749 + $0x60] sm:$0xff]
      %v7763 = vld [vmem:[%s7749 + $0x68] sm:$0xff]
      %v7764 = vld [vmem:[%s7749 + $0x70] sm:$0xff]
      %v7765 = vld [vmem:[%s7749 + $0x78] sm:$0xff]
      %v7766 = vld [vmem:[%s7749 + $0x80] sm:$0xff]
      %v7767 = vld [vmem:[%s7749 + $0x88] sm:$0xff]
      %v7768 = vld [vmem:[%s7749 + $0x90] sm:$0xff]
      %v7769 = vld [vmem:[%s7749 + $0x98] sm:$0xff]
      %v7770 = vld [vmem:[%s7749 + $0xa0] sm:$0xff]
      %v7771 = vld [vmem:[%s7749 + $0xa8] sm:$0xff]
      %v7772 = vld [vmem:[%s7749 + $0xb0] sm:$0xff]
      %v7773 = vld [vmem:[%s7749 + $0xb8] sm:$0xff]
      %v7774 = vld [vmem:[%s7749 + $0xc0] sm:$0xff]
      %v7775 = vld [vmem:[%s7749 + $0xc8] sm:$0xff]
      %v7776 = vld [vmem:[%s7749 + $0xd0] sm:$0xff]
      %v7777 = vld [vmem:[%s7749 + $0xd8] sm:$0xff]
      %v7778 = vld [vmem:[%s7749 + $0xe0] sm:$0xff]
      %v7779 = vld [vmem:[%s7749 + $0xe8] sm:$0xff]
      %v7780 = vld [vmem:[%s7749 + $0xf0] sm:$0xff]
      %v7781 = vld [vmem:[%s7749 + $0xf8] sm:$0xff]
      %v7782 = vld [vmem:[%s7749 + $0x100] sm:$0xff]
      %v7783 = vld [vmem:[%s7749 + $0x108] sm:$0xff]
      %v7784 = vld [vmem:[%s7749 + $0x110] sm:$0xff]
      %v7785 = vld [vmem:[%s7749 + $0x118] sm:$0xff]
      %v7786 = vld [vmem:[%s7749 + $0x120] sm:$0xff]
      %v7787 = vld [vmem:[%s7749 + $0x128] sm:$0xff]
      %v7788 = vld [vmem:[%s7749 + $0x130] sm:$0xff]
      %v7789 = vld [vmem:[%s7749 + $0x138] sm:$0xff]
      %v7790 = vld [vmem:[%s7749 + $0x140] sm:$0xff]
      %v7791 = vld [vmem:[%s7749 + $0x148] sm:$0xff]
      %v7792 = vld [vmem:[%s7749 + $0x150] sm:$0xff]
      %v7793 = vld [vmem:[%s7749 + $0x158] sm:$0xff]
      %v7794 = vld [vmem:[%s7749 + $0x160] sm:$0xff]
      %v7795 = vld [vmem:[%s7749 + $0x168] sm:$0xff]
      %v7796 = vld [vmem:[%s7749 + $0x170] sm:$0xff]
      %v7797 = vld [vmem:[%s7749 + $0x178] sm:$0xff]
      %7798 = vmatprep.subr.mxu0 0.0
      %7799 = vmatpush1.msra.mxu0 %v7765
      %7800 = vmatprep.subr.mxu0 0.0
      %7801 = vmatpush1.msra.mxu0 %v7764
      %7802 = vmatprep.subr.mxu0 0.0
      %7803 = vmatpush1.msra.mxu0 %v7763
      %7804 = vmatprep.subr.mxu0 0.0
      %7805 = vmatpush1.msra.mxu0 %v7762
      %7806 = vmatprep.subr.mxu0 0.0
      %7807 = vmatpush1.msra.mxu0 %v7761
      %7808 = vmatprep.subr.mxu0 0.0
      %7809 = vmatpush1.msra.mxu0 %v7760
      %7810 = vmatprep.subr.mxu0 0.0
      %7811 = vmatpush1.msra.mxu0 %v7759
      %7812 = vmatprep.subr.mxu0 0.0
      %7813 = vmatpush1.msra.mxu0 %v7758
      %7814 = vmatprep.subr.mxu0 0.0
      %7815 = vmatpush1.msra.mxu0 %v7757
      %7816 = vmatprep.subr.mxu0 0.0
      %7817 = vmatpush1.msra.mxu0 %v7756
      %7818 = vmatprep.subr.mxu0 0.0
      %7819 = vmatpush1.msra.mxu0 %v7755
      %7820 = vmatprep.subr.mxu0 0.0
      %7821 = vmatpush1.msra.mxu0 %v7754
      %7822 = vmatprep.subr.mxu0 0.0
      %7823 = vmatpush1.msra.mxu0 %v7753
      %7824 = vmatprep.subr.mxu0 0.0
      %7825 = vmatpush1.msra.mxu0 %v7752
      %7826 = vmatprep.subr.mxu0 0.0
      %7827 = vmatpush1.msra.mxu0 %v7751
      %7828 = vmatprep.subr.mxu0 0.0
      %7829 = vmatpush1.msra.mxu0 %v7750
      %7830 = vmatprep.subr.mxu0 0.0
      %7831 = vmatpush2.msra.mxu0 %v7781
      %7832 = vmatprep.subr.mxu0 0.0
      %7833 = vmatpush2.msra.mxu0 %v7780
      %7834 = vmatprep.subr.mxu0 0.0
      %7835 = vmatpush2.msra.mxu0 %v7779
      %7836 = vmatprep.subr.mxu0 0.0
      %7837 = vmatpush2.msra.mxu0 %v7778
      %7838 = vmatprep.subr.mxu0 0.0
      %7839 = vmatpush2.msra.mxu0 %v7777
      %7840 = vmatprep.subr.mxu0 0.0
      %7841 = vmatpush2.msra.mxu0 %v7776
      %7842 = vmatprep.subr.mxu0 0.0
      %7843 = vmatpush2.msra.mxu0 %v7775
      %7844 = vmatprep.subr.mxu0 0.0
      %7845 = vmatpush2.msra.mxu0 %v7774
      %7846 = vmatprep.subr.mxu0 0.0
      %7847 = vmatpush2.msra.mxu0 %v7773
      %7848 = vmatprep.subr.mxu0 0.0
      %7849 = vmatpush2.msra.mxu0 %v7772
      %7850 = vmatprep.subr.mxu0 0.0
      %7851 = vmatpush2.msra.mxu0 %v7771
      %7852 = vmatprep.subr.mxu0 0.0
      %7853 = vmatpush2.msra.mxu0 %v7770
      %7854 = vmatprep.subr.mxu0 0.0
      %7855 = vmatpush2.msra.mxu0 %v7769
      %7856 = vmatprep.subr.mxu0 0.0
      %7857 = vmatpush2.msra.mxu0 %v7768
      %7858 = vmatprep.subr.mxu0 0.0
      %7859 = vmatpush2.msra.mxu0 %v7767
      %7860 = vmatprep.subr.mxu0 0.0
      %7861 = vmatpush2.msra.mxu0 %v7766
      %7862 = vmatprep.mubr.f32.mxu0 %v7669
      %7863 = vmatmul.mubr.f32.gmra.mxu0 %v7668
      %v7864 = vpop.f32.mrf.mxu0
      %v7865 = vadd.f32 0.0, %v7864
      %v7866 = vpop.f32.mrf.mxu0
      %7867 = vdwg.mxu0
      %7868 = vmatprep.subr.mxu0 0.0
      %7869 = vmatpush1.msra.mxu0 %v7797
      %7870 = vmatprep.subr.mxu0 0.0
      %7871 = vmatpush1.msra.mxu0 %v7796
      %7872 = vmatprep.subr.mxu0 0.0
      %7873 = vmatpush1.msra.mxu0 %v7795
      %7874 = vmatprep.subr.mxu0 0.0
      %7875 = vmatpush1.msra.mxu0 %v7794
      %7876 = vmatprep.subr.mxu0 0.0
      %7877 = vmatpush1.msra.mxu0 %v7793
      %7878 = vmatprep.subr.mxu0 0.0
      %7879 = vmatpush1.msra.mxu0 %v7792
      %7880 = vmatprep.subr.mxu0 0.0
      %7881 = vmatpush1.msra.mxu0 %v7791
      %7882 = vmatprep.subr.mxu0 0.0
      %7883 = vmatpush1.msra.mxu0 %v7790
      %7884 = vmatprep.subr.mxu0 0.0
      %7885 = vmatpush1.msra.mxu0 %v7789
      %7886 = vmatprep.subr.mxu0 0.0
      %7887 = vmatpush1.msra.mxu0 %v7788
      %7888 = vmatprep.subr.mxu0 0.0
      %7889 = vmatpush1.msra.mxu0 %v7787
      %7890 = vmatprep.subr.mxu0 0.0
      %7891 = vmatpush1.msra.mxu0 %v7786
      %7892 = vmatprep.subr.mxu0 0.0
      %7893 = vmatpush1.msra.mxu0 %v7785
      %7894 = vmatprep.subr.mxu0 0.0
      %7895 = vmatpush1.msra.mxu0 %v7784
      %7896 = vmatprep.subr.mxu0 0.0
      %7897 = vmatpush1.msra.mxu0 %v7783
      %7898 = vmatprep.subr.mxu0 0.0
      %7899 = vmatpush1.msra.mxu0 %v7782
      %7900 = vmatprep.subr.mxu0 0.0
      %7901 = vmatpush2.msra.mxu0 0.0
      %7902 = vmatprep.subr.mxu0 0.0
      %7903 = vmatpush2.msra.mxu0 0.0
      %7904 = vmatprep.subr.mxu0 0.0
      %7905 = vmatpush2.msra.mxu0 0.0
      %7906 = vmatprep.subr.mxu0 0.0
      %7907 = vmatpush2.msra.mxu0 0.0
      %7908 = vmatprep.subr.mxu0 0.0
      %7909 = vmatpush2.msra.mxu0 0.0
      %7910 = vmatprep.subr.mxu0 0.0
      %7911 = vmatpush2.msra.mxu0 0.0
      %7912 = vmatprep.subr.mxu0 0.0
      %7913 = vmatpush2.msra.mxu0 0.0
      %7914 = vmatprep.subr.mxu0 0.0
      %7915 = vmatpush2.msra.mxu0 0.0
      %7916 = vmatprep.subr.mxu0 0.0
      %7917 = vmatpush2.msra.mxu0 0.0
      %7918 = vmatprep.subr.mxu0 0.0
      %7919 = vmatpush2.msra.mxu0 0.0
      %7920 = vmatprep.subr.mxu0 0.0
      %7921 = vmatpush2.msra.mxu0 0.0
      %7922 = vmatprep.subr.mxu0 0.0
      %7923 = vmatpush2.msra.mxu0 0.0
      %7924 = vmatprep.subr.mxu0 0.0
      %7925 = vmatpush2.msra.mxu0 0.0
      %7926 = vmatprep.subr.mxu0 0.0
      %7927 = vmatpush2.msra.mxu0 0.0
      %7928 = vmatprep.subr.mxu0 0.0
      %7929 = vmatpush2.msra.mxu0 0.0
      %7930 = vmatprep.subr.mxu0 0.0
      %7931 = vmatpush2.msra.mxu0 0.0
      %7932 = vmatprep.mubr.f32.mxu0 0.0
      %7933 = vmatmul.mubr.f32.gmra.mxu0 %v7670
      %v7934 = vpop.f32.mrf.mxu0
      %v7935 = vadd.f32 %v7865, %v7934
      %v7936 = vpop.f32.mrf.mxu0
      %7937 = vdwg.mxu0
      %7938 = vmatprep.subr.mxu0 0.0
      %7939 = vmatpush1.msra.mxu0 %v7716
      %7940 = vmatprep.subr.mxu0 0.0
      %7941 = vmatpush1.msra.mxu0 %v7715
      %7942 = vmatprep.subr.mxu0 0.0
      %7943 = vmatpush1.msra.mxu0 %v7714
      %7944 = vmatprep.subr.mxu0 0.0
      %7945 = vmatpush1.msra.mxu0 %v7713
      %7946 = vmatprep.subr.mxu0 0.0
      %7947 = vmatpush1.msra.mxu0 %v7712
      %7948 = vmatprep.subr.mxu0 0.0
      %7949 = vmatpush1.msra.mxu0 %v7711
      %7950 = vmatprep.subr.mxu0 0.0
      %7951 = vmatpush1.msra.mxu0 %v7710
      %7952 = vmatprep.subr.mxu0 0.0
      %7953 = vmatpush1.msra.mxu0 %v7709
      %7954 = vmatprep.subr.mxu0 0.0
      %7955 = vmatpush1.msra.mxu0 %v7708
      %7956 = vmatprep.subr.mxu0 0.0
      %7957 = vmatpush1.msra.mxu0 %v7707
      %7958 = vmatprep.subr.mxu0 0.0
      %7959 = vmatpush1.msra.mxu0 %v7706
      %7960 = vmatprep.subr.mxu0 0.0
      %7961 = vmatpush1.msra.mxu0 %v7705
      %7962 = vmatprep.subr.mxu0 0.0
      %7963 = vmatpush1.msra.mxu0 %v7704
      %7964 = vmatprep.subr.mxu0 0.0
      %7965 = vmatpush1.msra.mxu0 %v7703
      %7966 = vmatprep.subr.mxu0 0.0
      %7967 = vmatpush1.msra.mxu0 %v7702
      %7968 = vmatprep.subr.mxu0 0.0
      %7969 = vmatpush1.msra.mxu0 %v7701
      %7970 = vmatprep.subr.mxu0 0.0
      %7971 = vmatpush2.msra.mxu0 %v7732
      %7972 = vmatprep.subr.mxu0 0.0
      %7973 = vmatpush2.msra.mxu0 %v7731
      %7974 = vmatprep.subr.mxu0 0.0
      %7975 = vmatpush2.msra.mxu0 %v7730
      %7976 = vmatprep.subr.mxu0 0.0
      %7977 = vmatpush2.msra.mxu0 %v7729
      %7978 = vmatprep.subr.mxu0 0.0
      %7979 = vmatpush2.msra.mxu0 %v7728
      %7980 = vmatprep.subr.mxu0 0.0
      %7981 = vmatpush2.msra.mxu0 %v7727
      %7982 = vmatprep.subr.mxu0 0.0
      %7983 = vmatpush2.msra.mxu0 %v7726
      %7984 = vmatprep.subr.mxu0 0.0
      %7985 = vmatpush2.msra.mxu0 %v7725
      %7986 = vmatprep.subr.mxu0 0.0
      %7987 = vmatpush2.msra.mxu0 %v7724
      %7988 = vmatprep.subr.mxu0 0.0
      %7989 = vmatpush2.msra.mxu0 %v7723
      %7990 = vmatprep.subr.mxu0 0.0
      %7991 = vmatpush2.msra.mxu0 %v7722
      %7992 = vmatprep.subr.mxu0 0.0
      %7993 = vmatpush2.msra.mxu0 %v7721
      %7994 = vmatprep.subr.mxu0 0.0
      %7995 = vmatpush2.msra.mxu0 %v7720
      %7996 = vmatprep.subr.mxu0 0.0
      %7997 = vmatpush2.msra.mxu0 %v7719
      %7998 = vmatprep.subr.mxu0 0.0
      %7999 = vmatpush2.msra.mxu0 %v7718
      %8000 = vmatprep.subr.mxu0 0.0
      %8001 = vmatpush2.msra.mxu0 %v7717
      %8002 = vmatprep.mubr.f32.mxu0 %v7666
      %8003 = vmatmul.mubr.f32.gmra.mxu0 %v7665
      %v8004 = vpop.f32.mrf.mxu0
      %v8005 = vadd.f32 %v7935, %v8004
      %v8006 = vpop.f32.mrf.mxu0
      %8007 = vdwg.mxu0
      %8008 = vmatprep.subr.mxu0 0.0
      %8009 = vmatpush1.msra.mxu0 %v7748
      %8010 = vmatprep.subr.mxu0 0.0
      %8011 = vmatpush1.msra.mxu0 %v7747
      %8012 = vmatprep.subr.mxu0 0.0
      %8013 = vmatpush1.msra.mxu0 %v7746
      %8014 = vmatprep.subr.mxu0 0.0
      %8015 = vmatpush1.msra.mxu0 %v7745
      %8016 = vmatprep.subr.mxu0 0.0
      %8017 = vmatpush1.msra.mxu0 %v7744
      %8018 = vmatprep.subr.mxu0 0.0
      %8019 = vmatpush1.msra.mxu0 %v7743
      %8020 = vmatprep.subr.mxu0 0.0
      %8021 = vmatpush1.msra.mxu0 %v7742
      %8022 = vmatprep.subr.mxu0 0.0
      %8023 = vmatpush1.msra.mxu0 %v7741
      %8024 = vmatprep.subr.mxu0 0.0
      %8025 = vmatpush1.msra.mxu0 %v7740
      %8026 = vmatprep.subr.mxu0 0.0
      %8027 = vmatpush1.msra.mxu0 %v7739
      %8028 = vmatprep.subr.mxu0 0.0
      %8029 = vmatpush1.msra.mxu0 %v7738
      %8030 = vmatprep.subr.mxu0 0.0
      %8031 = vmatpush1.msra.mxu0 %v7737
      %8032 = vmatprep.subr.mxu0 0.0
      %8033 = vmatpush1.msra.mxu0 %v7736
      %8034 = vmatprep.subr.mxu0 0.0
      %8035 = vmatpush1.msra.mxu0 %v7735
      %8036 = vmatprep.subr.mxu0 0.0
      %8037 = vmatpush1.msra.mxu0 %v7734
      %8038 = vmatprep.subr.mxu0 0.0
      %8039 = vmatpush1.msra.mxu0 %v7733
      %8040 = vmatprep.subr.mxu0 0.0
      %8041 = vmatpush2.msra.mxu0 0.0
      %8042 = vmatprep.subr.mxu0 0.0
      %8043 = vmatpush2.msra.mxu0 0.0
      %8044 = vmatprep.subr.mxu0 0.0
      %8045 = vmatpush2.msra.mxu0 0.0
      %8046 = vmatprep.subr.mxu0 0.0
      %8047 = vmatpush2.msra.mxu0 0.0
      %8048 = vmatprep.subr.mxu0 0.0
      %8049 = vmatpush2.msra.mxu0 0.0
      %8050 = vmatprep.subr.mxu0 0.0
      %8051 = vmatpush2.msra.mxu0 0.0
      %8052 = vmatprep.subr.mxu0 0.0
      %8053 = vmatpush2.msra.mxu0 0.0
      %8054 = vmatprep.subr.mxu0 0.0
      %8055 = vmatpush2.msra.mxu0 0.0
      %8056 = vmatprep.subr.mxu0 0.0
      %8057 = vmatpush2.msra.mxu0 0.0
      %8058 = vmatprep.subr.mxu0 0.0
      %8059 = vmatpush2.msra.mxu0 0.0
      %8060 = vmatprep.subr.mxu0 0.0
      %8061 = vmatpush2.msra.mxu0 0.0
      %8062 = vmatprep.subr.mxu0 0.0
      %8063 = vmatpush2.msra.mxu0 0.0
      %8064 = vmatprep.subr.mxu0 0.0
      %8065 = vmatpush2.msra.mxu0 0.0
      %8066 = vmatprep.subr.mxu0 0.0
      %8067 = vmatpush2.msra.mxu0 0.0
      %8068 = vmatprep.subr.mxu0 0.0
      %8069 = vmatpush2.msra.mxu0 0.0
      %8070 = vmatprep.subr.mxu0 0.0
      %8071 = vmatpush2.msra.mxu0 0.0
      %8072 = vmatprep.mubr.f32.mxu0 0.0
      %8073 = vmatmul.mubr.f32.gmra.mxu0 %v7667
      %v8074 = vpop.f32.mrf.mxu0
      %v8075 = vadd.f32 %v8005, %v8074
      %v8076 = vpop.f32.mrf.mxu0
      %8077 = vdwg.mxu0
      %s8078 = scalar_lea.vmem %s471, 768
      %v8079 = vld [vmem:[%s8078] sm:$0xff]
      %v8080 = vld [vmem:[%s8078 + $0x8] sm:$0xff]
      %v8081 = vld [vmem:[%s8078 + $0x10] sm:$0xff]
      %v8082 = vld [vmem:[%s8078 + $0x18] sm:$0xff]
      %v8083 = vld [vmem:[%s8078 + $0x20] sm:$0xff]
      %v8084 = vld [vmem:[%s8078 + $0x28] sm:$0xff]
      %v8085 = vld [vmem:[%s8078 + $0x30] sm:$0xff]
      %v8086 = vld [vmem:[%s8078 + $0x38] sm:$0xff]
      %v8087 = vld [vmem:[%s8078 + $0x40] sm:$0xff]
      %v8088 = vld [vmem:[%s8078 + $0x48] sm:$0xff]
      %v8089 = vld [vmem:[%s8078 + $0x50] sm:$0xff]
      %v8090 = vld [vmem:[%s8078 + $0x58] sm:$0xff]
      %v8091 = vld [vmem:[%s8078 + $0x60] sm:$0xff]
      %v8092 = vld [vmem:[%s8078 + $0x68] sm:$0xff]
      %v8093 = vld [vmem:[%s8078 + $0x70] sm:$0xff]
      %v8094 = vld [vmem:[%s8078 + $0x78] sm:$0xff]
      %v8095 = vld [vmem:[%s8078 + $0x80] sm:$0xff]
      %v8096 = vld [vmem:[%s8078 + $0x88] sm:$0xff]
      %v8097 = vld [vmem:[%s8078 + $0x90] sm:$0xff]
      %v8098 = vld [vmem:[%s8078 + $0x98] sm:$0xff]
      %v8099 = vld [vmem:[%s8078 + $0xa0] sm:$0xff]
      %v8100 = vld [vmem:[%s8078 + $0xa8] sm:$0xff]
      %v8101 = vld [vmem:[%s8078 + $0xb0] sm:$0xff]
      %v8102 = vld [vmem:[%s8078 + $0xb8] sm:$0xff]
      %v8103 = vld [vmem:[%s8078 + $0xc0] sm:$0xff]
      %v8104 = vld [vmem:[%s8078 + $0xc8] sm:$0xff]
      %v8105 = vld [vmem:[%s8078 + $0xd0] sm:$0xff]
      %v8106 = vld [vmem:[%s8078 + $0xd8] sm:$0xff]
      %v8107 = vld [vmem:[%s8078 + $0xe0] sm:$0xff]
      %v8108 = vld [vmem:[%s8078 + $0xe8] sm:$0xff]
      %v8109 = vld [vmem:[%s8078 + $0xf0] sm:$0xff]
      %v8110 = vld [vmem:[%s8078 + $0xf8] sm:$0xff]
      %v8111 = vld [vmem:[%s8078 + $0x100] sm:$0xff]
      %v8112 = vld [vmem:[%s8078 + $0x108] sm:$0xff]
      %v8113 = vld [vmem:[%s8078 + $0x110] sm:$0xff]
      %v8114 = vld [vmem:[%s8078 + $0x118] sm:$0xff]
      %v8115 = vld [vmem:[%s8078 + $0x120] sm:$0xff]
      %v8116 = vld [vmem:[%s8078 + $0x128] sm:$0xff]
      %v8117 = vld [vmem:[%s8078 + $0x130] sm:$0xff]
      %v8118 = vld [vmem:[%s8078 + $0x138] sm:$0xff]
      %v8119 = vld [vmem:[%s8078 + $0x140] sm:$0xff]
      %v8120 = vld [vmem:[%s8078 + $0x148] sm:$0xff]
      %v8121 = vld [vmem:[%s8078 + $0x150] sm:$0xff]
      %v8122 = vld [vmem:[%s8078 + $0x158] sm:$0xff]
      %v8123 = vld [vmem:[%s8078 + $0x160] sm:$0xff]
      %v8124 = vld [vmem:[%s8078 + $0x168] sm:$0xff]
      %v8125 = vld [vmem:[%s8078 + $0x170] sm:$0xff]
      %v8126 = vld [vmem:[%s8078 + $0x178] sm:$0xff]
      %8127 = vmatprep.subr.mxu0 0.0
      %8128 = vmatpush1.msra.mxu0 %v8094
      %8129 = vmatprep.subr.mxu0 0.0
      %8130 = vmatpush1.msra.mxu0 %v8093
      %8131 = vmatprep.subr.mxu0 0.0
      %8132 = vmatpush1.msra.mxu0 %v8092
      %8133 = vmatprep.subr.mxu0 0.0
      %8134 = vmatpush1.msra.mxu0 %v8091
      %8135 = vmatprep.subr.mxu0 0.0
      %8136 = vmatpush1.msra.mxu0 %v8090
      %8137 = vmatprep.subr.mxu0 0.0
      %8138 = vmatpush1.msra.mxu0 %v8089
      %8139 = vmatprep.subr.mxu0 0.0
      %8140 = vmatpush1.msra.mxu0 %v8088
      %8141 = vmatprep.subr.mxu0 0.0
      %8142 = vmatpush1.msra.mxu0 %v8087
      %8143 = vmatprep.subr.mxu0 0.0
      %8144 = vmatpush1.msra.mxu0 %v8086
      %8145 = vmatprep.subr.mxu0 0.0
      %8146 = vmatpush1.msra.mxu0 %v8085
      %8147 = vmatprep.subr.mxu0 0.0
      %8148 = vmatpush1.msra.mxu0 %v8084
      %8149 = vmatprep.subr.mxu0 0.0
      %8150 = vmatpush1.msra.mxu0 %v8083
      %8151 = vmatprep.subr.mxu0 0.0
      %8152 = vmatpush1.msra.mxu0 %v8082
      %8153 = vmatprep.subr.mxu0 0.0
      %8154 = vmatpush1.msra.mxu0 %v8081
      %8155 = vmatprep.subr.mxu0 0.0
      %8156 = vmatpush1.msra.mxu0 %v8080
      %8157 = vmatprep.subr.mxu0 0.0
      %8158 = vmatpush1.msra.mxu0 %v8079
      %8159 = vmatprep.subr.mxu0 0.0
      %8160 = vmatpush2.msra.mxu0 %v8110
      %8161 = vmatprep.subr.mxu0 0.0
      %8162 = vmatpush2.msra.mxu0 %v8109
      %8163 = vmatprep.subr.mxu0 0.0
      %8164 = vmatpush2.msra.mxu0 %v8108
      %8165 = vmatprep.subr.mxu0 0.0
      %8166 = vmatpush2.msra.mxu0 %v8107
      %8167 = vmatprep.subr.mxu0 0.0
      %8168 = vmatpush2.msra.mxu0 %v8106
      %8169 = vmatprep.subr.mxu0 0.0
      %8170 = vmatpush2.msra.mxu0 %v8105
      %8171 = vmatprep.subr.mxu0 0.0
      %8172 = vmatpush2.msra.mxu0 %v8104
      %8173 = vmatprep.subr.mxu0 0.0
      %8174 = vmatpush2.msra.mxu0 %v8103
      %8175 = vmatprep.subr.mxu0 0.0
      %8176 = vmatpush2.msra.mxu0 %v8102
      %8177 = vmatprep.subr.mxu0 0.0
      %8178 = vmatpush2.msra.mxu0 %v8101
      %8179 = vmatprep.subr.mxu0 0.0
      %8180 = vmatpush2.msra.mxu0 %v8100
      %8181 = vmatprep.subr.mxu0 0.0
      %8182 = vmatpush2.msra.mxu0 %v8099
      %8183 = vmatprep.subr.mxu0 0.0
      %8184 = vmatpush2.msra.mxu0 %v8098
      %8185 = vmatprep.subr.mxu0 0.0
      %8186 = vmatpush2.msra.mxu0 %v8097
      %8187 = vmatprep.subr.mxu0 0.0
      %8188 = vmatpush2.msra.mxu0 %v8096
      %8189 = vmatprep.subr.mxu0 0.0
      %8190 = vmatpush2.msra.mxu0 %v8095
      %8191 = vmatprep.mubr.f32.mxu0 %v7672
      %8192 = vmatmul.mubr.f32.gmra.mxu0 %v7671
      %v8193 = vpop.f32.mrf.mxu0
      %v8194 = vadd.f32 0.0, %v8193
      %v8195 = vpop.f32.mrf.mxu0
      %8196 = vdwg.mxu0
      %8197 = vmatprep.subr.mxu0 0.0
      %8198 = vmatpush1.msra.mxu0 %v8126
      %8199 = vmatprep.subr.mxu0 0.0
      %8200 = vmatpush1.msra.mxu0 %v8125
      %8201 = vmatprep.subr.mxu0 0.0
      %8202 = vmatpush1.msra.mxu0 %v8124
      %8203 = vmatprep.subr.mxu0 0.0
      %8204 = vmatpush1.msra.mxu0 %v8123
      %8205 = vmatprep.subr.mxu0 0.0
      %8206 = vmatpush1.msra.mxu0 %v8122
      %8207 = vmatprep.subr.mxu0 0.0
      %8208 = vmatpush1.msra.mxu0 %v8121
      %8209 = vmatprep.subr.mxu0 0.0
      %8210 = vmatpush1.msra.mxu0 %v8120
      %8211 = vmatprep.subr.mxu0 0.0
      %8212 = vmatpush1.msra.mxu0 %v8119
      %8213 = vmatprep.subr.mxu0 0.0
      %8214 = vmatpush1.msra.mxu0 %v8118
      %8215 = vmatprep.subr.mxu0 0.0
      %8216 = vmatpush1.msra.mxu0 %v8117
      %8217 = vmatprep.subr.mxu0 0.0
      %8218 = vmatpush1.msra.mxu0 %v8116
      %8219 = vmatprep.subr.mxu0 0.0
      %8220 = vmatpush1.msra.mxu0 %v8115
      %8221 = vmatprep.subr.mxu0 0.0
      %8222 = vmatpush1.msra.mxu0 %v8114
      %8223 = vmatprep.subr.mxu0 0.0
      %8224 = vmatpush1.msra.mxu0 %v8113
      %8225 = vmatprep.subr.mxu0 0.0
      %8226 = vmatpush1.msra.mxu0 %v8112
      %8227 = vmatprep.subr.mxu0 0.0
      %8228 = vmatpush1.msra.mxu0 %v8111
      %8229 = vmatprep.subr.mxu0 0.0
      %8230 = vmatpush2.msra.mxu0 0.0
      %8231 = vmatprep.subr.mxu0 0.0
      %8232 = vmatpush2.msra.mxu0 0.0
      %8233 = vmatprep.subr.mxu0 0.0
      %8234 = vmatpush2.msra.mxu0 0.0
      %8235 = vmatprep.subr.mxu0 0.0
      %8236 = vmatpush2.msra.mxu0 0.0
      %8237 = vmatprep.subr.mxu0 0.0
      %8238 = vmatpush2.msra.mxu0 0.0
      %8239 = vmatprep.subr.mxu0 0.0
      %8240 = vmatpush2.msra.mxu0 0.0
      %8241 = vmatprep.subr.mxu0 0.0
      %8242 = vmatpush2.msra.mxu0 0.0
      %8243 = vmatprep.subr.mxu0 0.0
      %8244 = vmatpush2.msra.mxu0 0.0
      %8245 = vmatprep.subr.mxu0 0.0
      %8246 = vmatpush2.msra.mxu0 0.0
      %8247 = vmatprep.subr.mxu0 0.0
      %8248 = vmatpush2.msra.mxu0 0.0
      %8249 = vmatprep.subr.mxu0 0.0
      %8250 = vmatpush2.msra.mxu0 0.0
      %8251 = vmatprep.subr.mxu0 0.0
      %8252 = vmatpush2.msra.mxu0 0.0
      %8253 = vmatprep.subr.mxu0 0.0
      %8254 = vmatpush2.msra.mxu0 0.0
      %8255 = vmatprep.subr.mxu0 0.0
      %8256 = vmatpush2.msra.mxu0 0.0
      %8257 = vmatprep.subr.mxu0 0.0
      %8258 = vmatpush2.msra.mxu0 0.0
      %8259 = vmatprep.subr.mxu0 0.0
      %8260 = vmatpush2.msra.mxu0 0.0
      %8261 = vmatprep.mubr.f32.mxu0 0.0
      %8262 = vmatmul.mubr.f32.gmra.mxu0 %v7673
      %v8263 = vpop.f32.mrf.mxu0
      %v8264 = vadd.f32 %v8194, %v8263
      %v8265 = vpop.f32.mrf.mxu0
      %8266 = vdwg.mxu0
      %v8267 = vadd.f32 %v8075, %v8264
      %s8268 = scalar_lea.vmem %s471, 1152
      %v8269 = vld [vmem:[%s8268] sm:$0xff]
      %v8270 = vld [vmem:[%s8268 + $0x8] sm:$0xff]
      %v8271 = vld [vmem:[%s8268 + $0x10] sm:$0xff]
      %v8272 = vld [vmem:[%s8268 + $0x18] sm:$0xff]
      %v8273 = vld [vmem:[%s8268 + $0x20] sm:$0xff]
      %v8274 = vld [vmem:[%s8268 + $0x28] sm:$0xff]
      %v8275 = vld [vmem:[%s8268 + $0x30] sm:$0xff]
      %v8276 = vld [vmem:[%s8268 + $0x38] sm:$0xff]
      %v8277 = vld [vmem:[%s8268 + $0x40] sm:$0xff]
      %v8278 = vld [vmem:[%s8268 + $0x48] sm:$0xff]
      %v8279 = vld [vmem:[%s8268 + $0x50] sm:$0xff]
      %v8280 = vld [vmem:[%s8268 + $0x58] sm:$0xff]
      %v8281 = vld [vmem:[%s8268 + $0x60] sm:$0xff]
      %v8282 = vld [vmem:[%s8268 + $0x68] sm:$0xff]
      %v8283 = vld [vmem:[%s8268 + $0x70] sm:$0xff]
      %v8284 = vld [vmem:[%s8268 + $0x78] sm:$0xff]
      %v8285 = vld [vmem:[%s8268 + $0x80] sm:$0xff]
      %v8286 = vld [vmem:[%s8268 + $0x88] sm:$0xff]
      %v8287 = vld [vmem:[%s8268 + $0x90] sm:$0xff]
      %v8288 = vld [vmem:[%s8268 + $0x98] sm:$0xff]
      %v8289 = vld [vmem:[%s8268 + $0xa0] sm:$0xff]
      %v8290 = vld [vmem:[%s8268 + $0xa8] sm:$0xff]
      %v8291 = vld [vmem:[%s8268 + $0xb0] sm:$0xff]
      %v8292 = vld [vmem:[%s8268 + $0xb8] sm:$0xff]
      %v8293 = vld [vmem:[%s8268 + $0xc0] sm:$0xff]
      %v8294 = vld [vmem:[%s8268 + $0xc8] sm:$0xff]
      %v8295 = vld [vmem:[%s8268 + $0xd0] sm:$0xff]
      %v8296 = vld [vmem:[%s8268 + $0xd8] sm:$0xff]
      %v8297 = vld [vmem:[%s8268 + $0xe0] sm:$0xff]
      %v8298 = vld [vmem:[%s8268 + $0xe8] sm:$0xff]
      %v8299 = vld [vmem:[%s8268 + $0xf0] sm:$0xff]
      %v8300 = vld [vmem:[%s8268 + $0xf8] sm:$0xff]
      %v8301 = vld [vmem:[%s8268 + $0x100] sm:$0xff]
      %v8302 = vld [vmem:[%s8268 + $0x108] sm:$0xff]
      %v8303 = vld [vmem:[%s8268 + $0x110] sm:$0xff]
      %v8304 = vld [vmem:[%s8268 + $0x118] sm:$0xff]
      %v8305 = vld [vmem:[%s8268 + $0x120] sm:$0xff]
      %v8306 = vld [vmem:[%s8268 + $0x128] sm:$0xff]
      %v8307 = vld [vmem:[%s8268 + $0x130] sm:$0xff]
      %v8308 = vld [vmem:[%s8268 + $0x138] sm:$0xff]
      %v8309 = vld [vmem:[%s8268 + $0x140] sm:$0xff]
      %v8310 = vld [vmem:[%s8268 + $0x148] sm:$0xff]
      %v8311 = vld [vmem:[%s8268 + $0x150] sm:$0xff]
      %v8312 = vld [vmem:[%s8268 + $0x158] sm:$0xff]
      %v8313 = vld [vmem:[%s8268 + $0x160] sm:$0xff]
      %v8314 = vld [vmem:[%s8268 + $0x168] sm:$0xff]
      %v8315 = vld [vmem:[%s8268 + $0x170] sm:$0xff]
      %v8316 = vld [vmem:[%s8268 + $0x178] sm:$0xff]
      %8317 = vmatprep.subr.mxu0 0.0
      %8318 = vmatpush1.msra.mxu0 %v8284
      %8319 = vmatprep.subr.mxu0 0.0
      %8320 = vmatpush1.msra.mxu0 %v8283
      %8321 = vmatprep.subr.mxu0 0.0
      %8322 = vmatpush1.msra.mxu0 %v8282
      %8323 = vmatprep.subr.mxu0 0.0
      %8324 = vmatpush1.msra.mxu0 %v8281
      %8325 = vmatprep.subr.mxu0 0.0
      %8326 = vmatpush1.msra.mxu0 %v8280
      %8327 = vmatprep.subr.mxu0 0.0
      %8328 = vmatpush1.msra.mxu0 %v8279
      %8329 = vmatprep.subr.mxu0 0.0
      %8330 = vmatpush1.msra.mxu0 %v8278
      %8331 = vmatprep.subr.mxu0 0.0
      %8332 = vmatpush1.msra.mxu0 %v8277
      %8333 = vmatprep.subr.mxu0 0.0
      %8334 = vmatpush1.msra.mxu0 %v8276
      %8335 = vmatprep.subr.mxu0 0.0
      %8336 = vmatpush1.msra.mxu0 %v8275
      %8337 = vmatprep.subr.mxu0 0.0
      %8338 = vmatpush1.msra.mxu0 %v8274
      %8339 = vmatprep.subr.mxu0 0.0
      %8340 = vmatpush1.msra.mxu0 %v8273
      %8341 = vmatprep.subr.mxu0 0.0
      %8342 = vmatpush1.msra.mxu0 %v8272
      %8343 = vmatprep.subr.mxu0 0.0
      %8344 = vmatpush1.msra.mxu0 %v8271
      %8345 = vmatprep.subr.mxu0 0.0
      %8346 = vmatpush1.msra.mxu0 %v8270
      %8347 = vmatprep.subr.mxu0 0.0
      %8348 = vmatpush1.msra.mxu0 %v8269
      %8349 = vmatprep.subr.mxu0 0.0
      %8350 = vmatpush2.msra.mxu0 %v8300
      %8351 = vmatprep.subr.mxu0 0.0
      %8352 = vmatpush2.msra.mxu0 %v8299
      %8353 = vmatprep.subr.mxu0 0.0
      %8354 = vmatpush2.msra.mxu0 %v8298
      %8355 = vmatprep.subr.mxu0 0.0
      %8356 = vmatpush2.msra.mxu0 %v8297
      %8357 = vmatprep.subr.mxu0 0.0
      %8358 = vmatpush2.msra.mxu0 %v8296
      %8359 = vmatprep.subr.mxu0 0.0
      %8360 = vmatpush2.msra.mxu0 %v8295
      %8361 = vmatprep.subr.mxu0 0.0
      %8362 = vmatpush2.msra.mxu0 %v8294
      %8363 = vmatprep.subr.mxu0 0.0
      %8364 = vmatpush2.msra.mxu0 %v8293
      %8365 = vmatprep.subr.mxu0 0.0
      %8366 = vmatpush2.msra.mxu0 %v8292
      %8367 = vmatprep.subr.mxu0 0.0
      %8368 = vmatpush2.msra.mxu0 %v8291
      %8369 = vmatprep.subr.mxu0 0.0
      %8370 = vmatpush2.msra.mxu0 %v8290
      %8371 = vmatprep.subr.mxu0 0.0
      %8372 = vmatpush2.msra.mxu0 %v8289
      %8373 = vmatprep.subr.mxu0 0.0
      %8374 = vmatpush2.msra.mxu0 %v8288
      %8375 = vmatprep.subr.mxu0 0.0
      %8376 = vmatpush2.msra.mxu0 %v8287
      %8377 = vmatprep.subr.mxu0 0.0
      %8378 = vmatpush2.msra.mxu0 %v8286
      %8379 = vmatprep.subr.mxu0 0.0
      %8380 = vmatpush2.msra.mxu0 %v8285
      %8381 = vmatprep.mubr.f32.mxu0 %v7675
      %8382 = vmatmul.mubr.f32.gmra.mxu0 %v7674
      %v8383 = vpop.f32.mrf.mxu0
      %v8384 = vadd.f32 0.0, %v8383
      %v8385 = vpop.f32.mrf.mxu0
      %8386 = vdwg.mxu0
      %8387 = vmatprep.subr.mxu0 0.0
      %8388 = vmatpush1.msra.mxu0 %v8316
      %8389 = vmatprep.subr.mxu0 0.0
      %8390 = vmatpush1.msra.mxu0 %v8315
      %8391 = vmatprep.subr.mxu0 0.0
      %8392 = vmatpush1.msra.mxu0 %v8314
      %8393 = vmatprep.subr.mxu0 0.0
      %8394 = vmatpush1.msra.mxu0 %v8313
      %8395 = vmatprep.subr.mxu0 0.0
      %8396 = vmatpush1.msra.mxu0 %v8312
      %8397 = vmatprep.subr.mxu0 0.0
      %8398 = vmatpush1.msra.mxu0 %v8311
      %8399 = vmatprep.subr.mxu0 0.0
      %8400 = vmatpush1.msra.mxu0 %v8310
      %8401 = vmatprep.subr.mxu0 0.0
      %8402 = vmatpush1.msra.mxu0 %v8309
      %8403 = vmatprep.subr.mxu0 0.0
      %8404 = vmatpush1.msra.mxu0 %v8308
      %8405 = vmatprep.subr.mxu0 0.0
      %8406 = vmatpush1.msra.mxu0 %v8307
      %8407 = vmatprep.subr.mxu0 0.0
      %8408 = vmatpush1.msra.mxu0 %v8306
      %8409 = vmatprep.subr.mxu0 0.0
      %8410 = vmatpush1.msra.mxu0 %v8305
      %8411 = vmatprep.subr.mxu0 0.0
      %8412 = vmatpush1.msra.mxu0 %v8304
      %8413 = vmatprep.subr.mxu0 0.0
      %8414 = vmatpush1.msra.mxu0 %v8303
      %8415 = vmatprep.subr.mxu0 0.0
      %8416 = vmatpush1.msra.mxu0 %v8302
      %8417 = vmatprep.subr.mxu0 0.0
      %8418 = vmatpush1.msra.mxu0 %v8301
      %8419 = vmatprep.subr.mxu0 0.0
      %8420 = vmatpush2.msra.mxu0 0.0
      %8421 = vmatprep.subr.mxu0 0.0
      %8422 = vmatpush2.msra.mxu0 0.0
      %8423 = vmatprep.subr.mxu0 0.0
      %8424 = vmatpush2.msra.mxu0 0.0
      %8425 = vmatprep.subr.mxu0 0.0
      %8426 = vmatpush2.msra.mxu0 0.0
      %8427 = vmatprep.subr.mxu0 0.0
      %8428 = vmatpush2.msra.mxu0 0.0
      %8429 = vmatprep.subr.mxu0 0.0
      %8430 = vmatpush2.msra.mxu0 0.0
      %8431 = vmatprep.subr.mxu0 0.0
      %8432 = vmatpush2.msra.mxu0 0.0
      %8433 = vmatprep.subr.mxu0 0.0
      %8434 = vmatpush2.msra.mxu0 0.0
      %8435 = vmatprep.subr.mxu0 0.0
      %8436 = vmatpush2.msra.mxu0 0.0
      %8437 = vmatprep.subr.mxu0 0.0
      %8438 = vmatpush2.msra.mxu0 0.0
      %8439 = vmatprep.subr.mxu0 0.0
      %8440 = vmatpush2.msra.mxu0 0.0
      %8441 = vmatprep.subr.mxu0 0.0
      %8442 = vmatpush2.msra.mxu0 0.0
      %8443 = vmatprep.subr.mxu0 0.0
      %8444 = vmatpush2.msra.mxu0 0.0
      %8445 = vmatprep.subr.mxu0 0.0
      %8446 = vmatpush2.msra.mxu0 0.0
      %8447 = vmatprep.subr.mxu0 0.0
      %8448 = vmatpush2.msra.mxu0 0.0
      %8449 = vmatprep.subr.mxu0 0.0
      %8450 = vmatpush2.msra.mxu0 0.0
      %8451 = vmatprep.mubr.f32.mxu0 0.0
      %8452 = vmatmul.mubr.f32.gmra.mxu0 %v7676
      %v8453 = vpop.f32.mrf.mxu0
      %v8454 = vadd.f32 %v8384, %v8453
      %v8455 = vpop.f32.mrf.mxu0
      %8456 = vdwg.mxu0
      %v8457 = vadd.f32 %v8267, %v8454
      %s8458 = scalar_lea.vmem %s471, 1536
      %v8459 = vld [vmem:[%s8458] sm:$0xff]
      %v8460 = vld [vmem:[%s8458 + $0x8] sm:$0xff]
      %v8461 = vld [vmem:[%s8458 + $0x10] sm:$0xff]
      %v8462 = vld [vmem:[%s8458 + $0x18] sm:$0xff]
      %v8463 = vld [vmem:[%s8458 + $0x20] sm:$0xff]
      %v8464 = vld [vmem:[%s8458 + $0x28] sm:$0xff]
      %v8465 = vld [vmem:[%s8458 + $0x30] sm:$0xff]
      %v8466 = vld [vmem:[%s8458 + $0x38] sm:$0xff]
      %v8467 = vld [vmem:[%s8458 + $0x40] sm:$0xff]
      %v8468 = vld [vmem:[%s8458 + $0x48] sm:$0xff]
      %v8469 = vld [vmem:[%s8458 + $0x50] sm:$0xff]
      %v8470 = vld [vmem:[%s8458 + $0x58] sm:$0xff]
      %v8471 = vld [vmem:[%s8458 + $0x60] sm:$0xff]
      %v8472 = vld [vmem:[%s8458 + $0x68] sm:$0xff]
      %v8473 = vld [vmem:[%s8458 + $0x70] sm:$0xff]
      %v8474 = vld [vmem:[%s8458 + $0x78] sm:$0xff]
      %v8475 = vld [vmem:[%s8458 + $0x80] sm:$0xff]
      %v8476 = vld [vmem:[%s8458 + $0x88] sm:$0xff]
      %v8477 = vld [vmem:[%s8458 + $0x90] sm:$0xff]
      %v8478 = vld [vmem:[%s8458 + $0x98] sm:$0xff]
      %v8479 = vld [vmem:[%s8458 + $0xa0] sm:$0xff]
      %v8480 = vld [vmem:[%s8458 + $0xa8] sm:$0xff]
      %v8481 = vld [vmem:[%s8458 + $0xb0] sm:$0xff]
      %v8482 = vld [vmem:[%s8458 + $0xb8] sm:$0xff]
      %v8483 = vld [vmem:[%s8458 + $0xc0] sm:$0xff]
      %v8484 = vld [vmem:[%s8458 + $0xc8] sm:$0xff]
      %v8485 = vld [vmem:[%s8458 + $0xd0] sm:$0xff]
      %v8486 = vld [vmem:[%s8458 + $0xd8] sm:$0xff]
      %v8487 = vld [vmem:[%s8458 + $0xe0] sm:$0xff]
      %v8488 = vld [vmem:[%s8458 + $0xe8] sm:$0xff]
      %v8489 = vld [vmem:[%s8458 + $0xf0] sm:$0xff]
      %v8490 = vld [vmem:[%s8458 + $0xf8] sm:$0xff]
      %v8491 = vld [vmem:[%s8458 + $0x100] sm:$0xff]
      %v8492 = vld [vmem:[%s8458 + $0x108] sm:$0xff]
      %v8493 = vld [vmem:[%s8458 + $0x110] sm:$0xff]
      %v8494 = vld [vmem:[%s8458 + $0x118] sm:$0xff]
      %v8495 = vld [vmem:[%s8458 + $0x120] sm:$0xff]
      %v8496 = vld [vmem:[%s8458 + $0x128] sm:$0xff]
      %v8497 = vld [vmem:[%s8458 + $0x130] sm:$0xff]
      %v8498 = vld [vmem:[%s8458 + $0x138] sm:$0xff]
      %v8499 = vld [vmem:[%s8458 + $0x140] sm:$0xff]
      %v8500 = vld [vmem:[%s8458 + $0x148] sm:$0xff]
      %v8501 = vld [vmem:[%s8458 + $0x150] sm:$0xff]
      %v8502 = vld [vmem:[%s8458 + $0x158] sm:$0xff]
      %v8503 = vld [vmem:[%s8458 + $0x160] sm:$0xff]
      %v8504 = vld [vmem:[%s8458 + $0x168] sm:$0xff]
      %v8505 = vld [vmem:[%s8458 + $0x170] sm:$0xff]
      %v8506 = vld [vmem:[%s8458 + $0x178] sm:$0xff]
      %8507 = vmatprep.subr.mxu0 0.0
      %8508 = vmatpush1.msra.mxu0 %v8474
      %8509 = vmatprep.subr.mxu0 0.0
      %8510 = vmatpush1.msra.mxu0 %v8473
      %8511 = vmatprep.subr.mxu0 0.0
      %8512 = vmatpush1.msra.mxu0 %v8472
      %8513 = vmatprep.subr.mxu0 0.0
      %8514 = vmatpush1.msra.mxu0 %v8471
      %8515 = vmatprep.subr.mxu0 0.0
      %8516 = vmatpush1.msra.mxu0 %v8470
      %8517 = vmatprep.subr.mxu0 0.0
      %8518 = vmatpush1.msra.mxu0 %v8469
      %8519 = vmatprep.subr.mxu0 0.0
      %8520 = vmatpush1.msra.mxu0 %v8468
      %8521 = vmatprep.subr.mxu0 0.0
      %8522 = vmatpush1.msra.mxu0 %v8467
      %8523 = vmatprep.subr.mxu0 0.0
      %8524 = vmatpush1.msra.mxu0 %v8466
      %8525 = vmatprep.subr.mxu0 0.0
      %8526 = vmatpush1.msra.mxu0 %v8465
      %8527 = vmatprep.subr.mxu0 0.0
      %8528 = vmatpush1.msra.mxu0 %v8464
      %8529 = vmatprep.subr.mxu0 0.0
      %8530 = vmatpush1.msra.mxu0 %v8463
      %8531 = vmatprep.subr.mxu0 0.0
      %8532 = vmatpush1.msra.mxu0 %v8462
      %8533 = vmatprep.subr.mxu0 0.0
      %8534 = vmatpush1.msra.mxu0 %v8461
      %8535 = vmatprep.subr.mxu0 0.0
      %8536 = vmatpush1.msra.mxu0 %v8460
      %8537 = vmatprep.subr.mxu0 0.0
      %8538 = vmatpush1.msra.mxu0 %v8459
      %8539 = vmatprep.subr.mxu0 0.0
      %8540 = vmatpush2.msra.mxu0 %v8490
      %8541 = vmatprep.subr.mxu0 0.0
      %8542 = vmatpush2.msra.mxu0 %v8489
      %8543 = vmatprep.subr.mxu0 0.0
      %8544 = vmatpush2.msra.mxu0 %v8488
      %8545 = vmatprep.subr.mxu0 0.0
      %8546 = vmatpush2.msra.mxu0 %v8487
      %8547 = vmatprep.subr.mxu0 0.0
      %8548 = vmatpush2.msra.mxu0 %v8486
      %8549 = vmatprep.subr.mxu0 0.0
      %8550 = vmatpush2.msra.mxu0 %v8485
      %8551 = vmatprep.subr.mxu0 0.0
      %8552 = vmatpush2.msra.mxu0 %v8484
      %8553 = vmatprep.subr.mxu0 0.0
      %8554 = vmatpush2.msra.mxu0 %v8483
      %8555 = vmatprep.subr.mxu0 0.0
      %8556 = vmatpush2.msra.mxu0 %v8482
      %8557 = vmatprep.subr.mxu0 0.0
      %8558 = vmatpush2.msra.mxu0 %v8481
      %8559 = vmatprep.subr.mxu0 0.0
      %8560 = vmatpush2.msra.mxu0 %v8480
      %8561 = vmatprep.subr.mxu0 0.0
      %8562 = vmatpush2.msra.mxu0 %v8479
      %8563 = vmatprep.subr.mxu0 0.0
      %8564 = vmatpush2.msra.mxu0 %v8478
      %8565 = vmatprep.subr.mxu0 0.0
      %8566 = vmatpush2.msra.mxu0 %v8477
      %8567 = vmatprep.subr.mxu0 0.0
      %8568 = vmatpush2.msra.mxu0 %v8476
      %8569 = vmatprep.subr.mxu0 0.0
      %8570 = vmatpush2.msra.mxu0 %v8475
      %8571 = vmatprep.mubr.f32.mxu0 %v7678
      %8572 = vmatmul.mubr.f32.gmra.mxu0 %v7677
      %v8573 = vpop.f32.mrf.mxu0
      %v8574 = vadd.f32 0.0, %v8573
      %v8575 = vpop.f32.mrf.mxu0
      %8576 = vdwg.mxu0
      %8577 = vmatprep.subr.mxu0 0.0
      %8578 = vmatpush1.msra.mxu0 %v8506
      %8579 = vmatprep.subr.mxu0 0.0
      %8580 = vmatpush1.msra.mxu0 %v8505
      %8581 = vmatprep.subr.mxu0 0.0
      %8582 = vmatpush1.msra.mxu0 %v8504
      %8583 = vmatprep.subr.mxu0 0.0
      %8584 = vmatpush1.msra.mxu0 %v8503
      %8585 = vmatprep.subr.mxu0 0.0
      %8586 = vmatpush1.msra.mxu0 %v8502
      %8587 = vmatprep.subr.mxu0 0.0
      %8588 = vmatpush1.msra.mxu0 %v8501
      %8589 = vmatprep.subr.mxu0 0.0
      %8590 = vmatpush1.msra.mxu0 %v8500
      %8591 = vmatprep.subr.mxu0 0.0
      %8592 = vmatpush1.msra.mxu0 %v8499
      %8593 = vmatprep.subr.mxu0 0.0
      %8594 = vmatpush1.msra.mxu0 %v8498
      %8595 = vmatprep.subr.mxu0 0.0
      %8596 = vmatpush1.msra.mxu0 %v8497
      %8597 = vmatprep.subr.mxu0 0.0
      %8598 = vmatpush1.msra.mxu0 %v8496
      %8599 = vmatprep.subr.mxu0 0.0
      %8600 = vmatpush1.msra.mxu0 %v8495
      %8601 = vmatprep.subr.mxu0 0.0
      %8602 = vmatpush1.msra.mxu0 %v8494
      %8603 = vmatprep.subr.mxu0 0.0
      %8604 = vmatpush1.msra.mxu0 %v8493
      %8605 = vmatprep.subr.mxu0 0.0
      %8606 = vmatpush1.msra.mxu0 %v8492
      %8607 = vmatprep.subr.mxu0 0.0
      %8608 = vmatpush1.msra.mxu0 %v8491
      %8609 = vmatprep.subr.mxu0 0.0
      %8610 = vmatpush2.msra.mxu0 0.0
      %8611 = vmatprep.subr.mxu0 0.0
      %8612 = vmatpush2.msra.mxu0 0.0
      %8613 = vmatprep.subr.mxu0 0.0
      %8614 = vmatpush2.msra.mxu0 0.0
      %8615 = vmatprep.subr.mxu0 0.0
      %8616 = vmatpush2.msra.mxu0 0.0
      %8617 = vmatprep.subr.mxu0 0.0
      %8618 = vmatpush2.msra.mxu0 0.0
      %8619 = vmatprep.subr.mxu0 0.0
      %8620 = vmatpush2.msra.mxu0 0.0
      %8621 = vmatprep.subr.mxu0 0.0
      %8622 = vmatpush2.msra.mxu0 0.0
      %8623 = vmatprep.subr.mxu0 0.0
      %8624 = vmatpush2.msra.mxu0 0.0
      %8625 = vmatprep.subr.mxu0 0.0
      %8626 = vmatpush2.msra.mxu0 0.0
      %8627 = vmatprep.subr.mxu0 0.0
      %8628 = vmatpush2.msra.mxu0 0.0
      %8629 = vmatprep.subr.mxu0 0.0
      %8630 = vmatpush2.msra.mxu0 0.0
      %8631 = vmatprep.subr.mxu0 0.0
      %8632 = vmatpush2.msra.mxu0 0.0
      %8633 = vmatprep.subr.mxu0 0.0
      %8634 = vmatpush2.msra.mxu0 0.0
      %8635 = vmatprep.subr.mxu0 0.0
      %8636 = vmatpush2.msra.mxu0 0.0
      %8637 = vmatprep.subr.mxu0 0.0
      %8638 = vmatpush2.msra.mxu0 0.0
      %8639 = vmatprep.subr.mxu0 0.0
      %8640 = vmatpush2.msra.mxu0 0.0
      %8641 = vmatprep.mubr.f32.mxu0 0.0
      %8642 = vmatmul.mubr.f32.gmra.mxu0 %v7679
      %v8643 = vpop.f32.mrf.mxu0
      %v8644 = vadd.f32 %v8574, %v8643
      %v8645 = vpop.f32.mrf.mxu0
      %8646 = vdwg.mxu0
      %v8647 = vadd.f32 %v8457, %v8644
      %s8648 = scalar_lea.vmem %s471, 1920
      %v8649 = vld [vmem:[%s8648] sm:$0xff]
      %v8650 = vld [vmem:[%s8648 + $0x8] sm:$0xff]
      %v8651 = vld [vmem:[%s8648 + $0x10] sm:$0xff]
      %v8652 = vld [vmem:[%s8648 + $0x18] sm:$0xff]
      %v8653 = vld [vmem:[%s8648 + $0x20] sm:$0xff]
      %v8654 = vld [vmem:[%s8648 + $0x28] sm:$0xff]
      %v8655 = vld [vmem:[%s8648 + $0x30] sm:$0xff]
      %v8656 = vld [vmem:[%s8648 + $0x38] sm:$0xff]
      %v8657 = vld [vmem:[%s8648 + $0x40] sm:$0xff]
      %v8658 = vld [vmem:[%s8648 + $0x48] sm:$0xff]
      %v8659 = vld [vmem:[%s8648 + $0x50] sm:$0xff]
      %v8660 = vld [vmem:[%s8648 + $0x58] sm:$0xff]
      %v8661 = vld [vmem:[%s8648 + $0x60] sm:$0xff]
      %v8662 = vld [vmem:[%s8648 + $0x68] sm:$0xff]
      %v8663 = vld [vmem:[%s8648 + $0x70] sm:$0xff]
      %v8664 = vld [vmem:[%s8648 + $0x78] sm:$0xff]
      %v8665 = vld [vmem:[%s8648 + $0x80] sm:$0xff]
      %v8666 = vld [vmem:[%s8648 + $0x88] sm:$0xff]
      %v8667 = vld [vmem:[%s8648 + $0x90] sm:$0xff]
      %v8668 = vld [vmem:[%s8648 + $0x98] sm:$0xff]
      %v8669 = vld [vmem:[%s8648 + $0xa0] sm:$0xff]
      %v8670 = vld [vmem:[%s8648 + $0xa8] sm:$0xff]
      %v8671 = vld [vmem:[%s8648 + $0xb0] sm:$0xff]
      %v8672 = vld [vmem:[%s8648 + $0xb8] sm:$0xff]
      %v8673 = vld [vmem:[%s8648 + $0xc0] sm:$0xff]
      %v8674 = vld [vmem:[%s8648 + $0xc8] sm:$0xff]
      %v8675 = vld [vmem:[%s8648 + $0xd0] sm:$0xff]
      %v8676 = vld [vmem:[%s8648 + $0xd8] sm:$0xff]
      %v8677 = vld [vmem:[%s8648 + $0xe0] sm:$0xff]
      %v8678 = vld [vmem:[%s8648 + $0xe8] sm:$0xff]
      %v8679 = vld [vmem:[%s8648 + $0xf0] sm:$0xff]
      %v8680 = vld [vmem:[%s8648 + $0xf8] sm:$0xff]
      %v8681 = vld [vmem:[%s8648 + $0x100] sm:$0xff]
      %v8682 = vld [vmem:[%s8648 + $0x108] sm:$0xff]
      %v8683 = vld [vmem:[%s8648 + $0x110] sm:$0xff]
      %v8684 = vld [vmem:[%s8648 + $0x118] sm:$0xff]
      %v8685 = vld [vmem:[%s8648 + $0x120] sm:$0xff]
      %v8686 = vld [vmem:[%s8648 + $0x128] sm:$0xff]
      %v8687 = vld [vmem:[%s8648 + $0x130] sm:$0xff]
      %v8688 = vld [vmem:[%s8648 + $0x138] sm:$0xff]
      %v8689 = vld [vmem:[%s8648 + $0x140] sm:$0xff]
      %v8690 = vld [vmem:[%s8648 + $0x148] sm:$0xff]
      %v8691 = vld [vmem:[%s8648 + $0x150] sm:$0xff]
      %v8692 = vld [vmem:[%s8648 + $0x158] sm:$0xff]
      %v8693 = vld [vmem:[%s8648 + $0x160] sm:$0xff]
      %v8694 = vld [vmem:[%s8648 + $0x168] sm:$0xff]
      %v8695 = vld [vmem:[%s8648 + $0x170] sm:$0xff]
      %v8696 = vld [vmem:[%s8648 + $0x178] sm:$0xff]
      %8697 = vmatprep.subr.mxu0 0.0
      %8698 = vmatpush1.msra.mxu0 %v8664
      %8699 = vmatprep.subr.mxu0 0.0
      %8700 = vmatpush1.msra.mxu0 %v8663
      %8701 = vmatprep.subr.mxu0 0.0
      %8702 = vmatpush1.msra.mxu0 %v8662
      %8703 = vmatprep.subr.mxu0 0.0
      %8704 = vmatpush1.msra.mxu0 %v8661
      %8705 = vmatprep.subr.mxu0 0.0
      %8706 = vmatpush1.msra.mxu0 %v8660
      %8707 = vmatprep.subr.mxu0 0.0
      %8708 = vmatpush1.msra.mxu0 %v8659
      %8709 = vmatprep.subr.mxu0 0.0
      %8710 = vmatpush1.msra.mxu0 %v8658
      %8711 = vmatprep.subr.mxu0 0.0
      %8712 = vmatpush1.msra.mxu0 %v8657
      %8713 = vmatprep.subr.mxu0 0.0
      %8714 = vmatpush1.msra.mxu0 %v8656
      %8715 = vmatprep.subr.mxu0 0.0
      %8716 = vmatpush1.msra.mxu0 %v8655
      %8717 = vmatprep.subr.mxu0 0.0
      %8718 = vmatpush1.msra.mxu0 %v8654
      %8719 = vmatprep.subr.mxu0 0.0
      %8720 = vmatpush1.msra.mxu0 %v8653
      %8721 = vmatprep.subr.mxu0 0.0
      %8722 = vmatpush1.msra.mxu0 %v8652
      %8723 = vmatprep.subr.mxu0 0.0
      %8724 = vmatpush1.msra.mxu0 %v8651
      %8725 = vmatprep.subr.mxu0 0.0
      %8726 = vmatpush1.msra.mxu0 %v8650
      %8727 = vmatprep.subr.mxu0 0.0
      %8728 = vmatpush1.msra.mxu0 %v8649
      %8729 = vmatprep.subr.mxu0 0.0
      %8730 = vmatpush2.msra.mxu0 %v8680
      %8731 = vmatprep.subr.mxu0 0.0
      %8732 = vmatpush2.msra.mxu0 %v8679
      %8733 = vmatprep.subr.mxu0 0.0
      %8734 = vmatpush2.msra.mxu0 %v8678
      %8735 = vmatprep.subr.mxu0 0.0
      %8736 = vmatpush2.msra.mxu0 %v8677
      %8737 = vmatprep.subr.mxu0 0.0
      %8738 = vmatpush2.msra.mxu0 %v8676
      %8739 = vmatprep.subr.mxu0 0.0
      %8740 = vmatpush2.msra.mxu0 %v8675
      %8741 = vmatprep.subr.mxu0 0.0
      %8742 = vmatpush2.msra.mxu0 %v8674
      %8743 = vmatprep.subr.mxu0 0.0
      %8744 = vmatpush2.msra.mxu0 %v8673
      %8745 = vmatprep.subr.mxu0 0.0
      %8746 = vmatpush2.msra.mxu0 %v8672
      %8747 = vmatprep.subr.mxu0 0.0
      %8748 = vmatpush2.msra.mxu0 %v8671
      %8749 = vmatprep.subr.mxu0 0.0
      %8750 = vmatpush2.msra.mxu0 %v8670
      %8751 = vmatprep.subr.mxu0 0.0
      %8752 = vmatpush2.msra.mxu0 %v8669
      %8753 = vmatprep.subr.mxu0 0.0
      %8754 = vmatpush2.msra.mxu0 %v8668
      %8755 = vmatprep.subr.mxu0 0.0
      %8756 = vmatpush2.msra.mxu0 %v8667
      %8757 = vmatprep.subr.mxu0 0.0
      %8758 = vmatpush2.msra.mxu0 %v8666
      %8759 = vmatprep.subr.mxu0 0.0
      %8760 = vmatpush2.msra.mxu0 %v8665
      %8761 = vmatprep.mubr.f32.mxu0 %v7681
      %8762 = vmatmul.mubr.f32.gmra.mxu0 %v7680
      %v8763 = vpop.f32.mrf.mxu0
      %v8764 = vadd.f32 0.0, %v8763
      %v8765 = vpop.f32.mrf.mxu0
      %8766 = vdwg.mxu0
      %8767 = vmatprep.subr.mxu0 0.0
      %8768 = vmatpush1.msra.mxu0 %v8696
      %8769 = vmatprep.subr.mxu0 0.0
      %8770 = vmatpush1.msra.mxu0 %v8695
      %8771 = vmatprep.subr.mxu0 0.0
      %8772 = vmatpush1.msra.mxu0 %v8694
      %8773 = vmatprep.subr.mxu0 0.0
      %8774 = vmatpush1.msra.mxu0 %v8693
      %8775 = vmatprep.subr.mxu0 0.0
      %8776 = vmatpush1.msra.mxu0 %v8692
      %8777 = vmatprep.subr.mxu0 0.0
      %8778 = vmatpush1.msra.mxu0 %v8691
      %8779 = vmatprep.subr.mxu0 0.0
      %8780 = vmatpush1.msra.mxu0 %v8690
      %8781 = vmatprep.subr.mxu0 0.0
      %8782 = vmatpush1.msra.mxu0 %v8689
      %8783 = vmatprep.subr.mxu0 0.0
      %8784 = vmatpush1.msra.mxu0 %v8688
      %8785 = vmatprep.subr.mxu0 0.0
      %8786 = vmatpush1.msra.mxu0 %v8687
      %8787 = vmatprep.subr.mxu0 0.0
      %8788 = vmatpush1.msra.mxu0 %v8686
      %8789 = vmatprep.subr.mxu0 0.0
      %8790 = vmatpush1.msra.mxu0 %v8685
      %8791 = vmatprep.subr.mxu0 0.0
      %8792 = vmatpush1.msra.mxu0 %v8684
      %8793 = vmatprep.subr.mxu0 0.0
      %8794 = vmatpush1.msra.mxu0 %v8683
      %8795 = vmatprep.subr.mxu0 0.0
      %8796 = vmatpush1.msra.mxu0 %v8682
      %8797 = vmatprep.subr.mxu0 0.0
      %8798 = vmatpush1.msra.mxu0 %v8681
      %8799 = vmatprep.subr.mxu0 0.0
      %8800 = vmatpush2.msra.mxu0 0.0
      %8801 = vmatprep.subr.mxu0 0.0
      %8802 = vmatpush2.msra.mxu0 0.0
      %8803 = vmatprep.subr.mxu0 0.0
      %8804 = vmatpush2.msra.mxu0 0.0
      %8805 = vmatprep.subr.mxu0 0.0
      %8806 = vmatpush2.msra.mxu0 0.0
      %8807 = vmatprep.subr.mxu0 0.0
      %8808 = vmatpush2.msra.mxu0 0.0
      %8809 = vmatprep.subr.mxu0 0.0
      %8810 = vmatpush2.msra.mxu0 0.0
      %8811 = vmatprep.subr.mxu0 0.0
      %8812 = vmatpush2.msra.mxu0 0.0
      %8813 = vmatprep.subr.mxu0 0.0
      %8814 = vmatpush2.msra.mxu0 0.0
      %8815 = vmatprep.subr.mxu0 0.0
      %8816 = vmatpush2.msra.mxu0 0.0
      %8817 = vmatprep.subr.mxu0 0.0
      %8818 = vmatpush2.msra.mxu0 0.0
      %8819 = vmatprep.subr.mxu0 0.0
      %8820 = vmatpush2.msra.mxu0 0.0
      %8821 = vmatprep.subr.mxu0 0.0
      %8822 = vmatpush2.msra.mxu0 0.0
      %8823 = vmatprep.subr.mxu0 0.0
      %8824 = vmatpush2.msra.mxu0 0.0
      %8825 = vmatprep.subr.mxu0 0.0
      %8826 = vmatpush2.msra.mxu0 0.0
      %8827 = vmatprep.subr.mxu0 0.0
      %8828 = vmatpush2.msra.mxu0 0.0
      %8829 = vmatprep.subr.mxu0 0.0
      %8830 = vmatpush2.msra.mxu0 0.0
      %8831 = vmatprep.mubr.f32.mxu0 0.0
      %8832 = vmatmul.mubr.f32.gmra.mxu0 %v7682
      %v8833 = vpop.f32.mrf.mxu0
      %v8834 = vadd.f32 %v8764, %v8833
      %v8835 = vpop.f32.mrf.mxu0
      %8836 = vdwg.mxu0
      %v8837 = vadd.f32 %v8647, %v8834
      %s8838 = scalar_lea.vmem %s471, 2304
      %v8839 = vld [vmem:[%s8838] sm:$0xff]
      %v8840 = vld [vmem:[%s8838 + $0x8] sm:$0xff]
      %v8841 = vld [vmem:[%s8838 + $0x10] sm:$0xff]
      %v8842 = vld [vmem:[%s8838 + $0x18] sm:$0xff]
      %v8843 = vld [vmem:[%s8838 + $0x20] sm:$0xff]
      %v8844 = vld [vmem:[%s8838 + $0x28] sm:$0xff]
      %v8845 = vld [vmem:[%s8838 + $0x30] sm:$0xff]
      %v8846 = vld [vmem:[%s8838 + $0x38] sm:$0xff]
      %v8847 = vld [vmem:[%s8838 + $0x40] sm:$0xff]
      %v8848 = vld [vmem:[%s8838 + $0x48] sm:$0xff]
      %v8849 = vld [vmem:[%s8838 + $0x50] sm:$0xff]
      %v8850 = vld [vmem:[%s8838 + $0x58] sm:$0xff]
      %v8851 = vld [vmem:[%s8838 + $0x60] sm:$0xff]
      %v8852 = vld [vmem:[%s8838 + $0x68] sm:$0xff]
      %v8853 = vld [vmem:[%s8838 + $0x70] sm:$0xff]
      %v8854 = vld [vmem:[%s8838 + $0x78] sm:$0xff]
      %v8855 = vld [vmem:[%s8838 + $0x80] sm:$0xff]
      %v8856 = vld [vmem:[%s8838 + $0x88] sm:$0xff]
      %v8857 = vld [vmem:[%s8838 + $0x90] sm:$0xff]
      %v8858 = vld [vmem:[%s8838 + $0x98] sm:$0xff]
      %v8859 = vld [vmem:[%s8838 + $0xa0] sm:$0xff]
      %v8860 = vld [vmem:[%s8838 + $0xa8] sm:$0xff]
      %v8861 = vld [vmem:[%s8838 + $0xb0] sm:$0xff]
      %v8862 = vld [vmem:[%s8838 + $0xb8] sm:$0xff]
      %v8863 = vld [vmem:[%s8838 + $0xc0] sm:$0xff]
      %v8864 = vld [vmem:[%s8838 + $0xc8] sm:$0xff]
      %v8865 = vld [vmem:[%s8838 + $0xd0] sm:$0xff]
      %v8866 = vld [vmem:[%s8838 + $0xd8] sm:$0xff]
      %v8867 = vld [vmem:[%s8838 + $0xe0] sm:$0xff]
      %v8868 = vld [vmem:[%s8838 + $0xe8] sm:$0xff]
      %v8869 = vld [vmem:[%s8838 + $0xf0] sm:$0xff]
      %v8870 = vld [vmem:[%s8838 + $0xf8] sm:$0xff]
      %v8871 = vld [vmem:[%s8838 + $0x100] sm:$0xff]
      %v8872 = vld [vmem:[%s8838 + $0x108] sm:$0xff]
      %v8873 = vld [vmem:[%s8838 + $0x110] sm:$0xff]
      %v8874 = vld [vmem:[%s8838 + $0x118] sm:$0xff]
      %v8875 = vld [vmem:[%s8838 + $0x120] sm:$0xff]
      %v8876 = vld [vmem:[%s8838 + $0x128] sm:$0xff]
      %v8877 = vld [vmem:[%s8838 + $0x130] sm:$0xff]
      %v8878 = vld [vmem:[%s8838 + $0x138] sm:$0xff]
      %v8879 = vld [vmem:[%s8838 + $0x140] sm:$0xff]
      %v8880 = vld [vmem:[%s8838 + $0x148] sm:$0xff]
      %v8881 = vld [vmem:[%s8838 + $0x150] sm:$0xff]
      %v8882 = vld [vmem:[%s8838 + $0x158] sm:$0xff]
      %v8883 = vld [vmem:[%s8838 + $0x160] sm:$0xff]
      %v8884 = vld [vmem:[%s8838 + $0x168] sm:$0xff]
      %v8885 = vld [vmem:[%s8838 + $0x170] sm:$0xff]
      %v8886 = vld [vmem:[%s8838 + $0x178] sm:$0xff]
      %8887 = vmatprep.subr.mxu0 0.0
      %8888 = vmatpush1.msra.mxu0 %v8854
      %8889 = vmatprep.subr.mxu0 0.0
      %8890 = vmatpush1.msra.mxu0 %v8853
      %8891 = vmatprep.subr.mxu0 0.0
      %8892 = vmatpush1.msra.mxu0 %v8852
      %8893 = vmatprep.subr.mxu0 0.0
      %8894 = vmatpush1.msra.mxu0 %v8851
      %8895 = vmatprep.subr.mxu0 0.0
      %8896 = vmatpush1.msra.mxu0 %v8850
      %8897 = vmatprep.subr.mxu0 0.0
      %8898 = vmatpush1.msra.mxu0 %v8849
      %8899 = vmatprep.subr.mxu0 0.0
      %8900 = vmatpush1.msra.mxu0 %v8848
      %8901 = vmatprep.subr.mxu0 0.0
      %8902 = vmatpush1.msra.mxu0 %v8847
      %8903 = vmatprep.subr.mxu0 0.0
      %8904 = vmatpush1.msra.mxu0 %v8846
      %8905 = vmatprep.subr.mxu0 0.0
      %8906 = vmatpush1.msra.mxu0 %v8845
      %8907 = vmatprep.subr.mxu0 0.0
      %8908 = vmatpush1.msra.mxu0 %v8844
      %8909 = vmatprep.subr.mxu0 0.0
      %8910 = vmatpush1.msra.mxu0 %v8843
      %8911 = vmatprep.subr.mxu0 0.0
      %8912 = vmatpush1.msra.mxu0 %v8842
      %8913 = vmatprep.subr.mxu0 0.0
      %8914 = vmatpush1.msra.mxu0 %v8841
      %8915 = vmatprep.subr.mxu0 0.0
      %8916 = vmatpush1.msra.mxu0 %v8840
      %8917 = vmatprep.subr.mxu0 0.0
      %8918 = vmatpush1.msra.mxu0 %v8839
      %8919 = vmatprep.subr.mxu0 0.0
      %8920 = vmatpush2.msra.mxu0 %v8870
      %8921 = vmatprep.subr.mxu0 0.0
      %8922 = vmatpush2.msra.mxu0 %v8869
      %8923 = vmatprep.subr.mxu0 0.0
      %8924 = vmatpush2.msra.mxu0 %v8868
      %8925 = vmatprep.subr.mxu0 0.0
      %8926 = vmatpush2.msra.mxu0 %v8867
      %8927 = vmatprep.subr.mxu0 0.0
      %8928 = vmatpush2.msra.mxu0 %v8866
      %8929 = vmatprep.subr.mxu0 0.0
      %8930 = vmatpush2.msra.mxu0 %v8865
      %8931 = vmatprep.subr.mxu0 0.0
      %8932 = vmatpush2.msra.mxu0 %v8864
      %8933 = vmatprep.subr.mxu0 0.0
      %8934 = vmatpush2.msra.mxu0 %v8863
      %8935 = vmatprep.subr.mxu0 0.0
      %8936 = vmatpush2.msra.mxu0 %v8862
      %8937 = vmatprep.subr.mxu0 0.0
      %8938 = vmatpush2.msra.mxu0 %v8861
      %8939 = vmatprep.subr.mxu0 0.0
      %8940 = vmatpush2.msra.mxu0 %v8860
      %8941 = vmatprep.subr.mxu0 0.0
      %8942 = vmatpush2.msra.mxu0 %v8859
      %8943 = vmatprep.subr.mxu0 0.0
      %8944 = vmatpush2.msra.mxu0 %v8858
      %8945 = vmatprep.subr.mxu0 0.0
      %8946 = vmatpush2.msra.mxu0 %v8857
      %8947 = vmatprep.subr.mxu0 0.0
      %8948 = vmatpush2.msra.mxu0 %v8856
      %8949 = vmatprep.subr.mxu0 0.0
      %8950 = vmatpush2.msra.mxu0 %v8855
      %8951 = vmatprep.mubr.f32.mxu0 %v7684
      %8952 = vmatmul.mubr.f32.gmra.mxu0 %v7683
      %v8953 = vpop.f32.mrf.mxu0
      %v8954 = vadd.f32 0.0, %v8953
      %v8955 = vpop.f32.mrf.mxu0
      %8956 = vdwg.mxu0
      %8957 = vmatprep.subr.mxu0 0.0
      %8958 = vmatpush1.msra.mxu0 %v8886
      %8959 = vmatprep.subr.mxu0 0.0
      %8960 = vmatpush1.msra.mxu0 %v8885
      %8961 = vmatprep.subr.mxu0 0.0
      %8962 = vmatpush1.msra.mxu0 %v8884
      %8963 = vmatprep.subr.mxu0 0.0
      %8964 = vmatpush1.msra.mxu0 %v8883
      %8965 = vmatprep.subr.mxu0 0.0
      %8966 = vmatpush1.msra.mxu0 %v8882
      %8967 = vmatprep.subr.mxu0 0.0
      %8968 = vmatpush1.msra.mxu0 %v8881
      %8969 = vmatprep.subr.mxu0 0.0
      %8970 = vmatpush1.msra.mxu0 %v8880
      %8971 = vmatprep.subr.mxu0 0.0
      %8972 = vmatpush1.msra.mxu0 %v8879
      %8973 = vmatprep.subr.mxu0 0.0
      %8974 = vmatpush1.msra.mxu0 %v8878
      %8975 = vmatprep.subr.mxu0 0.0
      %8976 = vmatpush1.msra.mxu0 %v8877
      %8977 = vmatprep.subr.mxu0 0.0
      %8978 = vmatpush1.msra.mxu0 %v8876
      %8979 = vmatprep.subr.mxu0 0.0
      %8980 = vmatpush1.msra.mxu0 %v8875
      %8981 = vmatprep.subr.mxu0 0.0
      %8982 = vmatpush1.msra.mxu0 %v8874
      %8983 = vmatprep.subr.mxu0 0.0
      %8984 = vmatpush1.msra.mxu0 %v8873
      %8985 = vmatprep.subr.mxu0 0.0
      %8986 = vmatpush1.msra.mxu0 %v8872
      %8987 = vmatprep.subr.mxu0 0.0
      %8988 = vmatpush1.msra.mxu0 %v8871
      %8989 = vmatprep.subr.mxu0 0.0
      %8990 = vmatpush2.msra.mxu0 0.0
      %8991 = vmatprep.subr.mxu0 0.0
      %8992 = vmatpush2.msra.mxu0 0.0
      %8993 = vmatprep.subr.mxu0 0.0
      %8994 = vmatpush2.msra.mxu0 0.0
      %8995 = vmatprep.subr.mxu0 0.0
      %8996 = vmatpush2.msra.mxu0 0.0
      %8997 = vmatprep.subr.mxu0 0.0
      %8998 = vmatpush2.msra.mxu0 0.0
      %8999 = vmatprep.subr.mxu0 0.0
      %9000 = vmatpush2.msra.mxu0 0.0
      %9001 = vmatprep.subr.mxu0 0.0
      %9002 = vmatpush2.msra.mxu0 0.0
      %9003 = vmatprep.subr.mxu0 0.0
      %9004 = vmatpush2.msra.mxu0 0.0
      %9005 = vmatprep.subr.mxu0 0.0
      %9006 = vmatpush2.msra.mxu0 0.0
      %9007 = vmatprep.subr.mxu0 0.0
      %9008 = vmatpush2.msra.mxu0 0.0
      %9009 = vmatprep.subr.mxu0 0.0
      %9010 = vmatpush2.msra.mxu0 0.0
      %9011 = vmatprep.subr.mxu0 0.0
      %9012 = vmatpush2.msra.mxu0 0.0
      %9013 = vmatprep.subr.mxu0 0.0
      %9014 = vmatpush2.msra.mxu0 0.0
      %9015 = vmatprep.subr.mxu0 0.0
      %9016 = vmatpush2.msra.mxu0 0.0
      %9017 = vmatprep.subr.mxu0 0.0
      %9018 = vmatpush2.msra.mxu0 0.0
      %9019 = vmatprep.subr.mxu0 0.0
      %9020 = vmatpush2.msra.mxu0 0.0
      %9021 = vmatprep.mubr.f32.mxu0 0.0
      %9022 = vmatmul.mubr.f32.gmra.mxu0 %v7685
      %v9023 = vpop.f32.mrf.mxu0
      %v9024 = vadd.f32 %v8954, %v9023
      %v9025 = vpop.f32.mrf.mxu0
      %9026 = vdwg.mxu0
      %v9027 = vadd.f32 %v8837, %v9024
      %s9028 = scalar_lea.vmem %s471, 2688
      %v9029 = vld [vmem:[%s9028] sm:$0xff]
      %v9030 = vld [vmem:[%s9028 + $0x8] sm:$0xff]
      %v9031 = vld [vmem:[%s9028 + $0x10] sm:$0xff]
      %v9032 = vld [vmem:[%s9028 + $0x18] sm:$0xff]
      %v9033 = vld [vmem:[%s9028 + $0x20] sm:$0xff]
      %v9034 = vld [vmem:[%s9028 + $0x28] sm:$0xff]
      %v9035 = vld [vmem:[%s9028 + $0x30] sm:$0xff]
      %v9036 = vld [vmem:[%s9028 + $0x38] sm:$0xff]
      %v9037 = vld [vmem:[%s9028 + $0x40] sm:$0xff]
      %v9038 = vld [vmem:[%s9028 + $0x48] sm:$0xff]
      %v9039 = vld [vmem:[%s9028 + $0x50] sm:$0xff]
      %v9040 = vld [vmem:[%s9028 + $0x58] sm:$0xff]
      %v9041 = vld [vmem:[%s9028 + $0x60] sm:$0xff]
      %v9042 = vld [vmem:[%s9028 + $0x68] sm:$0xff]
      %v9043 = vld [vmem:[%s9028 + $0x70] sm:$0xff]
      %v9044 = vld [vmem:[%s9028 + $0x78] sm:$0xff]
      %v9045 = vld [vmem:[%s9028 + $0x80] sm:$0xff]
      %v9046 = vld [vmem:[%s9028 + $0x88] sm:$0xff]
      %v9047 = vld [vmem:[%s9028 + $0x90] sm:$0xff]
      %v9048 = vld [vmem:[%s9028 + $0x98] sm:$0xff]
      %v9049 = vld [vmem:[%s9028 + $0xa0] sm:$0xff]
      %v9050 = vld [vmem:[%s9028 + $0xa8] sm:$0xff]
      %v9051 = vld [vmem:[%s9028 + $0xb0] sm:$0xff]
      %v9052 = vld [vmem:[%s9028 + $0xb8] sm:$0xff]
      %v9053 = vld [vmem:[%s9028 + $0xc0] sm:$0xff]
      %v9054 = vld [vmem:[%s9028 + $0xc8] sm:$0xff]
      %v9055 = vld [vmem:[%s9028 + $0xd0] sm:$0xff]
      %v9056 = vld [vmem:[%s9028 + $0xd8] sm:$0xff]
      %v9057 = vld [vmem:[%s9028 + $0xe0] sm:$0xff]
      %v9058 = vld [vmem:[%s9028 + $0xe8] sm:$0xff]
      %v9059 = vld [vmem:[%s9028 + $0xf0] sm:$0xff]
      %v9060 = vld [vmem:[%s9028 + $0xf8] sm:$0xff]
      %v9061 = vld [vmem:[%s9028 + $0x100] sm:$0xff]
      %v9062 = vld [vmem:[%s9028 + $0x108] sm:$0xff]
      %v9063 = vld [vmem:[%s9028 + $0x110] sm:$0xff]
      %v9064 = vld [vmem:[%s9028 + $0x118] sm:$0xff]
      %v9065 = vld [vmem:[%s9028 + $0x120] sm:$0xff]
      %v9066 = vld [vmem:[%s9028 + $0x128] sm:$0xff]
      %v9067 = vld [vmem:[%s9028 + $0x130] sm:$0xff]
      %v9068 = vld [vmem:[%s9028 + $0x138] sm:$0xff]
      %v9069 = vld [vmem:[%s9028 + $0x140] sm:$0xff]
      %v9070 = vld [vmem:[%s9028 + $0x148] sm:$0xff]
      %v9071 = vld [vmem:[%s9028 + $0x150] sm:$0xff]
      %v9072 = vld [vmem:[%s9028 + $0x158] sm:$0xff]
      %v9073 = vld [vmem:[%s9028 + $0x160] sm:$0xff]
      %v9074 = vld [vmem:[%s9028 + $0x168] sm:$0xff]
      %v9075 = vld [vmem:[%s9028 + $0x170] sm:$0xff]
      %v9076 = vld [vmem:[%s9028 + $0x178] sm:$0xff]
      %9077 = vmatprep.subr.mxu0 0.0
      %9078 = vmatpush1.msra.mxu0 %v9044
      %9079 = vmatprep.subr.mxu0 0.0
      %9080 = vmatpush1.msra.mxu0 %v9043
      %9081 = vmatprep.subr.mxu0 0.0
      %9082 = vmatpush1.msra.mxu0 %v9042
      %9083 = vmatprep.subr.mxu0 0.0
      %9084 = vmatpush1.msra.mxu0 %v9041
      %9085 = vmatprep.subr.mxu0 0.0
      %9086 = vmatpush1.msra.mxu0 %v9040
      %9087 = vmatprep.subr.mxu0 0.0
      %9088 = vmatpush1.msra.mxu0 %v9039
      %9089 = vmatprep.subr.mxu0 0.0
      %9090 = vmatpush1.msra.mxu0 %v9038
      %9091 = vmatprep.subr.mxu0 0.0
      %9092 = vmatpush1.msra.mxu0 %v9037
      %9093 = vmatprep.subr.mxu0 0.0
      %9094 = vmatpush1.msra.mxu0 %v9036
      %9095 = vmatprep.subr.mxu0 0.0
      %9096 = vmatpush1.msra.mxu0 %v9035
      %9097 = vmatprep.subr.mxu0 0.0
      %9098 = vmatpush1.msra.mxu0 %v9034
      %9099 = vmatprep.subr.mxu0 0.0
      %9100 = vmatpush1.msra.mxu0 %v9033
      %9101 = vmatprep.subr.mxu0 0.0
      %9102 = vmatpush1.msra.mxu0 %v9032
      %9103 = vmatprep.subr.mxu0 0.0
      %9104 = vmatpush1.msra.mxu0 %v9031
      %9105 = vmatprep.subr.mxu0 0.0
      %9106 = vmatpush1.msra.mxu0 %v9030
      %9107 = vmatprep.subr.mxu0 0.0
      %9108 = vmatpush1.msra.mxu0 %v9029
      %9109 = vmatprep.subr.mxu0 0.0
      %9110 = vmatpush2.msra.mxu0 %v9060
      %9111 = vmatprep.subr.mxu0 0.0
      %9112 = vmatpush2.msra.mxu0 %v9059
      %9113 = vmatprep.subr.mxu0 0.0
      %9114 = vmatpush2.msra.mxu0 %v9058
      %9115 = vmatprep.subr.mxu0 0.0
      %9116 = vmatpush2.msra.mxu0 %v9057
      %9117 = vmatprep.subr.mxu0 0.0
      %9118 = vmatpush2.msra.mxu0 %v9056
      %9119 = vmatprep.subr.mxu0 0.0
      %9120 = vmatpush2.msra.mxu0 %v9055
      %9121 = vmatprep.subr.mxu0 0.0
      %9122 = vmatpush2.msra.mxu0 %v9054
      %9123 = vmatprep.subr.mxu0 0.0
      %9124 = vmatpush2.msra.mxu0 %v9053
      %9125 = vmatprep.subr.mxu0 0.0
      %9126 = vmatpush2.msra.mxu0 %v9052
      %9127 = vmatprep.subr.mxu0 0.0
      %9128 = vmatpush2.msra.mxu0 %v9051
      %9129 = vmatprep.subr.mxu0 0.0
      %9130 = vmatpush2.msra.mxu0 %v9050
      %9131 = vmatprep.subr.mxu0 0.0
      %9132 = vmatpush2.msra.mxu0 %v9049
      %9133 = vmatprep.subr.mxu0 0.0
      %9134 = vmatpush2.msra.mxu0 %v9048
      %9135 = vmatprep.subr.mxu0 0.0
      %9136 = vmatpush2.msra.mxu0 %v9047
      %9137 = vmatprep.subr.mxu0 0.0
      %9138 = vmatpush2.msra.mxu0 %v9046
      %9139 = vmatprep.subr.mxu0 0.0
      %9140 = vmatpush2.msra.mxu0 %v9045
      %9141 = vmatprep.mubr.f32.mxu0 %v7687
      %9142 = vmatmul.mubr.f32.gmra.mxu0 %v7686
      %v9143 = vpop.f32.mrf.mxu0
      %v9144 = vadd.f32 0.0, %v9143
      %v9145 = vpop.f32.mrf.mxu0
      %9146 = vdwg.mxu0
      %9147 = vmatprep.subr.mxu0 0.0
      %9148 = vmatpush1.msra.mxu0 %v9076
      %9149 = vmatprep.subr.mxu0 0.0
      %9150 = vmatpush1.msra.mxu0 %v9075
      %9151 = vmatprep.subr.mxu0 0.0
      %9152 = vmatpush1.msra.mxu0 %v9074
      %9153 = vmatprep.subr.mxu0 0.0
      %9154 = vmatpush1.msra.mxu0 %v9073
      %9155 = vmatprep.subr.mxu0 0.0
      %9156 = vmatpush1.msra.mxu0 %v9072
      %9157 = vmatprep.subr.mxu0 0.0
      %9158 = vmatpush1.msra.mxu0 %v9071
      %9159 = vmatprep.subr.mxu0 0.0
      %9160 = vmatpush1.msra.mxu0 %v9070
      %9161 = vmatprep.subr.mxu0 0.0
      %9162 = vmatpush1.msra.mxu0 %v9069
      %9163 = vmatprep.subr.mxu0 0.0
      %9164 = vmatpush1.msra.mxu0 %v9068
      %9165 = vmatprep.subr.mxu0 0.0
      %9166 = vmatpush1.msra.mxu0 %v9067
      %9167 = vmatprep.subr.mxu0 0.0
      %9168 = vmatpush1.msra.mxu0 %v9066
      %9169 = vmatprep.subr.mxu0 0.0
      %9170 = vmatpush1.msra.mxu0 %v9065
      %9171 = vmatprep.subr.mxu0 0.0
      %9172 = vmatpush1.msra.mxu0 %v9064
      %9173 = vmatprep.subr.mxu0 0.0
      %9174 = vmatpush1.msra.mxu0 %v9063
      %9175 = vmatprep.subr.mxu0 0.0
      %9176 = vmatpush1.msra.mxu0 %v9062
      %9177 = vmatprep.subr.mxu0 0.0
      %9178 = vmatpush1.msra.mxu0 %v9061
      %9179 = vmatprep.subr.mxu0 0.0
      %9180 = vmatpush2.msra.mxu0 0.0
      %9181 = vmatprep.subr.mxu0 0.0
      %9182 = vmatpush2.msra.mxu0 0.0
      %9183 = vmatprep.subr.mxu0 0.0
      %9184 = vmatpush2.msra.mxu0 0.0
      %9185 = vmatprep.subr.mxu0 0.0
      %9186 = vmatpush2.msra.mxu0 0.0
      %9187 = vmatprep.subr.mxu0 0.0
      %9188 = vmatpush2.msra.mxu0 0.0
      %9189 = vmatprep.subr.mxu0 0.0
      %9190 = vmatpush2.msra.mxu0 0.0
      %9191 = vmatprep.subr.mxu0 0.0
      %9192 = vmatpush2.msra.mxu0 0.0
      %9193 = vmatprep.subr.mxu0 0.0
      %9194 = vmatpush2.msra.mxu0 0.0
      %9195 = vmatprep.subr.mxu0 0.0
      %9196 = vmatpush2.msra.mxu0 0.0
      %9197 = vmatprep.subr.mxu0 0.0
      %9198 = vmatpush2.msra.mxu0 0.0
      %9199 = vmatprep.subr.mxu0 0.0
      %9200 = vmatpush2.msra.mxu0 0.0
      %9201 = vmatprep.subr.mxu0 0.0
      %9202 = vmatpush2.msra.mxu0 0.0
      %9203 = vmatprep.subr.mxu0 0.0
      %9204 = vmatpush2.msra.mxu0 0.0
      %9205 = vmatprep.subr.mxu0 0.0
      %9206 = vmatpush2.msra.mxu0 0.0
      %9207 = vmatprep.subr.mxu0 0.0
      %9208 = vmatpush2.msra.mxu0 0.0
      %9209 = vmatprep.subr.mxu0 0.0
      %9210 = vmatpush2.msra.mxu0 0.0
      %9211 = vmatprep.mubr.f32.mxu0 0.0
      %9212 = vmatmul.mubr.f32.gmra.mxu0 %v7688
      %v9213 = vpop.f32.mrf.mxu0
      %v9214 = vadd.f32 %v9144, %v9213
      %v9215 = vpop.f32.mrf.mxu0
      %9216 = vdwg.mxu0
      %v9217 = vadd.f32 %v9027, %v9214
      %s9218 = scalar_lea.vmem %s471, 3072
      %v9219 = vld [vmem:[%s9218] sm:$0xff]
      %v9220 = vld [vmem:[%s9218 + $0x8] sm:$0xff]
      %v9221 = vld [vmem:[%s9218 + $0x10] sm:$0xff]
      %v9222 = vld [vmem:[%s9218 + $0x18] sm:$0xff]
      %v9223 = vld [vmem:[%s9218 + $0x20] sm:$0xff]
      %v9224 = vld [vmem:[%s9218 + $0x28] sm:$0xff]
      %v9225 = vld [vmem:[%s9218 + $0x30] sm:$0xff]
      %v9226 = vld [vmem:[%s9218 + $0x38] sm:$0xff]
      %v9227 = vld [vmem:[%s9218 + $0x40] sm:$0xff]
      %v9228 = vld [vmem:[%s9218 + $0x48] sm:$0xff]
      %v9229 = vld [vmem:[%s9218 + $0x50] sm:$0xff]
      %v9230 = vld [vmem:[%s9218 + $0x58] sm:$0xff]
      %v9231 = vld [vmem:[%s9218 + $0x60] sm:$0xff]
      %v9232 = vld [vmem:[%s9218 + $0x68] sm:$0xff]
      %v9233 = vld [vmem:[%s9218 + $0x70] sm:$0xff]
      %v9234 = vld [vmem:[%s9218 + $0x78] sm:$0xff]
      %v9235 = vld [vmem:[%s9218 + $0x80] sm:$0xff]
      %v9236 = vld [vmem:[%s9218 + $0x88] sm:$0xff]
      %v9237 = vld [vmem:[%s9218 + $0x90] sm:$0xff]
      %v9238 = vld [vmem:[%s9218 + $0x98] sm:$0xff]
      %v9239 = vld [vmem:[%s9218 + $0xa0] sm:$0xff]
      %v9240 = vld [vmem:[%s9218 + $0xa8] sm:$0xff]
      %v9241 = vld [vmem:[%s9218 + $0xb0] sm:$0xff]
      %v9242 = vld [vmem:[%s9218 + $0xb8] sm:$0xff]
      %v9243 = vld [vmem:[%s9218 + $0xc0] sm:$0xff]
      %v9244 = vld [vmem:[%s9218 + $0xc8] sm:$0xff]
      %v9245 = vld [vmem:[%s9218 + $0xd0] sm:$0xff]
      %v9246 = vld [vmem:[%s9218 + $0xd8] sm:$0xff]
      %v9247 = vld [vmem:[%s9218 + $0xe0] sm:$0xff]
      %v9248 = vld [vmem:[%s9218 + $0xe8] sm:$0xff]
      %v9249 = vld [vmem:[%s9218 + $0xf0] sm:$0xff]
      %v9250 = vld [vmem:[%s9218 + $0xf8] sm:$0xff]
      %v9251 = vld [vmem:[%s9218 + $0x100] sm:$0xff]
      %v9252 = vld [vmem:[%s9218 + $0x108] sm:$0xff]
      %v9253 = vld [vmem:[%s9218 + $0x110] sm:$0xff]
      %v9254 = vld [vmem:[%s9218 + $0x118] sm:$0xff]
      %v9255 = vld [vmem:[%s9218 + $0x120] sm:$0xff]
      %v9256 = vld [vmem:[%s9218 + $0x128] sm:$0xff]
      %v9257 = vld [vmem:[%s9218 + $0x130] sm:$0xff]
      %v9258 = vld [vmem:[%s9218 + $0x138] sm:$0xff]
      %v9259 = vld [vmem:[%s9218 + $0x140] sm:$0xff]
      %v9260 = vld [vmem:[%s9218 + $0x148] sm:$0xff]
      %v9261 = vld [vmem:[%s9218 + $0x150] sm:$0xff]
      %v9262 = vld [vmem:[%s9218 + $0x158] sm:$0xff]
      %v9263 = vld [vmem:[%s9218 + $0x160] sm:$0xff]
      %v9264 = vld [vmem:[%s9218 + $0x168] sm:$0xff]
      %v9265 = vld [vmem:[%s9218 + $0x170] sm:$0xff]
      %v9266 = vld [vmem:[%s9218 + $0x178] sm:$0xff]
      %9267 = vmatprep.subr.mxu0 0.0
      %9268 = vmatpush1.msra.mxu0 %v9234
      %9269 = vmatprep.subr.mxu0 0.0
      %9270 = vmatpush1.msra.mxu0 %v9233
      %9271 = vmatprep.subr.mxu0 0.0
      %9272 = vmatpush1.msra.mxu0 %v9232
      %9273 = vmatprep.subr.mxu0 0.0
      %9274 = vmatpush1.msra.mxu0 %v9231
      %9275 = vmatprep.subr.mxu0 0.0
      %9276 = vmatpush1.msra.mxu0 %v9230
      %9277 = vmatprep.subr.mxu0 0.0
      %9278 = vmatpush1.msra.mxu0 %v9229
      %9279 = vmatprep.subr.mxu0 0.0
      %9280 = vmatpush1.msra.mxu0 %v9228
      %9281 = vmatprep.subr.mxu0 0.0
      %9282 = vmatpush1.msra.mxu0 %v9227
      %9283 = vmatprep.subr.mxu0 0.0
      %9284 = vmatpush1.msra.mxu0 %v9226
      %9285 = vmatprep.subr.mxu0 0.0
      %9286 = vmatpush1.msra.mxu0 %v9225
      %9287 = vmatprep.subr.mxu0 0.0
      %9288 = vmatpush1.msra.mxu0 %v9224
      %9289 = vmatprep.subr.mxu0 0.0
      %9290 = vmatpush1.msra.mxu0 %v9223
      %9291 = vmatprep.subr.mxu0 0.0
      %9292 = vmatpush1.msra.mxu0 %v9222
      %9293 = vmatprep.subr.mxu0 0.0
      %9294 = vmatpush1.msra.mxu0 %v9221
      %9295 = vmatprep.subr.mxu0 0.0
      %9296 = vmatpush1.msra.mxu0 %v9220
      %9297 = vmatprep.subr.mxu0 0.0
      %9298 = vmatpush1.msra.mxu0 %v9219
      %9299 = vmatprep.subr.mxu0 0.0
      %9300 = vmatpush2.msra.mxu0 %v9250
      %9301 = vmatprep.subr.mxu0 0.0
      %9302 = vmatpush2.msra.mxu0 %v9249
      %9303 = vmatprep.subr.mxu0 0.0
      %9304 = vmatpush2.msra.mxu0 %v9248
      %9305 = vmatprep.subr.mxu0 0.0
      %9306 = vmatpush2.msra.mxu0 %v9247
      %9307 = vmatprep.subr.mxu0 0.0
      %9308 = vmatpush2.msra.mxu0 %v9246
      %9309 = vmatprep.subr.mxu0 0.0
      %9310 = vmatpush2.msra.mxu0 %v9245
      %9311 = vmatprep.subr.mxu0 0.0
      %9312 = vmatpush2.msra.mxu0 %v9244
      %9313 = vmatprep.subr.mxu0 0.0
      %9314 = vmatpush2.msra.mxu0 %v9243
      %9315 = vmatprep.subr.mxu0 0.0
      %9316 = vmatpush2.msra.mxu0 %v9242
      %9317 = vmatprep.subr.mxu0 0.0
      %9318 = vmatpush2.msra.mxu0 %v9241
      %9319 = vmatprep.subr.mxu0 0.0
      %9320 = vmatpush2.msra.mxu0 %v9240
      %9321 = vmatprep.subr.mxu0 0.0
      %9322 = vmatpush2.msra.mxu0 %v9239
      %9323 = vmatprep.subr.mxu0 0.0
      %9324 = vmatpush2.msra.mxu0 %v9238
      %9325 = vmatprep.subr.mxu0 0.0
      %9326 = vmatpush2.msra.mxu0 %v9237
      %9327 = vmatprep.subr.mxu0 0.0
      %9328 = vmatpush2.msra.mxu0 %v9236
      %9329 = vmatprep.subr.mxu0 0.0
      %9330 = vmatpush2.msra.mxu0 %v9235
      %9331 = vmatprep.mubr.f32.mxu0 %v7690
      %9332 = vmatmul.mubr.f32.gmra.mxu0 %v7689
      %v9333 = vpop.f32.mrf.mxu0
      %v9334 = vadd.f32 0.0, %v9333
      %v9335 = vpop.f32.mrf.mxu0
      %9336 = vdwg.mxu0
      %9337 = vmatprep.subr.mxu0 0.0
      %9338 = vmatpush1.msra.mxu0 %v9266
      %9339 = vmatprep.subr.mxu0 0.0
      %9340 = vmatpush1.msra.mxu0 %v9265
      %9341 = vmatprep.subr.mxu0 0.0
      %9342 = vmatpush1.msra.mxu0 %v9264
      %9343 = vmatprep.subr.mxu0 0.0
      %9344 = vmatpush1.msra.mxu0 %v9263
      %9345 = vmatprep.subr.mxu0 0.0
      %9346 = vmatpush1.msra.mxu0 %v9262
      %9347 = vmatprep.subr.mxu0 0.0
      %9348 = vmatpush1.msra.mxu0 %v9261
      %9349 = vmatprep.subr.mxu0 0.0
      %9350 = vmatpush1.msra.mxu0 %v9260
      %9351 = vmatprep.subr.mxu0 0.0
      %9352 = vmatpush1.msra.mxu0 %v9259
      %9353 = vmatprep.subr.mxu0 0.0
      %9354 = vmatpush1.msra.mxu0 %v9258
      %9355 = vmatprep.subr.mxu0 0.0
      %9356 = vmatpush1.msra.mxu0 %v9257
      %9357 = vmatprep.subr.mxu0 0.0
      %9358 = vmatpush1.msra.mxu0 %v9256
      %9359 = vmatprep.subr.mxu0 0.0
      %9360 = vmatpush1.msra.mxu0 %v9255
      %9361 = vmatprep.subr.mxu0 0.0
      %9362 = vmatpush1.msra.mxu0 %v9254
      %9363 = vmatprep.subr.mxu0 0.0
      %9364 = vmatpush1.msra.mxu0 %v9253
      %9365 = vmatprep.subr.mxu0 0.0
      %9366 = vmatpush1.msra.mxu0 %v9252
      %9367 = vmatprep.subr.mxu0 0.0
      %9368 = vmatpush1.msra.mxu0 %v9251
      %9369 = vmatprep.subr.mxu0 0.0
      %9370 = vmatpush2.msra.mxu0 0.0
      %9371 = vmatprep.subr.mxu0 0.0
      %9372 = vmatpush2.msra.mxu0 0.0
      %9373 = vmatprep.subr.mxu0 0.0
      %9374 = vmatpush2.msra.mxu0 0.0
      %9375 = vmatprep.subr.mxu0 0.0
      %9376 = vmatpush2.msra.mxu0 0.0
      %9377 = vmatprep.subr.mxu0 0.0
      %9378 = vmatpush2.msra.mxu0 0.0
      %9379 = vmatprep.subr.mxu0 0.0
      %9380 = vmatpush2.msra.mxu0 0.0
      %9381 = vmatprep.subr.mxu0 0.0
      %9382 = vmatpush2.msra.mxu0 0.0
      %9383 = vmatprep.subr.mxu0 0.0
      %9384 = vmatpush2.msra.mxu0 0.0
      %9385 = vmatprep.subr.mxu0 0.0
      %9386 = vmatpush2.msra.mxu0 0.0
      %9387 = vmatprep.subr.mxu0 0.0
      %9388 = vmatpush2.msra.mxu0 0.0
      %9389 = vmatprep.subr.mxu0 0.0
      %9390 = vmatpush2.msra.mxu0 0.0
      %9391 = vmatprep.subr.mxu0 0.0
      %9392 = vmatpush2.msra.mxu0 0.0
      %9393 = vmatprep.subr.mxu0 0.0
      %9394 = vmatpush2.msra.mxu0 0.0
      %9395 = vmatprep.subr.mxu0 0.0
      %9396 = vmatpush2.msra.mxu0 0.0
      %9397 = vmatprep.subr.mxu0 0.0
      %9398 = vmatpush2.msra.mxu0 0.0
      %9399 = vmatprep.subr.mxu0 0.0
      %9400 = vmatpush2.msra.mxu0 0.0
      %9401 = vmatprep.mubr.f32.mxu0 0.0
      %9402 = vmatmul.mubr.f32.gmra.mxu0 %v7691
      %v9403 = vpop.f32.mrf.mxu0
      %v9404 = vadd.f32 %v9334, %v9403
      %v9405 = vpop.f32.mrf.mxu0
      %9406 = vdwg.mxu0
      %v9407 = vadd.f32 %v9217, %v9404
      %s9408 = scalar_lea.vmem %s471, 3456
      %v9409 = vld [vmem:[%s9408] sm:$0xff]
      %v9410 = vld [vmem:[%s9408 + $0x8] sm:$0xff]
      %v9411 = vld [vmem:[%s9408 + $0x10] sm:$0xff]
      %v9412 = vld [vmem:[%s9408 + $0x18] sm:$0xff]
      %v9413 = vld [vmem:[%s9408 + $0x20] sm:$0xff]
      %v9414 = vld [vmem:[%s9408 + $0x28] sm:$0xff]
      %v9415 = vld [vmem:[%s9408 + $0x30] sm:$0xff]
      %v9416 = vld [vmem:[%s9408 + $0x38] sm:$0xff]
      %v9417 = vld [vmem:[%s9408 + $0x40] sm:$0xff]
      %v9418 = vld [vmem:[%s9408 + $0x48] sm:$0xff]
      %v9419 = vld [vmem:[%s9408 + $0x50] sm:$0xff]
      %v9420 = vld [vmem:[%s9408 + $0x58] sm:$0xff]
      %v9421 = vld [vmem:[%s9408 + $0x60] sm:$0xff]
      %v9422 = vld [vmem:[%s9408 + $0x68] sm:$0xff]
      %v9423 = vld [vmem:[%s9408 + $0x70] sm:$0xff]
      %v9424 = vld [vmem:[%s9408 + $0x78] sm:$0xff]
      %v9425 = vld [vmem:[%s9408 + $0x80] sm:$0xff]
      %v9426 = vld [vmem:[%s9408 + $0x88] sm:$0xff]
      %v9427 = vld [vmem:[%s9408 + $0x90] sm:$0xff]
      %v9428 = vld [vmem:[%s9408 + $0x98] sm:$0xff]
      %v9429 = vld [vmem:[%s9408 + $0xa0] sm:$0xff]
      %v9430 = vld [vmem:[%s9408 + $0xa8] sm:$0xff]
      %v9431 = vld [vmem:[%s9408 + $0xb0] sm:$0xff]
      %v9432 = vld [vmem:[%s9408 + $0xb8] sm:$0xff]
      %v9433 = vld [vmem:[%s9408 + $0xc0] sm:$0xff]
      %v9434 = vld [vmem:[%s9408 + $0xc8] sm:$0xff]
      %v9435 = vld [vmem:[%s9408 + $0xd0] sm:$0xff]
      %v9436 = vld [vmem:[%s9408 + $0xd8] sm:$0xff]
      %v9437 = vld [vmem:[%s9408 + $0xe0] sm:$0xff]
      %v9438 = vld [vmem:[%s9408 + $0xe8] sm:$0xff]
      %v9439 = vld [vmem:[%s9408 + $0xf0] sm:$0xff]
      %v9440 = vld [vmem:[%s9408 + $0xf8] sm:$0xff]
      %v9441 = vld [vmem:[%s9408 + $0x100] sm:$0xff]
      %v9442 = vld [vmem:[%s9408 + $0x108] sm:$0xff]
      %v9443 = vld [vmem:[%s9408 + $0x110] sm:$0xff]
      %v9444 = vld [vmem:[%s9408 + $0x118] sm:$0xff]
      %v9445 = vld [vmem:[%s9408 + $0x120] sm:$0xff]
      %v9446 = vld [vmem:[%s9408 + $0x128] sm:$0xff]
      %v9447 = vld [vmem:[%s9408 + $0x130] sm:$0xff]
      %v9448 = vld [vmem:[%s9408 + $0x138] sm:$0xff]
      %v9449 = vld [vmem:[%s9408 + $0x140] sm:$0xff]
      %v9450 = vld [vmem:[%s9408 + $0x148] sm:$0xff]
      %v9451 = vld [vmem:[%s9408 + $0x150] sm:$0xff]
      %v9452 = vld [vmem:[%s9408 + $0x158] sm:$0xff]
      %v9453 = vld [vmem:[%s9408 + $0x160] sm:$0xff]
      %v9454 = vld [vmem:[%s9408 + $0x168] sm:$0xff]
      %v9455 = vld [vmem:[%s9408 + $0x170] sm:$0xff]
      %v9456 = vld [vmem:[%s9408 + $0x178] sm:$0xff]
      %9457 = vmatprep.subr.mxu0 0.0
      %9458 = vmatpush1.msra.mxu0 %v9424
      %9459 = vmatprep.subr.mxu0 0.0
      %9460 = vmatpush1.msra.mxu0 %v9423
      %9461 = vmatprep.subr.mxu0 0.0
      %9462 = vmatpush1.msra.mxu0 %v9422
      %9463 = vmatprep.subr.mxu0 0.0
      %9464 = vmatpush1.msra.mxu0 %v9421
      %9465 = vmatprep.subr.mxu0 0.0
      %9466 = vmatpush1.msra.mxu0 %v9420
      %9467 = vmatprep.subr.mxu0 0.0
      %9468 = vmatpush1.msra.mxu0 %v9419
      %9469 = vmatprep.subr.mxu0 0.0
      %9470 = vmatpush1.msra.mxu0 %v9418
      %9471 = vmatprep.subr.mxu0 0.0
      %9472 = vmatpush1.msra.mxu0 %v9417
      %9473 = vmatprep.subr.mxu0 0.0
      %9474 = vmatpush1.msra.mxu0 %v9416
      %9475 = vmatprep.subr.mxu0 0.0
      %9476 = vmatpush1.msra.mxu0 %v9415
      %9477 = vmatprep.subr.mxu0 0.0
      %9478 = vmatpush1.msra.mxu0 %v9414
      %9479 = vmatprep.subr.mxu0 0.0
      %9480 = vmatpush1.msra.mxu0 %v9413
      %9481 = vmatprep.subr.mxu0 0.0
      %9482 = vmatpush1.msra.mxu0 %v9412
      %9483 = vmatprep.subr.mxu0 0.0
      %9484 = vmatpush1.msra.mxu0 %v9411
      %9485 = vmatprep.subr.mxu0 0.0
      %9486 = vmatpush1.msra.mxu0 %v9410
      %9487 = vmatprep.subr.mxu0 0.0
      %9488 = vmatpush1.msra.mxu0 %v9409
      %9489 = vmatprep.subr.mxu0 0.0
      %9490 = vmatpush2.msra.mxu0 %v9440
      %9491 = vmatprep.subr.mxu0 0.0
      %9492 = vmatpush2.msra.mxu0 %v9439
      %9493 = vmatprep.subr.mxu0 0.0
      %9494 = vmatpush2.msra.mxu0 %v9438
      %9495 = vmatprep.subr.mxu0 0.0
      %9496 = vmatpush2.msra.mxu0 %v9437
      %9497 = vmatprep.subr.mxu0 0.0
      %9498 = vmatpush2.msra.mxu0 %v9436
      %9499 = vmatprep.subr.mxu0 0.0
      %9500 = vmatpush2.msra.mxu0 %v9435
      %9501 = vmatprep.subr.mxu0 0.0
      %9502 = vmatpush2.msra.mxu0 %v9434
      %9503 = vmatprep.subr.mxu0 0.0
      %9504 = vmatpush2.msra.mxu0 %v9433
      %9505 = vmatprep.subr.mxu0 0.0
      %9506 = vmatpush2.msra.mxu0 %v9432
      %9507 = vmatprep.subr.mxu0 0.0
      %9508 = vmatpush2.msra.mxu0 %v9431
      %9509 = vmatprep.subr.mxu0 0.0
      %9510 = vmatpush2.msra.mxu0 %v9430
      %9511 = vmatprep.subr.mxu0 0.0
      %9512 = vmatpush2.msra.mxu0 %v9429
      %9513 = vmatprep.subr.mxu0 0.0
      %9514 = vmatpush2.msra.mxu0 %v9428
      %9515 = vmatprep.subr.mxu0 0.0
      %9516 = vmatpush2.msra.mxu0 %v9427
      %9517 = vmatprep.subr.mxu0 0.0
      %9518 = vmatpush2.msra.mxu0 %v9426
      %9519 = vmatprep.subr.mxu0 0.0
      %9520 = vmatpush2.msra.mxu0 %v9425
      %9521 = vmatprep.mubr.f32.mxu0 %v7693
      %9522 = vmatmul.mubr.f32.gmra.mxu0 %v7692
      %v9523 = vpop.f32.mrf.mxu0
      %v9524 = vadd.f32 0.0, %v9523
      %v9525 = vpop.f32.mrf.mxu0
      %9526 = vdwg.mxu0
      %9527 = vmatprep.subr.mxu0 0.0
      %9528 = vmatpush1.msra.mxu0 %v9456
      %9529 = vmatprep.subr.mxu0 0.0
      %9530 = vmatpush1.msra.mxu0 %v9455
      %9531 = vmatprep.subr.mxu0 0.0
      %9532 = vmatpush1.msra.mxu0 %v9454
      %9533 = vmatprep.subr.mxu0 0.0
      %9534 = vmatpush1.msra.mxu0 %v9453
      %9535 = vmatprep.subr.mxu0 0.0
      %9536 = vmatpush1.msra.mxu0 %v9452
      %9537 = vmatprep.subr.mxu0 0.0
      %9538 = vmatpush1.msra.mxu0 %v9451
      %9539 = vmatprep.subr.mxu0 0.0
      %9540 = vmatpush1.msra.mxu0 %v9450
      %9541 = vmatprep.subr.mxu0 0.0
      %9542 = vmatpush1.msra.mxu0 %v9449
      %9543 = vmatprep.subr.mxu0 0.0
      %9544 = vmatpush1.msra.mxu0 %v9448
      %9545 = vmatprep.subr.mxu0 0.0
      %9546 = vmatpush1.msra.mxu0 %v9447
      %9547 = vmatprep.subr.mxu0 0.0
      %9548 = vmatpush1.msra.mxu0 %v9446
      %9549 = vmatprep.subr.mxu0 0.0
      %9550 = vmatpush1.msra.mxu0 %v9445
      %9551 = vmatprep.subr.mxu0 0.0
      %9552 = vmatpush1.msra.mxu0 %v9444
      %9553 = vmatprep.subr.mxu0 0.0
      %9554 = vmatpush1.msra.mxu0 %v9443
      %9555 = vmatprep.subr.mxu0 0.0
      %9556 = vmatpush1.msra.mxu0 %v9442
      %9557 = vmatprep.subr.mxu0 0.0
      %9558 = vmatpush1.msra.mxu0 %v9441
      %9559 = vmatprep.subr.mxu0 0.0
      %9560 = vmatpush2.msra.mxu0 0.0
      %9561 = vmatprep.subr.mxu0 0.0
      %9562 = vmatpush2.msra.mxu0 0.0
      %9563 = vmatprep.subr.mxu0 0.0
      %9564 = vmatpush2.msra.mxu0 0.0
      %9565 = vmatprep.subr.mxu0 0.0
      %9566 = vmatpush2.msra.mxu0 0.0
      %9567 = vmatprep.subr.mxu0 0.0
      %9568 = vmatpush2.msra.mxu0 0.0
      %9569 = vmatprep.subr.mxu0 0.0
      %9570 = vmatpush2.msra.mxu0 0.0
      %9571 = vmatprep.subr.mxu0 0.0
      %9572 = vmatpush2.msra.mxu0 0.0
      %9573 = vmatprep.subr.mxu0 0.0
      %9574 = vmatpush2.msra.mxu0 0.0
      %9575 = vmatprep.subr.mxu0 0.0
      %9576 = vmatpush2.msra.mxu0 0.0
      %9577 = vmatprep.subr.mxu0 0.0
      %9578 = vmatpush2.msra.mxu0 0.0
      %9579 = vmatprep.subr.mxu0 0.0
      %9580 = vmatpush2.msra.mxu0 0.0
      %9581 = vmatprep.subr.mxu0 0.0
      %9582 = vmatpush2.msra.mxu0 0.0
      %9583 = vmatprep.subr.mxu0 0.0
      %9584 = vmatpush2.msra.mxu0 0.0
      %9585 = vmatprep.subr.mxu0 0.0
      %9586 = vmatpush2.msra.mxu0 0.0
      %9587 = vmatprep.subr.mxu0 0.0
      %9588 = vmatpush2.msra.mxu0 0.0
      %9589 = vmatprep.subr.mxu0 0.0
      %9590 = vmatpush2.msra.mxu0 0.0
      %9591 = vmatprep.mubr.f32.mxu0 0.0
      %9592 = vmatmul.mubr.f32.gmra.mxu0 %v7694
      %v9593 = vpop.f32.mrf.mxu0
      %v9594 = vadd.f32 %v9524, %v9593
      %v9595 = vpop.f32.mrf.mxu0
      %9596 = vdwg.mxu0
      %v9597 = vadd.f32 %v9407, %v9594
      %s9598 = scalar_lea.vmem %s471, 3840
      %v9599 = vld [vmem:[%s9598] sm:$0xff]
      %v9600 = vld [vmem:[%s9598 + $0x8] sm:$0xff]
      %v9601 = vld [vmem:[%s9598 + $0x10] sm:$0xff]
      %v9602 = vld [vmem:[%s9598 + $0x18] sm:$0xff]
      %v9603 = vld [vmem:[%s9598 + $0x20] sm:$0xff]
      %v9604 = vld [vmem:[%s9598 + $0x28] sm:$0xff]
      %v9605 = vld [vmem:[%s9598 + $0x30] sm:$0xff]
      %v9606 = vld [vmem:[%s9598 + $0x38] sm:$0xff]
      %v9607 = vld [vmem:[%s9598 + $0x40] sm:$0xff]
      %v9608 = vld [vmem:[%s9598 + $0x48] sm:$0xff]
      %v9609 = vld [vmem:[%s9598 + $0x50] sm:$0xff]
      %v9610 = vld [vmem:[%s9598 + $0x58] sm:$0xff]
      %v9611 = vld [vmem:[%s9598 + $0x60] sm:$0xff]
      %v9612 = vld [vmem:[%s9598 + $0x68] sm:$0xff]
      %v9613 = vld [vmem:[%s9598 + $0x70] sm:$0xff]
      %v9614 = vld [vmem:[%s9598 + $0x78] sm:$0xff]
      %v9615 = vld [vmem:[%s9598 + $0x80] sm:$0xff]
      %v9616 = vld [vmem:[%s9598 + $0x88] sm:$0xff]
      %v9617 = vld [vmem:[%s9598 + $0x90] sm:$0xff]
      %v9618 = vld [vmem:[%s9598 + $0x98] sm:$0xff]
      %v9619 = vld [vmem:[%s9598 + $0xa0] sm:$0xff]
      %v9620 = vld [vmem:[%s9598 + $0xa8] sm:$0xff]
      %v9621 = vld [vmem:[%s9598 + $0xb0] sm:$0xff]
      %v9622 = vld [vmem:[%s9598 + $0xb8] sm:$0xff]
      %v9623 = vld [vmem:[%s9598 + $0xc0] sm:$0xff]
      %v9624 = vld [vmem:[%s9598 + $0xc8] sm:$0xff]
      %v9625 = vld [vmem:[%s9598 + $0xd0] sm:$0xff]
      %v9626 = vld [vmem:[%s9598 + $0xd8] sm:$0xff]
      %v9627 = vld [vmem:[%s9598 + $0xe0] sm:$0xff]
      %v9628 = vld [vmem:[%s9598 + $0xe8] sm:$0xff]
      %v9629 = vld [vmem:[%s9598 + $0xf0] sm:$0xff]
      %v9630 = vld [vmem:[%s9598 + $0xf8] sm:$0xff]
      %v9631 = vld [vmem:[%s9598 + $0x100] sm:$0xff]
      %v9632 = vld [vmem:[%s9598 + $0x108] sm:$0xff]
      %v9633 = vld [vmem:[%s9598 + $0x110] sm:$0xff]
      %v9634 = vld [vmem:[%s9598 + $0x118] sm:$0xff]
      %v9635 = vld [vmem:[%s9598 + $0x120] sm:$0xff]
      %v9636 = vld [vmem:[%s9598 + $0x128] sm:$0xff]
      %v9637 = vld [vmem:[%s9598 + $0x130] sm:$0xff]
      %v9638 = vld [vmem:[%s9598 + $0x138] sm:$0xff]
      %v9639 = vld [vmem:[%s9598 + $0x140] sm:$0xff]
      %v9640 = vld [vmem:[%s9598 + $0x148] sm:$0xff]
      %v9641 = vld [vmem:[%s9598 + $0x150] sm:$0xff]
      %v9642 = vld [vmem:[%s9598 + $0x158] sm:$0xff]
      %v9643 = vld [vmem:[%s9598 + $0x160] sm:$0xff]
      %v9644 = vld [vmem:[%s9598 + $0x168] sm:$0xff]
      %v9645 = vld [vmem:[%s9598 + $0x170] sm:$0xff]
      %v9646 = vld [vmem:[%s9598 + $0x178] sm:$0xff]
      %9647 = vmatprep.subr.mxu0 0.0
      %9648 = vmatpush1.msra.mxu0 %v9614
      %9649 = vmatprep.subr.mxu0 0.0
      %9650 = vmatpush1.msra.mxu0 %v9613
      %9651 = vmatprep.subr.mxu0 0.0
      %9652 = vmatpush1.msra.mxu0 %v9612
      %9653 = vmatprep.subr.mxu0 0.0
      %9654 = vmatpush1.msra.mxu0 %v9611
      %9655 = vmatprep.subr.mxu0 0.0
      %9656 = vmatpush1.msra.mxu0 %v9610
      %9657 = vmatprep.subr.mxu0 0.0
      %9658 = vmatpush1.msra.mxu0 %v9609
      %9659 = vmatprep.subr.mxu0 0.0
      %9660 = vmatpush1.msra.mxu0 %v9608
      %9661 = vmatprep.subr.mxu0 0.0
      %9662 = vmatpush1.msra.mxu0 %v9607
      %9663 = vmatprep.subr.mxu0 0.0
      %9664 = vmatpush1.msra.mxu0 %v9606
      %9665 = vmatprep.subr.mxu0 0.0
      %9666 = vmatpush1.msra.mxu0 %v9605
      %9667 = vmatprep.subr.mxu0 0.0
      %9668 = vmatpush1.msra.mxu0 %v9604
      %9669 = vmatprep.subr.mxu0 0.0
      %9670 = vmatpush1.msra.mxu0 %v9603
      %9671 = vmatprep.subr.mxu0 0.0
      %9672 = vmatpush1.msra.mxu0 %v9602
      %9673 = vmatprep.subr.mxu0 0.0
      %9674 = vmatpush1.msra.mxu0 %v9601
      %9675 = vmatprep.subr.mxu0 0.0
      %9676 = vmatpush1.msra.mxu0 %v9600
      %9677 = vmatprep.subr.mxu0 0.0
      %9678 = vmatpush1.msra.mxu0 %v9599
      %9679 = vmatprep.subr.mxu0 0.0
      %9680 = vmatpush2.msra.mxu0 %v9630
      %9681 = vmatprep.subr.mxu0 0.0
      %9682 = vmatpush2.msra.mxu0 %v9629
      %9683 = vmatprep.subr.mxu0 0.0
      %9684 = vmatpush2.msra.mxu0 %v9628
      %9685 = vmatprep.subr.mxu0 0.0
      %9686 = vmatpush2.msra.mxu0 %v9627
      %9687 = vmatprep.subr.mxu0 0.0
      %9688 = vmatpush2.msra.mxu0 %v9626
      %9689 = vmatprep.subr.mxu0 0.0
      %9690 = vmatpush2.msra.mxu0 %v9625
      %9691 = vmatprep.subr.mxu0 0.0
      %9692 = vmatpush2.msra.mxu0 %v9624
      %9693 = vmatprep.subr.mxu0 0.0
      %9694 = vmatpush2.msra.mxu0 %v9623
      %9695 = vmatprep.subr.mxu0 0.0
      %9696 = vmatpush2.msra.mxu0 %v9622
      %9697 = vmatprep.subr.mxu0 0.0
      %9698 = vmatpush2.msra.mxu0 %v9621
      %9699 = vmatprep.subr.mxu0 0.0
      %9700 = vmatpush2.msra.mxu0 %v9620
      %9701 = vmatprep.subr.mxu0 0.0
      %9702 = vmatpush2.msra.mxu0 %v9619
      %9703 = vmatprep.subr.mxu0 0.0
      %9704 = vmatpush2.msra.mxu0 %v9618
      %9705 = vmatprep.subr.mxu0 0.0
      %9706 = vmatpush2.msra.mxu0 %v9617
      %9707 = vmatprep.subr.mxu0 0.0
      %9708 = vmatpush2.msra.mxu0 %v9616
      %9709 = vmatprep.subr.mxu0 0.0
      %9710 = vmatpush2.msra.mxu0 %v9615
      %9711 = vmatprep.mubr.f32.mxu0 %v7696
      %9712 = vmatmul.mubr.f32.gmra.mxu0 %v7695
      %v9713 = vpop.f32.mrf.mxu0
      %v9714 = vadd.f32 0.0, %v9713
      %v9715 = vpop.f32.mrf.mxu0
      %9716 = vdwg.mxu0
      %9717 = vmatprep.subr.mxu0 0.0
      %9718 = vmatpush1.msra.mxu0 %v9646
      %9719 = vmatprep.subr.mxu0 0.0
      %9720 = vmatpush1.msra.mxu0 %v9645
      %9721 = vmatprep.subr.mxu0 0.0
      %9722 = vmatpush1.msra.mxu0 %v9644
      %9723 = vmatprep.subr.mxu0 0.0
      %9724 = vmatpush1.msra.mxu0 %v9643
      %9725 = vmatprep.subr.mxu0 0.0
      %9726 = vmatpush1.msra.mxu0 %v9642
      %9727 = vmatprep.subr.mxu0 0.0
      %9728 = vmatpush1.msra.mxu0 %v9641
      %9729 = vmatprep.subr.mxu0 0.0
      %9730 = vmatpush1.msra.mxu0 %v9640
      %9731 = vmatprep.subr.mxu0 0.0
      %9732 = vmatpush1.msra.mxu0 %v9639
      %9733 = vmatprep.subr.mxu0 0.0
      %9734 = vmatpush1.msra.mxu0 %v9638
      %9735 = vmatprep.subr.mxu0 0.0
      %9736 = vmatpush1.msra.mxu0 %v9637
      %9737 = vmatprep.subr.mxu0 0.0
      %9738 = vmatpush1.msra.mxu0 %v9636
      %9739 = vmatprep.subr.mxu0 0.0
      %9740 = vmatpush1.msra.mxu0 %v9635
      %9741 = vmatprep.subr.mxu0 0.0
      %9742 = vmatpush1.msra.mxu0 %v9634
      %9743 = vmatprep.subr.mxu0 0.0
      %9744 = vmatpush1.msra.mxu0 %v9633
      %9745 = vmatprep.subr.mxu0 0.0
      %9746 = vmatpush1.msra.mxu0 %v9632
      %9747 = vmatprep.subr.mxu0 0.0
      %9748 = vmatpush1.msra.mxu0 %v9631
      %9749 = vmatprep.subr.mxu0 0.0
      %9750 = vmatpush2.msra.mxu0 0.0
      %9751 = vmatprep.subr.mxu0 0.0
      %9752 = vmatpush2.msra.mxu0 0.0
      %9753 = vmatprep.subr.mxu0 0.0
      %9754 = vmatpush2.msra.mxu0 0.0
      %9755 = vmatprep.subr.mxu0 0.0
      %9756 = vmatpush2.msra.mxu0 0.0
      %9757 = vmatprep.subr.mxu0 0.0
      %9758 = vmatpush2.msra.mxu0 0.0
      %9759 = vmatprep.subr.mxu0 0.0
      %9760 = vmatpush2.msra.mxu0 0.0
      %9761 = vmatprep.subr.mxu0 0.0
      %9762 = vmatpush2.msra.mxu0 0.0
      %9763 = vmatprep.subr.mxu0 0.0
      %9764 = vmatpush2.msra.mxu0 0.0
      %9765 = vmatprep.subr.mxu0 0.0
      %9766 = vmatpush2.msra.mxu0 0.0
      %9767 = vmatprep.subr.mxu0 0.0
      %9768 = vmatpush2.msra.mxu0 0.0
      %9769 = vmatprep.subr.mxu0 0.0
      %9770 = vmatpush2.msra.mxu0 0.0
      %9771 = vmatprep.subr.mxu0 0.0
      %9772 = vmatpush2.msra.mxu0 0.0
      %9773 = vmatprep.subr.mxu0 0.0
      %9774 = vmatpush2.msra.mxu0 0.0
      %9775 = vmatprep.subr.mxu0 0.0
      %9776 = vmatpush2.msra.mxu0 0.0
      %9777 = vmatprep.subr.mxu0 0.0
      %9778 = vmatpush2.msra.mxu0 0.0
      %9779 = vmatprep.subr.mxu0 0.0
      %9780 = vmatpush2.msra.mxu0 0.0
      %9781 = vmatprep.mubr.f32.mxu0 0.0
      %9782 = vmatmul.mubr.f32.gmra.mxu0 %v7697
      %v9783 = vpop.f32.mrf.mxu0
      %v9784 = vadd.f32 %v9714, %v9783
      %v9785 = vpop.f32.mrf.mxu0
      %9786 = vdwg.mxu0
      %v9787 = vadd.f32 %v9597, %v9784
      %s9788 = scalar_lea.vmem %s471, 4224
      %v9789 = vld [vmem:[%s9788] sm:$0xff]
      %v9790 = vld [vmem:[%s9788 + $0x8] sm:$0xff]
      %v9791 = vld [vmem:[%s9788 + $0x10] sm:$0xff]
      %v9792 = vld [vmem:[%s9788 + $0x18] sm:$0xff]
      %v9793 = vld [vmem:[%s9788 + $0x20] sm:$0xff]
      %v9794 = vld [vmem:[%s9788 + $0x28] sm:$0xff]
      %v9795 = vld [vmem:[%s9788 + $0x30] sm:$0xff]
      %v9796 = vld [vmem:[%s9788 + $0x38] sm:$0xff]
      %v9797 = vld [vmem:[%s9788 + $0x40] sm:$0xff]
      %v9798 = vld [vmem:[%s9788 + $0x48] sm:$0xff]
      %v9799 = vld [vmem:[%s9788 + $0x50] sm:$0xff]
      %v9800 = vld [vmem:[%s9788 + $0x58] sm:$0xff]
      %v9801 = vld [vmem:[%s9788 + $0x60] sm:$0xff]
      %v9802 = vld [vmem:[%s9788 + $0x68] sm:$0xff]
      %v9803 = vld [vmem:[%s9788 + $0x70] sm:$0xff]
      %v9804 = vld [vmem:[%s9788 + $0x78] sm:$0xff]
      %v9805 = vld [vmem:[%s9788 + $0x80] sm:$0xff]
      %v9806 = vld [vmem:[%s9788 + $0x88] sm:$0xff]
      %v9807 = vld [vmem:[%s9788 + $0x90] sm:$0xff]
      %v9808 = vld [vmem:[%s9788 + $0x98] sm:$0xff]
      %v9809 = vld [vmem:[%s9788 + $0xa0] sm:$0xff]
      %v9810 = vld [vmem:[%s9788 + $0xa8] sm:$0xff]
      %v9811 = vld [vmem:[%s9788 + $0xb0] sm:$0xff]
      %v9812 = vld [vmem:[%s9788 + $0xb8] sm:$0xff]
      %v9813 = vld [vmem:[%s9788 + $0xc0] sm:$0xff]
      %v9814 = vld [vmem:[%s9788 + $0xc8] sm:$0xff]
      %v9815 = vld [vmem:[%s9788 + $0xd0] sm:$0xff]
      %v9816 = vld [vmem:[%s9788 + $0xd8] sm:$0xff]
      %v9817 = vld [vmem:[%s9788 + $0xe0] sm:$0xff]
      %v9818 = vld [vmem:[%s9788 + $0xe8] sm:$0xff]
      %v9819 = vld [vmem:[%s9788 + $0xf0] sm:$0xff]
      %v9820 = vld [vmem:[%s9788 + $0xf8] sm:$0xff]
      %v9821 = vld [vmem:[%s9788 + $0x100] sm:$0xff]
      %v9822 = vld [vmem:[%s9788 + $0x108] sm:$0xff]
      %v9823 = vld [vmem:[%s9788 + $0x110] sm:$0xff]
      %v9824 = vld [vmem:[%s9788 + $0x118] sm:$0xff]
      %v9825 = vld [vmem:[%s9788 + $0x120] sm:$0xff]
      %v9826 = vld [vmem:[%s9788 + $0x128] sm:$0xff]
      %v9827 = vld [vmem:[%s9788 + $0x130] sm:$0xff]
      %v9828 = vld [vmem:[%s9788 + $0x138] sm:$0xff]
      %v9829 = vld [vmem:[%s9788 + $0x140] sm:$0xff]
      %v9830 = vld [vmem:[%s9788 + $0x148] sm:$0xff]
      %v9831 = vld [vmem:[%s9788 + $0x150] sm:$0xff]
      %v9832 = vld [vmem:[%s9788 + $0x158] sm:$0xff]
      %v9833 = vld [vmem:[%s9788 + $0x160] sm:$0xff]
      %v9834 = vld [vmem:[%s9788 + $0x168] sm:$0xff]
      %v9835 = vld [vmem:[%s9788 + $0x170] sm:$0xff]
      %v9836 = vld [vmem:[%s9788 + $0x178] sm:$0xff]
      %9837 = vmatprep.subr.mxu0 0.0
      %9838 = vmatpush1.msra.mxu0 %v9804
      %9839 = vmatprep.subr.mxu0 0.0
      %9840 = vmatpush1.msra.mxu0 %v9803
      %9841 = vmatprep.subr.mxu0 0.0
      %9842 = vmatpush1.msra.mxu0 %v9802
      %9843 = vmatprep.subr.mxu0 0.0
      %9844 = vmatpush1.msra.mxu0 %v9801
      %9845 = vmatprep.subr.mxu0 0.0
      %9846 = vmatpush1.msra.mxu0 %v9800
      %9847 = vmatprep.subr.mxu0 0.0
      %9848 = vmatpush1.msra.mxu0 %v9799
      %9849 = vmatprep.subr.mxu0 0.0
      %9850 = vmatpush1.msra.mxu0 %v9798
      %9851 = vmatprep.subr.mxu0 0.0
      %9852 = vmatpush1.msra.mxu0 %v9797
      %9853 = vmatprep.subr.mxu0 0.0
      %9854 = vmatpush1.msra.mxu0 %v9796
      %9855 = vmatprep.subr.mxu0 0.0
      %9856 = vmatpush1.msra.mxu0 %v9795
      %9857 = vmatprep.subr.mxu0 0.0
      %9858 = vmatpush1.msra.mxu0 %v9794
      %9859 = vmatprep.subr.mxu0 0.0
      %9860 = vmatpush1.msra.mxu0 %v9793
      %9861 = vmatprep.subr.mxu0 0.0
      %9862 = vmatpush1.msra.mxu0 %v9792
      %9863 = vmatprep.subr.mxu0 0.0
      %9864 = vmatpush1.msra.mxu0 %v9791
      %9865 = vmatprep.subr.mxu0 0.0
      %9866 = vmatpush1.msra.mxu0 %v9790
      %9867 = vmatprep.subr.mxu0 0.0
      %9868 = vmatpush1.msra.mxu0 %v9789
      %9869 = vmatprep.subr.mxu0 0.0
      %9870 = vmatpush2.msra.mxu0 %v9820
      %9871 = vmatprep.subr.mxu0 0.0
      %9872 = vmatpush2.msra.mxu0 %v9819
      %9873 = vmatprep.subr.mxu0 0.0
      %9874 = vmatpush2.msra.mxu0 %v9818
      %9875 = vmatprep.subr.mxu0 0.0
      %9876 = vmatpush2.msra.mxu0 %v9817
      %9877 = vmatprep.subr.mxu0 0.0
      %9878 = vmatpush2.msra.mxu0 %v9816
      %9879 = vmatprep.subr.mxu0 0.0
      %9880 = vmatpush2.msra.mxu0 %v9815
      %9881 = vmatprep.subr.mxu0 0.0
      %9882 = vmatpush2.msra.mxu0 %v9814
      %9883 = vmatprep.subr.mxu0 0.0
      %9884 = vmatpush2.msra.mxu0 %v9813
      %9885 = vmatprep.subr.mxu0 0.0
      %9886 = vmatpush2.msra.mxu0 %v9812
      %9887 = vmatprep.subr.mxu0 0.0
      %9888 = vmatpush2.msra.mxu0 %v9811
      %9889 = vmatprep.subr.mxu0 0.0
      %9890 = vmatpush2.msra.mxu0 %v9810
      %9891 = vmatprep.subr.mxu0 0.0
      %9892 = vmatpush2.msra.mxu0 %v9809
      %9893 = vmatprep.subr.mxu0 0.0
      %9894 = vmatpush2.msra.mxu0 %v9808
      %9895 = vmatprep.subr.mxu0 0.0
      %9896 = vmatpush2.msra.mxu0 %v9807
      %9897 = vmatprep.subr.mxu0 0.0
      %9898 = vmatpush2.msra.mxu0 %v9806
      %9899 = vmatprep.subr.mxu0 0.0
      %9900 = vmatpush2.msra.mxu0 %v9805
      %9901 = vmatprep.mubr.f32.mxu0 %v7699
      %9902 = vmatmul.mubr.f32.gmra.mxu0 %v7698
      %v9903 = vpop.f32.mrf.mxu0
      %v9904 = vadd.f32 0.0, %v9903
      %v9905 = vpop.f32.mrf.mxu0
      %9906 = vdwg.mxu0
      %9907 = vmatprep.subr.mxu0 0.0
      %9908 = vmatpush1.msra.mxu0 %v9836
      %9909 = vmatprep.subr.mxu0 0.0
      %9910 = vmatpush1.msra.mxu0 %v9835
      %9911 = vmatprep.subr.mxu0 0.0
      %9912 = vmatpush1.msra.mxu0 %v9834
      %9913 = vmatprep.subr.mxu0 0.0
      %9914 = vmatpush1.msra.mxu0 %v9833
      %9915 = vmatprep.subr.mxu0 0.0
      %9916 = vmatpush1.msra.mxu0 %v9832
      %9917 = vmatprep.subr.mxu0 0.0
      %9918 = vmatpush1.msra.mxu0 %v9831
      %9919 = vmatprep.subr.mxu0 0.0
      %9920 = vmatpush1.msra.mxu0 %v9830
      %9921 = vmatprep.subr.mxu0 0.0
      %9922 = vmatpush1.msra.mxu0 %v9829
      %9923 = vmatprep.subr.mxu0 0.0
      %9924 = vmatpush1.msra.mxu0 %v9828
      %9925 = vmatprep.subr.mxu0 0.0
      %9926 = vmatpush1.msra.mxu0 %v9827
      %9927 = vmatprep.subr.mxu0 0.0
      %9928 = vmatpush1.msra.mxu0 %v9826
      %9929 = vmatprep.subr.mxu0 0.0
      %9930 = vmatpush1.msra.mxu0 %v9825
      %9931 = vmatprep.subr.mxu0 0.0
      %9932 = vmatpush1.msra.mxu0 %v9824
      %9933 = vmatprep.subr.mxu0 0.0
      %9934 = vmatpush1.msra.mxu0 %v9823
      %9935 = vmatprep.subr.mxu0 0.0
      %9936 = vmatpush1.msra.mxu0 %v9822
      %9937 = vmatprep.subr.mxu0 0.0
      %9938 = vmatpush1.msra.mxu0 %v9821
      %9939 = vmatprep.subr.mxu0 0.0
      %9940 = vmatpush2.msra.mxu0 0.0
      %9941 = vmatprep.subr.mxu0 0.0
      %9942 = vmatpush2.msra.mxu0 0.0
      %9943 = vmatprep.subr.mxu0 0.0
      %9944 = vmatpush2.msra.mxu0 0.0
      %9945 = vmatprep.subr.mxu0 0.0
      %9946 = vmatpush2.msra.mxu0 0.0
      %9947 = vmatprep.subr.mxu0 0.0
      %9948 = vmatpush2.msra.mxu0 0.0
      %9949 = vmatprep.subr.mxu0 0.0
      %9950 = vmatpush2.msra.mxu0 0.0
      %9951 = vmatprep.subr.mxu0 0.0
      %9952 = vmatpush2.msra.mxu0 0.0
      %9953 = vmatprep.subr.mxu0 0.0
      %9954 = vmatpush2.msra.mxu0 0.0
      %9955 = vmatprep.subr.mxu0 0.0
      %9956 = vmatpush2.msra.mxu0 0.0
      %9957 = vmatprep.subr.mxu0 0.0
      %9958 = vmatpush2.msra.mxu0 0.0
      %9959 = vmatprep.subr.mxu0 0.0
      %9960 = vmatpush2.msra.mxu0 0.0
      %9961 = vmatprep.subr.mxu0 0.0
      %9962 = vmatpush2.msra.mxu0 0.0
      %9963 = vmatprep.subr.mxu0 0.0
      %9964 = vmatpush2.msra.mxu0 0.0
      %9965 = vmatprep.subr.mxu0 0.0
      %9966 = vmatpush2.msra.mxu0 0.0
      %9967 = vmatprep.subr.mxu0 0.0
      %9968 = vmatpush2.msra.mxu0 0.0
      %9969 = vmatprep.subr.mxu0 0.0
      %9970 = vmatpush2.msra.mxu0 0.0
      %9971 = vmatprep.mubr.f32.mxu0 0.0
      %9972 = vmatmul.mubr.f32.gmra.mxu0 %v7700
      %v9973 = vpop.f32.mrf.mxu0
      %v9974 = vadd.f32 %v9904, %v9973
      %v9975 = vpop.f32.mrf.mxu0
      %9976 = vdwg.mxu0
      %v9977 = vadd.f32 %v9787, %v9974
      %v9978 = vld [vmem:[%s474] sm:$0x1]
      %v9980 = vlaneseq
      %v9981 = vshrl.u32 %v9980, 7
      %v9982 = vsub.s32 0, %v9981
      %v9983 = vrot.slane %v9978, %v9982
      %v9985 = vadd.f32 %v9977, %v9983
      %v9986 = vmax.f32 %v9985, 0.0
      %v9987 = vld [vmem:[%s479] sm:$0xff]
      %v9988 = vld [vmem:[%s479 + $0x8] sm:$0xff]
      %v9989 = vld [vmem:[%s479 + $0x10] sm:$0xff]
      %v9990 = vld [vmem:[%s479 + $0x18] sm:$0xff]
      %v9991 = vld [vmem:[%s479 + $0x20] sm:$0xff]
      %v9992 = vld [vmem:[%s479 + $0x28] sm:$0xff]
      %v9993 = vld [vmem:[%s479 + $0x30] sm:$0xff]
      %v9994 = vld [vmem:[%s479 + $0x38] sm:$0xff]
      %v9995 = vld [vmem:[%s479 + $0x40] sm:$0xff]
      %v9996 = vld [vmem:[%s479 + $0x48] sm:$0xff]
      %v9997 = vld [vmem:[%s479 + $0x50] sm:$0xff]
      %v9998 = vld [vmem:[%s479 + $0x58] sm:$0xff]
      %v9999 = vld [vmem:[%s479 + $0x60] sm:$0xff]
      %v10000 = vld [vmem:[%s479 + $0x68] sm:$0xff]
      %v10001 = vld [vmem:[%s479 + $0x70] sm:$0xff]
      %v10002 = vld [vmem:[%s479 + $0x78] sm:$0xff]
      %v10003 = vld [vmem:[%s482] sm:$0x1]
      %v10005 = vlaneseq
      %v10006 = vshrl.u32 %v10005, 7
      %v10007 = vsub.s32 0, %v10006
      %v10008 = vrot.slane %v10003, %v10007
      %10010 = vmatprep.subr.mxu0 0.0
      %10011 = vmatpush1.msra.mxu0 %v10002
      %10012 = vmatprep.subr.mxu0 0.0
      %10013 = vmatpush1.msra.mxu0 %v10001
      %10014 = vmatprep.subr.mxu0 0.0
      %10015 = vmatpush1.msra.mxu0 %v10000
      %10016 = vmatprep.subr.mxu0 0.0
      %10017 = vmatpush1.msra.mxu0 %v9999
      %10018 = vmatprep.subr.mxu0 0.0
      %10019 = vmatpush1.msra.mxu0 %v9998
      %10020 = vmatprep.subr.mxu0 0.0
      %10021 = vmatpush1.msra.mxu0 %v9997
      %10022 = vmatprep.subr.mxu0 0.0
      %10023 = vmatpush1.msra.mxu0 %v9996
      %10024 = vmatprep.subr.mxu0 0.0
      %10025 = vmatpush1.msra.mxu0 %v9995
      %10026 = vmatprep.subr.mxu0 0.0
      %10027 = vmatpush1.msra.mxu0 %v9994
      %10028 = vmatprep.subr.mxu0 0.0
      %10029 = vmatpush1.msra.mxu0 %v9993
      %10030 = vmatprep.subr.mxu0 0.0
      %10031 = vmatpush1.msra.mxu0 %v9992
      %10032 = vmatprep.subr.mxu0 0.0
      %10033 = vmatpush1.msra.mxu0 %v9991
      %10034 = vmatprep.subr.mxu0 0.0
      %10035 = vmatpush1.msra.mxu0 %v9990
      %10036 = vmatprep.subr.mxu0 0.0
      %10037 = vmatpush1.msra.mxu0 %v9989
      %10038 = vmatprep.subr.mxu0 0.0
      %10039 = vmatpush1.msra.mxu0 %v9988
      %10040 = vmatprep.subr.mxu0 0.0
      %10041 = vmatpush1.msra.mxu0 %v9987
      %10042 = vmatprep.subr.mxu0 0.0
      %10043 = vmatpush2.msra.mxu0 0.0
      %10044 = vmatprep.subr.mxu0 0.0
      %10045 = vmatpush2.msra.mxu0 0.0
      %10046 = vmatprep.subr.mxu0 0.0
      %10047 = vmatpush2.msra.mxu0 0.0
      %10048 = vmatprep.subr.mxu0 0.0
      %10049 = vmatpush2.msra.mxu0 0.0
      %10050 = vmatprep.subr.mxu0 0.0
      %10051 = vmatpush2.msra.mxu0 0.0
      %10052 = vmatprep.subr.mxu0 0.0
      %10053 = vmatpush2.msra.mxu0 0.0
      %10054 = vmatprep.subr.mxu0 0.0
      %10055 = vmatpush2.msra.mxu0 0.0
      %10056 = vmatprep.subr.mxu0 0.0
      %10057 = vmatpush2.msra.mxu0 0.0
      %10058 = vmatprep.subr.mxu0 0.0
      %10059 = vmatpush2.msra.mxu0 0.0
      %10060 = vmatprep.subr.mxu0 0.0
      %10061 = vmatpush2.msra.mxu0 0.0
      %10062 = vmatprep.subr.mxu0 0.0
      %10063 = vmatpush2.msra.mxu0 0.0
      %10064 = vmatprep.subr.mxu0 0.0
      %10065 = vmatpush2.msra.mxu0 0.0
      %10066 = vmatprep.subr.mxu0 0.0
      %10067 = vmatpush2.msra.mxu0 0.0
      %10068 = vmatprep.subr.mxu0 0.0
      %10069 = vmatpush2.msra.mxu0 0.0
      %10070 = vmatprep.subr.mxu0 0.0
      %10071 = vmatpush2.msra.mxu0 0.0
      %10072 = vmatprep.subr.mxu0 0.0
      %10073 = vmatpush2.msra.mxu0 0.0
      %10074 = vmatprep.mubr.f32.mxu0 0.0
      %10075 = vmatmul.mubr.f32.gmra.mxu0 %v9986
      %v10076 = vpop.f32.mrf.mxu0
      %v10077 = vadd.f32 %v10008, %v10076
      %v10078 = vpop.f32.mrf.mxu0
      %10079 = vdwg.mxu0
      %vm10080 = vcmask 15360
      %10081 = vst.msk [vmem:[%s489] sm:$0xff] %vm10080, %v10077
      %p10082 = scmp.lt.s32.totalorder %s24, 4
      %s10083 = scalar_select %p10082, %s24, 4
      %p10084 = scmp.lt.s32.totalorder %s25, 0
      %s10085 = scalar_select %p10084, %s25, 0
      %s10086 = sadd.s32 %s10085, %s10083
      %s10087 = smul.addr %s10086, 8
      %s10088 = scalar_lea.vmem %s9, %s10087
      // Predicated region
      $region57: #{semantic_split_net_forward.1} parent=55 // pred_check
        %p10089 = pneg %p286
      $region58: #{semantic_split_net_forward.1} parent=55 // pred_check_branch
        %10091 = sbr.rel (%p10089) target = $region60
      $region59: #{semantic_split_net_forward.1} parent=55 // pred_region
        _
      $region60: #{semantic_split_net_forward.1} parent=55 // pred_fallthru
        _
    $region56: #{semantic_split_net_forward.1} parent=5 // pred_fallthru
      _
    %p10092 = scmp.le.s32.totalorder 2, %s15
    // Predicated region
    $region61: #{semantic_split_net_forward.1} parent=5 // pred_check
      %p10093 = pneg %p10092
    $region62: #{semantic_split_net_forward.1} parent=5 // pred_check_branch
      %10095 = sbr.rel (%p10093) target = $region64
    $region63: #{semantic_split_net_forward.1} parent=5 // pred_region
      %s10096 = ssub.s32 %s15, 2
      // Predicated region
      $region65: #{semantic_split_net_forward.1} parent=63 // pred_check
        %p10097 = pneg %p292
      $region66: #{semantic_split_net_forward.1} parent=63 // pred_check_branch
        %10099 = sbr.rel (%p10097) target = $region68
      $region67: #{semantic_split_net_forward.1} parent=63 // pred_region
        %p10100 = scmp.lt.s32.totalorder %s26, 4
        %s10101 = scalar_select %p10100, %s26, 4
        %p10102 = scmp.lt.s32.totalorder %s27, 0
        %s10103 = scalar_select %p10102, %s27, 0
        %s10104 = sadd.s32 %s10103, %s10101
        %s10105 = smul.addr %s10104, 8
        %s10106 = scalar_lea.vmem %s9, %s10105
      $region68: #{semantic_split_net_forward.1} parent=63 // pred_fallthru
        _
    $region64: #{semantic_split_net_forward.1} parent=5 // pred_fallthru
      _
  $region6: #{semantic_split_net_forward.1} parent=0 // loop_footer
    %s19 = sadd.s32 1, %s15
  $region7: #{semantic_split_net_forward.1} parent=0 // loop_footer_branch
    %14 = sbr.rel target = $region3
  $region8: #{semantic_split_net_forward.1} parent=0 // loop_exit
    _

</llo_original>
